<compile_context>
chip_gen: v6e
topology: v6e:2x2x1
jax: 0.10.0
libtpu: 0.0.40
codegen_flags: <defaults>
</compile_context>

<pallas_src>
import functools
import math

import jax
import jax.numpy as jnp
from jax.experimental import pallas as pl
from jax.experimental.pallas import tpu as pltpu


# ----------------------------------------------------------------------------
# VMEM budget (per-generation: ~96 MiB on v5e/v6e, ~48 MiB on v7x)
# ----------------------------------------------------------------------------
def _default_vmem_limit():
    try:
        phys = pltpu.get_tpu_info().vmem_capacity_bytes
        return int(min(96 * 1024 * 1024, (phys * 3) // 4))
    except Exception:
        return 32 * 1024 * 1024


_VMEM_LIMIT = _default_vmem_limit()


# ----------------------------------------------------------------------------
# In-kernel building blocks
# ----------------------------------------------------------------------------
def _layernorm(h, gamma, beta, eps=1e-5):
    # h is f32; statistics stay f32.
    mean = jnp.mean(h, axis=-1, keepdims=True)
    var = jnp.mean((h - mean) ** 2, axis=-1, keepdims=True)
    return (h - mean) * jax.lax.rsqrt(var + eps) * gamma + beta


def _attend(xq, kh, vh, wq_s, bq_s, wo, bo, num_heads):
    """Attention for a bf16 query tile against precomputed head-split K/V.

    xq: (TQ, D) bf16.  kh, vh: (H, S, d_k) bf16 (computed once per layer by the
    kv_proj kernel).  wq_s/bq_s already carry the 1/sqrt(d_k) scale.
    """
    bf16 = jnp.bfloat16
    TQ, D = xq.shape
    d_k = D // num_heads

    q = jnp.dot(xq, wq_s, preferred_element_type=jnp.float32) + bq_s       # (TQ, D) f32
    qh = q.reshape(TQ, num_heads, d_k).transpose(1, 0, 2)                  # (H, TQ, d_k)

    scores = jnp.einsum("hqd,hkd->hqk", qh.astype(bf16), kh,
                        preferred_element_type=jnp.float32)                # (H, TQ, S)
    scores = scores - jnp.max(scores, axis=-1, keepdims=True)
    # TODO(synk): on v6e/v7x a bf16 exp (bf16 EUP) would ~2x softmax throughput.
    e = jnp.exp(scores)
    denom = jnp.sum(e, axis=-1, keepdims=True)                             # (H, TQ, 1)

    ctx = jnp.einsum("hqk,hkd->hqd", e.astype(bf16), vh,
                     preferred_element_type=jnp.float32)                   # (H, TQ, d_k)
    # Normalize after the PV matmul; approx reciprocal runs on the EUP slot.
    ctx = ctx * pl.reciprocal(denom, approx=True)

    ctx = ctx.transpose(1, 0, 2).reshape(TQ, D)
    return jnp.dot(ctx.astype(bf16), wo, preferred_element_type=jnp.float32) + bo


def _ffn(h, w1, b1, w2, b2):
    bf16 = jnp.bfloat16
    f = jnp.dot(h.astype(bf16), w1, preferred_element_type=jnp.float32) + b1
    f = jnp.maximum(f, 0.0)
    return jnp.dot(f.astype(bf16), w2, preferred_element_type=jnp.float32) + b2


# ----------------------------------------------------------------------------
# Kernels
# ----------------------------------------------------------------------------
def kv_proj_kernel(x_ref, wkv_ref, bkv_ref, k_ref, v_ref, *, num_heads):
    """Fused K|V projection + head split, computed once per (batch, layer)."""
    x = x_ref[0]                                   # (TS, D) bf16
    TS, D = x.shape
    d_k = D // num_heads
    kv = jnp.dot(x, wkv_ref[...], preferred_element_type=jnp.float32) + bkv_ref[...]
    k = kv[:, :D].reshape(TS, num_heads, d_k).transpose(1, 0, 2)
    v = kv[:, D:].reshape(TS, num_heads, d_k).transpose(1, 0, 2)
    k_ref[0] = k.astype(k_ref.dtype)
    v_ref[0] = v.astype(v_ref.dtype)


def encoder_layer_kernel(
    x_ref, kh_ref, vh_ref,
    wq_ref, bq_ref, wo_ref, bo_ref,
    w1_ref, b1_ref, w2_ref, b2_ref,
    g1_ref, be1_ref, g2_ref, be2_ref,
    o_ref, *, num_heads,
):
    # TODO(synk): attention mask not plumbed through (mask=None path only).
    x = x_ref[0]                                   # (TS, D) bf16 tile
    attn = _attend(x, kh_ref[0], vh_ref[0],
                   wq_ref[...], bq_ref[...], wo_ref[...], bo_ref[...], num_heads)
    h1 = _layernorm(x.astype(jnp.float32) + attn, g1_ref[...], be1_ref[...])
    ff = _ffn(h1, w1_ref[...], b1_ref[...], w2_ref[...], b2_ref[...])
    o_ref[0] = _layernorm(h1 + ff, g2_ref[...], be2_ref[...]).astype(o_ref.dtype)


def decoder_layer_kernel(
    x_ref, skh_ref, svh_ref, ckh_ref, cvh_ref,
    swq_ref, sbq_ref, swo_ref, sbo_ref,
    cwq_ref, cbq_ref, cwo_ref, cbo_ref,
    w1_ref, b1_ref, w2_ref, b2_ref,
    g1_ref, be1_ref, g2_ref, be2_ref, g3_ref, be3_ref,
    o_ref, *, num_heads,
):
    # TODO(synk): tgt_mask / memory_mask not plumbed through (None path only).
    x = x_ref[0]                                   # (TT, D) bf16 tile of tgt

    a1 = _attend(x, skh_ref[0], svh_ref[0], swq_ref[...], sbq_ref[...],
                 swo_ref[...], sbo_ref[...], num_heads)
    h1 = _layernorm(x.astype(jnp.float32) + a1, g1_ref[...], be1_ref[...])

    a2 = _attend(h1.astype(jnp.bfloat16), ckh_ref[0], cvh_ref[0],
                 cwq_ref[...], cbq_ref[...], cwo_ref[...], cbo_ref[...], num_heads)
    h2 = _layernorm(h1 + a2, g2_ref[...], be2_ref[...])

    ff = _ffn(h2, w1_ref[...], b1_ref[...], w2_ref[...], b2_ref[...])
    o_ref[0] = _layernorm(h2 + ff, g3_ref[...], be3_ref[...]).astype(o_ref.dtype)


def linear_kernel(x_ref, w_ref, b_ref, o_ref):
    y = jnp.dot(x_ref[0], w_ref[...], preferred_element_type=jnp.float32) + b_ref[...]
    o_ref[0] = y.astype(o_ref.dtype)


# ----------------------------------------------------------------------------
# pallas_call wrappers
# ----------------------------------------------------------------------------
def _const_spec(shape):
    n = len(shape)
    return pl.BlockSpec(shape, lambda *_: (0,) * n)
    # TODO(synk): single-buffer grid-invariant weights (pipeline_mode=pl.Buffered(1))
    # once verified on the target jax build; halves their VMEM footprint.


def _seq_tile(s, max_tile=256):
    if s <= max_tile:
        return s
    for t in range(max_tile, 7, -8):
        if s % t == 0:
            return t
    return s


def kv_heads(x, wkv, bkv, num_heads):
    """Head-split K/V (B, H, S, d_k) bf16, computed once per (batch, layer)."""
    B, S, D = x.shape
    d_k = D // num_heads
    TS = _seq_tile(S)
    grid = (B, S // TS)
    kernel = functools.partial(kv_proj_kernel, num_heads=num_heads)
    out_sds = jax.ShapeDtypeStruct((B, num_heads, S, d_k), jnp.bfloat16)
    return pl.pallas_call(
        kernel,
        out_shape=(out_sds, out_sds),
        grid=grid,
        in_specs=[pl.BlockSpec((1, TS, D), lambda b, s: (b, s, 0)),
                  _const_spec(wkv.shape),
                  _const_spec(bkv.shape)],
        out_specs=(pl.BlockSpec((1, num_heads, TS, d_k), lambda b, s: (b, 0, s, 0)),
                   pl.BlockSpec((1, num_heads, TS, d_k), lambda b, s: (b, 0, s, 0))),
        compiler_params=pltpu.CompilerParams(
            dimension_semantics=("parallel", "parallel"),
            vmem_limit_bytes=_VMEM_LIMIT),
    )(x, wkv, bkv)


def encoder_layer(x, p, num_heads):
    B, S, D = x.shape
    d_k = D // num_heads
    a = p["attn"]

    # K/V hoisted: computed once per (batch, layer), not per query tile.
    kh, vh = kv_heads(x, a["wkv"], a["bkv"], num_heads)

    TS = _seq_tile(S)
    grid = (B, S // TS)
    in_specs = [
        pl.BlockSpec((1, TS, D), lambda b, s: (b, s, 0)),                  # x tile
        pl.BlockSpec((1, num_heads, S, d_k), lambda b, s: (b, 0, 0, 0)),   # K heads
        pl.BlockSpec((1, num_heads, S, d_k), lambda b, s: (b, 0, 0, 0)),   # V heads
    ] + [_const_spec(t.shape) for t in (
        a["wq_s"], a["bq_s"], a["wo"], a["bo"],
        p["w1"], p["b1"], p["w2"], p["b2"],
        p["g1"], p["be1"], p["g2"], p["be2"])]

    kernel = functools.partial(encoder_layer_kernel, num_heads=num_heads)
    return pl.pallas_call(
        kernel,
        out_shape=jax.ShapeDtypeStruct((B, S, D), jnp.bfloat16),
        grid=grid,
        in_specs=in_specs,
        out_specs=pl.BlockSpec((1, TS, D), lambda b, s: (b, s, 0)),
        compiler_params=pltpu.CompilerParams(
            dimension_semantics=("parallel", "parallel"),
            vmem_limit_bytes=_VMEM_LIMIT),
    )(x, kh, vh,
      a["wq_s"], a["bq_s"], a["wo"], a["bo"],
      p["w1"], p["b1"], p["w2"], p["b2"],
      p["g1"], p["be1"], p["g2"], p["be2"])


def decoder_layer(x, enc_out, p, num_heads):
    B, T, D = x.shape
    S = enc_out.shape[1]
    d_k = D // num_heads
    sa, ca = p["self"], p["cross"]

    skh, svh = kv_heads(x, sa["wkv"], sa["bkv"], num_heads)          # self K/V
    ckh, cvh = kv_heads(enc_out, ca["wkv"], ca["bkv"], num_heads)    # cross K/V

    TT = _seq_tile(T)
    grid = (B, T // TT)
    in_specs = [
        pl.BlockSpec((1, TT, D), lambda b, s: (b, s, 0)),                  # tgt tile
        pl.BlockSpec((1, num_heads, T, d_k), lambda b, s: (b, 0, 0, 0)),   # self K
        pl.BlockSpec((1, num_heads, T, d_k), lambda b, s: (b, 0, 0, 0)),   # self V
        pl.BlockSpec((1, num_heads, S, d_k), lambda b, s: (b, 0, 0, 0)),   # cross K
        pl.BlockSpec((1, num_heads, S, d_k), lambda b, s: (b, 0, 0, 0)),   # cross V
    ] + [_const_spec(t.shape) for t in (
        sa["wq_s"], sa["bq_s"], sa["wo"], sa["bo"],
        ca["wq_s"], ca["bq_s"], ca["wo"], ca["bo"],
        p["w1"], p["b1"], p["w2"], p["b2"],
        p["g1"], p["be1"], p["g2"], p["be2"], p["g3"], p["be3"])]

    kernel = functools.partial(decoder_layer_kernel, num_heads=num_heads)
    return pl.pallas_call(
        kernel,
        out_shape=jax.ShapeDtypeStruct((B, T, D), jnp.bfloat16),
        grid=grid,
        in_specs=in_specs,
        out_specs=pl.BlockSpec((1, TT, D), lambda b, s: (b, s, 0)),
        compiler_params=pltpu.CompilerParams(
            dimension_semantics=("parallel", "parallel"),
            vmem_limit_bytes=_VMEM_LIMIT),
    )(x, skh, svh, ckh, cvh,
      sa["wq_s"], sa["bq_s"], sa["wo"], sa["bo"],
      ca["wq_s"], ca["bq_s"], ca["wo"], ca["bo"],
      p["w1"], p["b1"], p["w2"], p["b2"],
      p["g1"], p["be1"], p["g2"], p["be2"], p["g3"], p["be3"])


def output_projection(x, w, b, v_out):
    """Vocab-tiled output projection; w/b are padded to a multiple of 128."""
    B, T, D = x.shape
    Vp = w.shape[1]
    TV = Vp
    for cand in (2048, 1024, 512, 256, 128):
        if Vp % cand == 0:
            TV = cand
            break
    grid = (B, Vp // TV)
    out = pl.pallas_call(
        linear_kernel,
        out_shape=jax.ShapeDtypeStruct((B, T, Vp), jnp.float32),
        grid=grid,
        in_specs=[pl.BlockSpec((1, T, D), lambda b, v: (b, 0, 0)),
                  pl.BlockSpec((D, TV), lambda b, v: (0, v)),
                  pl.BlockSpec((1, TV), lambda b, v: (0, v))],
        out_specs=pl.BlockSpec((1, T, TV), lambda b, v: (b, 0, v)),
        compiler_params=pltpu.CompilerParams(
            dimension_semantics=("parallel", "parallel"),
            vmem_limit_bytes=_VMEM_LIMIT),
    )(x, w, b)
    return out[:, :, :v_out]


# ----------------------------------------------------------------------------
# Full Transformer forward (embedding / PE in plain JAX; layers in Pallas)
# ----------------------------------------------------------------------------
@functools.partial(jax.jit, static_argnames=("num_heads", "tgt_vocab"))
def transformer_forward(src, tgt, params, num_heads, tgt_vocab):
    pe = params["pe"]
    bf16 = jnp.bfloat16
    # TODO(synk): embedding gather + positional-encoding add done in plain JAX.
    x = (jnp.take(params["src_emb"], src, axis=0) + pe[None, : src.shape[1]]).astype(bf16)
    for lp in params["enc_layers"]:
        x = encoder_layer(x, lp, num_heads)
    enc_out = x

    y = (jnp.take(params["tgt_emb"], tgt, axis=0) + pe[None, : tgt.shape[1]]).astype(bf16)
    for lp in params["dec_layers"]:
        y = decoder_layer(y, enc_out, lp, num_heads)

    return output_projection(y, params["w_out"], params["b_out"], tgt_vocab)


# ----------------------------------------------------------------------------
# Parameter construction (PyTorch-style init, weights pre-transposed to (in,out))
# ----------------------------------------------------------------------------
def positional_encoding(max_len, d_model):
    pos = jnp.arange(max_len, dtype=jnp.float32)[:, None]
    div = jnp.exp(jnp.arange(0, d_model, 2, dtype=jnp.float32)
                  * (-math.log(10000.0) / d_model))
    pe = jnp.zeros((max_len, d_model), jnp.float32)
    pe = pe.at[:, 0::2].set(jnp.sin(pos * div))
    pe = pe.at[:, 1::2].set(jnp.cos(pos * div))
    return pe


def _init_linear(key, fan_in, fan_out):
    kw, kb = jax.random.split(key)
    lim = 1.0 / math.sqrt(fan_in)
    w = jax.random.uniform(kw, (fan_in, fan_out), jnp.float32, -lim, lim)
    b = jax.random.uniform(kb, (1, fan_out), jnp.float32, -lim, lim)
    return w, b


def _init_mha(key, d_model, num_heads):
    kq, kk, kv, ko = jax.random.split(key, 4)
    wq, bq = _init_linear(kq, d_model, d_model)
    wk, bk = _init_linear(kk, d_model, d_model)
    wv, bv = _init_linear(kv, d_model, d_model)
    wo, bo = _init_linear(ko, d_model, d_model)
    scale = 1.0 / math.sqrt(d_model // num_heads)
    return {
        # f32 masters (used only by the reference).
        "wq": wq, "bq": bq,
        # Kernel-ready: 1/sqrt(d_k) folded into W_Q / b_Q.
        "wq_s": (wq * scale).astype(jnp.bfloat16),
        "bq_s": bq * scale,
        "wkv": jnp.concatenate([wk, wv], axis=1).astype(jnp.bfloat16),
        "bkv": jnp.concatenate([bk, bv], axis=1),
        "wo": wo.astype(jnp.bfloat16),
        "bo": bo,
    }


def _init_ffn_norms(key, d_model, d_ff, n_norms):
    k1, k2 = jax.random.split(key)
    w1, b1 = _init_linear(k1, d_model, d_ff)
    w2, b2 = _init_linear(k2, d_ff, d_model)
    p = {"w1": w1.astype(jnp.bfloat16), "b1": b1,
         "w2": w2.astype(jnp.bfloat16), "b2": b2}
    for i in range(1, n_norms + 1):
        p[f"g{i}"] = jnp.ones((1, d_model), jnp.float32)
        p[f"be{i}"] = jnp.zeros((1, d_model), jnp.float32)
    return p


def init_params(key, src_vocab, tgt_vocab, d_model, d_ff, num_layers, num_heads, max_len):
    keys = iter(jax.random.split(key, 8 * num_layers + 8))
    params = {
        "src_emb": jax.random.normal(next(keys), (src_vocab, d_model), jnp.float32),
        "tgt_emb": jax.random.normal(next(keys), (tgt_vocab, d_model), jnp.float32),
        "pe": positional_encoding(max_len, d_model),
        "enc_layers": [],
        "dec_layers": [],
    }
    for _ in range(num_layers):
        p = {"attn": _init_mha(next(keys), d_model, num_heads)}
        p.update(_init_ffn_norms(next(keys), d_model, d_ff, 2))
        params["enc_layers"].append(p)
    for _ in range(num_layers):
        p = {"self": _init_mha(next(keys), d_model, num_heads),
             "cross": _init_mha(next(keys), d_model, num_heads)}
        p.update(_init_ffn_norms(next(keys), d_model, d_ff, 3))
        params["dec_layers"].append(p)

    # Output projection padded to a multiple of 128 vocab columns (lane-dense stores).
    v_pad = ((tgt_vocab + 127) // 128) * 128
    w_out, b_out = _init_linear(next(keys), d_model, tgt_vocab)
    params["w_out"] = (jnp.zeros((d_model, v_pad), jnp.float32)
                       .at[:, :tgt_vocab].set(w_out)).astype(jnp.bfloat16)
    params["b_out"] = jnp.zeros((1, v_pad), jnp.float32).at[:, :tgt_vocab].set(b_out)
    return params


# ----------------------------------------------------------------------------
# Plain-JAX reference (mirrors the PyTorch forward; f32 activations,
# bf16 MXU operands with f32 accumulation)
# ----------------------------------------------------------------------------
def _ref_ln(h, g, b, eps=1e-5):
    m = h.mean(-1, keepdims=True)
    v = ((h - m) ** 2).mean(-1, keepdims=True)
    return (h - m) / jnp.sqrt(v + eps) * g + b


def _ref_lin(x, w, b):
    return jnp.einsum("...d,df->...f", x.astype(jnp.bfloat16),
                      w.astype(jnp.bfloat16),
                      preferred_element_type=jnp.float32) + b


def _ref_mha(xq, xkv, p, num_heads):
    B, Tq, D = xq.shape
    Tk = xkv.shape[1]
    d_k = D // num_heads
    q = _ref_lin(xq, p["wq"], p["bq"])
    kv = _ref_lin(xkv, p["wkv"], p["bkv"])
    k, v = kv[..., :D], kv[..., D:]
    qh = q.reshape(B, Tq, num_heads, d_k).transpose(0, 2, 1, 3)
    kh = k.reshape(B, Tk, num_heads, d_k).transpose(0, 2, 1, 3)
    vh = v.reshape(B, Tk, num_heads, d_k).transpose(0, 2, 1, 3)
    s = jnp.einsum("bhqd,bhkd->bhqk", qh.astype(jnp.bfloat16),
                   kh.astype(jnp.bfloat16),
                   preferred_element_type=jnp.float32) / math.sqrt(d_k)
    s = s - s.max(-1, keepdims=True)
    e = jnp.exp(s)
    attn = e / e.sum(-1, keepdims=True)
    ctx = jnp.einsum("bhqk,bhkd->bhqd", attn.astype(jnp.bfloat16),
                     vh.astype(jnp.bfloat16),
                     preferred_element_type=jnp.float32)
    ctx = ctx.transpose(0, 2, 1, 3).reshape(B, Tq, D)
    return _ref_lin(ctx, p["wo"], p["bo"])


def _ref_ffn(x, p):
    return _ref_lin(jnp.maximum(_ref_lin(x, p["w1"], p["b1"]), 0.0), p["w2"], p["b2"])


def reference_forward(src, tgt, params, num_heads, tgt_vocab):
    pe = params["pe"]
    x = jnp.take(params["src_emb"], src, axis=0) + pe[None, : src.shape[1]]
    for p in params["enc_layers"]:
        h1 = _ref_ln(x + _ref_mha(x, x, p["attn"], num_heads), p["g1"], p["be1"])
        x = _ref_ln(h1 + _ref_ffn(h1, p), p["g2"], p["be2"])
    y = jnp.take(params["tgt_emb"], tgt, axis=0) + pe[None, : tgt.shape[1]]
    for p in params["dec_layers"]:
        h1 = _ref_ln(y + _ref_mha(y, y, p["self"], num_heads), p["g1"], p["be1"])
        h2 = _ref_ln(h1 + _ref_mha(h1, x, p["cross"], num_heads), p["g2"], p["be2"])
        y = _ref_ln(h2 + _ref_ffn(h2, p), p["g3"], p["be3"])
    logits = _ref_lin(y, params["w_out"], params["b_out"])
    return logits[:, :, :tgt_vocab]


# ----------------------------------------------------------------------------
if __name__ == "__main__":
    D_MODEL, N_HEADS, D_FF, N_LAYERS = 128, 4, 256, 2   # module defaults
    VOCAB = 16
    B, S_SRC, S_TGT = 2, 16, 8

    key = jax.random.PRNGKey(0)
    k_params, k_src, k_tgt = jax.random.split(key, 3)
    params = init_params(k_params, VOCAB, VOCAB, D_MODEL, D_FF, N_LAYERS,
                         N_HEADS, max_len=64)

    src = jax.random.randint(k_src, (B, S_SRC), 0, VOCAB)
    tgt = jax.random.randint(k_tgt, (B, S_TGT), 0, VOCAB)

    out = transformer_forward(src, tgt, params, N_HEADS, VOCAB)
    out = jax.block_until_ready(out)

    ref = reference_forward(src, tgt, params, N_HEADS, VOCAB)
    assert out.shape == (B, S_TGT, VOCAB)
    # bf16 inter-layer activations + folded softmax scale widen rounding slightly
    # vs the f32-activation reference; 5e-2 bounds that drift comfortably.
    assert jnp.allclose(out, ref, atol=5e-2, rtol=5e-2), "mismatch vs reference"

    print("KERNEL_OK")
</pallas_src>

<mosaic_0001>
module attributes {stable_mosaic.version = 11 : i64} {
  func.func @kv_proj_kernel(%arg0: i32, %arg1: i32, %arg2: memref<1x16x128xbf16, #tpu.memory_space<vmem>>, %arg3: memref<128x256xbf16, #tpu.memory_space<vmem>>, %arg4: memref<1x256xf32, #tpu.memory_space<vmem>>, %arg5: memref<1x4x16x32xbf16, #tpu.memory_space<vmem>>, %arg6: memref<1x4x16x32xbf16, #tpu.memory_space<vmem>>) attributes {dimension_semantics = [#tpu.dimension_semantics<parallel>, #tpu.dimension_semantics<parallel>], iteration_bounds = array<i64: 2, 1>, scalar_prefetch = 0 : i64, scratch_operands = 0 : i64, tpu.core_type = #tpu.core_type<tc>, window_params = [{transform_indices = @transform_0, window_bounds = array<i64: 1, 16, 128>}, {pipeline_mode = #tpu.pipeline_mode<synchronous>, transform_indices = @transform_1, window_bounds = array<i64: 128, 256>}, {pipeline_mode = #tpu.pipeline_mode<synchronous>, transform_indices = @transform_2, window_bounds = array<i64: 1, 256>}, {transform_indices = @transform_3, window_bounds = array<i64: 1, 4, 16, 32>}, {transform_indices = @transform_4, window_bounds = array<i64: 1, 4, 16, 32>}]} {
    %c0 = arith.constant 0 : index
    %c0_0 = arith.constant 0 : index
    %c0_1 = arith.constant 0 : index
    %0 = vector.load %arg2[%c0, %c0_0, %c0_1] : memref<1x16x128xbf16, #tpu.memory_space<vmem>>, vector<1x16x128xbf16>
    %1 = vector.shape_cast %0 : vector<1x16x128xbf16> to vector<16x128xbf16>
    %c0_2 = arith.constant 0 : index
    %c0_3 = arith.constant 0 : index
    %2 = vector.load %arg3[%c0_2, %c0_3] : memref<128x256xbf16, #tpu.memory_space<vmem>>, vector<128x256xbf16>
    %cst = arith.constant dense<0.000000e+00> : vector<16x256xf32>
    %3 = tpu.matmul %1, %2, %cst {dimension_numbers = #tpu.dot_dimension_numbers<[1], [0], [0], [1], [0, 0, 1, 1], [], []>} : vector<16x128xbf16>, vector<128x256xbf16>, vector<16x256xf32> -> vector<16x256xf32>
    %c0_4 = arith.constant 0 : index
    %c0_5 = arith.constant 0 : index
    %4 = vector.load %arg4[%c0_4, %c0_5] : memref<1x256xf32, #tpu.memory_space<vmem>>, vector<1x256xf32>
    %5 = vector.broadcast %4 : vector<1x256xf32> to vector<16x256xf32>
    %6 = arith.addf %3, %5 : vector<16x256xf32>
    %7 = vector.extract_strided_slice %6 {offsets = [0, 0], sizes = [16, 128], strides = [1, 1]} : vector<16x256xf32> to vector<16x128xf32>
    %8 = vector.shape_cast %7 : vector<16x128xf32> to vector<16x4x32xf32>
    %9 = tpu.transpose %8, [1, 0, 2] : vector<16x4x32xf32> -> vector<4x16x32xf32>
    %10 = vector.extract_strided_slice %6 {offsets = [0, 128], sizes = [16, 128], strides = [1, 1]} : vector<16x256xf32> to vector<16x128xf32>
    %11 = vector.shape_cast %10 : vector<16x128xf32> to vector<16x4x32xf32>
    %12 = tpu.transpose %11, [1, 0, 2] : vector<16x4x32xf32> -> vector<4x16x32xf32>
    %13 = arith.truncf %9 : vector<4x16x32xf32> to vector<4x16x32xbf16>
    %c0_6 = arith.constant 0 : index
    %c0_7 = arith.constant 0 : index
    %c0_8 = arith.constant 0 : index
    %c0_9 = arith.constant 0 : index
    %14 = vector.load %arg5[%c0_6, %c0_7, %c0_8, %c0_9] : memref<1x4x16x32xbf16, #tpu.memory_space<vmem>>, vector<1x4x16x32xbf16>
    %15 = vector.shape_cast %14 : vector<1x4x16x32xbf16> to vector<4x16x32xbf16>
    %16 = vector.shape_cast %13 : vector<4x16x32xbf16> to vector<1x4x16x32xbf16>
    tpu.vector_store %arg5[%c0_6, %c0_7, %c0_8, %c0_9], %16 {strides = array<i32>} : memref<1x4x16x32xbf16, #tpu.memory_space<vmem>>, vector<1x4x16x32xbf16>,
    %17 = arith.truncf %12 : vector<4x16x32xf32> to vector<4x16x32xbf16>
    %c0_10 = arith.constant 0 : index
    %c0_11 = arith.constant 0 : index
    %c0_12 = arith.constant 0 : index
    %c0_13 = arith.constant 0 : index
    %18 = vector.load %arg6[%c0_10, %c0_11, %c0_12, %c0_13] : memref<1x4x16x32xbf16, #tpu.memory_space<vmem>>, vector<1x4x16x32xbf16>
    %19 = vector.shape_cast %18 : vector<1x4x16x32xbf16> to vector<4x16x32xbf16>
    %20 = vector.shape_cast %17 : vector<4x16x32xbf16> to vector<1x4x16x32xbf16>
    tpu.vector_store %arg6[%c0_10, %c0_11, %c0_12, %c0_13], %20 {strides = array<i32>} : memref<1x4x16x32xbf16, #tpu.memory_space<vmem>>, vector<1x4x16x32xbf16>,
    return
  }
  func.func @transform_0(%arg0: i32, %arg1: i32) -> (i32, i32, i32) {
    %c0_i32 = arith.constant 0 : i32
    %c0_i32_0 = arith.constant 0 : i32
    return %arg0, %arg1, %c0_i32 : i32, i32, i32
  }
  func.func @transform_1(%arg0: i32, %arg1: i32) -> (i32, i32) {
    %c0_i32 = arith.constant 0 : i32
    %c0_i32_0 = arith.constant 0 : i32
    %c0_i32_1 = arith.constant 0 : i32
    return %c0_i32, %c0_i32_0 : i32, i32
  }
  func.func @transform_2(%arg0: i32, %arg1: i32) -> (i32, i32) {
    %c0_i32 = arith.constant 0 : i32
    %c0_i32_0 = arith.constant 0 : i32
    %c0_i32_1 = arith.constant 0 : i32
    return %c0_i32, %c0_i32_0 : i32, i32
  }
  func.func @transform_3(%arg0: i32, %arg1: i32) -> (i32, i32, i32, i32) {
    %c0_i32 = arith.constant 0 : i32
    %c0_i32_0 = arith.constant 0 : i32
    %c0_i32_1 = arith.constant 0 : i32
    return %arg0, %c0_i32, %arg1, %c0_i32_0 : i32, i32, i32, i32
  }
  func.func @transform_4(%arg0: i32, %arg1: i32) -> (i32, i32, i32, i32) {
    %c0_i32 = arith.constant 0 : i32
    %c0_i32_0 = arith.constant 0 : i32
    %c0_i32_1 = arith.constant 0 : i32
    return %arg0, %c0_i32, %arg1, %c0_i32_0 : i32, i32, i32, i32
  }
}

module attributes {stable_mosaic.version = 11 : i64} {
  func.func @encoder_layer_kernel(%arg0: i32, %arg1: i32, %arg2: memref<1x16x128xbf16, #tpu.memory_space<vmem>>, %arg3: memref<1x4x16x32xbf16, #tpu.memory_space<vmem>>, %arg4: memref<1x4x16x32xbf16, #tpu.memory_space<vmem>>, %arg5: memref<128x128xbf16, #tpu.memory_space<vmem>>, %arg6: memref<1x128xf32, #tpu.memory_space<vmem>>, %arg7: memref<128x128xbf16, #tpu.memory_space<vmem>>, %arg8: memref<1x128xf32, #tpu.memory_space<vmem>>, %arg9: memref<128x256xbf16, #tpu.memory_space<vmem>>, %arg10: memref<1x256xf32, #tpu.memory_space<vmem>>, %arg11: memref<256x128xbf16, #tpu.memory_space<vmem>>, %arg12: memref<1x128xf32, #tpu.memory_space<vmem>>, %arg13: memref<1x128xf32, #tpu.memory_space<vmem>>, %arg14: memref<1x128xf32, #tpu.memory_space<vmem>>, %arg15: memref<1x128xf32, #tpu.memory_space<vmem>>, %arg16: memref<1x128xf32, #tpu.memory_space<vmem>>, %arg17: memref<1x16x128xbf16, #tpu.memory_space<vmem>>) attributes {dimension_semantics = [#tpu.dimension_semantics<parallel>, #tpu.dimension_semantics<parallel>], iteration_bounds = array<i64: 2, 1>, scalar_prefetch = 0 : i64, scratch_operands = 0 : i64, tpu.core_type = #tpu.core_type<tc>, window_params = [{transform_indices = @transform_0, window_bounds = array<i64: 1, 16, 128>}, {transform_indices = @transform_1, window_bounds = array<i64: 1, 4, 16, 32>}, {transform_indices = @transform_2, window_bounds = array<i64: 1, 4, 16, 32>}, {pipeline_mode = #tpu.pipeline_mode<synchronous>, transform_indices = @transform_3, window_bounds = array<i64: 128, 128>}, {pipeline_mode = #tpu.pipeline_mode<synchronous>, transform_indices = @transform_4, window_bounds = array<i64: 1, 128>}, {pipeline_mode = #tpu.pipeline_mode<synchronous>, transform_indices = @transform_5, window_bounds = array<i64: 128, 128>}, {pipeline_mode = #tpu.pipeline_mode<synchronous>, transform_indices = @transform_6, window_bounds = array<i64: 1, 128>}, {pipeline_mode = #tpu.pipeline_mode<synchronous>, transform_indices = @transform_7, window_bounds = array<i64: 128, 256>}, {pipeline_mode = #tpu.pipeline_mode<synchronous>, transform_indices = @transform_8, window_bounds = array<i64: 1, 256>}, {pipeline_mode = #tpu.pipeline_mode<synchronous>, transform_indices = @transform_9, window_bounds = array<i64: 256, 128>}, {pipeline_mode = #tpu.pipeline_mode<synchronous>, transform_indices = @transform_10, window_bounds = array<i64: 1, 128>}, {pipeline_mode = #tpu.pipeline_mode<synchronous>, transform_indices = @transform_11, window_bounds = array<i64: 1, 128>}, {pipeline_mode = #tpu.pipeline_mode<synchronous>, transform_indices = @transform_12, window_bounds = array<i64: 1, 128>}, {pipeline_mode = #tpu.pipeline_mode<synchronous>, transform_indices = @transform_13, window_bounds = array<i64: 1, 128>}, {pipeline_mode = #tpu.pipeline_mode<synchronous>, transform_indices = @transform_14, window_bounds = array<i64: 1, 128>}, {transform_indices = @transform_15, window_bounds = array<i64: 1, 16, 128>}]} {
    %c0 = arith.constant 0 : index
    %c0_0 = arith.constant 0 : index
    %c0_1 = arith.constant 0 : index
    %0 = vector.load %arg2[%c0, %c0_0, %c0_1] : memref<1x16x128xbf16, #tpu.memory_space<vmem>>, vector<1x16x128xbf16>
    %1 = vector.shape_cast %0 : vector<1x16x128xbf16> to vector<16x128xbf16>
    %c0_2 = arith.constant 0 : index
    %c0_3 = arith.constant 0 : index
    %c0_4 = arith.constant 0 : index
    %c0_5 = arith.constant 0 : index
    %2 = vector.load %arg3[%c0_2, %c0_3, %c0_4, %c0_5] : memref<1x4x16x32xbf16, #tpu.memory_space<vmem>>, vector<1x4x16x32xbf16>
    %3 = vector.shape_cast %2 : vector<1x4x16x32xbf16> to vector<4x16x32xbf16>
    %c0_6 = arith.constant 0 : index
    %c0_7 = arith.constant 0 : index
    %c0_8 = arith.constant 0 : index
    %c0_9 = arith.constant 0 : index
    %4 = vector.load %arg4[%c0_6, %c0_7, %c0_8, %c0_9] : memref<1x4x16x32xbf16, #tpu.memory_space<vmem>>, vector<1x4x16x32xbf16>
    %5 = vector.shape_cast %4 : vector<1x4x16x32xbf16> to vector<4x16x32xbf16>
    %c0_10 = arith.constant 0 : index
    %c0_11 = arith.constant 0 : index
    %6 = vector.load %arg5[%c0_10, %c0_11] : memref<128x128xbf16, #tpu.memory_space<vmem>>, vector<128x128xbf16>
    %c0_12 = arith.constant 0 : index
    %c0_13 = arith.constant 0 : index
    %7 = vector.load %arg6[%c0_12, %c0_13] : memref<1x128xf32, #tpu.memory_space<vmem>>, vector<1x128xf32>
    %c0_14 = arith.constant 0 : index
    %c0_15 = arith.constant 0 : index
    %8 = vector.load %arg7[%c0_14, %c0_15] : memref<128x128xbf16, #tpu.memory_space<vmem>>, vector<128x128xbf16>
    %c0_16 = arith.constant 0 : index
    %c0_17 = arith.constant 0 : index
    %9 = vector.load %arg8[%c0_16, %c0_17] : memref<1x128xf32, #tpu.memory_space<vmem>>, vector<1x128xf32>
    %cst = arith.constant dense<0.000000e+00> : vector<16x128xf32>
    %10 = tpu.matmul %1, %6, %cst {dimension_numbers = #tpu.dot_dimension_numbers<[1], [0], [0], [1], [0, 0, 1, 1], [], []>} : vector<16x128xbf16>, vector<128x128xbf16>, vector<16x128xf32> -> vector<16x128xf32>
    %11 = vector.broadcast %7 : vector<1x128xf32> to vector<16x128xf32>
    %12 = arith.addf %10, %11 : vector<16x128xf32>
    %13 = vector.shape_cast %12 : vector<16x128xf32> to vector<16x4x32xf32>
    %14 = tpu.transpose %13, [1, 0, 2] : vector<16x4x32xf32> -> vector<4x16x32xf32>
    %15 = arith.truncf %14 : vector<4x16x32xf32> to vector<4x16x32xbf16>
    "tpu.trace_start"() <{level = 10 : i32, message = "hqd,hkd->hqk"}> : () -> ()
    %cst_18 = arith.constant dense<0.000000e+00> : vector<4x16x16xf32>
    %16 = tpu.matmul %15, %3, %cst_18 {dimension_numbers = #tpu.dot_dimension_numbers<[2], [2], [1], [1], [0, 0, 0, 1, 1, 1], [0], [0]>} : vector<4x16x32xbf16>, vector<4x16x32xbf16>, vector<4x16x16xf32> -> vector<4x16x16xf32>
    "tpu.trace_stop"() : () -> ()
    %cst_19 = arith.constant dense<0xFF800000> : vector<4x16xf32>
    %17 = vector.multi_reduction <maximumf>, %16, %cst_19 [2] : vector<4x16x16xf32> to vector<4x16xf32>
    %18 = vector.shape_cast %17 : vector<4x16xf32> to vector<4x16x1xf32>
    %19 = vector.broadcast %18 : vector<4x16x1xf32> to vector<4x16x16xf32>
    %20 = arith.subf %16, %19 : vector<4x16x16xf32>
    %21 = math.exp %20 : vector<4x16x16xf32>
    %cst_20 = arith.constant dense<0.000000e+00> : vector<4x16xf32>
    %22 = vector.multi_reduction <add>, %21, %cst_20 [2] : vector<4x16x16xf32> to vector<4x16xf32>
    %23 = vector.shape_cast %22 : vector<4x16xf32> to vector<4x16x1xf32>
    %24 = arith.truncf %21 : vector<4x16x16xf32> to vector<4x16x16xbf16>
    "tpu.trace_start"() <{level = 10 : i32, message = "hqk,hkd->hqd"}> : () -> ()
    %cst_21 = arith.constant dense<0.000000e+00> : vector<4x16x32xf32>
    %25 = tpu.matmul %24, %5, %cst_21 {dimension_numbers = #tpu.dot_dimension_numbers<[2], [1], [1], [2], [0, 0, 0, 1, 1, 2], [0], [0]>} : vector<4x16x16xbf16>, vector<4x16x32xbf16>, vector<4x16x32xf32> -> vector<4x16x32xf32>
    "tpu.trace_stop"() : () -> ()
    %26 = tpu.reciprocal %23 {approx = true} : vector<4x16x1xf32> -> vector<4x16x1xf32>
    %27 = vector.broadcast %26 : vector<4x16x1xf32> to vector<4x16x32xf32>
    %28 = arith.mulf %25, %27 : vector<4x16x32xf32>
    %29 = tpu.transpose %28, [1, 0, 2] : vector<4x16x32xf32> -> vector<16x4x32xf32>
    %30 = vector.shape_cast %29 : vector<16x4x32xf32> to vector<16x128xf32>
    %31 = arith.truncf %30 : vector<16x128xf32> to vector<16x128xbf16>
    %cst_22 = arith.constant dense<0.000000e+00> : vector<16x128xf32>
    %32 = tpu.matmul %31, %8, %cst_22 {dimension_numbers = #tpu.dot_dimension_numbers<[1], [0], [0], [1], [0, 0, 1, 1], [], []>} : vector<16x128xbf16>, vector<128x128xbf16>, vector<16x128xf32> -> vector<16x128xf32>
    %33 = vector.broadcast %9 : vector<1x128xf32> to vector<16x128xf32>
    %34 = arith.addf %32, %33 : vector<16x128xf32>
    %35 = arith.extf %1 : vector<16x128xbf16> to vector<16x128xf32>
    %36 = arith.addf %35, %34 : vector<16x128xf32>
    %c0_23 = arith.constant 0 : index
    %c0_24 = arith.constant 0 : index
    %37 = vector.load %arg13[%c0_23, %c0_24] : memref<1x128xf32, #tpu.memory_space<vmem>>, vector<1x128xf32>
    %c0_25 = arith.constant 0 : index
    %c0_26 = arith.constant 0 : index
    %38 = vector.load %arg14[%c0_25, %c0_26] : memref<1x128xf32, #tpu.memory_space<vmem>>, vector<1x128xf32>
    %cst_27 = arith.constant dense<0.000000e+00> : vector<16xf32>
    %39 = vector.multi_reduction <add>, %36, %cst_27 [1] : vector<16x128xf32> to vector<16xf32>
    %40 = vector.shape_cast %39 : vector<16xf32> to vector<16x1xf32>
    %cst_28 = arith.constant 1.280000e+02 : f32
    %41 = vector.broadcast %cst_28 : f32 to vector<16x1xf32>
    %42 = arith.divf %40, %41 : vector<16x1xf32>
    %43 = vector.broadcast %42 : vector<16x1xf32> to vector<16x128xf32>
    %44 = arith.subf %36, %43 : vector<16x128xf32>
    %45 = arith.mulf %44, %44 : vector<16x128xf32>
    %cst_29 = arith.constant dense<0.000000e+00> : vector<16xf32>
    %46 = vector.multi_reduction <add>, %45, %cst_29 [1] : vector<16x128xf32> to vector<16xf32>
    %47 = vector.shape_cast %46 : vector<16xf32> to vector<16x1xf32>
    %cst_30 = arith.constant 1.280000e+02 : f32
    %48 = vector.broadcast %cst_30 : f32 to vector<16x1xf32>
    %49 = arith.divf %47, %48 : vector<16x1xf32>
    %50 = vector.broadcast %42 : vector<16x1xf32> to vector<16x128xf32>
    %51 = arith.subf %36, %50 : vector<16x128xf32>
    %cst_31 = arith.constant 9.99999974E-6 : f32
    %52 = vector.broadcast %cst_31 : f32 to vector<16x1xf32>
    %53 = arith.addf %49, %52 : vector<16x1xf32>
    %54 = math.rsqrt %53 : vector<16x1xf32>
    %55 = vector.broadcast %54 : vector<16x1xf32> to vector<16x128xf32>
    %56 = arith.mulf %51, %55 : vector<16x128xf32>
    %57 = vector.broadcast %37 : vector<1x128xf32> to vector<16x128xf32>
    %58 = arith.mulf %56, %57 : vector<16x128xf32>
    %59 = vector.broadcast %38 : vector<1x128xf32> to vector<16x128xf32>
    %60 = arith.addf %58, %59 : vector<16x128xf32>
    %c0_32 = arith.constant 0 : index
    %c0_33 = arith.constant 0 : index
    %61 = vector.load %arg9[%c0_32, %c0_33] : memref<128x256xbf16, #tpu.memory_space<vmem>>, vector<128x256xbf16>
    %c0_34 = arith.constant 0 : index
    %c0_35 = arith.constant 0 : index
    %62 = vector.load %arg10[%c0_34, %c0_35] : memref<1x256xf32, #tpu.memory_space<vmem>>, vector<1x256xf32>
    %c0_36 = arith.constant 0 : index
    %c0_37 = arith.constant 0 : index
    %63 = vector.load %arg11[%c0_36, %c0_37] : memref<256x128xbf16, #tpu.memory_space<vmem>>, vector<256x128xbf16>
    %c0_38 = arith.constant 0 : index
    %c0_39 = arith.constant 0 : index
    %64 = vector.load %arg12[%c0_38, %c0_39] : memref<1x128xf32, #tpu.memory_space<vmem>>, vector<1x128xf32>
    %65 = arith.truncf %60 : vector<16x128xf32> to vector<16x128xbf16>
    %cst_40 = arith.constant dense<0.000000e+00> : vector<16x256xf32>
    %66 = tpu.matmul %65, %61, %cst_40 {dimension_numbers = #tpu.dot_dimension_numbers<[1], [0], [0], [1], [0, 0, 1, 1], [], []>} : vector<16x128xbf16>, vector<128x256xbf16>, vector<16x256xf32> -> vector<16x256xf32>
    %67 = vector.broadcast %62 : vector<1x256xf32> to vector<16x256xf32>
    %68 = arith.addf %66, %67 : vector<16x256xf32>
    %cst_41 = arith.constant 0.000000e+00 : f32
    %69 = vector.broadcast %cst_41 : f32 to vector<16x256xf32>
    %70 = arith.maximumf %68, %69 : vector<16x256xf32>
    %71 = arith.truncf %70 : vector<16x256xf32> to vector<16x256xbf16>
    %cst_42 = arith.constant dense<0.000000e+00> : vector<16x128xf32>
    %72 = tpu.matmul %71, %63, %cst_42 {dimension_numbers = #tpu.dot_dimension_numbers<[1], [0], [0], [1], [0, 0, 1, 1], [], []>} : vector<16x256xbf16>, vector<256x128xbf16>, vector<16x128xf32> -> vector<16x128xf32>
    %73 = vector.broadcast %64 : vector<1x128xf32> to vector<16x128xf32>
    %74 = arith.addf %72, %73 : vector<16x128xf32>
    %75 = arith.addf %60, %74 : vector<16x128xf32>
    %c0_43 = arith.constant 0 : index
    %c0_44 = arith.constant 0 : index
    %76 = vector.load %arg15[%c0_43, %c0_44] : memref<1x128xf32, #tpu.memory_space<vmem>>, vector<1x128xf32>
    %c0_45 = arith.constant 0 : index
    %c0_46 = arith.constant 0 : index
    %77 = vector.load %arg16[%c0_45, %c0_46] : memref<1x128xf32, #tpu.memory_space<vmem>>, vector<1x128xf32>
    %cst_47 = arith.constant dense<0.000000e+00> : vector<16xf32>
    %78 = vector.multi_reduction <add>, %75, %cst_47 [1] : vector<16x128xf32> to vector<16xf32>
    %79 = vector.shape_cast %78 : vector<16xf32> to vector<16x1xf32>
    %cst_48 = arith.constant 1.280000e+02 : f32
    %80 = vector.broadcast %cst_48 : f32 to vector<16x1xf32>
    %81 = arith.divf %79, %80 : vector<16x1xf32>
    %82 = vector.broadcast %81 : vector<16x1xf32> to vector<16x128xf32>
    %83 = arith.subf %75, %82 : vector<16x128xf32>
    %84 = arith.mulf %83, %83 : vector<16x128xf32>
    %cst_49 = arith.constant dense<0.000000e+00> : vector<16xf32>
    %85 = vector.multi_reduction <add>, %84, %cst_49 [1] : vector<16x128xf32> to vector<16xf32>
    %86 = vector.shape_cast %85 : vector<16xf32> to vector<16x1xf32>
    %cst_50 = arith.constant 1.280000e+02 : f32
    %87 = vector.broadcast %cst_50 : f32 to vector<16x1xf32>
    %88 = arith.divf %86, %87 : vector<16x1xf32>
    %89 = vector.broadcast %81 : vector<16x1xf32> to vector<16x128xf32>
    %90 = arith.subf %75, %89 : vector<16x128xf32>
    %cst_51 = arith.constant 9.99999974E-6 : f32
    %91 = vector.broadcast %cst_51 : f32 to vector<16x1xf32>
    %92 = arith.addf %88, %91 : vector<16x1xf32>
    %93 = math.rsqrt %92 : vector<16x1xf32>
    %94 = vector.broadcast %93 : vector<16x1xf32> to vector<16x128xf32>
    %95 = arith.mulf %90, %94 : vector<16x128xf32>
    %96 = vector.broadcast %76 : vector<1x128xf32> to vector<16x128xf32>
    %97 = arith.mulf %95, %96 : vector<16x128xf32>
    %98 = vector.broadcast %77 : vector<1x128xf32> to vector<16x128xf32>
    %99 = arith.addf %97, %98 : vector<16x128xf32>
    %100 = arith.truncf %99 : vector<16x128xf32> to vector<16x128xbf16>
    %c0_52 = arith.constant 0 : index
    %c0_53 = arith.constant 0 : index
    %c0_54 = arith.constant 0 : index
    %101 = vector.load %arg17[%c0_52, %c0_53, %c0_54] : memref<1x16x128xbf16, #tpu.memory_space<vmem>>, vector<1x16x128xbf16>
    %102 = vector.shape_cast %101 : vector<1x16x128xbf16> to vector<16x128xbf16>
    %103 = vector.shape_cast %100 : vector<16x128xbf16> to vector<1x16x128xbf16>
    tpu.vector_store %arg17[%c0_52, %c0_53, %c0_54], %103 {strides = array<i32>} : memref<1x16x128xbf16, #tpu.memory_space<vmem>>, vector<1x16x128xbf16>,
    return
  }
  func.func @transform_0(%arg0: i32, %arg1: i32) -> (i32, i32, i32) {
    %c0_i32 = arith.constant 0 : i32
    %c0_i32_0 = arith.constant 0 : i32
    return %arg0, %arg1, %c0_i32 : i32, i32, i32
  }
  func.func @transform_1(%arg0: i32, %arg1: i32) -> (i32, i32, i32, i32) {
    %c0_i32 = arith.constant 0 : i32
    %c0_i32_0 = arith.constant 0 : i32
    %c0_i32_1 = arith.constant 0 : i32
    %c0_i32_2 = arith.constant 0 : i32
    return %arg0, %c0_i32, %c0_i32_0, %c0_i32_1 : i32, i32, i32, i32
  }
  func.func @transform_2(%arg0: i32, %arg1: i32) -> (i32, i32, i32, i32) {
    %c0_i32 = arith.constant 0 : i32
    %c0_i32_0 = arith.constant 0 : i32
    %c0_i32_1 = arith.constant 0 : i32
    %c0_i32_2 = arith.constant 0 : i32
    return %arg0, %c0_i32, %c0_i32_0, %c0_i32_1 : i32, i32, i32, i32
  }
  func.func @transform_3(%arg0: i32, %arg1: i32) -> (i32, i32) {
    %c0_i32 = arith.constant 0 : i32
    %c0_i32_0 = arith.constant 0 : i32
    %c0_i32_1 = arith.constant 0 : i32
    return %c0_i32, %c0_i32_0 : i32, i32
  }
  func.func @transform_4(%arg0: i32, %arg1: i32) -> (i32, i32) {
    %c0_i32 = arith.constant 0 : i32
    %c0_i32_0 = arith.constant 0 : i32
    %c0_i32_1 = arith.constant 0 : i32
    return %c0_i32, %c0_i32_0 : i32, i32
  }
  func.func @transform_5(%arg0: i32, %arg1: i32) -> (i32, i32) {
    %c0_i32 = arith.constant 0 : i32
    %c0_i32_0 = arith.constant 0 : i32
    %c0_i32_1 = arith.constant 0 : i32
    return %c0_i32, %c0_i32_0 : i32, i32
  }
  func.func @transform_6(%arg0: i32, %arg1: i32) -> (i32, i32) {
    %c0_i32 = arith.constant 0 : i32
    %c0_i32_0 = arith.constant 0 : i32
    %c0_i32_1 = arith.constant 0 : i32
    return %c0_i32, %c0_i32_0 : i32, i32
  }
  func.func @transform_7(%arg0: i32, %arg1: i32) -> (i32, i32) {
    %c0_i32 = arith.constant 0 : i32
    %c0_i32_0 = arith.constant 0 : i32
    %c0_i32_1 = arith.constant 0 : i32
    return %c0_i32, %c0_i32_0 : i32, i32
  }
  func.func @transform_8(%arg0: i32, %arg1: i32) -> (i32, i32) {
    %c0_i32 = arith.constant 0 : i32
    %c0_i32_0 = arith.constant 0 : i32
    %c0_i32_1 = arith.constant 0 : i32
    return %c0_i32, %c0_i32_0 : i32, i32
  }
  func.func @transform_9(%arg0: i32, %arg1: i32) -> (i32, i32) {
    %c0_i32 = arith.constant 0 : i32
    %c0_i32_0 = arith.constant 0 : i32
    %c0_i32_1 = arith.constant 0 : i32
    return %c0_i32, %c0_i32_0 : i32, i32
  }
  func.func @transform_10(%arg0: i32, %arg1: i32) -> (i32, i32) {
    %c0_i32 = arith.constant 0 : i32
    %c0_i32_0 = arith.constant 0 : i32
    %c0_i32_1 = arith.constant 0 : i32
    return %c0_i32, %c0_i32_0 : i32, i32
  }
  func.func @transform_11(%arg0: i32, %arg1: i32) -> (i32, i32) {
    %c0_i32 = arith.constant 0 : i32
    %c0_i32_0 = arith.constant 0 : i32
    %c0_i32_1 = arith.constant 0 : i32
    return %c0_i32, %c0_i32_0 : i32, i32
  }
  func.func @transform_12(%arg0: i32, %arg1: i32) -> (i32, i32) {
    %c0_i32 = arith.constant 0 : i32
    %c0_i32_0 = arith.constant 0 : i32
    %c0_i32_1 = arith.constant 0 : i32
    return %c0_i32, %c0_i32_0 : i32, i32
  }
  func.func @transform_13(%arg0: i32, %arg1: i32) -> (i32, i32) {
    %c0_i32 = arith.constant 0 : i32
    %c0_i32_0 = arith.constant 0 : i32
    %c0_i32_1 = arith.constant 0 : i32
    return %c0_i32, %c0_i32_0 : i32, i32
  }
  func.func @transform_14(%arg0: i32, %arg1: i32) -> (i32, i32) {
    %c0_i32 = arith.constant 0 : i32
    %c0_i32_0 = arith.constant 0 : i32
    %c0_i32_1 = arith.constant 0 : i32
    return %c0_i32, %c0_i32_0 : i32, i32
  }
  func.func @transform_15(%arg0: i32, %arg1: i32) -> (i32, i32, i32) {
    %c0_i32 = arith.constant 0 : i32
    %c0_i32_0 = arith.constant 0 : i32
    return %arg0, %arg1, %c0_i32 : i32, i32, i32
  }
}

module attributes {stable_mosaic.version = 11 : i64} {
  func.func @kv_proj_kernel(%arg0: i32, %arg1: i32, %arg2: memref<1x8x128xbf16, #tpu.memory_space<vmem>>, %arg3: memref<128x256xbf16, #tpu.memory_space<vmem>>, %arg4: memref<1x256xf32, #tpu.memory_space<vmem>>, %arg5: memref<1x4x8x32xbf16, #tpu.memory_space<vmem>>, %arg6: memref<1x4x8x32xbf16, #tpu.memory_space<vmem>>) attributes {dimension_semantics = [#tpu.dimension_semantics<parallel>, #tpu.dimension_semantics<parallel>], iteration_bounds = array<i64: 2, 1>, scalar_prefetch = 0 : i64, scratch_operands = 0 : i64, tpu.core_type = #tpu.core_type<tc>, window_params = [{transform_indices = @transform_0, window_bounds = array<i64: 1, 8, 128>}, {pipeline_mode = #tpu.pipeline_mode<synchronous>, transform_indices = @transform_1, window_bounds = array<i64: 128, 256>}, {pipeline_mode = #tpu.pipeline_mode<synchronous>, transform_indices = @transform_2, window_bounds = array<i64: 1, 256>}, {transform_indices = @transform_3, window_bounds = array<i64: 1, 4, 8, 32>}, {transform_indices = @transform_4, window_bounds = array<i64: 1, 4, 8, 32>}]} {
    %c0 = arith.constant 0 : index
    %c0_0 = arith.constant 0 : index
    %c0_1 = arith.constant 0 : index
    %0 = vector.load %arg2[%c0, %c0_0, %c0_1] : memref<1x8x128xbf16, #tpu.memory_space<vmem>>, vector<1x8x128xbf16>
    %1 = vector.shape_cast %0 : vector<1x8x128xbf16> to vector<8x128xbf16>
    %c0_2 = arith.constant 0 : index
    %c0_3 = arith.constant 0 : index
    %2 = vector.load %arg3[%c0_2, %c0_3] : memref<128x256xbf16, #tpu.memory_space<vmem>>, vector<128x256xbf16>
    %cst = arith.constant dense<0.000000e+00> : vector<8x256xf32>
    %3 = tpu.matmul %1, %2, %cst {dimension_numbers = #tpu.dot_dimension_numbers<[1], [0], [0], [1], [0, 0, 1, 1], [], []>} : vector<8x128xbf16>, vector<128x256xbf16>, vector<8x256xf32> -> vector<8x256xf32>
    %c0_4 = arith.constant 0 : index
    %c0_5 = arith.constant 0 : index
    %4 = vector.load %arg4[%c0_4, %c0_5] : memref<1x256xf32, #tpu.memory_space<vmem>>, vector<1x256xf32>
    %5 = vector.broadcast %4 : vector<1x256xf32> to vector<8x256xf32>
    %6 = arith.addf %3, %5 : vector<8x256xf32>
    %7 = vector.extract_strided_slice %6 {offsets = [0, 0], sizes = [8, 128], strides = [1, 1]} : vector<8x256xf32> to vector<8x128xf32>
    %8 = vector.shape_cast %7 : vector<8x128xf32> to vector<8x4x32xf32>
    %9 = tpu.transpose %8, [1, 0, 2] : vector<8x4x32xf32> -> vector<4x8x32xf32>
    %10 = vector.extract_strided_slice %6 {offsets = [0, 128], sizes = [8, 128], strides = [1, 1]} : vector<8x256xf32> to vector<8x128xf32>
    %11 = vector.shape_cast %10 : vector<8x128xf32> to vector<8x4x32xf32>
    %12 = tpu.transpose %11, [1, 0, 2] : vector<8x4x32xf32> -> vector<4x8x32xf32>
    %13 = arith.truncf %9 : vector<4x8x32xf32> to vector<4x8x32xbf16>
    %c0_6 = arith.constant 0 : index
    %c0_7 = arith.constant 0 : index
    %c0_8 = arith.constant 0 : index
    %c0_9 = arith.constant 0 : index
    %14 = vector.load %arg5[%c0_6, %c0_7, %c0_8, %c0_9] : memref<1x4x8x32xbf16, #tpu.memory_space<vmem>>, vector<1x4x8x32xbf16>
    %15 = vector.shape_cast %14 : vector<1x4x8x32xbf16> to vector<4x8x32xbf16>
    %16 = vector.shape_cast %13 : vector<4x8x32xbf16> to vector<1x4x8x32xbf16>
    tpu.vector_store %arg5[%c0_6, %c0_7, %c0_8, %c0_9], %16 {strides = array<i32>} : memref<1x4x8x32xbf16, #tpu.memory_space<vmem>>, vector<1x4x8x32xbf16>,
    %17 = arith.truncf %12 : vector<4x8x32xf32> to vector<4x8x32xbf16>
    %c0_10 = arith.constant 0 : index
    %c0_11 = arith.constant 0 : index
    %c0_12 = arith.constant 0 : index
    %c0_13 = arith.constant 0 : index
    %18 = vector.load %arg6[%c0_10, %c0_11, %c0_12, %c0_13] : memref<1x4x8x32xbf16, #tpu.memory_space<vmem>>, vector<1x4x8x32xbf16>
    %19 = vector.shape_cast %18 : vector<1x4x8x32xbf16> to vector<4x8x32xbf16>
    %20 = vector.shape_cast %17 : vector<4x8x32xbf16> to vector<1x4x8x32xbf16>
    tpu.vector_store %arg6[%c0_10, %c0_11, %c0_12, %c0_13], %20 {strides = array<i32>} : memref<1x4x8x32xbf16, #tpu.memory_space<vmem>>, vector<1x4x8x32xbf16>,
    return
  }
  func.func @transform_0(%arg0: i32, %arg1: i32) -> (i32, i32, i32) {
    %c0_i32 = arith.constant 0 : i32
    %c0_i32_0 = arith.constant 0 : i32
    return %arg0, %arg1, %c0_i32 : i32, i32, i32
  }
  func.func @transform_1(%arg0: i32, %arg1: i32) -> (i32, i32) {
    %c0_i32 = arith.constant 0 : i32
    %c0_i32_0 = arith.constant 0 : i32
    %c0_i32_1 = arith.constant 0 : i32
    return %c0_i32, %c0_i32_0 : i32, i32
  }
  func.func @transform_2(%arg0: i32, %arg1: i32) -> (i32, i32) {
    %c0_i32 = arith.constant 0 : i32
    %c0_i32_0 = arith.constant 0 : i32
    %c0_i32_1 = arith.constant 0 : i32
    return %c0_i32, %c0_i32_0 : i32, i32
  }
  func.func @transform_3(%arg0: i32, %arg1: i32) -> (i32, i32, i32, i32) {
    %c0_i32 = arith.constant 0 : i32
    %c0_i32_0 = arith.constant 0 : i32
    %c0_i32_1 = arith.constant 0 : i32
    return %arg0, %c0_i32, %arg1, %c0_i32_0 : i32, i32, i32, i32
  }
  func.func @transform_4(%arg0: i32, %arg1: i32) -> (i32, i32, i32, i32) {
    %c0_i32 = arith.constant 0 : i32
    %c0_i32_0 = arith.constant 0 : i32
    %c0_i32_1 = arith.constant 0 : i32
    return %arg0, %c0_i32, %arg1, %c0_i32_0 : i32, i32, i32, i32
  }
}

module attributes {stable_mosaic.version = 11 : i64} {
  func.func @decoder_layer_kernel(%arg0: i32, %arg1: i32, %arg2: memref<1x8x128xbf16, #tpu.memory_space<vmem>>, %arg3: memref<1x4x8x32xbf16, #tpu.memory_space<vmem>>, %arg4: memref<1x4x8x32xbf16, #tpu.memory_space<vmem>>, %arg5: memref<1x4x16x32xbf16, #tpu.memory_space<vmem>>, %arg6: memref<1x4x16x32xbf16, #tpu.memory_space<vmem>>, %arg7: memref<128x128xbf16, #tpu.memory_space<vmem>>, %arg8: memref<1x128xf32, #tpu.memory_space<vmem>>, %arg9: memref<128x128xbf16, #tpu.memory_space<vmem>>, %arg10: memref<1x128xf32, #tpu.memory_space<vmem>>, %arg11: memref<128x128xbf16, #tpu.memory_space<vmem>>, %arg12: memref<1x128xf32, #tpu.memory_space<vmem>>, %arg13: memref<128x128xbf16, #tpu.memory_space<vmem>>, %arg14: memref<1x128xf32, #tpu.memory_space<vmem>>, %arg15: memref<128x256xbf16, #tpu.memory_space<vmem>>, %arg16: memref<1x256xf32, #tpu.memory_space<vmem>>, %arg17: memref<256x128xbf16, #tpu.memory_space<vmem>>, %arg18: memref<1x128xf32, #tpu.memory_space<vmem>>, %arg19: memref<1x128xf32, #tpu.memory_space<vmem>>, %arg20: memref<1x128xf32, #tpu.memory_space<vmem>>, %arg21: memref<1x128xf32, #tpu.memory_space<vmem>>, %arg22: memref<1x128xf32, #tpu.memory_space<vmem>>, %arg23: memref<1x128xf32, #tpu.memory_space<vmem>>, %arg24: memref<1x128xf32, #tpu.memory_space<vmem>>, %arg25: memref<1x8x128xbf16, #tpu.memory_space<vmem>>) attributes {dimension_semantics = [#tpu.dimension_semantics<parallel>, #tpu.dimension_semantics<parallel>], iteration_bounds = array<i64: 2, 1>, scalar_prefetch = 0 : i64, scratch_operands = 0 : i64, tpu.core_type = #tpu.core_type<tc>, window_params = [{transform_indices = @transform_0, window_bounds = array<i64: 1, 8, 128>}, {transform_indices = @transform_1, window_bounds = array<i64: 1, 4, 8, 32>}, {transform_indices = @transform_2, window_bounds = array<i64: 1, 4, 8, 32>}, {transform_indices = @transform_3, window_bounds = array<i64: 1, 4, 16, 32>}, {transform_indices = @transform_4, window_bounds = array<i64: 1, 4, 16, 32>}, {pipeline_mode = #tpu.pipeline_mode<synchronous>, transform_indices = @transform_5, window_bounds = array<i64: 128, 128>}, {pipeline_mode = #tpu.pipeline_mode<synchronous>, transform_indices = @transform_6, window_bounds = array<i64: 1, 128>}, {pipeline_mode = #tpu.pipeline_mode<synchronous>, transform_indices = @transform_7, window_bounds = array<i64: 128, 128>}, {pipeline_mode = #tpu.pipeline_mode<synchronous>, transform_indices = @transform_8, window_bounds = array<i64: 1, 128>}, {pipeline_mode = #tpu.pipeline_mode<synchronous>, transform_indices = @transform_9, window_bounds = array<i64: 128, 128>}, {pipeline_mode = #tpu.pipeline_mode<synchronous>, transform_indices = @transform_10, window_bounds = array<i64: 1, 128>}, {pipeline_mode = #tpu.pipeline_mode<synchronous>, transform_indices = @transform_11, window_bounds = array<i64: 128, 128>}, {pipeline_mode = #tpu.pipeline_mode<synchronous>, transform_indices = @transform_12, window_bounds = array<i64: 1, 128>}, {pipeline_mode = #tpu.pipeline_mode<synchronous>, transform_indices = @transform_13, window_bounds = array<i64: 128, 256>}, {pipeline_mode = #tpu.pipeline_mode<synchronous>, transform_indices = @transform_14, window_bounds = array<i64: 1, 256>}, {pipeline_mode = #tpu.pipeline_mode<synchronous>, transform_indices = @transform_15, window_bounds = array<i64: 256, 128>}, {pipeline_mode = #tpu.pipeline_mode<synchronous>, transform_indices = @transform_16, window_bounds = array<i64: 1, 128>}, {pipeline_mode = #tpu.pipeline_mode<synchronous>, transform_indices = @transform_17, window_bounds = array<i64: 1, 128>}, {pipeline_mode = #tpu.pipeline_mode<synchronous>, transform_indices = @transform_18, window_bounds = array<i64: 1, 128>}, {pipeline_mode = #tpu.pipeline_mode<synchronous>, transform_indices = @transform_19, window_bounds = array<i64: 1, 128>}, {pipeline_mode = #tpu.pipeline_mode<synchronous>, transform_indices = @transform_20, window_bounds = array<i64: 1, 128>}, {pipeline_mode = #tpu.pipeline_mode<synchronous>, transform_indices = @transform_21, window_bounds = array<i64: 1, 128>}, {pipeline_mode = #tpu.pipeline_mode<synchronous>, transform_indices = @transform_22, window_bounds = array<i64: 1, 128>}, {transform_indices = @transform_23, window_bounds = array<i64: 1, 8, 128>}]} {
    %c0 = arith.constant 0 : index
    %c0_0 = arith.constant 0 : index
    %c0_1 = arith.constant 0 : index
    %0 = vector.load %arg2[%c0, %c0_0, %c0_1] : memref<1x8x128xbf16, #tpu.memory_space<vmem>>, vector<1x8x128xbf16>
    %1 = vector.shape_cast %0 : vector<1x8x128xbf16> to vector<8x128xbf16>
    %c0_2 = arith.constant 0 : index
    %c0_3 = arith.constant 0 : index
    %c0_4 = arith.constant 0 : index
    %c0_5 = arith.constant 0 : index
    %2 = vector.load %arg3[%c0_2, %c0_3, %c0_4, %c0_5] : memref<1x4x8x32xbf16, #tpu.memory_space<vmem>>, vector<1x4x8x32xbf16>
    %3 = vector.shape_cast %2 : vector<1x4x8x32xbf16> to vector<4x8x32xbf16>
    %c0_6 = arith.constant 0 : index
    %c0_7 = arith.constant 0 : index
    %c0_8 = arith.constant 0 : index
    %c0_9 = arith.constant 0 : index
    %4 = vector.load %arg4[%c0_6, %c0_7, %c0_8, %c0_9] : memref<1x4x8x32xbf16, #tpu.memory_space<vmem>>, vector<1x4x8x32xbf16>
    %5 = vector.shape_cast %4 : vector<1x4x8x32xbf16> to vector<4x8x32xbf16>
    %c0_10 = arith.constant 0 : index
    %c0_11 = arith.constant 0 : index
    %6 = vector.load %arg7[%c0_10, %c0_11] : memref<128x128xbf16, #tpu.memory_space<vmem>>, vector<128x128xbf16>
    %c0_12 = arith.constant 0 : index
    %c0_13 = arith.constant 0 : index
    %7 = vector.load %arg8[%c0_12, %c0_13] : memref<1x128xf32, #tpu.memory_space<vmem>>, vector<1x128xf32>
    %c0_14 = arith.constant 0 : index
    %c0_15 = arith.constant 0 : index
    %8 = vector.load %arg9[%c0_14, %c0_15] : memref<128x128xbf16, #tpu.memory_space<vmem>>, vector<128x128xbf16>
    %c0_16 = arith.constant 0 : index
    %c0_17 = arith.constant 0 : index
    %9 = vector.load %arg10[%c0_16, %c0_17] : memref<1x128xf32, #tpu.memory_space<vmem>>, vector<1x128xf32>
    %cst = arith.constant dense<0.000000e+00> : vector<8x128xf32>
    %10 = tpu.matmul %1, %6, %cst {dimension_numbers = #tpu.dot_dimension_numbers<[1], [0], [0], [1], [0, 0, 1, 1], [], []>} : vector<8x128xbf16>, vector<128x128xbf16>, vector<8x128xf32> -> vector<8x128xf32>
    %11 = vector.broadcast %7 : vector<1x128xf32> to vector<8x128xf32>
    %12 = arith.addf %10, %11 : vector<8x128xf32>
    %13 = vector.shape_cast %12 : vector<8x128xf32> to vector<8x4x32xf32>
    %14 = tpu.transpose %13, [1, 0, 2] : vector<8x4x32xf32> -> vector<4x8x32xf32>
    %15 = arith.truncf %14 : vector<4x8x32xf32> to vector<4x8x32xbf16>
    "tpu.trace_start"() <{level = 10 : i32, message = "hqd,hkd->hqk"}> : () -> ()
    %cst_18 = arith.constant dense<0.000000e+00> : vector<4x8x8xf32>
    %16 = tpu.matmul %15, %3, %cst_18 {dimension_numbers = #tpu.dot_dimension_numbers<[2], [2], [1], [1], [0, 0, 0, 1, 1, 1], [0], [0]>} : vector<4x8x32xbf16>, vector<4x8x32xbf16>, vector<4x8x8xf32> -> vector<4x8x8xf32>
    "tpu.trace_stop"() : () -> ()
    %cst_19 = arith.constant dense<0xFF800000> : vector<4x8xf32>
    %17 = vector.multi_reduction <maximumf>, %16, %cst_19 [2] : vector<4x8x8xf32> to vector<4x8xf32>
    %18 = vector.shape_cast %17 : vector<4x8xf32> to vector<4x8x1xf32>
    %19 = vector.broadcast %18 : vector<4x8x1xf32> to vector<4x8x8xf32>
    %20 = arith.subf %16, %19 : vector<4x8x8xf32>
    %21 = math.exp %20 : vector<4x8x8xf32>
    %cst_20 = arith.constant dense<0.000000e+00> : vector<4x8xf32>
    %22 = vector.multi_reduction <add>, %21, %cst_20 [2] : vector<4x8x8xf32> to vector<4x8xf32>
    %23 = vector.shape_cast %22 : vector<4x8xf32> to vector<4x8x1xf32>
    %24 = arith.truncf %21 : vector<4x8x8xf32> to vector<4x8x8xbf16>
    "tpu.trace_start"() <{level = 10 : i32, message = "hqk,hkd->hqd"}> : () -> ()
    %cst_21 = arith.constant dense<0.000000e+00> : vector<4x8x32xf32>
    %25 = tpu.matmul %24, %5, %cst_21 {dimension_numbers = #tpu.dot_dimension_numbers<[2], [1], [1], [2], [0, 0, 0, 1, 1, 2], [0], [0]>} : vector<4x8x8xbf16>, vector<4x8x32xbf16>, vector<4x8x32xf32> -> vector<4x8x32xf32>
    "tpu.trace_stop"() : () -> ()
    %26 = tpu.reciprocal %23 {approx = true} : vector<4x8x1xf32> -> vector<4x8x1xf32>
    %27 = vector.broadcast %26 : vector<4x8x1xf32> to vector<4x8x32xf32>
    %28 = arith.mulf %25, %27 : vector<4x8x32xf32>
    %29 = tpu.transpose %28, [1, 0, 2] : vector<4x8x32xf32> -> vector<8x4x32xf32>
    %30 = vector.shape_cast %29 : vector<8x4x32xf32> to vector<8x128xf32>
    %31 = arith.truncf %30 : vector<8x128xf32> to vector<8x128xbf16>
    %cst_22 = arith.constant dense<0.000000e+00> : vector<8x128xf32>
    %32 = tpu.matmul %31, %8, %cst_22 {dimension_numbers = #tpu.dot_dimension_numbers<[1], [0], [0], [1], [0, 0, 1, 1], [], []>} : vector<8x128xbf16>, vector<128x128xbf16>, vector<8x128xf32> -> vector<8x128xf32>
    %33 = vector.broadcast %9 : vector<1x128xf32> to vector<8x128xf32>
    %34 = arith.addf %32, %33 : vector<8x128xf32>
    %35 = arith.extf %1 : vector<8x128xbf16> to vector<8x128xf32>
    %36 = arith.addf %35, %34 : vector<8x128xf32>
    %c0_23 = arith.constant 0 : index
    %c0_24 = arith.constant 0 : index
    %37 = vector.load %arg19[%c0_23, %c0_24] : memref<1x128xf32, #tpu.memory_space<vmem>>, vector<1x128xf32>
    %c0_25 = arith.constant 0 : index
    %c0_26 = arith.constant 0 : index
    %38 = vector.load %arg20[%c0_25, %c0_26] : memref<1x128xf32, #tpu.memory_space<vmem>>, vector<1x128xf32>
    %cst_27 = arith.constant dense<0.000000e+00> : vector<8xf32>
    %39 = vector.multi_reduction <add>, %36, %cst_27 [1] : vector<8x128xf32> to vector<8xf32>
    %40 = vector.shape_cast %39 : vector<8xf32> to vector<8x1xf32>
    %cst_28 = arith.constant 1.280000e+02 : f32
    %41 = vector.broadcast %cst_28 : f32 to vector<8x1xf32>
    %42 = arith.divf %40, %41 : vector<8x1xf32>
    %43 = vector.broadcast %42 : vector<8x1xf32> to vector<8x128xf32>
    %44 = arith.subf %36, %43 : vector<8x128xf32>
    %45 = arith.mulf %44, %44 : vector<8x128xf32>
    %cst_29 = arith.constant dense<0.000000e+00> : vector<8xf32>
    %46 = vector.multi_reduction <add>, %45, %cst_29 [1] : vector<8x128xf32> to vector<8xf32>
    %47 = vector.shape_cast %46 : vector<8xf32> to vector<8x1xf32>
    %cst_30 = arith.constant 1.280000e+02 : f32
    %48 = vector.broadcast %cst_30 : f32 to vector<8x1xf32>
    %49 = arith.divf %47, %48 : vector<8x1xf32>
    %50 = vector.broadcast %42 : vector<8x1xf32> to vector<8x128xf32>
    %51 = arith.subf %36, %50 : vector<8x128xf32>
    %cst_31 = arith.constant 9.99999974E-6 : f32
    %52 = vector.broadcast %cst_31 : f32 to vector<8x1xf32>
    %53 = arith.addf %49, %52 : vector<8x1xf32>
    %54 = math.rsqrt %53 : vector<8x1xf32>
    %55 = vector.broadcast %54 : vector<8x1xf32> to vector<8x128xf32>
    %56 = arith.mulf %51, %55 : vector<8x128xf32>
    %57 = vector.broadcast %37 : vector<1x128xf32> to vector<8x128xf32>
    %58 = arith.mulf %56, %57 : vector<8x128xf32>
    %59 = vector.broadcast %38 : vector<1x128xf32> to vector<8x128xf32>
    %60 = arith.addf %58, %59 : vector<8x128xf32>
    %61 = arith.truncf %60 : vector<8x128xf32> to vector<8x128xbf16>
    %c0_32 = arith.constant 0 : index
    %c0_33 = arith.constant 0 : index
    %c0_34 = arith.constant 0 : index
    %c0_35 = arith.constant 0 : index
    %62 = vector.load %arg5[%c0_32, %c0_33, %c0_34, %c0_35] : memref<1x4x16x32xbf16, #tpu.memory_space<vmem>>, vector<1x4x16x32xbf16>
    %63 = vector.shape_cast %62 : vector<1x4x16x32xbf16> to vector<4x16x32xbf16>
    %c0_36 = arith.constant 0 : index
    %c0_37 = arith.constant 0 : index
    %c0_38 = arith.constant 0 : index
    %c0_39 = arith.constant 0 : index
    %64 = vector.load %arg6[%c0_36, %c0_37, %c0_38, %c0_39] : memref<1x4x16x32xbf16, #tpu.memory_space<vmem>>, vector<1x4x16x32xbf16>
    %65 = vector.shape_cast %64 : vector<1x4x16x32xbf16> to vector<4x16x32xbf16>
    %c0_40 = arith.constant 0 : index
    %c0_41 = arith.constant 0 : index
    %66 = vector.load %arg11[%c0_40, %c0_41] : memref<128x128xbf16, #tpu.memory_space<vmem>>, vector<128x128xbf16>
    %c0_42 = arith.constant 0 : index
    %c0_43 = arith.constant 0 : index
    %67 = vector.load %arg12[%c0_42, %c0_43] : memref<1x128xf32, #tpu.memory_space<vmem>>, vector<1x128xf32>
    %c0_44 = arith.constant 0 : index
    %c0_45 = arith.constant 0 : index
    %68 = vector.load %arg13[%c0_44, %c0_45] : memref<128x128xbf16, #tpu.memory_space<vmem>>, vector<128x128xbf16>
    %c0_46 = arith.constant 0 : index
    %c0_47 = arith.constant 0 : index
    %69 = vector.load %arg14[%c0_46, %c0_47] : memref<1x128xf32, #tpu.memory_space<vmem>>, vector<1x128xf32>
    %cst_48 = arith.constant dense<0.000000e+00> : vector<8x128xf32>
    %70 = tpu.matmul %61, %66, %cst_48 {dimension_numbers = #tpu.dot_dimension_numbers<[1], [0], [0], [1], [0, 0, 1, 1], [], []>} : vector<8x128xbf16>, vector<128x128xbf16>, vector<8x128xf32> -> vector<8x128xf32>
    %71 = vector.broadcast %67 : vector<1x128xf32> to vector<8x128xf32>
    %72 = arith.addf %70, %71 : vector<8x128xf32>
    %73 = vector.shape_cast %72 : vector<8x128xf32> to vector<8x4x32xf32>
    %74 = tpu.transpose %73, [1, 0, 2] : vector<8x4x32xf32> -> vector<4x8x32xf32>
    %75 = arith.truncf %74 : vector<4x8x32xf32> to vector<4x8x32xbf16>
    "tpu.trace_start"() <{level = 10 : i32, message = "hqd,hkd->hqk"}> : () -> ()
    %cst_49 = arith.constant dense<0.000000e+00> : vector<4x8x16xf32>
    %76 = tpu.matmul %75, %63, %cst_49 {dimension_numbers = #tpu.dot_dimension_numbers<[2], [2], [1], [1], [0, 0, 0, 1, 1, 1], [0], [0]>} : vector<4x8x32xbf16>, vector<4x16x32xbf16>, vector<4x8x16xf32> -> vector<4x8x16xf32>
    "tpu.trace_stop"() : () -> ()
    %cst_50 = arith.constant dense<0xFF800000> : vector<4x8xf32>
    %77 = vector.multi_reduction <maximumf>, %76, %cst_50 [2] : vector<4x8x16xf32> to vector<4x8xf32>
    %78 = vector.shape_cast %77 : vector<4x8xf32> to vector<4x8x1xf32>
    %79 = vector.broadcast %78 : vector<4x8x1xf32> to vector<4x8x16xf32>
    %80 = arith.subf %76, %79 : vector<4x8x16xf32>
    %81 = math.exp %80 : vector<4x8x16xf32>
    %cst_51 = arith.constant dense<0.000000e+00> : vector<4x8xf32>
    %82 = vector.multi_reduction <add>, %81, %cst_51 [2] : vector<4x8x16xf32> to vector<4x8xf32>
    %83 = vector.shape_cast %82 : vector<4x8xf32> to vector<4x8x1xf32>
    %84 = arith.truncf %81 : vector<4x8x16xf32> to vector<4x8x16xbf16>
    "tpu.trace_start"() <{level = 10 : i32, message = "hqk,hkd->hqd"}> : () -> ()
    %cst_52 = arith.constant dense<0.000000e+00> : vector<4x8x32xf32>
    %85 = tpu.matmul %84, %65, %cst_52 {dimension_numbers = #tpu.dot_dimension_numbers<[2], [1], [1], [2], [0, 0, 0, 1, 1, 2], [0], [0]>} : vector<4x8x16xbf16>, vector<4x16x32xbf16>, vector<4x8x32xf32> -> vector<4x8x32xf32>
    "tpu.trace_stop"() : () -> ()
    %86 = tpu.reciprocal %83 {approx = true} : vector<4x8x1xf32> -> vector<4x8x1xf32>
    %87 = vector.broadcast %86 : vector<4x8x1xf32> to vector<4x8x32xf32>
    %88 = arith.mulf %85, %87 : vector<4x8x32xf32>
    %89 = tpu.transpose %88, [1, 0, 2] : vector<4x8x32xf32> -> vector<8x4x32xf32>
    %90 = vector.shape_cast %89 : vector<8x4x32xf32> to vector<8x128xf32>
    %91 = arith.truncf %90 : vector<8x128xf32> to vector<8x128xbf16>
    %cst_53 = arith.constant dense<0.000000e+00> : vector<8x128xf32>
    %92 = tpu.matmul %91, %68, %cst_53 {dimension_numbers = #tpu.dot_dimension_numbers<[1], [0], [0], [1], [0, 0, 1, 1], [], []>} : vector<8x128xbf16>, vector<128x128xbf16>, vector<8x128xf32> -> vector<8x128xf32>
    %93 = vector.broadcast %69 : vector<1x128xf32> to vector<8x128xf32>
    %94 = arith.addf %92, %93 : vector<8x128xf32>
    %95 = arith.addf %60, %94 : vector<8x128xf32>
    %c0_54 = arith.constant 0 : index
    %c0_55 = arith.constant 0 : index
    %96 = vector.load %arg21[%c0_54, %c0_55] : memref<1x128xf32, #tpu.memory_space<vmem>>, vector<1x128xf32>
    %c0_56 = arith.constant 0 : index
    %c0_57 = arith.constant 0 : index
    %97 = vector.load %arg22[%c0_56, %c0_57] : memref<1x128xf32, #tpu.memory_space<vmem>>, vector<1x128xf32>
    %cst_58 = arith.constant dense<0.000000e+00> : vector<8xf32>
    %98 = vector.multi_reduction <add>, %95, %cst_58 [1] : vector<8x128xf32> to vector<8xf32>
    %99 = vector.shape_cast %98 : vector<8xf32> to vector<8x1xf32>
    %cst_59 = arith.constant 1.280000e+02 : f32
    %100 = vector.broadcast %cst_59 : f32 to vector<8x1xf32>
    %101 = arith.divf %99, %100 : vector<8x1xf32>
    %102 = vector.broadcast %101 : vector<8x1xf32> to vector<8x128xf32>
    %103 = arith.subf %95, %102 : vector<8x128xf32>
    %104 = arith.mulf %103, %103 : vector<8x128xf32>
    %cst_60 = arith.constant dense<0.000000e+00> : vector<8xf32>
    %105 = vector.multi_reduction <add>, %104, %cst_60 [1] : vector<8x128xf32> to vector<8xf32>
    %106 = vector.shape_cast %105 : vector<8xf32> to vector<8x1xf32>
    %cst_61 = arith.constant 1.280000e+02 : f32
    %107 = vector.broadcast %cst_61 : f32 to vector<8x1xf32>
    %108 = arith.divf %106, %107 : vector<8x1xf32>
    %109 = vector.broadcast %101 : vector<8x1xf32> to vector<8x128xf32>
    %110 = arith.subf %95, %109 : vector<8x128xf32>
    %cst_62 = arith.constant 9.99999974E-6 : f32
    %111 = vector.broadcast %cst_62 : f32 to vector<8x1xf32>
    %112 = arith.addf %108, %111 : vector<8x1xf32>
    %113 = math.rsqrt %112 : vector<8x1xf32>
    %114 = vector.broadcast %113 : vector<8x1xf32> to vector<8x128xf32>
    %115 = arith.mulf %110, %114 : vector<8x128xf32>
    %116 = vector.broadcast %96 : vector<1x128xf32> to vector<8x128xf32>
    %117 = arith.mulf %115, %116 : vector<8x128xf32>
    %118 = vector.broadcast %97 : vector<1x128xf32> to vector<8x128xf32>
    %119 = arith.addf %117, %118 : vector<8x128xf32>
    %c0_63 = arith.constant 0 : index
    %c0_64 = arith.constant 0 : index
    %120 = vector.load %arg15[%c0_63, %c0_64] : memref<128x256xbf16, #tpu.memory_space<vmem>>, vector<128x256xbf16>
    %c0_65 = arith.constant 0 : index
    %c0_66 = arith.constant 0 : index
    %121 = vector.load %arg16[%c0_65, %c0_66] : memref<1x256xf32, #tpu.memory_space<vmem>>, vector<1x256xf32>
    %c0_67 = arith.constant 0 : index
    %c0_68 = arith.constant 0 : index
    %122 = vector.load %arg17[%c0_67, %c0_68] : memref<256x128xbf16, #tpu.memory_space<vmem>>, vector<256x128xbf16>
    %c0_69 = arith.constant 0 : index
    %c0_70 = arith.constant 0 : index
    %123 = vector.load %arg18[%c0_69, %c0_70] : memref<1x128xf32, #tpu.memory_space<vmem>>, vector<1x128xf32>
    %124 = arith.truncf %119 : vector<8x128xf32> to vector<8x128xbf16>
    %cst_71 = arith.constant dense<0.000000e+00> : vector<8x256xf32>
    %125 = tpu.matmul %124, %120, %cst_71 {dimension_numbers = #tpu.dot_dimension_numbers<[1], [0], [0], [1], [0, 0, 1, 1], [], []>} : vector<8x128xbf16>, vector<128x256xbf16>, vector<8x256xf32> -> vector<8x256xf32>
    %126 = vector.broadcast %121 : vector<1x256xf32> to vector<8x256xf32>
    %127 = arith.addf %125, %126 : vector<8x256xf32>
    %cst_72 = arith.constant 0.000000e+00 : f32
    %128 = vector.broadcast %cst_72 : f32 to vector<8x256xf32>
    %129 = arith.maximumf %127, %128 : vector<8x256xf32>
    %130 = arith.truncf %129 : vector<8x256xf32> to vector<8x256xbf16>
    %cst_73 = arith.constant dense<0.000000e+00> : vector<8x128xf32>
    %131 = tpu.matmul %130, %122, %cst_73 {dimension_numbers = #tpu.dot_dimension_numbers<[1], [0], [0], [1], [0, 0, 1, 1], [], []>} : vector<8x256xbf16>, vector<256x128xbf16>, vector<8x128xf32> -> vector<8x128xf32>
    %132 = vector.broadcast %123 : vector<1x128xf32> to vector<8x128xf32>
    %133 = arith.addf %131, %132 : vector<8x128xf32>
    %134 = arith.addf %119, %133 : vector<8x128xf32>
    %c0_74 = arith.constant 0 : index
    %c0_75 = arith.constant 0 : index
    %135 = vector.load %arg23[%c0_74, %c0_75] : memref<1x128xf32, #tpu.memory_space<vmem>>, vector<1x128xf32>
    %c0_76 = arith.constant 0 : index
    %c0_77 = arith.constant 0 : index
    %136 = vector.load %arg24[%c0_76, %c0_77] : memref<1x128xf32, #tpu.memory_space<vmem>>, vector<1x128xf32>
    %cst_78 = arith.constant dense<0.000000e+00> : vector<8xf32>
    %137 = vector.multi_reduction <add>, %134, %cst_78 [1] : vector<8x128xf32> to vector<8xf32>
    %138 = vector.shape_cast %137 : vector<8xf32> to vector<8x1xf32>
    %cst_79 = arith.constant 1.280000e+02 : f32
    %139 = vector.broadcast %cst_79 : f32 to vector<8x1xf32>
    %140 = arith.divf %138, %139 : vector<8x1xf32>
    %141 = vector.broadcast %140 : vector<8x1xf32> to vector<8x128xf32>
    %142 = arith.subf %134, %141 : vector<8x128xf32>
    %143 = arith.mulf %142, %142 : vector<8x128xf32>
    %cst_80 = arith.constant dense<0.000000e+00> : vector<8xf32>
    %144 = vector.multi_reduction <add>, %143, %cst_80 [1] : vector<8x128xf32> to vector<8xf32>
    %145 = vector.shape_cast %144 : vector<8xf32> to vector<8x1xf32>
    %cst_81 = arith.constant 1.280000e+02 : f32
    %146 = vector.broadcast %cst_81 : f32 to vector<8x1xf32>
    %147 = arith.divf %145, %146 : vector<8x1xf32>
    %148 = vector.broadcast %140 : vector<8x1xf32> to vector<8x128xf32>
    %149 = arith.subf %134, %148 : vector<8x128xf32>
    %cst_82 = arith.constant 9.99999974E-6 : f32
    %150 = vector.broadcast %cst_82 : f32 to vector<8x1xf32>
    %151 = arith.addf %147, %150 : vector<8x1xf32>
    %152 = math.rsqrt %151 : vector<8x1xf32>
    %153 = vector.broadcast %152 : vector<8x1xf32> to vector<8x128xf32>
    %154 = arith.mulf %149, %153 : vector<8x128xf32>
    %155 = vector.broadcast %135 : vector<1x128xf32> to vector<8x128xf32>
    %156 = arith.mulf %154, %155 : vector<8x128xf32>
    %157 = vector.broadcast %136 : vector<1x128xf32> to vector<8x128xf32>
    %158 = arith.addf %156, %157 : vector<8x128xf32>
    %159 = arith.truncf %158 : vector<8x128xf32> to vector<8x128xbf16>
    %c0_83 = arith.constant 0 : index
    %c0_84 = arith.constant 0 : index
    %c0_85 = arith.constant 0 : index
    %160 = vector.load %arg25[%c0_83, %c0_84, %c0_85] : memref<1x8x128xbf16, #tpu.memory_space<vmem>>, vector<1x8x128xbf16>
    %161 = vector.shape_cast %160 : vector<1x8x128xbf16> to vector<8x128xbf16>
    %162 = vector.shape_cast %159 : vector<8x128xbf16> to vector<1x8x128xbf16>
    tpu.vector_store %arg25[%c0_83, %c0_84, %c0_85], %162 {strides = array<i32>} : memref<1x8x128xbf16, #tpu.memory_space<vmem>>, vector<1x8x128xbf16>,
    return
  }
  func.func @transform_0(%arg0: i32, %arg1: i32) -> (i32, i32, i32) {
    %c0_i32 = arith.constant 0 : i32
    %c0_i32_0 = arith.constant 0 : i32
    return %arg0, %arg1, %c0_i32 : i32, i32, i32
  }
  func.func @transform_1(%arg0: i32, %arg1: i32) -> (i32, i32, i32, i32) {
    %c0_i32 = arith.constant 0 : i32
    %c0_i32_0 = arith.constant 0 : i32
    %c0_i32_1 = arith.constant 0 : i32
    %c0_i32_2 = arith.constant 0 : i32
    return %arg0, %c0_i32, %c0_i32_0, %c0_i32_1 : i32, i32, i32, i32
  }
  func.func @transform_2(%arg0: i32, %arg1: i32) -> (i32, i32, i32, i32) {
    %c0_i32 = arith.constant 0 : i32
    %c0_i32_0 = arith.constant 0 : i32
    %c0_i32_1 = arith.constant 0 : i32
    %c0_i32_2 = arith.constant 0 : i32
    return %arg0, %c0_i32, %c0_i32_0, %c0_i32_1 : i32, i32, i32, i32
  }
  func.func @transform_3(%arg0: i32, %arg1: i32) -> (i32, i32, i32, i32) {
    %c0_i32 = arith.constant 0 : i32
    %c0_i32_0 = arith.constant 0 : i32
    %c0_i32_1 = arith.constant 0 : i32
    %c0_i32_2 = arith.constant 0 : i32
    return %arg0, %c0_i32, %c0_i32_0, %c0_i32_1 : i32, i32, i32, i32
  }
  func.func @transform_4(%arg0: i32, %arg1: i32) -> (i32, i32, i32, i32) {
    %c0_i32 = arith.constant 0 : i32
    %c0_i32_0 = arith.constant 0 : i32
    %c0_i32_1 = arith.constant 0 : i32
    %c0_i32_2 = arith.constant 0 : i32
    return %arg0, %c0_i32, %c0_i32_0, %c0_i32_1 : i32, i32, i32, i32
  }
  func.func @transform_5(%arg0: i32, %arg1: i32) -> (i32, i32) {
    %c0_i32 = arith.constant 0 : i32
    %c0_i32_0 = arith.constant 0 : i32
    %c0_i32_1 = arith.constant 0 : i32
    return %c0_i32, %c0_i32_0 : i32, i32
  }
  func.func @transform_6(%arg0: i32, %arg1: i32) -> (i32, i32) {
    %c0_i32 = arith.constant 0 : i32
    %c0_i32_0 = arith.constant 0 : i32
    %c0_i32_1 = arith.constant 0 : i32
    return %c0_i32, %c0_i32_0 : i32, i32
  }
  func.func @transform_7(%arg0: i32, %arg1: i32) -> (i32, i32) {
    %c0_i32 = arith.constant 0 : i32
    %c0_i32_0 = arith.constant 0 : i32
    %c0_i32_1 = arith.constant 0 : i32
    return %c0_i32, %c0_i32_0 : i32, i32
  }
  func.func @transform_8(%arg0: i32, %arg1: i32) -> (i32, i32) {
    %c0_i32 = arith.constant 0 : i32
    %c0_i32_0 = arith.constant 0 : i32
    %c0_i32_1 = arith.constant 0 : i32
    return %c0_i32, %c0_i32_0 : i32, i32
  }
  func.func @transform_9(%arg0: i32, %arg1: i32) -> (i32, i32) {
    %c0_i32 = arith.constant 0 : i32
    %c0_i32_0 = arith.constant 0 : i32
    %c0_i32_1 = arith.constant 0 : i32
    return %c0_i32, %c0_i32_0 : i32, i32
  }
  func.func @transform_10(%arg0: i32, %arg1: i32) -> (i32, i32) {
    %c0_i32 = arith.constant 0 : i32
    %c0_i32_0 = arith.constant 0 : i32
    %c0_i32_1 = arith.constant 0 : i32
    return %c0_i32, %c0_i32_0 : i32, i32
  }
  func.func @transform_11(%arg0: i32, %arg1: i32) -> (i32, i32) {
    %c0_i32 = arith.constant 0 : i32
    %c0_i32_0 = arith.constant 0 : i32
    %c0_i32_1 = arith.constant 0 : i32
    return %c0_i32, %c0_i32_0 : i32, i32
  }
  func.func @transform_12(%arg0: i32, %arg1: i32) -> (i32, i32) {
    %c0_i32 = arith.constant 0 : i32
    %c0_i32_0 = arith.constant 0 : i32
    %c0_i32_1 = arith.constant 0 : i32
    return %c0_i32, %c0_i32_0 : i32, i32
  }
  func.func @transform_13(%arg0: i32, %arg1: i32) -> (i32, i32) {
    %c0_i32 = arith.constant 0 : i32
    %c0_i32_0 = arith.constant 0 : i32
    %c0_i32_1 = arith.constant 0 : i32
    return %c0_i32, %c0_i32_0 : i32, i32
  }
  func.func @transform_14(%arg0: i32, %arg1: i32) -> (i32, i32) {
    %c0_i32 = arith.constant 0 : i32
    %c0_i32_0 = arith.constant 0 : i32
    %c0_i32_1 = arith.constant 0 : i32
    return %c0_i32, %c0_i32_0 : i32, i32
  }
  func.func @transform_15(%arg0: i32, %arg1: i32) -> (i32, i32) {
    %c0_i32 = arith.constant 0 : i32
    %c0_i32_0 = arith.constant 0 : i32
    %c0_i32_1 = arith.constant 0 : i32
    return %c0_i32, %c0_i32_0 : i32, i32
  }
  func.func @transform_16(%arg0: i32, %arg1: i32) -> (i32, i32) {
    %c0_i32 = arith.constant 0 : i32
    %c0_i32_0 = arith.constant 0 : i32
    %c0_i32_1 = arith.constant 0 : i32
    return %c0_i32, %c0_i32_0 : i32, i32
  }
  func.func @transform_17(%arg0: i32, %arg1: i32) -> (i32, i32) {
    %c0_i32 = arith.constant 0 : i32
    %c0_i32_0 = arith.constant 0 : i32
    %c0_i32_1 = arith.constant 0 : i32
    return %c0_i32, %c0_i32_0 : i32, i32
  }
  func.func @transform_18(%arg0: i32, %arg1: i32) -> (i32, i32) {
    %c0_i32 = arith.constant 0 : i32
    %c0_i32_0 = arith.constant 0 : i32
    %c0_i32_1 = arith.constant 0 : i32
    return %c0_i32, %c0_i32_0 : i32, i32
  }
  func.func @transform_19(%arg0: i32, %arg1: i32) -> (i32, i32) {
    %c0_i32 = arith.constant 0 : i32
    %c0_i32_0 = arith.constant 0 : i32
    %c0_i32_1 = arith.constant 0 : i32
    return %c0_i32, %c0_i32_0 : i32, i32
  }
  func.func @transform_20(%arg0: i32, %arg1: i32) -> (i32, i32) {
    %c0_i32 = arith.constant 0 : i32
    %c0_i32_0 = arith.constant 0 : i32
    %c0_i32_1 = arith.constant 0 : i32
    return %c0_i32, %c0_i32_0 : i32, i32
  }
  func.func @transform_21(%arg0: i32, %arg1: i32) -> (i32, i32) {
    %c0_i32 = arith.constant 0 : i32
    %c0_i32_0 = arith.constant 0 : i32
    %c0_i32_1 = arith.constant 0 : i32
    return %c0_i32, %c0_i32_0 : i32, i32
  }
  func.func @transform_22(%arg0: i32, %arg1: i32) -> (i32, i32) {
    %c0_i32 = arith.constant 0 : i32
    %c0_i32_0 = arith.constant 0 : i32
    %c0_i32_1 = arith.constant 0 : i32
    return %c0_i32, %c0_i32_0 : i32, i32
  }
  func.func @transform_23(%arg0: i32, %arg1: i32) -> (i32, i32, i32) {
    %c0_i32 = arith.constant 0 : i32
    %c0_i32_0 = arith.constant 0 : i32
    return %arg0, %arg1, %c0_i32 : i32, i32, i32
  }
}

module attributes {stable_mosaic.version = 11 : i64} {
  func.func @linear_kernel(%arg0: i32, %arg1: i32, %arg2: memref<1x8x128xbf16, #tpu.memory_space<vmem>>, %arg3: memref<128x128xbf16, #tpu.memory_space<vmem>>, %arg4: memref<1x128xf32, #tpu.memory_space<vmem>>, %arg5: memref<1x8x128xf32, #tpu.memory_space<vmem>>) attributes {dimension_semantics = [#tpu.dimension_semantics<parallel>, #tpu.dimension_semantics<parallel>], iteration_bounds = array<i64: 2, 1>, scalar_prefetch = 0 : i64, scratch_operands = 0 : i64, tpu.core_type = #tpu.core_type<tc>, window_params = [{transform_indices = @transform_0, window_bounds = array<i64: 1, 8, 128>}, {transform_indices = @transform_1, window_bounds = array<i64: 128, 128>}, {transform_indices = @transform_2, window_bounds = array<i64: 1, 128>}, {transform_indices = @transform_3, window_bounds = array<i64: 1, 8, 128>}]} {
    %c0 = arith.constant 0 : index
    %c0_0 = arith.constant 0 : index
    %c0_1 = arith.constant 0 : index
    %0 = vector.load %arg2[%c0, %c0_0, %c0_1] : memref<1x8x128xbf16, #tpu.memory_space<vmem>>, vector<1x8x128xbf16>
    %1 = vector.shape_cast %0 : vector<1x8x128xbf16> to vector<8x128xbf16>
    %c0_2 = arith.constant 0 : index
    %c0_3 = arith.constant 0 : index
    %2 = vector.load %arg3[%c0_2, %c0_3] : memref<128x128xbf16, #tpu.memory_space<vmem>>, vector<128x128xbf16>
    %cst = arith.constant dense<0.000000e+00> : vector<8x128xf32>
    %3 = tpu.matmul %1, %2, %cst {dimension_numbers = #tpu.dot_dimension_numbers<[1], [0], [0], [1], [0, 0, 1, 1], [], []>} : vector<8x128xbf16>, vector<128x128xbf16>, vector<8x128xf32> -> vector<8x128xf32>
    %c0_4 = arith.constant 0 : index
    %c0_5 = arith.constant 0 : index
    %4 = vector.load %arg4[%c0_4, %c0_5] : memref<1x128xf32, #tpu.memory_space<vmem>>, vector<1x128xf32>
    %5 = vector.broadcast %4 : vector<1x128xf32> to vector<8x128xf32>
    %6 = arith.addf %3, %5 : vector<8x128xf32>
    %c0_6 = arith.constant 0 : index
    %c0_7 = arith.constant 0 : index
    %c0_8 = arith.constant 0 : index
    %7 = vector.load %arg5[%c0_6, %c0_7, %c0_8] : memref<1x8x128xf32, #tpu.memory_space<vmem>>, vector<1x8x128xf32>
    %8 = vector.shape_cast %7 : vector<1x8x128xf32> to vector<8x128xf32>
    %9 = vector.shape_cast %6 : vector<8x128xf32> to vector<1x8x128xf32>
    tpu.vector_store %arg5[%c0_6, %c0_7, %c0_8], %9 {strides = array<i32>} : memref<1x8x128xf32, #tpu.memory_space<vmem>>, vector<1x8x128xf32>,
    return
  }
  func.func @transform_0(%arg0: i32, %arg1: i32) -> (i32, i32, i32) {
    %c0_i32 = arith.constant 0 : i32
    %c0_i32_0 = arith.constant 0 : i32
    %c0_i32_1 = arith.constant 0 : i32
    return %arg0, %c0_i32, %c0_i32_0 : i32, i32, i32
  }
  func.func @transform_1(%arg0: i32, %arg1: i32) -> (i32, i32) {
    %c0_i32 = arith.constant 0 : i32
    %c0_i32_0 = arith.constant 0 : i32
    return %c0_i32, %arg1 : i32, i32
  }
  func.func @transform_2(%arg0: i32, %arg1: i32) -> (i32, i32) {
    %c0_i32 = arith.constant 0 : i32
    %c0_i32_0 = arith.constant 0 : i32
    return %c0_i32, %arg1 : i32, i32
  }
  func.func @transform_3(%arg0: i32, %arg1: i32) -> (i32, i32, i32) {
    %c0_i32 = arith.constant 0 : i32
    %c0_i32_0 = arith.constant 0 : i32
    return %arg0, %c0_i32, %arg1 : i32, i32, i32
  }
}

</mosaic_0001>

<llo_original>
// kernel: transformer_forward.11
$region0: #{transformer_forward.11}
  #allocation0 [shape = 'u32[]', space=smem, size = 0x4, offset = 0x4, fixed_abs, tag = 'smem constant byte address 0x4 - core index']
  #allocation1 [shape = 'u32[144,128]{1,0:T(1,128)}', space=vmem, size = 0x12000, scoped, tag = 'internal scratch']
  %s0 = inlined_call_operand.vmem [shape: bf16[2,16,128], index: 0, kind: input, shape index: {}]
  %s1 = inlined_call_operand.vmem [shape: bf16[128,256], index: 1, kind: input, shape index: {}]
  %s2 = inlined_call_operand.vmem [shape: f32[1,256], index: 2, kind: input, shape index: {}]
  %s3 = inlined_call_operand.vmem [shape: bf16[2,4,16,32], index: 3, kind: output, shape index: {0}]
  %s4 = inlined_call_operand.vmem [shape: bf16[2,4,16,32], index: 4, kind: output, shape index: {1}]
  %5 = xla_tuple %s3, %s4
  %s6 = sld [smem:[#allocation0]]
  $region53: #{transformer_forward.11} parent=0
    _
  %s8 = ssub.s32 1, %s6
  %s9 = scalar_select 0, %s8, %s6
  loop: start=0, step=1, limit=4
  $region2: #{transformer_forward.11} parent=0 // loop_pre_header
    _
  $region3: #{transformer_forward.11} parent=0 // loop_header
    %s11 = sphi 0, %s15
    %p12 = scmp.ge.s32.totalorder %s11, 4
    %s18 = sphi 0, %s30
    %s19 = sphi 0, %s26
    %s20 = sphi 0, %s18
    %s21 = sphi 0, %s19
    %s22 = sphi 0, %s20
    %s23 = sphi 0, %s21
    %s35 = sphi 0, %s37
    %s38 = sphi 0, %s35
    %s39 = sphi 0, %s38
    %s55 = sphi 0, %s39
    %s59 = sphi 0, %s59
    %s61 = sphi 0, %s59
    %s62 = sphi 0, %s61
    %s76 = sphi 0, %s62
    %s80 = sphi 0, %s80
    %s82 = sphi 0, %s80
    %s83 = sphi 0, %s82
    %s97 = sphi 0, %s83
    %s105 = sphi 0, %s107
    %s108 = sphi 0, %s105
    %s109 = sphi 0, %s108
    %s125 = sphi 0, %s109
    %s133 = sphi 0, %s135
    %s136 = sphi 0, %s133
    %s137 = sphi 0, %s136
    %s153 = sphi 0, %s137
  $region4: #{transformer_forward.11} parent=0 // loop_header_branch
    %14 = sbr.rel (%p12) target = $region8
  $region5: #{transformer_forward.11} parent=0 // loop_body
    %s16 = ssub.s32 %s11, 1
    %s17 = ssub.s32 %s11, 2
    %s24 = sadd.s32 1, %s19
    %p25 = scmp.ge.s32.totalorder %s24, 1
    %s26 = scalar_select %p25, 0, %s24
    %s27 = sadd.s32 1, %s18
    %s28 = scalar_select %p25, %s27, %s18
    %p29 = scmp.ge.s32.totalorder %s28, 2
    %s30 = scalar_select %p29, 0, %s28
    %s31 = ssub.s32 %s18, %s30
    %s32 = ssub.s32 %s19, %s26
    %s33 = sor.u32 %s31, %s32
    %p34 = scmp.eq.s32.totalorder %s33, 0
    %s36 = sadd.s32 %s35, 1
    %s37 = scalar_select %p34, %s35, %s36
    %p40 = pneg %p34
    %p41 = scmp.eq.s32.totalorder %s11, 1
    %p42 = por %p40, %p41
    %p43 = scmp.ne.s32.totalorder %s35, %s38
    %p44 = scmp.eq.s32.totalorder %s11, 0
    %p45 = por %p43, %p44
    %p46 = scmp.ne.s32.totalorder %s35, %s38
    %p47 = scmp.eq.s32.totalorder %s16, 1
    %p48 = por %p46, %p47
    %p49 = scmp.ne.s32.totalorder %s38, %s39
    %p50 = scmp.eq.s32.totalorder %s16, 0
    %p51 = por %p49, %p50
    %p52 = scmp.ne.s32.totalorder %s38, %s39
    %p53 = scmp.eq.s32.totalorder %s17, 1
    %p54 = por %p52, %p53
    %p56 = scmp.ne.s32.totalorder %s39, %s55
    %p57 = scmp.eq.s32.totalorder %s17, 0
    %p58 = por %p56, %p57
    %s60 = sadd.s32 %s59, 1
    %p63 = scmp.eq.s32.totalorder %s11, 1
    %p64 = scmp.ne.s32.totalorder %s59, %s61
    %p65 = scmp.eq.s32.totalorder %s11, 0
    %p66 = por %p64, %p65
    %p67 = scmp.ne.s32.totalorder %s59, %s61
    %p68 = scmp.eq.s32.totalorder %s16, 1
    %p69 = por %p67, %p68
    %p70 = scmp.ne.s32.totalorder %s61, %s62
    %p71 = scmp.eq.s32.totalorder %s16, 0
    %p72 = por %p70, %p71
    %p73 = scmp.ne.s32.totalorder %s61, %s62
    %p74 = scmp.eq.s32.totalorder %s17, 1
    %p75 = por %p73, %p74
    %p77 = scmp.ne.s32.totalorder %s62, %s76
    %p78 = scmp.eq.s32.totalorder %s17, 0
    %p79 = por %p77, %p78
    %s81 = sadd.s32 %s80, 1
    %p84 = scmp.eq.s32.totalorder %s11, 1
    %p85 = scmp.ne.s32.totalorder %s80, %s82
    %p86 = scmp.eq.s32.totalorder %s11, 0
    %p87 = por %p85, %p86
    %p88 = scmp.ne.s32.totalorder %s80, %s82
    %p89 = scmp.eq.s32.totalorder %s16, 1
    %p90 = por %p88, %p89
    %p91 = scmp.ne.s32.totalorder %s82, %s83
    %p92 = scmp.eq.s32.totalorder %s16, 0
    %p93 = por %p91, %p92
    %p94 = scmp.ne.s32.totalorder %s82, %s83
    %p95 = scmp.eq.s32.totalorder %s17, 1
    %p96 = por %p94, %p95
    %p98 = scmp.ne.s32.totalorder %s83, %s97
    %p99 = scmp.eq.s32.totalorder %s17, 0
    %p100 = por %p98, %p99
    %s101 = ssub.s32 %s18, %s30
    %s102 = ssub.s32 %s19, %s26
    %s103 = sor.u32 %s101, %s102
    %p104 = scmp.eq.s32.totalorder %s103, 0
    %s106 = sadd.s32 %s105, 1
    %s107 = scalar_select %p104, %s105, %s106
    %p110 = pneg %p104
    %p111 = scmp.eq.s32.totalorder %s11, 1
    %p112 = por %p110, %p111
    %p113 = scmp.ne.s32.totalorder %s105, %s108
    %p114 = scmp.eq.s32.totalorder %s11, 0
    %p115 = por %p113, %p114
    %p116 = scmp.ne.s32.totalorder %s105, %s108
    %p117 = scmp.eq.s32.totalorder %s16, 1
    %p118 = por %p116, %p117
    %p119 = scmp.ne.s32.totalorder %s108, %s109
    %p120 = scmp.eq.s32.totalorder %s16, 0
    %p121 = por %p119, %p120
    %p122 = scmp.ne.s32.totalorder %s108, %s109
    %p123 = scmp.eq.s32.totalorder %s17, 1
    %p124 = por %p122, %p123
    %p126 = scmp.ne.s32.totalorder %s109, %s125
    %p127 = scmp.eq.s32.totalorder %s17, 0
    %p128 = por %p126, %p127
    %s129 = ssub.s32 %s18, %s30
    %s130 = ssub.s32 %s19, %s26
    %s131 = sor.u32 %s129, %s130
    %p132 = scmp.eq.s32.totalorder %s131, 0
    %s134 = sadd.s32 %s133, 1
    %s135 = scalar_select %p132, %s133, %s134
    %p138 = pneg %p132
    %p139 = scmp.eq.s32.totalorder %s11, 1
    %p140 = por %p138, %p139
    %p141 = scmp.ne.s32.totalorder %s133, %s136
    %p142 = scmp.eq.s32.totalorder %s11, 0
    %p143 = por %p141, %p142
    %p144 = scmp.ne.s32.totalorder %s133, %s136
    %p145 = scmp.eq.s32.totalorder %s16, 1
    %p146 = por %p144, %p145
    %p147 = scmp.ne.s32.totalorder %s136, %s137
    %p148 = scmp.eq.s32.totalorder %s16, 0
    %p149 = por %p147, %p148
    %p150 = scmp.ne.s32.totalorder %s136, %s137
    %p151 = scmp.eq.s32.totalorder %s17, 1
    %p152 = por %p150, %p151
    %p154 = scmp.ne.s32.totalorder %s137, %s153
    %p155 = scmp.eq.s32.totalorder %s17, 0
    %p156 = por %p154, %p155
    %p157 = scmp.le.s32.totalorder 1, %s11
    %p158 = scmp.lt.s32.totalorder %s11, 3
    %p159 = pnand %p157, %p158
    %p160 = pneg %p159
    // Predicated region
    $region9: #{transformer_forward.11} parent=5 // pred_check
      _
    $region10: #{transformer_forward.11} parent=5 // pred_check_branch
      %162 = sbr.rel (%p159) target = $region12
    $region11: #{transformer_forward.11} parent=5 // pred_region
      %s163 = ssub.s32 %s11, 1
      // Predicated region
      $region13: #{transformer_forward.11} parent=11 // pred_check
        %p164 = pneg %p72
      $region14: #{transformer_forward.11} parent=11 // pred_check_branch
        %166 = sbr.rel (%p164) target = $region16
      $region15: #{transformer_forward.11} parent=11 // pred_region
        _
      $region16: #{transformer_forward.11} parent=11 // pred_fallthru
        _
      // Predicated region
      $region17: #{transformer_forward.11} parent=11 // pred_check
        %p167 = pneg %p93
      $region18: #{transformer_forward.11} parent=11 // pred_check_branch
        %169 = sbr.rel (%p167) target = $region20
      $region19: #{transformer_forward.11} parent=11 // pred_region
        _
      $region20: #{transformer_forward.11} parent=11 // pred_fallthru
        _
    $region12: #{transformer_forward.11} parent=5 // pred_fallthru
      _
    %p170 = scmp.lt.s32.totalorder %s11, 2
    // Predicated region
    $region21: #{transformer_forward.11} parent=5 // pred_check
      %p171 = pneg %p170
    $region22: #{transformer_forward.11} parent=5 // pred_check_branch
      %173 = sbr.rel (%p171) target = $region24
    $region23: #{transformer_forward.11} parent=5 // pred_region
      // Predicated region
      $region25: #{transformer_forward.11} parent=23 // pred_check
        %p174 = pneg %p45
      $region26: #{transformer_forward.11} parent=23 // pred_check_branch
        %176 = sbr.rel (%p174) target = $region28
      $region27: #{transformer_forward.11} parent=23 // pred_region
        %s177 = smul.u32 2, %s19
        %p178 = scmp.lt.s32.totalorder %s18, 1
        %s179 = scalar_select %p178, %s18, 1
        %p180 = scmp.lt.s32.totalorder %s177, 1
        %s181 = scalar_select %p180, %s177, 1
        %s182 = smul.addr %s179, 2
        %s183 = sadd.s32 %s181, %s182
        %s184 = smul.addr %s183, 4
        %s185 = scalar_lea.vmem %s0, %s184
        %s186 = smul.u32 2, %s19
      $region28: #{transformer_forward.11} parent=23 // pred_fallthru
        _
    $region24: #{transformer_forward.11} parent=5 // pred_fallthru
      _
    %p187 = scmp.le.s32.totalorder 1, %s11
    %p188 = scmp.lt.s32.totalorder %s11, 3
    %p189 = pnand %p187, %p188
    %p190 = pneg %p189
    // Predicated region
    $region29: #{transformer_forward.11} parent=5 // pred_check
      _
    $region30: #{transformer_forward.11} parent=5 // pred_check_branch
      %192 = sbr.rel (%p189) target = $region32
    $region31: #{transformer_forward.11} parent=5 // pred_region
      %s193 = ssub.s32 %s11, 1
      %s194 = smul.u32 2, %s21
      %p195 = scmp.lt.s32.totalorder %s20, 1
      %s196 = scalar_select %p195, %s20, 1
      %p197 = scmp.lt.s32.totalorder %s194, 1
      %s198 = scalar_select %p197, %s194, 1
      %s199 = smul.addr %s196, 2
      %s200 = sadd.s32 %s198, %s199
      %s201 = smul.addr %s200, 4
      %s202 = scalar_lea.vmem %s0, %s201
      %p203 = pneg %p51
      %p204 = pneg %p48
      %p205 = pneg %p72
      %p206 = pneg %p69
      %p207 = pneg %p93
      %p208 = pneg %p90
      %p209 = pneg %p121
      %p210 = pneg %p118
      %s211 = smul.u32 2, %s21
      %p212 = scmp.lt.s32.totalorder %s20, 1
      %s213 = scalar_select %p212, %s20, 1
      %p214 = scmp.lt.s32.totalorder %s211, 1
      %s215 = scalar_select %p214, %s211, 1
      %s216 = smul.addr %s213, 8
      %s217 = sadd.s32 %s215, %s216
      %s218 = smul.addr %s217, 4
      %s219 = scalar_lea.vmem %s3, %s218
      %p220 = pneg %p149
      %p221 = pneg %p146
      %s222 = smul.u32 2, %s21
      %p223 = scmp.lt.s32.totalorder %s20, 1
      %s224 = scalar_select %p223, %s20, 1
      %p225 = scmp.lt.s32.totalorder %s222, 1
      %s226 = scalar_select %p225, %s222, 1
      %s227 = smul.addr %s224, 8
      %s228 = sadd.s32 %s226, %s227
      %s229 = smul.addr %s228, 4
      %s230 = scalar_lea.vmem %s4, %s229
      %s231 = smul.u32 2, %s21
      %p232 = scmp.lt.s32.totalorder %s20, 1
      %s233 = scalar_select %p232, %s20, 1
      %p234 = scmp.lt.s32.totalorder %s231, 1
      %s235 = scalar_select %p234, %s231, 1
      %s236 = smul.addr %s233, 2
      %s237 = sadd.s32 %s235, %s236
      %s238 = smul.addr %s237, 4
      %s239 = scalar_lea.vmem %s0, %s238
      %s240 = smul.u32 2, %s21
      %s241 = smul.u32 2, %s21
      %p242 = scmp.lt.s32.totalorder %s20, 1
      %s243 = scalar_select %p242, %s20, 1
      %p244 = scmp.lt.s32.totalorder %s241, 1
      %s245 = scalar_select %p244, %s241, 1
      %s246 = smul.addr %s243, 8
      %s247 = sadd.s32 %s245, %s246
      %s248 = smul.addr %s247, 4
      %s249 = scalar_lea.vmem %s3, %s248
      %s250 = smul.u32 2, %s21
      %s251 = smul.u32 2, %s21
      %p252 = scmp.lt.s32.totalorder %s20, 1
      %s253 = scalar_select %p252, %s20, 1
      %p254 = scmp.lt.s32.totalorder %s251, 1
      %s255 = scalar_select %p254, %s251, 1
      %s256 = smul.addr %s253, 8
      %s257 = sadd.s32 %s255, %s256
      %s258 = smul.addr %s257, 4
      %s259 = scalar_lea.vmem %s4, %s258
      %s260 = smul.u32 2, %s21
      %v262 = vld [vmem:[%s239] sm:$0xf]
      %v263 = vld [vmem:[%s239 + $0x4] sm:$0xf]
      %v264 = vld [vmem:[%s1] sm:$0xff]
      %v265 = vld [vmem:[%s1 + $0x8] sm:$0xff]
      %v266 = vld [vmem:[%s1 + $0x10] sm:$0xff]
      %v267 = vld [vmem:[%s1 + $0x18] sm:$0xff]
      %v268 = vld [vmem:[%s1 + $0x20] sm:$0xff]
      %v269 = vld [vmem:[%s1 + $0x28] sm:$0xff]
      %v270 = vld [vmem:[%s1 + $0x30] sm:$0xff]
      %v271 = vld [vmem:[%s1 + $0x38] sm:$0xff]
      %v272 = vld [vmem:[%s1 + $0x40] sm:$0xff]
      %v273 = vld [vmem:[%s1 + $0x48] sm:$0xff]
      %v274 = vld [vmem:[%s1 + $0x50] sm:$0xff]
      %v275 = vld [vmem:[%s1 + $0x58] sm:$0xff]
      %v276 = vld [vmem:[%s1 + $0x60] sm:$0xff]
      %v277 = vld [vmem:[%s1 + $0x68] sm:$0xff]
      %v278 = vld [vmem:[%s1 + $0x70] sm:$0xff]
      %v279 = vld [vmem:[%s1 + $0x78] sm:$0xff]
      %v280 = vld [vmem:[%s2] sm:$0x3]
      %v282 = vlaneseq
      %v283 = vshrl.u32 %v282, 7
      %v284 = vsub.s32 0, %v283
      %v285 = vrot.slane %v280, %v284
      %v286 = vlaneseq
      %v287 = vshrl.u32 %v286, 7
      %v288 = vsub.s32 1, %v287
      %v289 = vrot.slane %v280, %v288
      %v294 = vunpack.c.l.b16 %v262
      %v295 = vunpack.c.l.b16 %v263
      %v296 = vpack.c.b16 %v295, %v294
      %v314 = vunpack.c.l.b16 %v264
      %v315 = vunpack.c.h.b16 %v264
      %v316 = vunpack.c.l.b16 %v265
      %v317 = vunpack.c.h.b16 %v265
      %v318 = vunpack.c.l.b16 %v266
      %v319 = vunpack.c.h.b16 %v266
      %v320 = vunpack.c.l.b16 %v267
      %v321 = vunpack.c.h.b16 %v267
      %v322 = vunpack.c.l.b16 %v268
      %v323 = vunpack.c.h.b16 %v268
      %v324 = vunpack.c.l.b16 %v269
      %v325 = vunpack.c.h.b16 %v269
      %v326 = vunpack.c.l.b16 %v270
      %v327 = vunpack.c.h.b16 %v270
      %v328 = vunpack.c.l.b16 %v271
      %v329 = vunpack.c.h.b16 %v271
      %v330 = vunpack.c.l.b16 %v272
      %v331 = vunpack.c.h.b16 %v272
      %v332 = vunpack.c.l.b16 %v273
      %v333 = vunpack.c.h.b16 %v273
      %v334 = vunpack.c.l.b16 %v274
      %v335 = vunpack.c.h.b16 %v274
      %v336 = vunpack.c.l.b16 %v275
      %v337 = vunpack.c.h.b16 %v275
      %v338 = vunpack.c.l.b16 %v276
      %v339 = vunpack.c.h.b16 %v276
      %v340 = vunpack.c.l.b16 %v277
      %v341 = vunpack.c.h.b16 %v277
      %v342 = vunpack.c.l.b16 %v278
      %v343 = vunpack.c.h.b16 %v278
      %v344 = vunpack.c.l.b16 %v279
      %v345 = vunpack.c.h.b16 %v279
      %v346 = vpack.c.b16 %v316, %v314
      %v347 = vpack.c.b16 %v317, %v315
      %v348 = vpack.c.b16 %v320, %v318
      %v349 = vpack.c.b16 %v321, %v319
      %v350 = vpack.c.b16 %v324, %v322
      %v351 = vpack.c.b16 %v325, %v323
      %v352 = vpack.c.b16 %v328, %v326
      %v353 = vpack.c.b16 %v329, %v327
      %v354 = vpack.c.b16 %v332, %v330
      %v355 = vpack.c.b16 %v333, %v331
      %v356 = vpack.c.b16 %v336, %v334
      %v357 = vpack.c.b16 %v337, %v335
      %v358 = vpack.c.b16 %v340, %v338
      %v359 = vpack.c.b16 %v341, %v339
      %v360 = vpack.c.b16 %v344, %v342
      %v361 = vpack.c.b16 %v345, %v343
      %378 = vmatprep.subr.bf16.mxu0 %v361
      %379 = vmatpush1.bf16.msra.mxu0 %v360
      %380 = vmatprep.subr.bf16.mxu0 %v359
      %381 = vmatpush1.bf16.msra.mxu0 %v358
      %382 = vmatprep.subr.bf16.mxu0 %v357
      %383 = vmatpush1.bf16.msra.mxu0 %v356
      %384 = vmatprep.subr.bf16.mxu0 %v355
      %385 = vmatpush1.bf16.msra.mxu0 %v354
      %386 = vmatprep.subr.bf16.mxu0 %v353
      %387 = vmatpush1.bf16.msra.mxu0 %v352
      %388 = vmatprep.subr.bf16.mxu0 %v351
      %389 = vmatpush1.bf16.msra.mxu0 %v350
      %390 = vmatprep.subr.bf16.mxu0 %v349
      %391 = vmatpush1.bf16.msra.mxu0 %v348
      %392 = vmatprep.subr.bf16.mxu0 %v347
      %393 = vmatpush1.bf16.msra.mxu0 %v346
      %394 = vmatprep.subr.bf16.mxu0 0
      %395 = vmatpush2.bf16.msra.mxu0 0
      %396 = vmatprep.subr.bf16.mxu0 0
      %397 = vmatpush2.bf16.msra.mxu0 0
      %398 = vmatprep.subr.bf16.mxu0 0
      %399 = vmatpush2.bf16.msra.mxu0 0
      %400 = vmatprep.subr.bf16.mxu0 0
      %401 = vmatpush2.bf16.msra.mxu0 0
      %402 = vmatprep.subr.bf16.mxu0 0
      %403 = vmatpush2.bf16.msra.mxu0 0
      %404 = vmatprep.subr.bf16.mxu0 0
      %405 = vmatpush2.bf16.msra.mxu0 0
      %406 = vmatprep.subr.bf16.mxu0 0
      %407 = vmatpush2.bf16.msra.mxu0 0
      %408 = vmatprep.subr.bf16.mxu0 0
      %409 = vmatpush2.bf16.msra.mxu0 0
      %410 = vmatprep.mubr.bf16.mxu0 0
      %411 = vmatmul.mubr.bf16.gmra.mxu0 %v296
      %v412 = vpop.f32.mrf.mxu0
      %v413 = vadd.f32 %v285, %v412
      %v414 = vpop.f32.mrf.mxu0
      %v415 = vadd.f32 %v289, %v414
      %v416 = vpop.f32.mrf.mxu0
      %v417 = vadd.f32 %v285, %v416
      %v418 = vpop.f32.mrf.mxu0
      %v419 = vadd.f32 %v289, %v418
      %420 = vdwg.mxu0
      %423 = vrot.lane.b32.xlu0 %v413, 96
      %v424 = vpop.permute.xlu0 %423
      %425 = vrot.lane.b32.xlu0 %v417, 96
      %v426 = vpop.permute.xlu0 %425
      %429 = vrot.lane.b32.xlu0 %v413, 64
      %v430 = vpop.permute.xlu0 %429
      %431 = vrot.lane.b32.xlu0 %v417, 64
      %v432 = vpop.permute.xlu0 %431
      %435 = vrot.lane.b32.xlu0 %v413, 32
      %v436 = vpop.permute.xlu0 %435
      %437 = vrot.lane.b32.xlu0 %v417, 32
      %v438 = vpop.permute.xlu0 %437
      %v441 = vcombine.low %v413, %v430
      %v442 = vcombine.high %v413, %v430
      %v444 = vunpack.c.l.s4 1983009808
      %v445 = vunpack.c.0.s8 %v444
      %v446 = vlaneseq
      %v447 = vshrl.u32 %v446, 7
      %v448 = vsub.s32 %v445, %v447
      %v449 = vrot.slane %v441, %v448
      %v451 = vunpack.c.l.s4 1983009808
      %v452 = vunpack.c.0.s8 %v451
      %v453 = vlaneseq
      %v454 = vshrl.u32 %v453, 7
      %v455 = vsub.s32 %v452, %v454
      %v456 = vrot.slane %v442, %v455
      %v457 = vcombine.low %v424, %v436
      %v458 = vcombine.high %v424, %v436
      %v460 = vunpack.c.l.s4 1983009808
      %v461 = vunpack.c.0.s8 %v460
      %v462 = vlaneseq
      %v463 = vshrl.u32 %v462, 7
      %v464 = vsub.s32 %v461, %v463
      %v465 = vrot.slane %v457, %v464
      %v467 = vunpack.c.l.s4 1983009808
      %v468 = vunpack.c.0.s8 %v467
      %v469 = vlaneseq
      %v470 = vshrl.u32 %v469, 7
      %v471 = vsub.s32 %v468, %v470
      %v472 = vrot.slane %v458, %v471
      %v473 = vcombine.low %v449, %v465
      %v474 = vcombine.high %v449, %v465
      %v476 = vunpack.c.l.s4 1934713408
      %v477 = vunpack.c.0.s8 %v476
      %v478 = vlaneseq
      %v479 = vshrl.u32 %v478, 7
      %v480 = vsub.s32 %v477, %v479
      %v481 = vrot.slane %v473, %v480
      %v483 = vunpack.c.l.s4 1934713408
      %v484 = vunpack.c.0.s8 %v483
      %v485 = vlaneseq
      %v486 = vshrl.u32 %v485, 7
      %v487 = vsub.s32 %v484, %v486
      %v488 = vrot.slane %v474, %v487
      %v489 = vcombine.low %v456, %v472
      %v490 = vcombine.high %v456, %v472
      %v492 = vunpack.c.l.s4 1934713408
      %v493 = vunpack.c.0.s8 %v492
      %v494 = vlaneseq
      %v495 = vshrl.u32 %v494, 7
      %v496 = vsub.s32 %v493, %v495
      %v497 = vrot.slane %v489, %v496
      %v499 = vunpack.c.l.s4 1934713408
      %v500 = vunpack.c.0.s8 %v499
      %v501 = vlaneseq
      %v502 = vshrl.u32 %v501, 7
      %v503 = vsub.s32 %v500, %v502
      %v504 = vrot.slane %v490, %v503
      %v505 = vcombine.high %v481, 0.0
      %v506 = vcombine.high %v488, 0.0
      %v507 = vcombine.high %v497, 0.0
      %v508 = vcombine.high %v504, 0.0
      %v509 = vcombine.low %v417, %v432
      %v510 = vcombine.high %v417, %v432
      %v512 = vunpack.c.l.s4 1983009808
      %v513 = vunpack.c.0.s8 %v512
      %v514 = vlaneseq
      %v515 = vshrl.u32 %v514, 7
      %v516 = vsub.s32 %v513, %v515
      %v517 = vrot.slane %v509, %v516
      %v519 = vunpack.c.l.s4 1983009808
      %v520 = vunpack.c.0.s8 %v519
      %v521 = vlaneseq
      %v522 = vshrl.u32 %v521, 7
      %v523 = vsub.s32 %v520, %v522
      %v524 = vrot.slane %v510, %v523
      %v525 = vcombine.low %v426, %v438
      %v526 = vcombine.high %v426, %v438
      %v528 = vunpack.c.l.s4 1983009808
      %v529 = vunpack.c.0.s8 %v528
      %v530 = vlaneseq
      %v531 = vshrl.u32 %v530, 7
      %v532 = vsub.s32 %v529, %v531
      %v533 = vrot.slane %v525, %v532
      %v535 = vunpack.c.l.s4 1983009808
      %v536 = vunpack.c.0.s8 %v535
      %v537 = vlaneseq
      %v538 = vshrl.u32 %v537, 7
      %v539 = vsub.s32 %v536, %v538
      %v540 = vrot.slane %v526, %v539
      %v541 = vcombine.low %v517, %v533
      %v542 = vcombine.high %v517, %v533
      %v544 = vunpack.c.l.s4 1934713408
      %v545 = vunpack.c.0.s8 %v544
      %v546 = vlaneseq
      %v547 = vshrl.u32 %v546, 7
      %v548 = vsub.s32 %v545, %v547
      %v549 = vrot.slane %v541, %v548
      %v551 = vunpack.c.l.s4 1934713408
      %v552 = vunpack.c.0.s8 %v551
      %v553 = vlaneseq
      %v554 = vshrl.u32 %v553, 7
      %v555 = vsub.s32 %v552, %v554
      %v556 = vrot.slane %v542, %v555
      %v557 = vcombine.low %v524, %v540
      %v558 = vcombine.high %v524, %v540
      %v560 = vunpack.c.l.s4 1934713408
      %v561 = vunpack.c.0.s8 %v560
      %v562 = vlaneseq
      %v563 = vshrl.u32 %v562, 7
      %v564 = vsub.s32 %v561, %v563
      %v565 = vrot.slane %v557, %v564
      %v567 = vunpack.c.l.s4 1934713408
      %v568 = vunpack.c.0.s8 %v567
      %v569 = vlaneseq
      %v570 = vshrl.u32 %v569, 7
      %v571 = vsub.s32 %v568, %v570
      %v572 = vrot.slane %v558, %v571
      %v573 = vcombine.high %v549, 0.0
      %v574 = vcombine.high %v556, 0.0
      %v575 = vcombine.high %v565, 0.0
      %v576 = vcombine.high %v572, 0.0
      %v577 = vcombine.low %v481, %v488
      %v579 = vunpack.c.l.s4 1983009808
      %v580 = vunpack.c.0.s8 %v579
      %v581 = vlaneseq
      %v582 = vshrl.u32 %v581, 7
      %v583 = vsub.s32 %v580, %v582
      %v584 = vrot.slane %v577, %v583
      %v585 = vcombine.low %v505, %v506
      %v587 = vunpack.c.l.s4 1983009808
      %v588 = vunpack.c.0.s8 %v587
      %v589 = vlaneseq
      %v590 = vshrl.u32 %v589, 7
      %v591 = vsub.s32 %v588, %v590
      %v592 = vrot.slane %v585, %v591
      %v593 = vcombine.low %v497, %v504
      %v595 = vunpack.c.l.s4 1983009808
      %v596 = vunpack.c.0.s8 %v595
      %v597 = vlaneseq
      %v598 = vshrl.u32 %v597, 7
      %v599 = vsub.s32 %v596, %v598
      %v600 = vrot.slane %v593, %v599
      %v601 = vcombine.low %v507, %v508
      %v603 = vunpack.c.l.s4 1983009808
      %v604 = vunpack.c.0.s8 %v603
      %v605 = vlaneseq
      %v606 = vshrl.u32 %v605, 7
      %v607 = vsub.s32 %v604, %v606
      %v608 = vrot.slane %v601, %v607
      %v609 = vcombine.low %v584, %v592
      %v610 = vcombine.high %v584, %v592
      %v612 = vunpack.c.l.s4 1934713408
      %v613 = vunpack.c.0.s8 %v612
      %v614 = vlaneseq
      %v615 = vshrl.u32 %v614, 7
      %v616 = vsub.s32 %v613, %v615
      %v617 = vrot.slane %v609, %v616
      %v619 = vunpack.c.l.s4 1934713408
      %v620 = vunpack.c.0.s8 %v619
      %v621 = vlaneseq
      %v622 = vshrl.u32 %v621, 7
      %v623 = vsub.s32 %v620, %v622
      %v624 = vrot.slane %v610, %v623
      %v625 = vcombine.low %v600, %v608
      %v626 = vcombine.high %v600, %v608
      %v628 = vunpack.c.l.s4 1934713408
      %v629 = vunpack.c.0.s8 %v628
      %v630 = vlaneseq
      %v631 = vshrl.u32 %v630, 7
      %v632 = vsub.s32 %v629, %v631
      %v633 = vrot.slane %v625, %v632
      %v635 = vunpack.c.l.s4 1934713408
      %v636 = vunpack.c.0.s8 %v635
      %v637 = vlaneseq
      %v638 = vshrl.u32 %v637, 7
      %v639 = vsub.s32 %v636, %v638
      %v640 = vrot.slane %v626, %v639
      %v641 = vcombine.low %v617, %v633
      %v642 = vcombine.high %v617, %v633
      %v643 = vcombine.low %v624, %v640
      %v644 = vcombine.high %v624, %v640
      %v645 = vcombine.low %v549, %v556
      %v647 = vunpack.c.l.s4 1983009808
      %v648 = vunpack.c.0.s8 %v647
      %v649 = vlaneseq
      %v650 = vshrl.u32 %v649, 7
      %v651 = vsub.s32 %v648, %v650
      %v652 = vrot.slane %v645, %v651
      %v653 = vcombine.low %v573, %v574
      %v655 = vunpack.c.l.s4 1983009808
      %v656 = vunpack.c.0.s8 %v655
      %v657 = vlaneseq
      %v658 = vshrl.u32 %v657, 7
      %v659 = vsub.s32 %v656, %v658
      %v660 = vrot.slane %v653, %v659
      %v661 = vcombine.low %v565, %v572
      %v663 = vunpack.c.l.s4 1983009808
      %v664 = vunpack.c.0.s8 %v663
      %v665 = vlaneseq
      %v666 = vshrl.u32 %v665, 7
      %v667 = vsub.s32 %v664, %v666
      %v668 = vrot.slane %v661, %v667
      %v669 = vcombine.low %v575, %v576
      %v671 = vunpack.c.l.s4 1983009808
      %v672 = vunpack.c.0.s8 %v671
      %v673 = vlaneseq
      %v674 = vshrl.u32 %v673, 7
      %v675 = vsub.s32 %v672, %v674
      %v676 = vrot.slane %v669, %v675
      %v677 = vcombine.low %v652, %v660
      %v678 = vcombine.high %v652, %v660
      %v680 = vunpack.c.l.s4 1934713408
      %v681 = vunpack.c.0.s8 %v680
      %v682 = vlaneseq
      %v683 = vshrl.u32 %v682, 7
      %v684 = vsub.s32 %v681, %v683
      %v685 = vrot.slane %v677, %v684
      %v687 = vunpack.c.l.s4 1934713408
      %v688 = vunpack.c.0.s8 %v687
      %v689 = vlaneseq
      %v690 = vshrl.u32 %v689, 7
      %v691 = vsub.s32 %v688, %v690
      %v692 = vrot.slane %v678, %v691
      %v693 = vcombine.low %v668, %v676
      %v694 = vcombine.high %v668, %v676
      %v696 = vunpack.c.l.s4 1934713408
      %v697 = vunpack.c.0.s8 %v696
      %v698 = vlaneseq
      %v699 = vshrl.u32 %v698, 7
      %v700 = vsub.s32 %v697, %v699
      %v701 = vrot.slane %v693, %v700
      %v703 = vunpack.c.l.s4 1934713408
      %v704 = vunpack.c.0.s8 %v703
      %v705 = vlaneseq
      %v706 = vshrl.u32 %v705, 7
      %v707 = vsub.s32 %v704, %v706
      %v708 = vrot.slane %v694, %v707
      %v709 = vcombine.low %v685, %v701
      %v710 = vcombine.high %v685, %v701
      %v711 = vcombine.low %v692, %v708
      %v712 = vcombine.high %v692, %v708
      %715 = vrot.lane.b32.xlu0 %v415, 96
      %v716 = vpop.permute.xlu0 %715
      %717 = vrot.lane.b32.xlu0 %v419, 96
      %v718 = vpop.permute.xlu0 %717
      %721 = vrot.lane.b32.xlu0 %v415, 64
      %v722 = vpop.permute.xlu0 %721
      %723 = vrot.lane.b32.xlu0 %v419, 64
      %v724 = vpop.permute.xlu0 %723
      %727 = vrot.lane.b32.xlu0 %v415, 32
      %v728 = vpop.permute.xlu0 %727
      %729 = vrot.lane.b32.xlu0 %v419, 32
      %v730 = vpop.permute.xlu0 %729
      %v733 = vcombine.low %v415, %v722
      %v734 = vcombine.high %v415, %v722
      %v736 = vunpack.c.l.s4 1983009808
      %v737 = vunpack.c.0.s8 %v736
      %v738 = vlaneseq
      %v739 = vshrl.u32 %v738, 7
      %v740 = vsub.s32 %v737, %v739
      %v741 = vrot.slane %v733, %v740
      %v743 = vunpack.c.l.s4 1983009808
      %v744 = vunpack.c.0.s8 %v743
      %v745 = vlaneseq
      %v746 = vshrl.u32 %v745, 7
      %v747 = vsub.s32 %v744, %v746
      %v748 = vrot.slane %v734, %v747
      %v749 = vcombine.low %v716, %v728
      %v750 = vcombine.high %v716, %v728
      %v752 = vunpack.c.l.s4 1983009808
      %v753 = vunpack.c.0.s8 %v752
      %v754 = vlaneseq
      %v755 = vshrl.u32 %v754, 7
      %v756 = vsub.s32 %v753, %v755
      %v757 = vrot.slane %v749, %v756
      %v759 = vunpack.c.l.s4 1983009808
      %v760 = vunpack.c.0.s8 %v759
      %v761 = vlaneseq
      %v762 = vshrl.u32 %v761, 7
      %v763 = vsub.s32 %v760, %v762
      %v764 = vrot.slane %v750, %v763
      %v765 = vcombine.low %v741, %v757
      %v766 = vcombine.high %v741, %v757
      %v768 = vunpack.c.l.s4 1934713408
      %v769 = vunpack.c.0.s8 %v768
      %v770 = vlaneseq
      %v771 = vshrl.u32 %v770, 7
      %v772 = vsub.s32 %v769, %v771
      %v773 = vrot.slane %v765, %v772
      %v775 = vunpack.c.l.s4 1934713408
      %v776 = vunpack.c.0.s8 %v775
      %v777 = vlaneseq
      %v778 = vshrl.u32 %v777, 7
      %v779 = vsub.s32 %v776, %v778
      %v780 = vrot.slane %v766, %v779
      %v781 = vcombine.low %v748, %v764
      %v782 = vcombine.high %v748, %v764
      %v784 = vunpack.c.l.s4 1934713408
      %v785 = vunpack.c.0.s8 %v784
      %v786 = vlaneseq
      %v787 = vshrl.u32 %v786, 7
      %v788 = vsub.s32 %v785, %v787
      %v789 = vrot.slane %v781, %v788
      %v791 = vunpack.c.l.s4 1934713408
      %v792 = vunpack.c.0.s8 %v791
      %v793 = vlaneseq
      %v794 = vshrl.u32 %v793, 7
      %v795 = vsub.s32 %v792, %v794
      %v796 = vrot.slane %v782, %v795
      %v797 = vcombine.high %v773, 0.0
      %v798 = vcombine.high %v780, 0.0
      %v799 = vcombine.high %v789, 0.0
      %v800 = vcombine.high %v796, 0.0
      %v801 = vcombine.low %v419, %v724
      %v802 = vcombine.high %v419, %v724
      %v804 = vunpack.c.l.s4 1983009808
      %v805 = vunpack.c.0.s8 %v804
      %v806 = vlaneseq
      %v807 = vshrl.u32 %v806, 7
      %v808 = vsub.s32 %v805, %v807
      %v809 = vrot.slane %v801, %v808
      %v811 = vunpack.c.l.s4 1983009808
      %v812 = vunpack.c.0.s8 %v811
      %v813 = vlaneseq
      %v814 = vshrl.u32 %v813, 7
      %v815 = vsub.s32 %v812, %v814
      %v816 = vrot.slane %v802, %v815
      %v817 = vcombine.low %v718, %v730
      %v818 = vcombine.high %v718, %v730
      %v820 = vunpack.c.l.s4 1983009808
      %v821 = vunpack.c.0.s8 %v820
      %v822 = vlaneseq
      %v823 = vshrl.u32 %v822, 7
      %v824 = vsub.s32 %v821, %v823
      %v825 = vrot.slane %v817, %v824
      %v827 = vunpack.c.l.s4 1983009808
      %v828 = vunpack.c.0.s8 %v827
      %v829 = vlaneseq
      %v830 = vshrl.u32 %v829, 7
      %v831 = vsub.s32 %v828, %v830
      %v832 = vrot.slane %v818, %v831
      %v833 = vcombine.low %v809, %v825
      %v834 = vcombine.high %v809, %v825
      %v836 = vunpack.c.l.s4 1934713408
      %v837 = vunpack.c.0.s8 %v836
      %v838 = vlaneseq
      %v839 = vshrl.u32 %v838, 7
      %v840 = vsub.s32 %v837, %v839
      %v841 = vrot.slane %v833, %v840
      %v843 = vunpack.c.l.s4 1934713408
      %v844 = vunpack.c.0.s8 %v843
      %v845 = vlaneseq
      %v846 = vshrl.u32 %v845, 7
      %v847 = vsub.s32 %v844, %v846
      %v848 = vrot.slane %v834, %v847
      %v849 = vcombine.low %v816, %v832
      %v850 = vcombine.high %v816, %v832
      %v852 = vunpack.c.l.s4 1934713408
      %v853 = vunpack.c.0.s8 %v852
      %v854 = vlaneseq
      %v855 = vshrl.u32 %v854, 7
      %v856 = vsub.s32 %v853, %v855
      %v857 = vrot.slane %v849, %v856
      %v859 = vunpack.c.l.s4 1934713408
      %v860 = vunpack.c.0.s8 %v859
      %v861 = vlaneseq
      %v862 = vshrl.u32 %v861, 7
      %v863 = vsub.s32 %v860, %v862
      %v864 = vrot.slane %v850, %v863
      %v865 = vcombine.high %v841, 0.0
      %v866 = vcombine.high %v848, 0.0
      %v867 = vcombine.high %v857, 0.0
      %v868 = vcombine.high %v864, 0.0
      %v869 = vcombine.low %v773, %v780
      %v871 = vunpack.c.l.s4 1983009808
      %v872 = vunpack.c.0.s8 %v871
      %v873 = vlaneseq
      %v874 = vshrl.u32 %v873, 7
      %v875 = vsub.s32 %v872, %v874
      %v876 = vrot.slane %v869, %v875
      %v877 = vcombine.low %v797, %v798
      %v879 = vunpack.c.l.s4 1983009808
      %v880 = vunpack.c.0.s8 %v879
      %v881 = vlaneseq
      %v882 = vshrl.u32 %v881, 7
      %v883 = vsub.s32 %v880, %v882
      %v884 = vrot.slane %v877, %v883
      %v885 = vcombine.low %v789, %v796
      %v887 = vunpack.c.l.s4 1983009808
      %v888 = vunpack.c.0.s8 %v887
      %v889 = vlaneseq
      %v890 = vshrl.u32 %v889, 7
      %v891 = vsub.s32 %v888, %v890
      %v892 = vrot.slane %v885, %v891
      %v893 = vcombine.low %v799, %v800
      %v895 = vunpack.c.l.s4 1983009808
      %v896 = vunpack.c.0.s8 %v895
      %v897 = vlaneseq
      %v898 = vshrl.u32 %v897, 7
      %v899 = vsub.s32 %v896, %v898
      %v900 = vrot.slane %v893, %v899
      %v901 = vcombine.low %v876, %v884
      %v902 = vcombine.high %v876, %v884
      %v904 = vunpack.c.l.s4 1934713408
      %v905 = vunpack.c.0.s8 %v904
      %v906 = vlaneseq
      %v907 = vshrl.u32 %v906, 7
      %v908 = vsub.s32 %v905, %v907
      %v909 = vrot.slane %v901, %v908
      %v911 = vunpack.c.l.s4 1934713408
      %v912 = vunpack.c.0.s8 %v911
      %v913 = vlaneseq
      %v914 = vshrl.u32 %v913, 7
      %v915 = vsub.s32 %v912, %v914
      %v916 = vrot.slane %v902, %v915
      %v917 = vcombine.low %v892, %v900
      %v918 = vcombine.high %v892, %v900
      %v920 = vunpack.c.l.s4 1934713408
      %v921 = vunpack.c.0.s8 %v920
      %v922 = vlaneseq
      %v923 = vshrl.u32 %v922, 7
      %v924 = vsub.s32 %v921, %v923
      %v925 = vrot.slane %v917, %v924
      %v927 = vunpack.c.l.s4 1934713408
      %v928 = vunpack.c.0.s8 %v927
      %v929 = vlaneseq
      %v930 = vshrl.u32 %v929, 7
      %v931 = vsub.s32 %v928, %v930
      %v932 = vrot.slane %v918, %v931
      %v933 = vcombine.low %v909, %v925
      %v934 = vcombine.high %v909, %v925
      %v935 = vcombine.low %v916, %v932
      %v936 = vcombine.high %v916, %v932
      %v937 = vcombine.low %v841, %v848
      %v939 = vunpack.c.l.s4 1983009808
      %v940 = vunpack.c.0.s8 %v939
      %v941 = vlaneseq
      %v942 = vshrl.u32 %v941, 7
      %v943 = vsub.s32 %v940, %v942
      %v944 = vrot.slane %v937, %v943
      %v945 = vcombine.low %v865, %v866
      %v947 = vunpack.c.l.s4 1983009808
      %v948 = vunpack.c.0.s8 %v947
      %v949 = vlaneseq
      %v950 = vshrl.u32 %v949, 7
      %v951 = vsub.s32 %v948, %v950
      %v952 = vrot.slane %v945, %v951
      %v953 = vcombine.low %v857, %v864
      %v955 = vunpack.c.l.s4 1983009808
      %v956 = vunpack.c.0.s8 %v955
      %v957 = vlaneseq
      %v958 = vshrl.u32 %v957, 7
      %v959 = vsub.s32 %v956, %v958
      %v960 = vrot.slane %v953, %v959
      %v961 = vcombine.low %v867, %v868
      %v963 = vunpack.c.l.s4 1983009808
      %v964 = vunpack.c.0.s8 %v963
      %v965 = vlaneseq
      %v966 = vshrl.u32 %v965, 7
      %v967 = vsub.s32 %v964, %v966
      %v968 = vrot.slane %v961, %v967
      %v969 = vcombine.low %v944, %v952
      %v970 = vcombine.high %v944, %v952
      %v972 = vunpack.c.l.s4 1934713408
      %v973 = vunpack.c.0.s8 %v972
      %v974 = vlaneseq
      %v975 = vshrl.u32 %v974, 7
      %v976 = vsub.s32 %v973, %v975
      %v977 = vrot.slane %v969, %v976
      %v979 = vunpack.c.l.s4 1934713408
      %v980 = vunpack.c.0.s8 %v979
      %v981 = vlaneseq
      %v982 = vshrl.u32 %v981, 7
      %v983 = vsub.s32 %v980, %v982
      %v984 = vrot.slane %v970, %v983
      %v985 = vcombine.low %v960, %v968
      %v986 = vcombine.high %v960, %v968
      %v988 = vunpack.c.l.s4 1934713408
      %v989 = vunpack.c.0.s8 %v988
      %v990 = vlaneseq
      %v991 = vshrl.u32 %v990, 7
      %v992 = vsub.s32 %v989, %v991
      %v993 = vrot.slane %v985, %v992
      %v995 = vunpack.c.l.s4 1934713408
      %v996 = vunpack.c.0.s8 %v995
      %v997 = vlaneseq
      %v998 = vshrl.u32 %v997, 7
      %v999 = vsub.s32 %v996, %v998
      %v1000 = vrot.slane %v986, %v999
      %v1001 = vcombine.low %v977, %v993
      %v1002 = vcombine.high %v977, %v993
      %v1003 = vcombine.low %v984, %v1000
      %v1004 = vcombine.high %v984, %v1000
      %v1005 = vpack.c.bf16 %v709, %v641
      %v1006 = vpack.c.bf16 %v710, %v642
      %v1007 = vpack.c.bf16 %v711, %v643
      %v1008 = vpack.c.bf16 %v712, %v644
      %v1013 = vunpack.c.l.b16 %v1005
      %v1014 = vunpack.c.h.b16 %v1005
      %v1015 = vunpack.c.l.b16 %v1006
      %v1016 = vunpack.c.h.b16 %v1006
      %v1017 = vunpack.c.l.b16 %v1007
      %v1018 = vunpack.c.h.b16 %v1007
      %v1019 = vunpack.c.l.b16 %v1008
      %v1020 = vunpack.c.h.b16 %v1008
      %v1021 = vpack.c.b16 %v1013, %v1013
      %v1022 = vpack.c.b16 %v1014, %v1014
      %v1023 = vpack.c.b16 %v1015, %v1015
      %v1024 = vpack.c.b16 %v1016, %v1016
      %v1025 = vpack.c.b16 %v1017, %v1017
      %v1026 = vpack.c.b16 %v1018, %v1018
      %v1027 = vpack.c.b16 %v1019, %v1019
      %v1028 = vpack.c.b16 %v1020, %v1020
      %vm1037 = vcmask 257024
      %1038 = vst.msk [vmem:[%s249] sm:$0xf] %vm1037, %v1021
      %1039 = vst.msk [vmem:[%s249 + $0x4] sm:$0xf] %vm1037, %v1022
      %1040 = vst.msk [vmem:[%s249 + $0x8] sm:$0xf] %vm1037, %v1023
      %1041 = vst.msk [vmem:[%s249 + $0xc] sm:$0xf] %vm1037, %v1024
      %1042 = vst.msk [vmem:[%s249 + $0x10] sm:$0xf] %vm1037, %v1025
      %1043 = vst.msk [vmem:[%s249 + $0x14] sm:$0xf] %vm1037, %v1026
      %1044 = vst.msk [vmem:[%s249 + $0x18] sm:$0xf] %vm1037, %v1027
      %1045 = vst.msk [vmem:[%s249 + $0x1c] sm:$0xf] %vm1037, %v1028
      %v1046 = vpack.c.bf16 %v1001, %v933
      %v1047 = vpack.c.bf16 %v1002, %v934
      %v1048 = vpack.c.bf16 %v1003, %v935
      %v1049 = vpack.c.bf16 %v1004, %v936
      %v1054 = vunpack.c.l.b16 %v1046
      %v1055 = vunpack.c.h.b16 %v1046
      %v1056 = vunpack.c.l.b16 %v1047
      %v1057 = vunpack.c.h.b16 %v1047
      %v1058 = vunpack.c.l.b16 %v1048
      %v1059 = vunpack.c.h.b16 %v1048
      %v1060 = vunpack.c.l.b16 %v1049
      %v1061 = vunpack.c.h.b16 %v1049
      %v1062 = vpack.c.b16 %v1054, %v1054
      %v1063 = vpack.c.b16 %v1055, %v1055
      %v1064 = vpack.c.b16 %v1056, %v1056
      %v1065 = vpack.c.b16 %v1057, %v1057
      %v1066 = vpack.c.b16 %v1058, %v1058
      %v1067 = vpack.c.b16 %v1059, %v1059
      %v1068 = vpack.c.b16 %v1060, %v1060
      %v1069 = vpack.c.b16 %v1061, %v1061
      %1078 = vst.msk [vmem:[%s259] sm:$0xf] %vm1037, %v1062
      %1079 = vst.msk [vmem:[%s259 + $0x4] sm:$0xf] %vm1037, %v1063
      %1080 = vst.msk [vmem:[%s259 + $0x8] sm:$0xf] %vm1037, %v1064
      %1081 = vst.msk [vmem:[%s259 + $0xc] sm:$0xf] %vm1037, %v1065
      %1082 = vst.msk [vmem:[%s259 + $0x10] sm:$0xf] %vm1037, %v1066
      %1083 = vst.msk [vmem:[%s259 + $0x14] sm:$0xf] %vm1037, %v1067
      %1084 = vst.msk [vmem:[%s259 + $0x18] sm:$0xf] %vm1037, %v1068
      %1085 = vst.msk [vmem:[%s259 + $0x1c] sm:$0xf] %vm1037, %v1069
      %s1086 = smul.u32 2, %s21
      %p1087 = scmp.lt.s32.totalorder %s20, 1
      %s1088 = scalar_select %p1087, %s20, 1
      %p1089 = scmp.lt.s32.totalorder %s1086, 1
      %s1090 = scalar_select %p1089, %s1086, 1
      %s1091 = smul.addr %s1088, 8
      %s1092 = sadd.s32 %s1090, %s1091
      %s1093 = smul.addr %s1092, 4
      %s1094 = scalar_lea.vmem %s3, %s1093
      %s1095 = smul.u32 2, %s21
      %p1096 = scmp.lt.s32.totalorder %s20, 1
      %s1097 = scalar_select %p1096, %s20, 1
      %p1098 = scmp.lt.s32.totalorder %s1095, 1
      %s1099 = scalar_select %p1098, %s1095, 1
      %s1100 = smul.addr %s1097, 8
      %s1101 = sadd.s32 %s1099, %s1100
      %s1102 = smul.addr %s1101, 4
      %s1103 = scalar_lea.vmem %s4, %s1102
      // Predicated region
      $region33: #{transformer_forward.11} parent=31 // pred_check
        %p1104 = pneg %p118
      $region34: #{transformer_forward.11} parent=31 // pred_check_branch
        %1106 = sbr.rel (%p1104) target = $region36
      $region35: #{transformer_forward.11} parent=31 // pred_region
        %s1107 = smul.u32 2, %s21
      $region36: #{transformer_forward.11} parent=31 // pred_fallthru
        _
      // Predicated region
      $region37: #{transformer_forward.11} parent=31 // pred_check
        %p1108 = pneg %p146
      $region38: #{transformer_forward.11} parent=31 // pred_check_branch
        %1110 = sbr.rel (%p1108) target = $region40
      $region39: #{transformer_forward.11} parent=31 // pred_region
        %s1111 = smul.u32 2, %s21
      $region40: #{transformer_forward.11} parent=31 // pred_fallthru
        _
    $region32: #{transformer_forward.11} parent=5 // pred_fallthru
      _
    %p1112 = scmp.le.s32.totalorder 2, %s11
    // Predicated region
    $region41: #{transformer_forward.11} parent=5 // pred_check
      %p1113 = pneg %p1112
    $region42: #{transformer_forward.11} parent=5 // pred_check_branch
      %1115 = sbr.rel (%p1113) target = $region44
    $region43: #{transformer_forward.11} parent=5 // pred_region
      %s1116 = ssub.s32 %s11, 2
      // Predicated region
      $region45: #{transformer_forward.11} parent=43 // pred_check
        %p1117 = pneg %p124
      $region46: #{transformer_forward.11} parent=43 // pred_check_branch
        %1119 = sbr.rel (%p1117) target = $region48
      $region47: #{transformer_forward.11} parent=43 // pred_region
        %s1120 = smul.u32 2, %s23
        %p1121 = scmp.lt.s32.totalorder %s22, 1
        %s1122 = scalar_select %p1121, %s22, 1
        %p1123 = scmp.lt.s32.totalorder %s1120, 1
        %s1124 = scalar_select %p1123, %s1120, 1
        %s1125 = smul.addr %s1122, 8
        %s1126 = sadd.s32 %s1124, %s1125
        %s1127 = smul.addr %s1126, 4
        %s1128 = scalar_lea.vmem %s3, %s1127
      $region48: #{transformer_forward.11} parent=43 // pred_fallthru
        _
      // Predicated region
      $region49: #{transformer_forward.11} parent=43 // pred_check
        %p1129 = pneg %p152
      $region50: #{transformer_forward.11} parent=43 // pred_check_branch
        %1131 = sbr.rel (%p1129) target = $region52
      $region51: #{transformer_forward.11} parent=43 // pred_region
        %s1132 = smul.u32 2, %s23
        %p1133 = scmp.lt.s32.totalorder %s22, 1
        %s1134 = scalar_select %p1133, %s22, 1
        %p1135 = scmp.lt.s32.totalorder %s1132, 1
        %s1136 = scalar_select %p1135, %s1132, 1
        %s1137 = smul.addr %s1134, 8
        %s1138 = sadd.s32 %s1136, %s1137
        %s1139 = smul.addr %s1138, 4
        %s1140 = scalar_lea.vmem %s4, %s1139
      $region52: #{transformer_forward.11} parent=43 // pred_fallthru
        _
    $region44: #{transformer_forward.11} parent=5 // pred_fallthru
      _
  $region6: #{transformer_forward.11} parent=0 // loop_footer
    %s15 = sadd.s32 1, %s11
  $region7: #{transformer_forward.11} parent=0 // loop_footer_branch
    %10 = sbr.rel target = $region3
  $region8: #{transformer_forward.11} parent=0 // loop_exit
    _

// kernel: transformer_forward.15
$region0: #{transformer_forward.15}
  #allocation0 [shape = 'u32[]', space=smem, size = 0x4, offset = 0x4, fixed_abs, tag = 'smem constant byte address 0x4 - core index']
  #allocation1 [shape = 'u32[144,128]{1,0:T(1,128)}', space=vmem, size = 0x12000, scoped, tag = 'internal scratch']
  %s0 = inlined_call_operand.vmem [shape: bf16[2,8,128], index: 0, kind: input, shape index: {}]
  %s1 = inlined_call_operand.vmem [shape: bf16[128,256], index: 1, kind: input, shape index: {}]
  %s2 = inlined_call_operand.vmem [shape: f32[1,256], index: 2, kind: input, shape index: {}]
  %s3 = inlined_call_operand.vmem [shape: bf16[2,4,8,32], index: 3, kind: output, shape index: {0}]
  %s4 = inlined_call_operand.vmem [shape: bf16[2,4,8,32], index: 4, kind: output, shape index: {1}]
  %5 = xla_tuple %s3, %s4
  %s6 = sld [smem:[#allocation0]]
  $region53: #{transformer_forward.15} parent=0
    _
  %s8 = ssub.s32 1, %s6
  %s9 = scalar_select 0, %s8, %s6
  loop: start=0, step=1, limit=4
  $region2: #{transformer_forward.15} parent=0 // loop_pre_header
    _
  $region3: #{transformer_forward.15} parent=0 // loop_header
    %s11 = sphi 0, %s15
    %p12 = scmp.ge.s32.totalorder %s11, 4
    %s18 = sphi 0, %s30
    %s19 = sphi 0, %s26
    %s20 = sphi 0, %s18
    %s21 = sphi 0, %s19
    %s22 = sphi 0, %s20
    %s23 = sphi 0, %s21
    %s35 = sphi 0, %s37
    %s38 = sphi 0, %s35
    %s39 = sphi 0, %s38
    %s55 = sphi 0, %s39
    %s59 = sphi 0, %s59
    %s61 = sphi 0, %s59
    %s62 = sphi 0, %s61
    %s76 = sphi 0, %s62
    %s80 = sphi 0, %s80
    %s82 = sphi 0, %s80
    %s83 = sphi 0, %s82
    %s97 = sphi 0, %s83
    %s105 = sphi 0, %s107
    %s108 = sphi 0, %s105
    %s109 = sphi 0, %s108
    %s125 = sphi 0, %s109
    %s133 = sphi 0, %s135
    %s136 = sphi 0, %s133
    %s137 = sphi 0, %s136
    %s153 = sphi 0, %s137
  $region4: #{transformer_forward.15} parent=0 // loop_header_branch
    %14 = sbr.rel (%p12) target = $region8
  $region5: #{transformer_forward.15} parent=0 // loop_body
    %s16 = ssub.s32 %s11, 1
    %s17 = ssub.s32 %s11, 2
    %s24 = sadd.s32 1, %s19
    %p25 = scmp.ge.s32.totalorder %s24, 1
    %s26 = scalar_select %p25, 0, %s24
    %s27 = sadd.s32 1, %s18
    %s28 = scalar_select %p25, %s27, %s18
    %p29 = scmp.ge.s32.totalorder %s28, 2
    %s30 = scalar_select %p29, 0, %s28
    %s31 = ssub.s32 %s18, %s30
    %s32 = ssub.s32 %s19, %s26
    %s33 = sor.u32 %s31, %s32
    %p34 = scmp.eq.s32.totalorder %s33, 0
    %s36 = sadd.s32 %s35, 1
    %s37 = scalar_select %p34, %s35, %s36
    %p40 = pneg %p34
    %p41 = scmp.eq.s32.totalorder %s11, 1
    %p42 = por %p40, %p41
    %p43 = scmp.ne.s32.totalorder %s35, %s38
    %p44 = scmp.eq.s32.totalorder %s11, 0
    %p45 = por %p43, %p44
    %p46 = scmp.ne.s32.totalorder %s35, %s38
    %p47 = scmp.eq.s32.totalorder %s16, 1
    %p48 = por %p46, %p47
    %p49 = scmp.ne.s32.totalorder %s38, %s39
    %p50 = scmp.eq.s32.totalorder %s16, 0
    %p51 = por %p49, %p50
    %p52 = scmp.ne.s32.totalorder %s38, %s39
    %p53 = scmp.eq.s32.totalorder %s17, 1
    %p54 = por %p52, %p53
    %p56 = scmp.ne.s32.totalorder %s39, %s55
    %p57 = scmp.eq.s32.totalorder %s17, 0
    %p58 = por %p56, %p57
    %s60 = sadd.s32 %s59, 1
    %p63 = scmp.eq.s32.totalorder %s11, 1
    %p64 = scmp.ne.s32.totalorder %s59, %s61
    %p65 = scmp.eq.s32.totalorder %s11, 0
    %p66 = por %p64, %p65
    %p67 = scmp.ne.s32.totalorder %s59, %s61
    %p68 = scmp.eq.s32.totalorder %s16, 1
    %p69 = por %p67, %p68
    %p70 = scmp.ne.s32.totalorder %s61, %s62
    %p71 = scmp.eq.s32.totalorder %s16, 0
    %p72 = por %p70, %p71
    %p73 = scmp.ne.s32.totalorder %s61, %s62
    %p74 = scmp.eq.s32.totalorder %s17, 1
    %p75 = por %p73, %p74
    %p77 = scmp.ne.s32.totalorder %s62, %s76
    %p78 = scmp.eq.s32.totalorder %s17, 0
    %p79 = por %p77, %p78
    %s81 = sadd.s32 %s80, 1
    %p84 = scmp.eq.s32.totalorder %s11, 1
    %p85 = scmp.ne.s32.totalorder %s80, %s82
    %p86 = scmp.eq.s32.totalorder %s11, 0
    %p87 = por %p85, %p86
    %p88 = scmp.ne.s32.totalorder %s80, %s82
    %p89 = scmp.eq.s32.totalorder %s16, 1
    %p90 = por %p88, %p89
    %p91 = scmp.ne.s32.totalorder %s82, %s83
    %p92 = scmp.eq.s32.totalorder %s16, 0
    %p93 = por %p91, %p92
    %p94 = scmp.ne.s32.totalorder %s82, %s83
    %p95 = scmp.eq.s32.totalorder %s17, 1
    %p96 = por %p94, %p95
    %p98 = scmp.ne.s32.totalorder %s83, %s97
    %p99 = scmp.eq.s32.totalorder %s17, 0
    %p100 = por %p98, %p99
    %s101 = ssub.s32 %s18, %s30
    %s102 = ssub.s32 %s19, %s26
    %s103 = sor.u32 %s101, %s102
    %p104 = scmp.eq.s32.totalorder %s103, 0
    %s106 = sadd.s32 %s105, 1
    %s107 = scalar_select %p104, %s105, %s106
    %p110 = pneg %p104
    %p111 = scmp.eq.s32.totalorder %s11, 1
    %p112 = por %p110, %p111
    %p113 = scmp.ne.s32.totalorder %s105, %s108
    %p114 = scmp.eq.s32.totalorder %s11, 0
    %p115 = por %p113, %p114
    %p116 = scmp.ne.s32.totalorder %s105, %s108
    %p117 = scmp.eq.s32.totalorder %s16, 1
    %p118 = por %p116, %p117
    %p119 = scmp.ne.s32.totalorder %s108, %s109
    %p120 = scmp.eq.s32.totalorder %s16, 0
    %p121 = por %p119, %p120
    %p122 = scmp.ne.s32.totalorder %s108, %s109
    %p123 = scmp.eq.s32.totalorder %s17, 1
    %p124 = por %p122, %p123
    %p126 = scmp.ne.s32.totalorder %s109, %s125
    %p127 = scmp.eq.s32.totalorder %s17, 0
    %p128 = por %p126, %p127
    %s129 = ssub.s32 %s18, %s30
    %s130 = ssub.s32 %s19, %s26
    %s131 = sor.u32 %s129, %s130
    %p132 = scmp.eq.s32.totalorder %s131, 0
    %s134 = sadd.s32 %s133, 1
    %s135 = scalar_select %p132, %s133, %s134
    %p138 = pneg %p132
    %p139 = scmp.eq.s32.totalorder %s11, 1
    %p140 = por %p138, %p139
    %p141 = scmp.ne.s32.totalorder %s133, %s136
    %p142 = scmp.eq.s32.totalorder %s11, 0
    %p143 = por %p141, %p142
    %p144 = scmp.ne.s32.totalorder %s133, %s136
    %p145 = scmp.eq.s32.totalorder %s16, 1
    %p146 = por %p144, %p145
    %p147 = scmp.ne.s32.totalorder %s136, %s137
    %p148 = scmp.eq.s32.totalorder %s16, 0
    %p149 = por %p147, %p148
    %p150 = scmp.ne.s32.totalorder %s136, %s137
    %p151 = scmp.eq.s32.totalorder %s17, 1
    %p152 = por %p150, %p151
    %p154 = scmp.ne.s32.totalorder %s137, %s153
    %p155 = scmp.eq.s32.totalorder %s17, 0
    %p156 = por %p154, %p155
    %p157 = scmp.le.s32.totalorder 1, %s11
    %p158 = scmp.lt.s32.totalorder %s11, 3
    %p159 = pnand %p157, %p158
    %p160 = pneg %p159
    // Predicated region
    $region9: #{transformer_forward.15} parent=5 // pred_check
      _
    $region10: #{transformer_forward.15} parent=5 // pred_check_branch
      %162 = sbr.rel (%p159) target = $region12
    $region11: #{transformer_forward.15} parent=5 // pred_region
      %s163 = ssub.s32 %s11, 1
      // Predicated region
      $region13: #{transformer_forward.15} parent=11 // pred_check
        %p164 = pneg %p72
      $region14: #{transformer_forward.15} parent=11 // pred_check_branch
        %166 = sbr.rel (%p164) target = $region16
      $region15: #{transformer_forward.15} parent=11 // pred_region
        _
      $region16: #{transformer_forward.15} parent=11 // pred_fallthru
        _
      // Predicated region
      $region17: #{transformer_forward.15} parent=11 // pred_check
        %p167 = pneg %p93
      $region18: #{transformer_forward.15} parent=11 // pred_check_branch
        %169 = sbr.rel (%p167) target = $region20
      $region19: #{transformer_forward.15} parent=11 // pred_region
        _
      $region20: #{transformer_forward.15} parent=11 // pred_fallthru
        _
    $region12: #{transformer_forward.15} parent=5 // pred_fallthru
      _
    %p170 = scmp.lt.s32.totalorder %s11, 2
    // Predicated region
    $region21: #{transformer_forward.15} parent=5 // pred_check
      %p171 = pneg %p170
    $region22: #{transformer_forward.15} parent=5 // pred_check_branch
      %173 = sbr.rel (%p171) target = $region24
    $region23: #{transformer_forward.15} parent=5 // pred_region
      // Predicated region
      $region25: #{transformer_forward.15} parent=23 // pred_check
        %p174 = pneg %p45
      $region26: #{transformer_forward.15} parent=23 // pred_check_branch
        %176 = sbr.rel (%p174) target = $region28
      $region27: #{transformer_forward.15} parent=23 // pred_region
        %p177 = scmp.lt.s32.totalorder %s18, 1
        %s178 = scalar_select %p177, %s18, 1
        %p179 = scmp.lt.s32.totalorder %s19, 0
        %s180 = scalar_select %p179, %s19, 0
        %s181 = sadd.s32 %s180, %s178
        %s182 = smul.addr %s181, 4
        %s183 = scalar_lea.vmem %s0, %s182
      $region28: #{transformer_forward.15} parent=23 // pred_fallthru
        _
    $region24: #{transformer_forward.15} parent=5 // pred_fallthru
      _
    %p184 = scmp.le.s32.totalorder 1, %s11
    %p185 = scmp.lt.s32.totalorder %s11, 3
    %p186 = pnand %p184, %p185
    %p187 = pneg %p186
    // Predicated region
    $region29: #{transformer_forward.15} parent=5 // pred_check
      _
    $region30: #{transformer_forward.15} parent=5 // pred_check_branch
      %189 = sbr.rel (%p186) target = $region32
    $region31: #{transformer_forward.15} parent=5 // pred_region
      %s190 = ssub.s32 %s11, 1
      %p191 = scmp.lt.s32.totalorder %s20, 1
      %s192 = scalar_select %p191, %s20, 1
      %p193 = scmp.lt.s32.totalorder %s21, 0
      %s194 = scalar_select %p193, %s21, 0
      %s195 = sadd.s32 %s194, %s192
      %s196 = smul.addr %s195, 4
      %s197 = scalar_lea.vmem %s0, %s196
      %p198 = pneg %p51
      %p199 = pneg %p48
      %p200 = pneg %p72
      %p201 = pneg %p69
      %p202 = pneg %p93
      %p203 = pneg %p90
      %p204 = pneg %p121
      %p205 = pneg %p118
      %p206 = scmp.lt.s32.totalorder %s20, 1
      %s207 = scalar_select %p206, %s20, 1
      %p208 = scmp.lt.s32.totalorder %s21, 0
      %s209 = scalar_select %p208, %s21, 0
      %s210 = smul.addr %s207, 4
      %s211 = sadd.s32 %s209, %s210
      %s212 = smul.addr %s211, 4
      %s213 = scalar_lea.vmem %s3, %s212
      %p214 = pneg %p149
      %p215 = pneg %p146
      %p216 = scmp.lt.s32.totalorder %s20, 1
      %s217 = scalar_select %p216, %s20, 1
      %p218 = scmp.lt.s32.totalorder %s21, 0
      %s219 = scalar_select %p218, %s21, 0
      %s220 = smul.addr %s217, 4
      %s221 = sadd.s32 %s219, %s220
      %s222 = smul.addr %s221, 4
      %s223 = scalar_lea.vmem %s4, %s222
      %p224 = scmp.lt.s32.totalorder %s20, 1
      %s225 = scalar_select %p224, %s20, 1
      %p226 = scmp.lt.s32.totalorder %s21, 0
      %s227 = scalar_select %p226, %s21, 0
      %s228 = sadd.s32 %s227, %s225
      %s229 = smul.addr %s228, 4
      %s230 = scalar_lea.vmem %s0, %s229
      %p231 = scmp.lt.s32.totalorder %s20, 1
      %s232 = scalar_select %p231, %s20, 1
      %p233 = scmp.lt.s32.totalorder %s21, 0
      %s234 = scalar_select %p233, %s21, 0
      %s235 = smul.addr %s232, 4
      %s236 = sadd.s32 %s234, %s235
      %s237 = smul.addr %s236, 4
      %s238 = scalar_lea.vmem %s3, %s237
      %p239 = scmp.lt.s32.totalorder %s20, 1
      %s240 = scalar_select %p239, %s20, 1
      %p241 = scmp.lt.s32.totalorder %s21, 0
      %s242 = scalar_select %p241, %s21, 0
      %s243 = smul.addr %s240, 4
      %s244 = sadd.s32 %s242, %s243
      %s245 = smul.addr %s244, 4
      %s246 = scalar_lea.vmem %s4, %s245
      %v248 = vld [vmem:[%s230] sm:$0xf]
      %v249 = vld [vmem:[%s1] sm:$0xff]
      %v250 = vld [vmem:[%s1 + $0x8] sm:$0xff]
      %v251 = vld [vmem:[%s1 + $0x10] sm:$0xff]
      %v252 = vld [vmem:[%s1 + $0x18] sm:$0xff]
      %v253 = vld [vmem:[%s1 + $0x20] sm:$0xff]
      %v254 = vld [vmem:[%s1 + $0x28] sm:$0xff]
      %v255 = vld [vmem:[%s1 + $0x30] sm:$0xff]
      %v256 = vld [vmem:[%s1 + $0x38] sm:$0xff]
      %v257 = vld [vmem:[%s1 + $0x40] sm:$0xff]
      %v258 = vld [vmem:[%s1 + $0x48] sm:$0xff]
      %v259 = vld [vmem:[%s1 + $0x50] sm:$0xff]
      %v260 = vld [vmem:[%s1 + $0x58] sm:$0xff]
      %v261 = vld [vmem:[%s1 + $0x60] sm:$0xff]
      %v262 = vld [vmem:[%s1 + $0x68] sm:$0xff]
      %v263 = vld [vmem:[%s1 + $0x70] sm:$0xff]
      %v264 = vld [vmem:[%s1 + $0x78] sm:$0xff]
      %v265 = vld [vmem:[%s2] sm:$0x3]
      %v267 = vlaneseq
      %v268 = vshrl.u32 %v267, 7
      %v269 = vsub.s32 0, %v268
      %v270 = vrot.slane %v265, %v269
      %v271 = vlaneseq
      %v272 = vshrl.u32 %v271, 7
      %v273 = vsub.s32 1, %v272
      %v274 = vrot.slane %v265, %v273
      %v293 = vunpack.c.l.b16 %v249
      %v294 = vunpack.c.h.b16 %v249
      %v295 = vunpack.c.l.b16 %v250
      %v296 = vunpack.c.h.b16 %v250
      %v297 = vunpack.c.l.b16 %v251
      %v298 = vunpack.c.h.b16 %v251
      %v299 = vunpack.c.l.b16 %v252
      %v300 = vunpack.c.h.b16 %v252
      %v301 = vunpack.c.l.b16 %v253
      %v302 = vunpack.c.h.b16 %v253
      %v303 = vunpack.c.l.b16 %v254
      %v304 = vunpack.c.h.b16 %v254
      %v305 = vunpack.c.l.b16 %v255
      %v306 = vunpack.c.h.b16 %v255
      %v307 = vunpack.c.l.b16 %v256
      %v308 = vunpack.c.h.b16 %v256
      %v309 = vunpack.c.l.b16 %v257
      %v310 = vunpack.c.h.b16 %v257
      %v311 = vunpack.c.l.b16 %v258
      %v312 = vunpack.c.h.b16 %v258
      %v313 = vunpack.c.l.b16 %v259
      %v314 = vunpack.c.h.b16 %v259
      %v315 = vunpack.c.l.b16 %v260
      %v316 = vunpack.c.h.b16 %v260
      %v317 = vunpack.c.l.b16 %v261
      %v318 = vunpack.c.h.b16 %v261
      %v319 = vunpack.c.l.b16 %v262
      %v320 = vunpack.c.h.b16 %v262
      %v321 = vunpack.c.l.b16 %v263
      %v322 = vunpack.c.h.b16 %v263
      %v323 = vunpack.c.l.b16 %v264
      %v324 = vunpack.c.h.b16 %v264
      %v325 = vpack.c.b16 %v295, %v293
      %v326 = vpack.c.b16 %v296, %v294
      %v327 = vpack.c.b16 %v299, %v297
      %v328 = vpack.c.b16 %v300, %v298
      %v329 = vpack.c.b16 %v303, %v301
      %v330 = vpack.c.b16 %v304, %v302
      %v331 = vpack.c.b16 %v307, %v305
      %v332 = vpack.c.b16 %v308, %v306
      %v333 = vpack.c.b16 %v311, %v309
      %v334 = vpack.c.b16 %v312, %v310
      %v335 = vpack.c.b16 %v315, %v313
      %v336 = vpack.c.b16 %v316, %v314
      %v337 = vpack.c.b16 %v319, %v317
      %v338 = vpack.c.b16 %v320, %v318
      %v339 = vpack.c.b16 %v323, %v321
      %v340 = vpack.c.b16 %v324, %v322
      %357 = vmatprep.subr.bf16.mxu0 %v340
      %358 = vmatpush1.bf16.msra.mxu0 %v339
      %359 = vmatprep.subr.bf16.mxu0 %v338
      %360 = vmatpush1.bf16.msra.mxu0 %v337
      %361 = vmatprep.subr.bf16.mxu0 %v336
      %362 = vmatpush1.bf16.msra.mxu0 %v335
      %363 = vmatprep.subr.bf16.mxu0 %v334
      %364 = vmatpush1.bf16.msra.mxu0 %v333
      %365 = vmatprep.subr.bf16.mxu0 %v332
      %366 = vmatpush1.bf16.msra.mxu0 %v331
      %367 = vmatprep.subr.bf16.mxu0 %v330
      %368 = vmatpush1.bf16.msra.mxu0 %v329
      %369 = vmatprep.subr.bf16.mxu0 %v328
      %370 = vmatpush1.bf16.msra.mxu0 %v327
      %371 = vmatprep.subr.bf16.mxu0 %v326
      %372 = vmatpush1.bf16.msra.mxu0 %v325
      %373 = vmatprep.subr.bf16.mxu0 0
      %374 = vmatpush2.bf16.msra.mxu0 0
      %375 = vmatprep.subr.bf16.mxu0 0
      %376 = vmatpush2.bf16.msra.mxu0 0
      %377 = vmatprep.subr.bf16.mxu0 0
      %378 = vmatpush2.bf16.msra.mxu0 0
      %379 = vmatprep.subr.bf16.mxu0 0
      %380 = vmatpush2.bf16.msra.mxu0 0
      %381 = vmatprep.subr.bf16.mxu0 0
      %382 = vmatpush2.bf16.msra.mxu0 0
      %383 = vmatprep.subr.bf16.mxu0 0
      %384 = vmatpush2.bf16.msra.mxu0 0
      %385 = vmatprep.subr.bf16.mxu0 0
      %386 = vmatpush2.bf16.msra.mxu0 0
      %387 = vmatprep.subr.bf16.mxu0 0
      %388 = vmatpush2.bf16.msra.mxu0 0
      %389 = vmatprep.mubr.bf16.mxu0 0
      %390 = vmatmul.mubr.bf16.gmra.mxu0 %v248
      %v391 = vpop.f32.mrf.mxu0
      %v392 = vadd.f32 %v270, %v391
      %v393 = vpop.f32.mrf.mxu0
      %v394 = vadd.f32 %v274, %v393
      %v395 = vpop.f32.mrf.mxu0
      %v396 = vpop.f32.mrf.mxu0
      %397 = vdwg.mxu0
      %399 = vrot.lane.b32.xlu0 %v392, 96
      %v400 = vpop.permute.xlu0 %399
      %402 = vrot.lane.b32.xlu0 %v392, 64
      %v403 = vpop.permute.xlu0 %402
      %405 = vrot.lane.b32.xlu0 %v392, 32
      %v406 = vpop.permute.xlu0 %405
      %v408 = vcombine.low %v392, %v403
      %v409 = vcombine.high %v392, %v403
      %v411 = vunpack.c.l.s4 1983009808
      %v412 = vunpack.c.0.s8 %v411
      %v413 = vlaneseq
      %v414 = vshrl.u32 %v413, 7
      %v415 = vsub.s32 %v412, %v414
      %v416 = vrot.slane %v408, %v415
      %v418 = vunpack.c.l.s4 1983009808
      %v419 = vunpack.c.0.s8 %v418
      %v420 = vlaneseq
      %v421 = vshrl.u32 %v420, 7
      %v422 = vsub.s32 %v419, %v421
      %v423 = vrot.slane %v409, %v422
      %v424 = vcombine.low %v400, %v406
      %v425 = vcombine.high %v400, %v406
      %v427 = vunpack.c.l.s4 1983009808
      %v428 = vunpack.c.0.s8 %v427
      %v429 = vlaneseq
      %v430 = vshrl.u32 %v429, 7
      %v431 = vsub.s32 %v428, %v430
      %v432 = vrot.slane %v424, %v431
      %v434 = vunpack.c.l.s4 1983009808
      %v435 = vunpack.c.0.s8 %v434
      %v436 = vlaneseq
      %v437 = vshrl.u32 %v436, 7
      %v438 = vsub.s32 %v435, %v437
      %v439 = vrot.slane %v425, %v438
      %v440 = vcombine.low %v416, %v432
      %v441 = vcombine.high %v416, %v432
      %v443 = vunpack.c.l.s4 1934713408
      %v444 = vunpack.c.0.s8 %v443
      %v445 = vlaneseq
      %v446 = vshrl.u32 %v445, 7
      %v447 = vsub.s32 %v444, %v446
      %v448 = vrot.slane %v440, %v447
      %v450 = vunpack.c.l.s4 1934713408
      %v451 = vunpack.c.0.s8 %v450
      %v452 = vlaneseq
      %v453 = vshrl.u32 %v452, 7
      %v454 = vsub.s32 %v451, %v453
      %v455 = vrot.slane %v441, %v454
      %v456 = vcombine.low %v423, %v439
      %v457 = vcombine.high %v423, %v439
      %v459 = vunpack.c.l.s4 1934713408
      %v460 = vunpack.c.0.s8 %v459
      %v461 = vlaneseq
      %v462 = vshrl.u32 %v461, 7
      %v463 = vsub.s32 %v460, %v462
      %v464 = vrot.slane %v456, %v463
      %v466 = vunpack.c.l.s4 1934713408
      %v467 = vunpack.c.0.s8 %v466
      %v468 = vlaneseq
      %v469 = vshrl.u32 %v468, 7
      %v470 = vsub.s32 %v467, %v469
      %v471 = vrot.slane %v457, %v470
      %v472 = vcombine.high %v448, 0.0
      %v473 = vcombine.high %v455, 0.0
      %v474 = vcombine.high %v464, 0.0
      %v475 = vcombine.high %v471, 0.0
      %v476 = vcombine.low %v448, %v455
      %v478 = vunpack.c.l.s4 1983009808
      %v479 = vunpack.c.0.s8 %v478
      %v480 = vlaneseq
      %v481 = vshrl.u32 %v480, 7
      %v482 = vsub.s32 %v479, %v481
      %v483 = vrot.slane %v476, %v482
      %v484 = vcombine.low %v472, %v473
      %v486 = vunpack.c.l.s4 1983009808
      %v487 = vunpack.c.0.s8 %v486
      %v488 = vlaneseq
      %v489 = vshrl.u32 %v488, 7
      %v490 = vsub.s32 %v487, %v489
      %v491 = vrot.slane %v484, %v490
      %v492 = vcombine.low %v464, %v471
      %v494 = vunpack.c.l.s4 1983009808
      %v495 = vunpack.c.0.s8 %v494
      %v496 = vlaneseq
      %v497 = vshrl.u32 %v496, 7
      %v498 = vsub.s32 %v495, %v497
      %v499 = vrot.slane %v492, %v498
      %v500 = vcombine.low %v474, %v475
      %v502 = vunpack.c.l.s4 1983009808
      %v503 = vunpack.c.0.s8 %v502
      %v504 = vlaneseq
      %v505 = vshrl.u32 %v504, 7
      %v506 = vsub.s32 %v503, %v505
      %v507 = vrot.slane %v500, %v506
      %v508 = vcombine.low %v483, %v491
      %v509 = vcombine.high %v483, %v491
      %v511 = vunpack.c.l.s4 1934713408
      %v512 = vunpack.c.0.s8 %v511
      %v513 = vlaneseq
      %v514 = vshrl.u32 %v513, 7
      %v515 = vsub.s32 %v512, %v514
      %v516 = vrot.slane %v508, %v515
      %v518 = vunpack.c.l.s4 1934713408
      %v519 = vunpack.c.0.s8 %v518
      %v520 = vlaneseq
      %v521 = vshrl.u32 %v520, 7
      %v522 = vsub.s32 %v519, %v521
      %v523 = vrot.slane %v509, %v522
      %v524 = vcombine.low %v499, %v507
      %v525 = vcombine.high %v499, %v507
      %v527 = vunpack.c.l.s4 1934713408
      %v528 = vunpack.c.0.s8 %v527
      %v529 = vlaneseq
      %v530 = vshrl.u32 %v529, 7
      %v531 = vsub.s32 %v528, %v530
      %v532 = vrot.slane %v524, %v531
      %v534 = vunpack.c.l.s4 1934713408
      %v535 = vunpack.c.0.s8 %v534
      %v536 = vlaneseq
      %v537 = vshrl.u32 %v536, 7
      %v538 = vsub.s32 %v535, %v537
      %v539 = vrot.slane %v525, %v538
      %v540 = vcombine.low %v516, %v532
      %v541 = vcombine.high %v516, %v532
      %v542 = vcombine.low %v523, %v539
      %v543 = vcombine.high %v523, %v539
      %545 = vrot.lane.b32.xlu0 %v394, 96
      %v546 = vpop.permute.xlu0 %545
      %548 = vrot.lane.b32.xlu0 %v394, 64
      %v549 = vpop.permute.xlu0 %548
      %551 = vrot.lane.b32.xlu0 %v394, 32
      %v552 = vpop.permute.xlu0 %551
      %v554 = vcombine.low %v394, %v549
      %v555 = vcombine.high %v394, %v549
      %v557 = vunpack.c.l.s4 1983009808
      %v558 = vunpack.c.0.s8 %v557
      %v559 = vlaneseq
      %v560 = vshrl.u32 %v559, 7
      %v561 = vsub.s32 %v558, %v560
      %v562 = vrot.slane %v554, %v561
      %v564 = vunpack.c.l.s4 1983009808
      %v565 = vunpack.c.0.s8 %v564
      %v566 = vlaneseq
      %v567 = vshrl.u32 %v566, 7
      %v568 = vsub.s32 %v565, %v567
      %v569 = vrot.slane %v555, %v568
      %v570 = vcombine.low %v546, %v552
      %v571 = vcombine.high %v546, %v552
      %v573 = vunpack.c.l.s4 1983009808
      %v574 = vunpack.c.0.s8 %v573
      %v575 = vlaneseq
      %v576 = vshrl.u32 %v575, 7
      %v577 = vsub.s32 %v574, %v576
      %v578 = vrot.slane %v570, %v577
      %v580 = vunpack.c.l.s4 1983009808
      %v581 = vunpack.c.0.s8 %v580
      %v582 = vlaneseq
      %v583 = vshrl.u32 %v582, 7
      %v584 = vsub.s32 %v581, %v583
      %v585 = vrot.slane %v571, %v584
      %v586 = vcombine.low %v562, %v578
      %v587 = vcombine.high %v562, %v578
      %v589 = vunpack.c.l.s4 1934713408
      %v590 = vunpack.c.0.s8 %v589
      %v591 = vlaneseq
      %v592 = vshrl.u32 %v591, 7
      %v593 = vsub.s32 %v590, %v592
      %v594 = vrot.slane %v586, %v593
      %v596 = vunpack.c.l.s4 1934713408
      %v597 = vunpack.c.0.s8 %v596
      %v598 = vlaneseq
      %v599 = vshrl.u32 %v598, 7
      %v600 = vsub.s32 %v597, %v599
      %v601 = vrot.slane %v587, %v600
      %v602 = vcombine.low %v569, %v585
      %v603 = vcombine.high %v569, %v585
      %v605 = vunpack.c.l.s4 1934713408
      %v606 = vunpack.c.0.s8 %v605
      %v607 = vlaneseq
      %v608 = vshrl.u32 %v607, 7
      %v609 = vsub.s32 %v606, %v608
      %v610 = vrot.slane %v602, %v609
      %v612 = vunpack.c.l.s4 1934713408
      %v613 = vunpack.c.0.s8 %v612
      %v614 = vlaneseq
      %v615 = vshrl.u32 %v614, 7
      %v616 = vsub.s32 %v613, %v615
      %v617 = vrot.slane %v603, %v616
      %v618 = vcombine.high %v594, 0.0
      %v619 = vcombine.high %v601, 0.0
      %v620 = vcombine.high %v610, 0.0
      %v621 = vcombine.high %v617, 0.0
      %v622 = vcombine.low %v594, %v601
      %v624 = vunpack.c.l.s4 1983009808
      %v625 = vunpack.c.0.s8 %v624
      %v626 = vlaneseq
      %v627 = vshrl.u32 %v626, 7
      %v628 = vsub.s32 %v625, %v627
      %v629 = vrot.slane %v622, %v628
      %v630 = vcombine.low %v618, %v619
      %v632 = vunpack.c.l.s4 1983009808
      %v633 = vunpack.c.0.s8 %v632
      %v634 = vlaneseq
      %v635 = vshrl.u32 %v634, 7
      %v636 = vsub.s32 %v633, %v635
      %v637 = vrot.slane %v630, %v636
      %v638 = vcombine.low %v610, %v617
      %v640 = vunpack.c.l.s4 1983009808
      %v641 = vunpack.c.0.s8 %v640
      %v642 = vlaneseq
      %v643 = vshrl.u32 %v642, 7
      %v644 = vsub.s32 %v641, %v643
      %v645 = vrot.slane %v638, %v644
      %v646 = vcombine.low %v620, %v621
      %v648 = vunpack.c.l.s4 1983009808
      %v649 = vunpack.c.0.s8 %v648
      %v650 = vlaneseq
      %v651 = vshrl.u32 %v650, 7
      %v652 = vsub.s32 %v649, %v651
      %v653 = vrot.slane %v646, %v652
      %v654 = vcombine.low %v629, %v637
      %v655 = vcombine.high %v629, %v637
      %v657 = vunpack.c.l.s4 1934713408
      %v658 = vunpack.c.0.s8 %v657
      %v659 = vlaneseq
      %v660 = vshrl.u32 %v659, 7
      %v661 = vsub.s32 %v658, %v660
      %v662 = vrot.slane %v654, %v661
      %v664 = vunpack.c.l.s4 1934713408
      %v665 = vunpack.c.0.s8 %v664
      %v666 = vlaneseq
      %v667 = vshrl.u32 %v666, 7
      %v668 = vsub.s32 %v665, %v667
      %v669 = vrot.slane %v655, %v668
      %v670 = vcombine.low %v645, %v653
      %v671 = vcombine.high %v645, %v653
      %v673 = vunpack.c.l.s4 1934713408
      %v674 = vunpack.c.0.s8 %v673
      %v675 = vlaneseq
      %v676 = vshrl.u32 %v675, 7
      %v677 = vsub.s32 %v674, %v676
      %v678 = vrot.slane %v670, %v677
      %v680 = vunpack.c.l.s4 1934713408
      %v681 = vunpack.c.0.s8 %v680
      %v682 = vlaneseq
      %v683 = vshrl.u32 %v682, 7
      %v684 = vsub.s32 %v681, %v683
      %v685 = vrot.slane %v671, %v684
      %v686 = vcombine.low %v662, %v678
      %v687 = vcombine.high %v662, %v678
      %v688 = vcombine.low %v669, %v685
      %v689 = vcombine.high %v669, %v685
      %v690 = vpack.c.bf16 %v540, %v540
      %v691 = vpack.c.bf16 %v541, %v541
      %v692 = vpack.c.bf16 %v542, %v542
      %v693 = vpack.c.bf16 %v543, %v543
      %vm694 = vcmask 257024
      %695 = vst.msk [vmem:[%s238] sm:$0xf] %vm694, %v690
      %696 = vst.msk [vmem:[%s238 + $0x4] sm:$0xf] %vm694, %v691
      %697 = vst.msk [vmem:[%s238 + $0x8] sm:$0xf] %vm694, %v692
      %698 = vst.msk [vmem:[%s238 + $0xc] sm:$0xf] %vm694, %v693
      %v699 = vpack.c.bf16 %v686, %v686
      %v700 = vpack.c.bf16 %v687, %v687
      %v701 = vpack.c.bf16 %v688, %v688
      %v702 = vpack.c.bf16 %v689, %v689
      %703 = vst.msk [vmem:[%s246] sm:$0xf] %vm694, %v699
      %704 = vst.msk [vmem:[%s246 + $0x4] sm:$0xf] %vm694, %v700
      %705 = vst.msk [vmem:[%s246 + $0x8] sm:$0xf] %vm694, %v701
      %706 = vst.msk [vmem:[%s246 + $0xc] sm:$0xf] %vm694, %v702
      %p707 = scmp.lt.s32.totalorder %s20, 1
      %s708 = scalar_select %p707, %s20, 1
      %p709 = scmp.lt.s32.totalorder %s21, 0
      %s710 = scalar_select %p709, %s21, 0
      %s711 = smul.addr %s708, 4
      %s712 = sadd.s32 %s710, %s711
      %s713 = smul.addr %s712, 4
      %s714 = scalar_lea.vmem %s3, %s713
      %p715 = scmp.lt.s32.totalorder %s20, 1
      %s716 = scalar_select %p715, %s20, 1
      %p717 = scmp.lt.s32.totalorder %s21, 0
      %s718 = scalar_select %p717, %s21, 0
      %s719 = smul.addr %s716, 4
      %s720 = sadd.s32 %s718, %s719
      %s721 = smul.addr %s720, 4
      %s722 = scalar_lea.vmem %s4, %s721
      // Predicated region
      $region33: #{transformer_forward.15} parent=31 // pred_check
        %p723 = pneg %p118
      $region34: #{transformer_forward.15} parent=31 // pred_check_branch
        %725 = sbr.rel (%p723) target = $region36
      $region35: #{transformer_forward.15} parent=31 // pred_region
        _
      $region36: #{transformer_forward.15} parent=31 // pred_fallthru
        _
      // Predicated region
      $region37: #{transformer_forward.15} parent=31 // pred_check
        %p726 = pneg %p146
      $region38: #{transformer_forward.15} parent=31 // pred_check_branch
        %728 = sbr.rel (%p726) target = $region40
      $region39: #{transformer_forward.15} parent=31 // pred_region
        _
      $region40: #{transformer_forward.15} parent=31 // pred_fallthru
        _
    $region32: #{transformer_forward.15} parent=5 // pred_fallthru
      _
    %p729 = scmp.le.s32.totalorder 2, %s11
    // Predicated region
    $region41: #{transformer_forward.15} parent=5 // pred_check
      %p730 = pneg %p729
    $region42: #{transformer_forward.15} parent=5 // pred_check_branch
      %732 = sbr.rel (%p730) target = $region44
    $region43: #{transformer_forward.15} parent=5 // pred_region
      %s733 = ssub.s32 %s11, 2
      // Predicated region
      $region45: #{transformer_forward.15} parent=43 // pred_check
        %p734 = pneg %p124
      $region46: #{transformer_forward.15} parent=43 // pred_check_branch
        %736 = sbr.rel (%p734) target = $region48
      $region47: #{transformer_forward.15} parent=43 // pred_region
        %p737 = scmp.lt.s32.totalorder %s22, 1
        %s738 = scalar_select %p737, %s22, 1
        %p739 = scmp.lt.s32.totalorder %s23, 0
        %s740 = scalar_select %p739, %s23, 0
        %s741 = smul.addr %s738, 4
        %s742 = sadd.s32 %s740, %s741
        %s743 = smul.addr %s742, 4
        %s744 = scalar_lea.vmem %s3, %s743
      $region48: #{transformer_forward.15} parent=43 // pred_fallthru
        _
      // Predicated region
      $region49: #{transformer_forward.15} parent=43 // pred_check
        %p745 = pneg %p152
      $region50: #{transformer_forward.15} parent=43 // pred_check_branch
        %747 = sbr.rel (%p745) target = $region52
      $region51: #{transformer_forward.15} parent=43 // pred_region
        %p748 = scmp.lt.s32.totalorder %s22, 1
        %s749 = scalar_select %p748, %s22, 1
        %p750 = scmp.lt.s32.totalorder %s23, 0
        %s751 = scalar_select %p750, %s23, 0
        %s752 = smul.addr %s749, 4
        %s753 = sadd.s32 %s751, %s752
        %s754 = smul.addr %s753, 4
        %s755 = scalar_lea.vmem %s4, %s754
      $region52: #{transformer_forward.15} parent=43 // pred_fallthru
        _
    $region44: #{transformer_forward.15} parent=5 // pred_fallthru
      _
  $region6: #{transformer_forward.15} parent=0 // loop_footer
    %s15 = sadd.s32 1, %s11
  $region7: #{transformer_forward.15} parent=0 // loop_footer_branch
    %10 = sbr.rel target = $region3
  $region8: #{transformer_forward.15} parent=0 // loop_exit
    _

// kernel: transformer_forward.12
$region0: #{transformer_forward.12}
  #allocation0 [shape = 'u32[]', space=smem, size = 0x4, offset = 0x4, fixed_abs, tag = 'smem constant byte address 0x4 - core index']
  #allocation1 [shape = 'u32[144,128]{1,0:T(1,128)}', space=vmem, size = 0x12000, scoped, tag = 'internal scratch']
  %s0 = inlined_call_operand.vmem [shape: bf16[2,16,128], index: 0, kind: input, shape index: {}]
  %s1 = inlined_call_operand.vmem [shape: bf16[2,4,16,32], index: 1, kind: input, shape index: {}]
  %s2 = inlined_call_operand.vmem [shape: bf16[2,4,16,32], index: 2, kind: input, shape index: {}]
  %s3 = inlined_call_operand.vmem [shape: bf16[128,128], index: 3, kind: input, shape index: {}]
  %s4 = inlined_call_operand.vmem [shape: f32[1,128], index: 4, kind: input, shape index: {}]
  %s5 = inlined_call_operand.vmem [shape: bf16[128,128], index: 5, kind: input, shape index: {}]
  %s6 = inlined_call_operand.vmem [shape: f32[1,128], index: 6, kind: input, shape index: {}]
  %s7 = inlined_call_operand.vmem [shape: bf16[128,256], index: 7, kind: input, shape index: {}]
  %s8 = inlined_call_operand.vmem [shape: f32[1,256], index: 8, kind: input, shape index: {}]
  %s9 = inlined_call_operand.vmem [shape: bf16[256,128], index: 9, kind: input, shape index: {}]
  %s10 = inlined_call_operand.vmem [shape: f32[1,128], index: 10, kind: input, shape index: {}]
  %s11 = inlined_call_operand.vmem [shape: f32[1,128], index: 11, kind: input, shape index: {}]
  %s12 = inlined_call_operand.vmem [shape: f32[1,128], index: 12, kind: input, shape index: {}]
  %s13 = inlined_call_operand.vmem [shape: f32[1,128], index: 13, kind: input, shape index: {}]
  %s14 = inlined_call_operand.vmem [shape: f32[1,128], index: 14, kind: input, shape index: {}]
  %s15 = inlined_call_operand.vmem [shape: bf16[2,16,128], index: 15, kind: output, shape index: {}]
  %s16 = sld [smem:[#allocation0]]
  $region93: #{transformer_forward.12} parent=0
    _
  %s18 = ssub.s32 1, %s16
  %s19 = scalar_select 0, %s18, %s16
  loop: start=0, step=1, limit=4
  $region2: #{transformer_forward.12} parent=0 // loop_pre_header
    _
  $region3: #{transformer_forward.12} parent=0 // loop_header
    %s21 = sphi 0, %s25
    %p22 = scmp.ge.s32.totalorder %s21, 4
    %s28 = sphi 0, %s40
    %s29 = sphi 0, %s36
    %s30 = sphi 0, %s28
    %s31 = sphi 0, %s29
    %s32 = sphi 0, %s30
    %s33 = sphi 0, %s31
    %s45 = sphi 0, %s47
    %s48 = sphi 0, %s45
    %s49 = sphi 0, %s48
    %s65 = sphi 0, %s49
    %s71 = sphi 0, %s73
    %s74 = sphi 0, %s71
    %s75 = sphi 0, %s74
    %s91 = sphi 0, %s75
    %s97 = sphi 0, %s99
    %s100 = sphi 0, %s97
    %s101 = sphi 0, %s100
    %s117 = sphi 0, %s101
    %s121 = sphi 0, %s121
    %s123 = sphi 0, %s121
    %s124 = sphi 0, %s123
    %s138 = sphi 0, %s124
    %s142 = sphi 0, %s142
    %s144 = sphi 0, %s142
    %s145 = sphi 0, %s144
    %s159 = sphi 0, %s145
    %s163 = sphi 0, %s163
    %s165 = sphi 0, %s163
    %s166 = sphi 0, %s165
    %s180 = sphi 0, %s166
    %s184 = sphi 0, %s184
    %s186 = sphi 0, %s184
    %s187 = sphi 0, %s186
    %s201 = sphi 0, %s187
    %s205 = sphi 0, %s205
    %s207 = sphi 0, %s205
    %s208 = sphi 0, %s207
    %s222 = sphi 0, %s208
    %s226 = sphi 0, %s226
    %s228 = sphi 0, %s226
    %s229 = sphi 0, %s228
    %s243 = sphi 0, %s229
    %s247 = sphi 0, %s247
    %s249 = sphi 0, %s247
    %s250 = sphi 0, %s249
    %s264 = sphi 0, %s250
    %s268 = sphi 0, %s268
    %s270 = sphi 0, %s268
    %s271 = sphi 0, %s270
    %s285 = sphi 0, %s271
    %s289 = sphi 0, %s289
    %s291 = sphi 0, %s289
    %s292 = sphi 0, %s291
    %s306 = sphi 0, %s292
    %s310 = sphi 0, %s310
    %s312 = sphi 0, %s310
    %s313 = sphi 0, %s312
    %s327 = sphi 0, %s313
    %s331 = sphi 0, %s331
    %s333 = sphi 0, %s331
    %s334 = sphi 0, %s333
    %s348 = sphi 0, %s334
    %s352 = sphi 0, %s352
    %s354 = sphi 0, %s352
    %s355 = sphi 0, %s354
    %s369 = sphi 0, %s355
    %s377 = sphi 0, %s379
    %s380 = sphi 0, %s377
    %s381 = sphi 0, %s380
    %s397 = sphi 0, %s381
  $region4: #{transformer_forward.12} parent=0 // loop_header_branch
    %24 = sbr.rel (%p22) target = $region8
  $region5: #{transformer_forward.12} parent=0 // loop_body
    %s26 = ssub.s32 %s21, 1
    %s27 = ssub.s32 %s21, 2
    %s34 = sadd.s32 1, %s29
    %p35 = scmp.ge.s32.totalorder %s34, 1
    %s36 = scalar_select %p35, 0, %s34
    %s37 = sadd.s32 1, %s28
    %s38 = scalar_select %p35, %s37, %s28
    %p39 = scmp.ge.s32.totalorder %s38, 2
    %s40 = scalar_select %p39, 0, %s38
    %s41 = ssub.s32 %s28, %s40
    %s42 = ssub.s32 %s29, %s36
    %s43 = sor.u32 %s41, %s42
    %p44 = scmp.eq.s32.totalorder %s43, 0
    %s46 = sadd.s32 %s45, 1
    %s47 = scalar_select %p44, %s45, %s46
    %p50 = pneg %p44
    %p51 = scmp.eq.s32.totalorder %s21, 1
    %p52 = por %p50, %p51
    %p53 = scmp.ne.s32.totalorder %s45, %s48
    %p54 = scmp.eq.s32.totalorder %s21, 0
    %p55 = por %p53, %p54
    %p56 = scmp.ne.s32.totalorder %s45, %s48
    %p57 = scmp.eq.s32.totalorder %s26, 1
    %p58 = por %p56, %p57
    %p59 = scmp.ne.s32.totalorder %s48, %s49
    %p60 = scmp.eq.s32.totalorder %s26, 0
    %p61 = por %p59, %p60
    %p62 = scmp.ne.s32.totalorder %s48, %s49
    %p63 = scmp.eq.s32.totalorder %s27, 1
    %p64 = por %p62, %p63
    %p66 = scmp.ne.s32.totalorder %s49, %s65
    %p67 = scmp.eq.s32.totalorder %s27, 0
    %p68 = por %p66, %p67
    %s69 = ssub.s32 %s28, %s40
    %p70 = scmp.eq.s32.totalorder %s69, 0
    %s72 = sadd.s32 %s71, 1
    %s73 = scalar_select %p70, %s71, %s72
    %p76 = pneg %p70
    %p77 = scmp.eq.s32.totalorder %s21, 1
    %p78 = por %p76, %p77
    %p79 = scmp.ne.s32.totalorder %s71, %s74
    %p80 = scmp.eq.s32.totalorder %s21, 0
    %p81 = por %p79, %p80
    %p82 = scmp.ne.s32.totalorder %s71, %s74
    %p83 = scmp.eq.s32.totalorder %s26, 1
    %p84 = por %p82, %p83
    %p85 = scmp.ne.s32.totalorder %s74, %s75
    %p86 = scmp.eq.s32.totalorder %s26, 0
    %p87 = por %p85, %p86
    %p88 = scmp.ne.s32.totalorder %s74, %s75
    %p89 = scmp.eq.s32.totalorder %s27, 1
    %p90 = por %p88, %p89
    %p92 = scmp.ne.s32.totalorder %s75, %s91
    %p93 = scmp.eq.s32.totalorder %s27, 0
    %p94 = por %p92, %p93
    %s95 = ssub.s32 %s28, %s40
    %p96 = scmp.eq.s32.totalorder %s95, 0
    %s98 = sadd.s32 %s97, 1
    %s99 = scalar_select %p96, %s97, %s98
    %p102 = pneg %p96
    %p103 = scmp.eq.s32.totalorder %s21, 1
    %p104 = por %p102, %p103
    %p105 = scmp.ne.s32.totalorder %s97, %s100
    %p106 = scmp.eq.s32.totalorder %s21, 0
    %p107 = por %p105, %p106
    %p108 = scmp.ne.s32.totalorder %s97, %s100
    %p109 = scmp.eq.s32.totalorder %s26, 1
    %p110 = por %p108, %p109
    %p111 = scmp.ne.s32.totalorder %s100, %s101
    %p112 = scmp.eq.s32.totalorder %s26, 0
    %p113 = por %p111, %p112
    %p114 = scmp.ne.s32.totalorder %s100, %s101
    %p115 = scmp.eq.s32.totalorder %s27, 1
    %p116 = por %p114, %p115
    %p118 = scmp.ne.s32.totalorder %s101, %s117
    %p119 = scmp.eq.s32.totalorder %s27, 0
    %p120 = por %p118, %p119
    %s122 = sadd.s32 %s121, 1
    %p125 = scmp.eq.s32.totalorder %s21, 1
    %p126 = scmp.ne.s32.totalorder %s121, %s123
    %p127 = scmp.eq.s32.totalorder %s21, 0
    %p128 = por %p126, %p127
    %p129 = scmp.ne.s32.totalorder %s121, %s123
    %p130 = scmp.eq.s32.totalorder %s26, 1
    %p131 = por %p129, %p130
    %p132 = scmp.ne.s32.totalorder %s123, %s124
    %p133 = scmp.eq.s32.totalorder %s26, 0
    %p134 = por %p132, %p133
    %p135 = scmp.ne.s32.totalorder %s123, %s124
    %p136 = scmp.eq.s32.totalorder %s27, 1
    %p137 = por %p135, %p136
    %p139 = scmp.ne.s32.totalorder %s124, %s138
    %p140 = scmp.eq.s32.totalorder %s27, 0
    %p141 = por %p139, %p140
    %s143 = sadd.s32 %s142, 1
    %p146 = scmp.eq.s32.totalorder %s21, 1
    %p147 = scmp.ne.s32.totalorder %s142, %s144
    %p148 = scmp.eq.s32.totalorder %s21, 0
    %p149 = por %p147, %p148
    %p150 = scmp.ne.s32.totalorder %s142, %s144
    %p151 = scmp.eq.s32.totalorder %s26, 1
    %p152 = por %p150, %p151
    %p153 = scmp.ne.s32.totalorder %s144, %s145
    %p154 = scmp.eq.s32.totalorder %s26, 0
    %p155 = por %p153, %p154
    %p156 = scmp.ne.s32.totalorder %s144, %s145
    %p157 = scmp.eq.s32.totalorder %s27, 1
    %p158 = por %p156, %p157
    %p160 = scmp.ne.s32.totalorder %s145, %s159
    %p161 = scmp.eq.s32.totalorder %s27, 0
    %p162 = por %p160, %p161
    %s164 = sadd.s32 %s163, 1
    %p167 = scmp.eq.s32.totalorder %s21, 1
    %p168 = scmp.ne.s32.totalorder %s163, %s165
    %p169 = scmp.eq.s32.totalorder %s21, 0
    %p170 = por %p168, %p169
    %p171 = scmp.ne.s32.totalorder %s163, %s165
    %p172 = scmp.eq.s32.totalorder %s26, 1
    %p173 = por %p171, %p172
    %p174 = scmp.ne.s32.totalorder %s165, %s166
    %p175 = scmp.eq.s32.totalorder %s26, 0
    %p176 = por %p174, %p175
    %p177 = scmp.ne.s32.totalorder %s165, %s166
    %p178 = scmp.eq.s32.totalorder %s27, 1
    %p179 = por %p177, %p178
    %p181 = scmp.ne.s32.totalorder %s166, %s180
    %p182 = scmp.eq.s32.totalorder %s27, 0
    %p183 = por %p181, %p182
    %s185 = sadd.s32 %s184, 1
    %p188 = scmp.eq.s32.totalorder %s21, 1
    %p189 = scmp.ne.s32.totalorder %s184, %s186
    %p190 = scmp.eq.s32.totalorder %s21, 0
    %p191 = por %p189, %p190
    %p192 = scmp.ne.s32.totalorder %s184, %s186
    %p193 = scmp.eq.s32.totalorder %s26, 1
    %p194 = por %p192, %p193
    %p195 = scmp.ne.s32.totalorder %s186, %s187
    %p196 = scmp.eq.s32.totalorder %s26, 0
    %p197 = por %p195, %p196
    %p198 = scmp.ne.s32.totalorder %s186, %s187
    %p199 = scmp.eq.s32.totalorder %s27, 1
    %p200 = por %p198, %p199
    %p202 = scmp.ne.s32.totalorder %s187, %s201
    %p203 = scmp.eq.s32.totalorder %s27, 0
    %p204 = por %p202, %p203
    %s206 = sadd.s32 %s205, 1
    %p209 = scmp.eq.s32.totalorder %s21, 1
    %p210 = scmp.ne.s32.totalorder %s205, %s207
    %p211 = scmp.eq.s32.totalorder %s21, 0
    %p212 = por %p210, %p211
    %p213 = scmp.ne.s32.totalorder %s205, %s207
    %p214 = scmp.eq.s32.totalorder %s26, 1
    %p215 = por %p213, %p214
    %p216 = scmp.ne.s32.totalorder %s207, %s208
    %p217 = scmp.eq.s32.totalorder %s26, 0
    %p218 = por %p216, %p217
    %p219 = scmp.ne.s32.totalorder %s207, %s208
    %p220 = scmp.eq.s32.totalorder %s27, 1
    %p221 = por %p219, %p220
    %p223 = scmp.ne.s32.totalorder %s208, %s222
    %p224 = scmp.eq.s32.totalorder %s27, 0
    %p225 = por %p223, %p224
    %s227 = sadd.s32 %s226, 1
    %p230 = scmp.eq.s32.totalorder %s21, 1
    %p231 = scmp.ne.s32.totalorder %s226, %s228
    %p232 = scmp.eq.s32.totalorder %s21, 0
    %p233 = por %p231, %p232
    %p234 = scmp.ne.s32.totalorder %s226, %s228
    %p235 = scmp.eq.s32.totalorder %s26, 1
    %p236 = por %p234, %p235
    %p237 = scmp.ne.s32.totalorder %s228, %s229
    %p238 = scmp.eq.s32.totalorder %s26, 0
    %p239 = por %p237, %p238
    %p240 = scmp.ne.s32.totalorder %s228, %s229
    %p241 = scmp.eq.s32.totalorder %s27, 1
    %p242 = por %p240, %p241
    %p244 = scmp.ne.s32.totalorder %s229, %s243
    %p245 = scmp.eq.s32.totalorder %s27, 0
    %p246 = por %p244, %p245
    %s248 = sadd.s32 %s247, 1
    %p251 = scmp.eq.s32.totalorder %s21, 1
    %p252 = scmp.ne.s32.totalorder %s247, %s249
    %p253 = scmp.eq.s32.totalorder %s21, 0
    %p254 = por %p252, %p253
    %p255 = scmp.ne.s32.totalorder %s247, %s249
    %p256 = scmp.eq.s32.totalorder %s26, 1
    %p257 = por %p255, %p256
    %p258 = scmp.ne.s32.totalorder %s249, %s250
    %p259 = scmp.eq.s32.totalorder %s26, 0
    %p260 = por %p258, %p259
    %p261 = scmp.ne.s32.totalorder %s249, %s250
    %p262 = scmp.eq.s32.totalorder %s27, 1
    %p263 = por %p261, %p262
    %p265 = scmp.ne.s32.totalorder %s250, %s264
    %p266 = scmp.eq.s32.totalorder %s27, 0
    %p267 = por %p265, %p266
    %s269 = sadd.s32 %s268, 1
    %p272 = scmp.eq.s32.totalorder %s21, 1
    %p273 = scmp.ne.s32.totalorder %s268, %s270
    %p274 = scmp.eq.s32.totalorder %s21, 0
    %p275 = por %p273, %p274
    %p276 = scmp.ne.s32.totalorder %s268, %s270
    %p277 = scmp.eq.s32.totalorder %s26, 1
    %p278 = por %p276, %p277
    %p279 = scmp.ne.s32.totalorder %s270, %s271
    %p280 = scmp.eq.s32.totalorder %s26, 0
    %p281 = por %p279, %p280
    %p282 = scmp.ne.s32.totalorder %s270, %s271
    %p283 = scmp.eq.s32.totalorder %s27, 1
    %p284 = por %p282, %p283
    %p286 = scmp.ne.s32.totalorder %s271, %s285
    %p287 = scmp.eq.s32.totalorder %s27, 0
    %p288 = por %p286, %p287
    %s290 = sadd.s32 %s289, 1
    %p293 = scmp.eq.s32.totalorder %s21, 1
    %p294 = scmp.ne.s32.totalorder %s289, %s291
    %p295 = scmp.eq.s32.totalorder %s21, 0
    %p296 = por %p294, %p295
    %p297 = scmp.ne.s32.totalorder %s289, %s291
    %p298 = scmp.eq.s32.totalorder %s26, 1
    %p299 = por %p297, %p298
    %p300 = scmp.ne.s32.totalorder %s291, %s292
    %p301 = scmp.eq.s32.totalorder %s26, 0
    %p302 = por %p300, %p301
    %p303 = scmp.ne.s32.totalorder %s291, %s292
    %p304 = scmp.eq.s32.totalorder %s27, 1
    %p305 = por %p303, %p304
    %p307 = scmp.ne.s32.totalorder %s292, %s306
    %p308 = scmp.eq.s32.totalorder %s27, 0
    %p309 = por %p307, %p308
    %s311 = sadd.s32 %s310, 1
    %p314 = scmp.eq.s32.totalorder %s21, 1
    %p315 = scmp.ne.s32.totalorder %s310, %s312
    %p316 = scmp.eq.s32.totalorder %s21, 0
    %p317 = por %p315, %p316
    %p318 = scmp.ne.s32.totalorder %s310, %s312
    %p319 = scmp.eq.s32.totalorder %s26, 1
    %p320 = por %p318, %p319
    %p321 = scmp.ne.s32.totalorder %s312, %s313
    %p322 = scmp.eq.s32.totalorder %s26, 0
    %p323 = por %p321, %p322
    %p324 = scmp.ne.s32.totalorder %s312, %s313
    %p325 = scmp.eq.s32.totalorder %s27, 1
    %p326 = por %p324, %p325
    %p328 = scmp.ne.s32.totalorder %s313, %s327
    %p329 = scmp.eq.s32.totalorder %s27, 0
    %p330 = por %p328, %p329
    %s332 = sadd.s32 %s331, 1
    %p335 = scmp.eq.s32.totalorder %s21, 1
    %p336 = scmp.ne.s32.totalorder %s331, %s333
    %p337 = scmp.eq.s32.totalorder %s21, 0
    %p338 = por %p336, %p337
    %p339 = scmp.ne.s32.totalorder %s331, %s333
    %p340 = scmp.eq.s32.totalorder %s26, 1
    %p341 = por %p339, %p340
    %p342 = scmp.ne.s32.totalorder %s333, %s334
    %p343 = scmp.eq.s32.totalorder %s26, 0
    %p344 = por %p342, %p343
    %p345 = scmp.ne.s32.totalorder %s333, %s334
    %p346 = scmp.eq.s32.totalorder %s27, 1
    %p347 = por %p345, %p346
    %p349 = scmp.ne.s32.totalorder %s334, %s348
    %p350 = scmp.eq.s32.totalorder %s27, 0
    %p351 = por %p349, %p350
    %s353 = sadd.s32 %s352, 1
    %p356 = scmp.eq.s32.totalorder %s21, 1
    %p357 = scmp.ne.s32.totalorder %s352, %s354
    %p358 = scmp.eq.s32.totalorder %s21, 0
    %p359 = por %p357, %p358
    %p360 = scmp.ne.s32.totalorder %s352, %s354
    %p361 = scmp.eq.s32.totalorder %s26, 1
    %p362 = por %p360, %p361
    %p363 = scmp.ne.s32.totalorder %s354, %s355
    %p364 = scmp.eq.s32.totalorder %s26, 0
    %p365 = por %p363, %p364
    %p366 = scmp.ne.s32.totalorder %s354, %s355
    %p367 = scmp.eq.s32.totalorder %s27, 1
    %p368 = por %p366, %p367
    %p370 = scmp.ne.s32.totalorder %s355, %s369
    %p371 = scmp.eq.s32.totalorder %s27, 0
    %p372 = por %p370, %p371
    %s373 = ssub.s32 %s28, %s40
    %s374 = ssub.s32 %s29, %s36
    %s375 = sor.u32 %s373, %s374
    %p376 = scmp.eq.s32.totalorder %s375, 0
    %s378 = sadd.s32 %s377, 1
    %s379 = scalar_select %p376, %s377, %s378
    %p382 = pneg %p376
    %p383 = scmp.eq.s32.totalorder %s21, 1
    %p384 = por %p382, %p383
    %p385 = scmp.ne.s32.totalorder %s377, %s380
    %p386 = scmp.eq.s32.totalorder %s21, 0
    %p387 = por %p385, %p386
    %p388 = scmp.ne.s32.totalorder %s377, %s380
    %p389 = scmp.eq.s32.totalorder %s26, 1
    %p390 = por %p388, %p389
    %p391 = scmp.ne.s32.totalorder %s380, %s381
    %p392 = scmp.eq.s32.totalorder %s26, 0
    %p393 = por %p391, %p392
    %p394 = scmp.ne.s32.totalorder %s380, %s381
    %p395 = scmp.eq.s32.totalorder %s27, 1
    %p396 = por %p394, %p395
    %p398 = scmp.ne.s32.totalorder %s381, %s397
    %p399 = scmp.eq.s32.totalorder %s27, 0
    %p400 = por %p398, %p399
    %p401 = scmp.le.s32.totalorder 1, %s21
    %p402 = scmp.lt.s32.totalorder %s21, 3
    %p403 = pnand %p401, %p402
    %p404 = pneg %p403
    // Predicated region
    $region9: #{transformer_forward.12} parent=5 // pred_check
      _
    $region10: #{transformer_forward.12} parent=5 // pred_check_branch
      %406 = sbr.rel (%p403) target = $region12
    $region11: #{transformer_forward.12} parent=5 // pred_region
      %s407 = ssub.s32 %s21, 1
      // Predicated region
      $region13: #{transformer_forward.12} parent=11 // pred_check
        %p408 = pneg %p134
      $region14: #{transformer_forward.12} parent=11 // pred_check_branch
        %410 = sbr.rel (%p408) target = $region16
      $region15: #{transformer_forward.12} parent=11 // pred_region
        _
      $region16: #{transformer_forward.12} parent=11 // pred_fallthru
        _
      // Predicated region
      $region17: #{transformer_forward.12} parent=11 // pred_check
        %p411 = pneg %p155
      $region18: #{transformer_forward.12} parent=11 // pred_check_branch
        %413 = sbr.rel (%p411) target = $region20
      $region19: #{transformer_forward.12} parent=11 // pred_region
        _
      $region20: #{transformer_forward.12} parent=11 // pred_fallthru
        _
      // Predicated region
      $region21: #{transformer_forward.12} parent=11 // pred_check
        %p414 = pneg %p176
      $region22: #{transformer_forward.12} parent=11 // pred_check_branch
        %416 = sbr.rel (%p414) target = $region24
      $region23: #{transformer_forward.12} parent=11 // pred_region
        _
      $region24: #{transformer_forward.12} parent=11 // pred_fallthru
        _
      // Predicated region
      $region25: #{transformer_forward.12} parent=11 // pred_check
        %p417 = pneg %p197
      $region26: #{transformer_forward.12} parent=11 // pred_check_branch
        %419 = sbr.rel (%p417) target = $region28
      $region27: #{transformer_forward.12} parent=11 // pred_region
        _
      $region28: #{transformer_forward.12} parent=11 // pred_fallthru
        _
      // Predicated region
      $region29: #{transformer_forward.12} parent=11 // pred_check
        %p420 = pneg %p218
      $region30: #{transformer_forward.12} parent=11 // pred_check_branch
        %422 = sbr.rel (%p420) target = $region32
      $region31: #{transformer_forward.12} parent=11 // pred_region
        _
      $region32: #{transformer_forward.12} parent=11 // pred_fallthru
        _
      // Predicated region
      $region33: #{transformer_forward.12} parent=11 // pred_check
        %p423 = pneg %p239
      $region34: #{transformer_forward.12} parent=11 // pred_check_branch
        %425 = sbr.rel (%p423) target = $region36
      $region35: #{transformer_forward.12} parent=11 // pred_region
        _
      $region36: #{transformer_forward.12} parent=11 // pred_fallthru
        _
      // Predicated region
      $region37: #{transformer_forward.12} parent=11 // pred_check
        %p426 = pneg %p260
      $region38: #{transformer_forward.12} parent=11 // pred_check_branch
        %428 = sbr.rel (%p426) target = $region40
      $region39: #{transformer_forward.12} parent=11 // pred_region
        _
      $region40: #{transformer_forward.12} parent=11 // pred_fallthru
        _
      // Predicated region
      $region41: #{transformer_forward.12} parent=11 // pred_check
        %p429 = pneg %p281
      $region42: #{transformer_forward.12} parent=11 // pred_check_branch
        %431 = sbr.rel (%p429) target = $region44
      $region43: #{transformer_forward.12} parent=11 // pred_region
        _
      $region44: #{transformer_forward.12} parent=11 // pred_fallthru
        _
      // Predicated region
      $region45: #{transformer_forward.12} parent=11 // pred_check
        %p432 = pneg %p302
      $region46: #{transformer_forward.12} parent=11 // pred_check_branch
        %434 = sbr.rel (%p432) target = $region48
      $region47: #{transformer_forward.12} parent=11 // pred_region
        _
      $region48: #{transformer_forward.12} parent=11 // pred_fallthru
        _
      // Predicated region
      $region49: #{transformer_forward.12} parent=11 // pred_check
        %p435 = pneg %p323
      $region50: #{transformer_forward.12} parent=11 // pred_check_branch
        %437 = sbr.rel (%p435) target = $region52
      $region51: #{transformer_forward.12} parent=11 // pred_region
        _
      $region52: #{transformer_forward.12} parent=11 // pred_fallthru
        _
      // Predicated region
      $region53: #{transformer_forward.12} parent=11 // pred_check
        %p438 = pneg %p344
      $region54: #{transformer_forward.12} parent=11 // pred_check_branch
        %440 = sbr.rel (%p438) target = $region56
      $region55: #{transformer_forward.12} parent=11 // pred_region
        _
      $region56: #{transformer_forward.12} parent=11 // pred_fallthru
        _
      // Predicated region
      $region57: #{transformer_forward.12} parent=11 // pred_check
        %p441 = pneg %p365
      $region58: #{transformer_forward.12} parent=11 // pred_check_branch
        %443 = sbr.rel (%p441) target = $region60
      $region59: #{transformer_forward.12} parent=11 // pred_region
        _
      $region60: #{transformer_forward.12} parent=11 // pred_fallthru
        _
    $region12: #{transformer_forward.12} parent=5 // pred_fallthru
      _
    %p444 = scmp.lt.s32.totalorder %s21, 2
    // Predicated region
    $region61: #{transformer_forward.12} parent=5 // pred_check
      %p445 = pneg %p444
    $region62: #{transformer_forward.12} parent=5 // pred_check_branch
      %447 = sbr.rel (%p445) target = $region64
    $region63: #{transformer_forward.12} parent=5 // pred_region
      // Predicated region
      $region65: #{transformer_forward.12} parent=63 // pred_check
        %p448 = pneg %p55
      $region66: #{transformer_forward.12} parent=63 // pred_check_branch
        %450 = sbr.rel (%p448) target = $region68
      $region67: #{transformer_forward.12} parent=63 // pred_region
        %s451 = smul.u32 2, %s29
        %p452 = scmp.lt.s32.totalorder %s28, 1
        %s453 = scalar_select %p452, %s28, 1
        %p454 = scmp.lt.s32.totalorder %s451, 1
        %s455 = scalar_select %p454, %s451, 1
        %s456 = smul.addr %s453, 2
        %s457 = sadd.s32 %s455, %s456
        %s458 = smul.addr %s457, 4
        %s459 = scalar_lea.vmem %s0, %s458
        %s460 = smul.u32 2, %s29
      $region68: #{transformer_forward.12} parent=63 // pred_fallthru
        _
      // Predicated region
      $region69: #{transformer_forward.12} parent=63 // pred_check
        %p461 = pneg %p81
      $region70: #{transformer_forward.12} parent=63 // pred_check_branch
        %463 = sbr.rel (%p461) target = $region72
      $region71: #{transformer_forward.12} parent=63 // pred_region
        %p464 = scmp.lt.s32.totalorder %s28, 1
        %s465 = scalar_select %p464, %s28, 1
        %s466 = smul.addr %s465, 8
        %s467 = smul.addr %s466, 4
        %s468 = scalar_lea.vmem %s1, %s467
      $region72: #{transformer_forward.12} parent=63 // pred_fallthru
        _
      // Predicated region
      $region73: #{transformer_forward.12} parent=63 // pred_check
        %p469 = pneg %p107
      $region74: #{transformer_forward.12} parent=63 // pred_check_branch
        %471 = sbr.rel (%p469) target = $region76
      $region75: #{transformer_forward.12} parent=63 // pred_region
        %p472 = scmp.lt.s32.totalorder %s28, 1
        %s473 = scalar_select %p472, %s28, 1
        %s474 = smul.addr %s473, 8
        %s475 = smul.addr %s474, 4
        %s476 = scalar_lea.vmem %s2, %s475
      $region76: #{transformer_forward.12} parent=63 // pred_fallthru
        _
    $region64: #{transformer_forward.12} parent=5 // pred_fallthru
      _
    %p477 = scmp.le.s32.totalorder 1, %s21
    %p478 = scmp.lt.s32.totalorder %s21, 3
    %p479 = pnand %p477, %p478
    %p480 = pneg %p479
    // Predicated region
    $region77: #{transformer_forward.12} parent=5 // pred_check
      _
    $region78: #{transformer_forward.12} parent=5 // pred_check_branch
      %482 = sbr.rel (%p479) target = $region80
    $region79: #{transformer_forward.12} parent=5 // pred_region
      %s483 = ssub.s32 %s21, 1
      %s484 = smul.u32 2, %s31
      %p485 = scmp.lt.s32.totalorder %s30, 1
      %s486 = scalar_select %p485, %s30, 1
      %p487 = scmp.lt.s32.totalorder %s484, 1
      %s488 = scalar_select %p487, %s484, 1
      %s489 = smul.addr %s486, 2
      %s490 = sadd.s32 %s488, %s489
      %s491 = smul.addr %s490, 4
      %s492 = scalar_lea.vmem %s0, %s491
      %p493 = pneg %p61
      %p494 = pneg %p58
      %p495 = scmp.lt.s32.totalorder %s30, 1
      %s496 = scalar_select %p495, %s30, 1
      %s497 = smul.addr %s496, 8
      %s498 = smul.addr %s497, 4
      %s499 = scalar_lea.vmem %s1, %s498
      %p500 = pneg %p87
      %p501 = pneg %p84
      %p502 = scmp.lt.s32.totalorder %s30, 1
      %s503 = scalar_select %p502, %s30, 1
      %s504 = smul.addr %s503, 8
      %s505 = smul.addr %s504, 4
      %s506 = scalar_lea.vmem %s2, %s505
      %p507 = pneg %p113
      %p508 = pneg %p110
      %p509 = pneg %p134
      %p510 = pneg %p131
      %p511 = pneg %p155
      %p512 = pneg %p152
      %p513 = pneg %p176
      %p514 = pneg %p173
      %p515 = pneg %p197
      %p516 = pneg %p194
      %p517 = pneg %p218
      %p518 = pneg %p215
      %p519 = pneg %p239
      %p520 = pneg %p236
      %p521 = pneg %p260
      %p522 = pneg %p257
      %p523 = pneg %p281
      %p524 = pneg %p278
      %p525 = pneg %p302
      %p526 = pneg %p299
      %p527 = pneg %p323
      %p528 = pneg %p320
      %p529 = pneg %p344
      %p530 = pneg %p341
      %p531 = pneg %p365
      %p532 = pneg %p362
      %p533 = pneg %p393
      %p534 = pneg %p390
      %s535 = smul.u32 2, %s31
      %p536 = scmp.lt.s32.totalorder %s30, 1
      %s537 = scalar_select %p536, %s30, 1
      %p538 = scmp.lt.s32.totalorder %s535, 1
      %s539 = scalar_select %p538, %s535, 1
      %s540 = smul.addr %s537, 2
      %s541 = sadd.s32 %s539, %s540
      %s542 = smul.addr %s541, 4
      %s543 = scalar_lea.vmem %s15, %s542
      %s544 = smul.u32 2, %s31
      %p545 = scmp.lt.s32.totalorder %s30, 1
      %s546 = scalar_select %p545, %s30, 1
      %p547 = scmp.lt.s32.totalorder %s544, 1
      %s548 = scalar_select %p547, %s544, 1
      %s549 = smul.addr %s546, 2
      %s550 = sadd.s32 %s548, %s549
      %s551 = smul.addr %s550, 4
      %s552 = scalar_lea.vmem %s0, %s551
      %s553 = smul.u32 2, %s31
      %p554 = scmp.lt.s32.totalorder %s30, 1
      %s555 = scalar_select %p554, %s30, 1
      %s556 = smul.addr %s555, 8
      %s557 = smul.addr %s556, 4
      %s558 = scalar_lea.vmem %s1, %s557
      %p559 = scmp.lt.s32.totalorder %s30, 1
      %s560 = scalar_select %p559, %s30, 1
      %s561 = smul.addr %s560, 8
      %s562 = smul.addr %s561, 4
      %s563 = scalar_lea.vmem %s2, %s562
      %s564 = smul.u32 2, %s31
      %p565 = scmp.lt.s32.totalorder %s30, 1
      %s566 = scalar_select %p565, %s30, 1
      %p567 = scmp.lt.s32.totalorder %s564, 1
      %s568 = scalar_select %p567, %s564, 1
      %s569 = smul.addr %s566, 2
      %s570 = sadd.s32 %s568, %s569
      %s571 = smul.addr %s570, 4
      %s572 = scalar_lea.vmem %s15, %s571
      %s573 = smul.u32 2, %s31
      %v575 = vld [vmem:[%s552] sm:$0xf]
      %v576 = vld [vmem:[%s552 + $0x4] sm:$0xf]
      %v577 = vld [vmem:[%s558] sm:$0xf]
      %v578 = vld [vmem:[%s558 + $0x4] sm:$0xf]
      %v579 = vld [vmem:[%s558 + $0x8] sm:$0xf]
      %v580 = vld [vmem:[%s558 + $0xc] sm:$0xf]
      %v581 = vld [vmem:[%s558 + $0x10] sm:$0xf]
      %v582 = vld [vmem:[%s558 + $0x14] sm:$0xf]
      %v583 = vld [vmem:[%s558 + $0x18] sm:$0xf]
      %v584 = vld [vmem:[%s558 + $0x1c] sm:$0xf]
      %v585 = vld [vmem:[%s563] sm:$0xf]
      %v586 = vld [vmem:[%s563 + $0x4] sm:$0xf]
      %v587 = vld [vmem:[%s563 + $0x8] sm:$0xf]
      %v588 = vld [vmem:[%s563 + $0xc] sm:$0xf]
      %v589 = vld [vmem:[%s563 + $0x10] sm:$0xf]
      %v590 = vld [vmem:[%s563 + $0x14] sm:$0xf]
      %v591 = vld [vmem:[%s563 + $0x18] sm:$0xf]
      %v592 = vld [vmem:[%s563 + $0x1c] sm:$0xf]
      %v593 = vld [vmem:[%s3] sm:$0xf]
      %v594 = vld [vmem:[%s3 + $0x4] sm:$0xf]
      %v595 = vld [vmem:[%s3 + $0x8] sm:$0xf]
      %v596 = vld [vmem:[%s3 + $0xc] sm:$0xf]
      %v597 = vld [vmem:[%s3 + $0x10] sm:$0xf]
      %v598 = vld [vmem:[%s3 + $0x14] sm:$0xf]
      %v599 = vld [vmem:[%s3 + $0x18] sm:$0xf]
      %v600 = vld [vmem:[%s3 + $0x1c] sm:$0xf]
      %v601 = vld [vmem:[%s3 + $0x20] sm:$0xf]
      %v602 = vld [vmem:[%s3 + $0x24] sm:$0xf]
      %v603 = vld [vmem:[%s3 + $0x28] sm:$0xf]
      %v604 = vld [vmem:[%s3 + $0x2c] sm:$0xf]
      %v605 = vld [vmem:[%s3 + $0x30] sm:$0xf]
      %v606 = vld [vmem:[%s3 + $0x34] sm:$0xf]
      %v607 = vld [vmem:[%s3 + $0x38] sm:$0xf]
      %v608 = vld [vmem:[%s3 + $0x3c] sm:$0xf]
      %v609 = vld [vmem:[%s4] sm:$0x1]
      %v610 = vld [vmem:[%s5] sm:$0xf]
      %v611 = vld [vmem:[%s5 + $0x4] sm:$0xf]
      %v612 = vld [vmem:[%s5 + $0x8] sm:$0xf]
      %v613 = vld [vmem:[%s5 + $0xc] sm:$0xf]
      %v614 = vld [vmem:[%s5 + $0x10] sm:$0xf]
      %v615 = vld [vmem:[%s5 + $0x14] sm:$0xf]
      %v616 = vld [vmem:[%s5 + $0x18] sm:$0xf]
      %v617 = vld [vmem:[%s5 + $0x1c] sm:$0xf]
      %v618 = vld [vmem:[%s5 + $0x20] sm:$0xf]
      %v619 = vld [vmem:[%s5 + $0x24] sm:$0xf]
      %v620 = vld [vmem:[%s5 + $0x28] sm:$0xf]
      %v621 = vld [vmem:[%s5 + $0x2c] sm:$0xf]
      %v622 = vld [vmem:[%s5 + $0x30] sm:$0xf]
      %v623 = vld [vmem:[%s5 + $0x34] sm:$0xf]
      %v624 = vld [vmem:[%s5 + $0x38] sm:$0xf]
      %v625 = vld [vmem:[%s5 + $0x3c] sm:$0xf]
      %v626 = vld [vmem:[%s6] sm:$0x1]
      %v628 = vlaneseq
      %v629 = vshrl.u32 %v628, 7
      %v630 = vsub.s32 0, %v629
      %v631 = vrot.slane %v609, %v630
      %v635 = vunpack.c.l.b16 %v575
      %v636 = vunpack.c.l.b16 %v576
      %v637 = vpack.c.b16 %v636, %v635
      %v655 = vunpack.c.l.b16 %v593
      %v656 = vunpack.c.l.b16 %v594
      %v657 = vunpack.c.l.b16 %v595
      %v658 = vunpack.c.l.b16 %v596
      %v659 = vunpack.c.l.b16 %v597
      %v660 = vunpack.c.l.b16 %v598
      %v661 = vunpack.c.l.b16 %v599
      %v662 = vunpack.c.l.b16 %v600
      %v663 = vunpack.c.l.b16 %v601
      %v664 = vunpack.c.l.b16 %v602
      %v665 = vunpack.c.l.b16 %v603
      %v666 = vunpack.c.l.b16 %v604
      %v667 = vunpack.c.l.b16 %v605
      %v668 = vunpack.c.l.b16 %v606
      %v669 = vunpack.c.l.b16 %v607
      %v670 = vunpack.c.l.b16 %v608
      %v671 = vpack.c.b16 %v656, %v655
      %v672 = vpack.c.b16 %v658, %v657
      %v673 = vpack.c.b16 %v660, %v659
      %v674 = vpack.c.b16 %v662, %v661
      %v675 = vpack.c.b16 %v664, %v663
      %v676 = vpack.c.b16 %v666, %v665
      %v677 = vpack.c.b16 %v668, %v667
      %v678 = vpack.c.b16 %v670, %v669
      %687 = vmatprep.subr.bf16.mxu0 0
      %688 = vmatpush1.bf16.msra.mxu0 %v678
      %689 = vmatprep.subr.bf16.mxu0 0
      %690 = vmatpush1.bf16.msra.mxu0 %v677
      %691 = vmatprep.subr.bf16.mxu0 0
      %692 = vmatpush1.bf16.msra.mxu0 %v676
      %693 = vmatprep.subr.bf16.mxu0 0
      %694 = vmatpush1.bf16.msra.mxu0 %v675
      %695 = vmatprep.subr.bf16.mxu0 0
      %696 = vmatpush1.bf16.msra.mxu0 %v674
      %697 = vmatprep.subr.bf16.mxu0 0
      %698 = vmatpush1.bf16.msra.mxu0 %v673
      %699 = vmatprep.subr.bf16.mxu0 0
      %700 = vmatpush1.bf16.msra.mxu0 %v672
      %701 = vmatprep.subr.bf16.mxu0 0
      %702 = vmatpush1.bf16.msra.mxu0 %v671
      %703 = vmatprep.subr.bf16.mxu0 0
      %704 = vmatpush2.bf16.msra.mxu0 0
      %705 = vmatprep.subr.bf16.mxu0 0
      %706 = vmatpush2.bf16.msra.mxu0 0
      %707 = vmatprep.subr.bf16.mxu0 0
      %708 = vmatpush2.bf16.msra.mxu0 0
      %709 = vmatprep.subr.bf16.mxu0 0
      %710 = vmatpush2.bf16.msra.mxu0 0
      %711 = vmatprep.subr.bf16.mxu0 0
      %712 = vmatpush2.bf16.msra.mxu0 0
      %713 = vmatprep.subr.bf16.mxu0 0
      %714 = vmatpush2.bf16.msra.mxu0 0
      %715 = vmatprep.subr.bf16.mxu0 0
      %716 = vmatpush2.bf16.msra.mxu0 0
      %717 = vmatprep.subr.bf16.mxu0 0
      %718 = vmatpush2.bf16.msra.mxu0 0
      %719 = vmatprep.mubr.bf16.mxu0 0
      %720 = vmatmul.mubr.bf16.gmra.mxu0 %v637
      %v721 = vpop.f32.mrf.mxu0
      %v722 = vadd.f32 %v631, %v721
      %v723 = vpop.f32.mrf.mxu0
      %v724 = vpop.f32.mrf.mxu0
      %v725 = vadd.f32 %v631, %v724
      %v726 = vpop.f32.mrf.mxu0
      %727 = vdwg.mxu0
      %730 = vrot.lane.b32.xlu0 %v722, 96
      %v731 = vpop.permute.xlu0 %730
      %732 = vrot.lane.b32.xlu0 %v725, 96
      %v733 = vpop.permute.xlu0 %732
      %736 = vrot.lane.b32.xlu0 %v722, 64
      %v737 = vpop.permute.xlu0 %736
      %738 = vrot.lane.b32.xlu0 %v725, 64
      %v739 = vpop.permute.xlu0 %738
      %742 = vrot.lane.b32.xlu0 %v722, 32
      %v743 = vpop.permute.xlu0 %742
      %744 = vrot.lane.b32.xlu0 %v725, 32
      %v745 = vpop.permute.xlu0 %744
      %v748 = vcombine.low %v722, %v737
      %v749 = vcombine.high %v722, %v737
      %v751 = vunpack.c.l.s4 1983009808
      %v752 = vunpack.c.0.s8 %v751
      %v753 = vlaneseq
      %v754 = vshrl.u32 %v753, 7
      %v755 = vsub.s32 %v752, %v754
      %v756 = vrot.slane %v748, %v755
      %v758 = vunpack.c.l.s4 1983009808
      %v759 = vunpack.c.0.s8 %v758
      %v760 = vlaneseq
      %v761 = vshrl.u32 %v760, 7
      %v762 = vsub.s32 %v759, %v761
      %v763 = vrot.slane %v749, %v762
      %v764 = vcombine.low %v731, %v743
      %v765 = vcombine.high %v731, %v743
      %v767 = vunpack.c.l.s4 1983009808
      %v768 = vunpack.c.0.s8 %v767
      %v769 = vlaneseq
      %v770 = vshrl.u32 %v769, 7
      %v771 = vsub.s32 %v768, %v770
      %v772 = vrot.slane %v764, %v771
      %v774 = vunpack.c.l.s4 1983009808
      %v775 = vunpack.c.0.s8 %v774
      %v776 = vlaneseq
      %v777 = vshrl.u32 %v776, 7
      %v778 = vsub.s32 %v775, %v777
      %v779 = vrot.slane %v765, %v778
      %v780 = vcombine.low %v756, %v772
      %v781 = vcombine.high %v756, %v772
      %v783 = vunpack.c.l.s4 1934713408
      %v784 = vunpack.c.0.s8 %v783
      %v785 = vlaneseq
      %v786 = vshrl.u32 %v785, 7
      %v787 = vsub.s32 %v784, %v786
      %v788 = vrot.slane %v780, %v787
      %v790 = vunpack.c.l.s4 1934713408
      %v791 = vunpack.c.0.s8 %v790
      %v792 = vlaneseq
      %v793 = vshrl.u32 %v792, 7
      %v794 = vsub.s32 %v791, %v793
      %v795 = vrot.slane %v781, %v794
      %v796 = vcombine.low %v763, %v779
      %v797 = vcombine.high %v763, %v779
      %v799 = vunpack.c.l.s4 1934713408
      %v800 = vunpack.c.0.s8 %v799
      %v801 = vlaneseq
      %v802 = vshrl.u32 %v801, 7
      %v803 = vsub.s32 %v800, %v802
      %v804 = vrot.slane %v796, %v803
      %v806 = vunpack.c.l.s4 1934713408
      %v807 = vunpack.c.0.s8 %v806
      %v808 = vlaneseq
      %v809 = vshrl.u32 %v808, 7
      %v810 = vsub.s32 %v807, %v809
      %v811 = vrot.slane %v797, %v810
      %v812 = vcombine.high %v788, 0.0
      %v813 = vcombine.high %v795, 0.0
      %v814 = vcombine.high %v804, 0.0
      %v815 = vcombine.high %v811, 0.0
      %v816 = vcombine.low %v725, %v739
      %v817 = vcombine.high %v725, %v739
      %v819 = vunpack.c.l.s4 1983009808
      %v820 = vunpack.c.0.s8 %v819
      %v821 = vlaneseq
      %v822 = vshrl.u32 %v821, 7
      %v823 = vsub.s32 %v820, %v822
      %v824 = vrot.slane %v816, %v823
      %v826 = vunpack.c.l.s4 1983009808
      %v827 = vunpack.c.0.s8 %v826
      %v828 = vlaneseq
      %v829 = vshrl.u32 %v828, 7
      %v830 = vsub.s32 %v827, %v829
      %v831 = vrot.slane %v817, %v830
      %v832 = vcombine.low %v733, %v745
      %v833 = vcombine.high %v733, %v745
      %v835 = vunpack.c.l.s4 1983009808
      %v836 = vunpack.c.0.s8 %v835
      %v837 = vlaneseq
      %v838 = vshrl.u32 %v837, 7
      %v839 = vsub.s32 %v836, %v838
      %v840 = vrot.slane %v832, %v839
      %v842 = vunpack.c.l.s4 1983009808
      %v843 = vunpack.c.0.s8 %v842
      %v844 = vlaneseq
      %v845 = vshrl.u32 %v844, 7
      %v846 = vsub.s32 %v843, %v845
      %v847 = vrot.slane %v833, %v846
      %v848 = vcombine.low %v824, %v840
      %v849 = vcombine.high %v824, %v840
      %v851 = vunpack.c.l.s4 1934713408
      %v852 = vunpack.c.0.s8 %v851
      %v853 = vlaneseq
      %v854 = vshrl.u32 %v853, 7
      %v855 = vsub.s32 %v852, %v854
      %v856 = vrot.slane %v848, %v855
      %v858 = vunpack.c.l.s4 1934713408
      %v859 = vunpack.c.0.s8 %v858
      %v860 = vlaneseq
      %v861 = vshrl.u32 %v860, 7
      %v862 = vsub.s32 %v859, %v861
      %v863 = vrot.slane %v849, %v862
      %v864 = vcombine.low %v831, %v847
      %v865 = vcombine.high %v831, %v847
      %v867 = vunpack.c.l.s4 1934713408
      %v868 = vunpack.c.0.s8 %v867
      %v869 = vlaneseq
      %v870 = vshrl.u32 %v869, 7
      %v871 = vsub.s32 %v868, %v870
      %v872 = vrot.slane %v864, %v871
      %v874 = vunpack.c.l.s4 1934713408
      %v875 = vunpack.c.0.s8 %v874
      %v876 = vlaneseq
      %v877 = vshrl.u32 %v876, 7
      %v878 = vsub.s32 %v875, %v877
      %v879 = vrot.slane %v865, %v878
      %v880 = vcombine.high %v856, 0.0
      %v881 = vcombine.high %v863, 0.0
      %v882 = vcombine.high %v872, 0.0
      %v883 = vcombine.high %v879, 0.0
      %v884 = vcombine.low %v788, %v795
      %v886 = vunpack.c.l.s4 1983009808
      %v887 = vunpack.c.0.s8 %v886
      %v888 = vlaneseq
      %v889 = vshrl.u32 %v888, 7
      %v890 = vsub.s32 %v887, %v889
      %v891 = vrot.slane %v884, %v890
      %v892 = vcombine.low %v812, %v813
      %v894 = vunpack.c.l.s4 1983009808
      %v895 = vunpack.c.0.s8 %v894
      %v896 = vlaneseq
      %v897 = vshrl.u32 %v896, 7
      %v898 = vsub.s32 %v895, %v897
      %v899 = vrot.slane %v892, %v898
      %v900 = vcombine.low %v804, %v811
      %v902 = vunpack.c.l.s4 1983009808
      %v903 = vunpack.c.0.s8 %v902
      %v904 = vlaneseq
      %v905 = vshrl.u32 %v904, 7
      %v906 = vsub.s32 %v903, %v905
      %v907 = vrot.slane %v900, %v906
      %v908 = vcombine.low %v814, %v815
      %v910 = vunpack.c.l.s4 1983009808
      %v911 = vunpack.c.0.s8 %v910
      %v912 = vlaneseq
      %v913 = vshrl.u32 %v912, 7
      %v914 = vsub.s32 %v911, %v913
      %v915 = vrot.slane %v908, %v914
      %v916 = vcombine.low %v891, %v899
      %v917 = vcombine.high %v891, %v899
      %v919 = vunpack.c.l.s4 1934713408
      %v920 = vunpack.c.0.s8 %v919
      %v921 = vlaneseq
      %v922 = vshrl.u32 %v921, 7
      %v923 = vsub.s32 %v920, %v922
      %v924 = vrot.slane %v916, %v923
      %v926 = vunpack.c.l.s4 1934713408
      %v927 = vunpack.c.0.s8 %v926
      %v928 = vlaneseq
      %v929 = vshrl.u32 %v928, 7
      %v930 = vsub.s32 %v927, %v929
      %v931 = vrot.slane %v917, %v930
      %v932 = vcombine.low %v907, %v915
      %v933 = vcombine.high %v907, %v915
      %v935 = vunpack.c.l.s4 1934713408
      %v936 = vunpack.c.0.s8 %v935
      %v937 = vlaneseq
      %v938 = vshrl.u32 %v937, 7
      %v939 = vsub.s32 %v936, %v938
      %v940 = vrot.slane %v932, %v939
      %v942 = vunpack.c.l.s4 1934713408
      %v943 = vunpack.c.0.s8 %v942
      %v944 = vlaneseq
      %v945 = vshrl.u32 %v944, 7
      %v946 = vsub.s32 %v943, %v945
      %v947 = vrot.slane %v933, %v946
      %v948 = vcombine.low %v924, %v940
      %v949 = vcombine.high %v924, %v940
      %v950 = vcombine.low %v931, %v947
      %v951 = vcombine.high %v931, %v947
      %v952 = vcombine.low %v856, %v863
      %v954 = vunpack.c.l.s4 1983009808
      %v955 = vunpack.c.0.s8 %v954
      %v956 = vlaneseq
      %v957 = vshrl.u32 %v956, 7
      %v958 = vsub.s32 %v955, %v957
      %v959 = vrot.slane %v952, %v958
      %v960 = vcombine.low %v880, %v881
      %v962 = vunpack.c.l.s4 1983009808
      %v963 = vunpack.c.0.s8 %v962
      %v964 = vlaneseq
      %v965 = vshrl.u32 %v964, 7
      %v966 = vsub.s32 %v963, %v965
      %v967 = vrot.slane %v960, %v966
      %v968 = vcombine.low %v872, %v879
      %v970 = vunpack.c.l.s4 1983009808
      %v971 = vunpack.c.0.s8 %v970
      %v972 = vlaneseq
      %v973 = vshrl.u32 %v972, 7
      %v974 = vsub.s32 %v971, %v973
      %v975 = vrot.slane %v968, %v974
      %v976 = vcombine.low %v882, %v883
      %v978 = vunpack.c.l.s4 1983009808
      %v979 = vunpack.c.0.s8 %v978
      %v980 = vlaneseq
      %v981 = vshrl.u32 %v980, 7
      %v982 = vsub.s32 %v979, %v981
      %v983 = vrot.slane %v976, %v982
      %v984 = vcombine.low %v959, %v967
      %v985 = vcombine.high %v959, %v967
      %v987 = vunpack.c.l.s4 1934713408
      %v988 = vunpack.c.0.s8 %v987
      %v989 = vlaneseq
      %v990 = vshrl.u32 %v989, 7
      %v991 = vsub.s32 %v988, %v990
      %v992 = vrot.slane %v984, %v991
      %v994 = vunpack.c.l.s4 1934713408
      %v995 = vunpack.c.0.s8 %v994
      %v996 = vlaneseq
      %v997 = vshrl.u32 %v996, 7
      %v998 = vsub.s32 %v995, %v997
      %v999 = vrot.slane %v985, %v998
      %v1000 = vcombine.low %v975, %v983
      %v1001 = vcombine.high %v975, %v983
      %v1003 = vunpack.c.l.s4 1934713408
      %v1004 = vunpack.c.0.s8 %v1003
      %v1005 = vlaneseq
      %v1006 = vshrl.u32 %v1005, 7
      %v1007 = vsub.s32 %v1004, %v1006
      %v1008 = vrot.slane %v1000, %v1007
      %v1010 = vunpack.c.l.s4 1934713408
      %v1011 = vunpack.c.0.s8 %v1010
      %v1012 = vlaneseq
      %v1013 = vshrl.u32 %v1012, 7
      %v1014 = vsub.s32 %v1011, %v1013
      %v1015 = vrot.slane %v1001, %v1014
      %v1016 = vcombine.low %v992, %v1008
      %v1017 = vcombine.high %v992, %v1008
      %v1018 = vcombine.low %v999, %v1015
      %v1019 = vcombine.high %v999, %v1015
      %v1020 = vpack.c.bf16 %v1016, %v948
      %v1021 = vpack.c.bf16 %v1017, %v949
      %v1022 = vpack.c.bf16 %v1018, %v950
      %v1023 = vpack.c.bf16 %v1019, %v951
      %v1026 = vunpack.c.l.b16 %v577
      %v1027 = vunpack.c.l.b16 %v578
      %v1028 = vpack.c.b16 %v1027, %v1026
      %vm1029 = vcmask 261120
      %v1031 = vsel %vm1029, %v1020, 0
      %v1034 = vsel %vm1029, %v1028, 0
      %1036 = vmatprep.subr.bf16.mxu0 0
      %1037 = vmatpush1.bf16.xpose.msra.mxu0 0
      %1038 = vmatprep.subr.bf16.mxu0 0
      %1039 = vmatpush1.bf16.xpose.msra.mxu0 0
      %1040 = vmatprep.subr.bf16.mxu0 0
      %1041 = vmatpush1.bf16.xpose.msra.mxu0 0
      %1042 = vmatprep.subr.bf16.mxu0 0
      %1043 = vmatpush1.bf16.xpose.msra.mxu0 0
      %1044 = vmatprep.subr.bf16.mxu0 0
      %1045 = vmatpush1.bf16.xpose.msra.mxu0 0
      %1046 = vmatprep.subr.bf16.mxu0 0
      %1047 = vmatpush1.bf16.xpose.msra.mxu0 0
      %1048 = vmatprep.subr.bf16.mxu0 0
      %1049 = vmatpush1.bf16.xpose.msra.mxu0 0
      %1050 = vmatprep.subr.bf16.mxu0 0
      %1051 = vmatpush1.bf16.xpose.msra.mxu0 %v1034
      %1052 = vmatprep.subr.bf16.mxu0 0
      %1053 = vmatpush2.bf16.xpose.msra.mxu0 0
      %1054 = vmatprep.subr.bf16.mxu0 0
      %1055 = vmatpush2.bf16.xpose.msra.mxu0 0
      %1056 = vmatprep.subr.bf16.mxu0 0
      %1057 = vmatpush2.bf16.xpose.msra.mxu0 0
      %1058 = vmatprep.subr.bf16.mxu0 0
      %1059 = vmatpush2.bf16.xpose.msra.mxu0 0
      %1060 = vmatprep.subr.bf16.mxu0 0
      %1061 = vmatpush2.bf16.xpose.msra.mxu0 0
      %1062 = vmatprep.subr.bf16.mxu0 0
      %1063 = vmatpush2.bf16.xpose.msra.mxu0 0
      %1064 = vmatprep.subr.bf16.mxu0 0
      %1065 = vmatpush2.bf16.xpose.msra.mxu0 0
      %1066 = vmatprep.subr.bf16.mxu0 0
      %1067 = vmatpush2.bf16.xpose.msra.mxu0 0
      %1068 = vmatprep.mubr.bf16.mxu0 0
      %1069 = vmatmul.mubr.bf16.gmra.mxu0 %v1031
      %v1070 = vpop.f32.mrf.mxu0
      %v1071 = vadd.f32 0.0, %v1070
      %v1072 = vpop.f32.mrf.mxu0
      %v1073 = vpop.f32.mrf.mxu0
      %v1074 = vadd.f32 0.0, %v1073
      %v1075 = vpop.f32.mrf.mxu0
      %1076 = vdwg.mxu0
      %v1079 = vunpack.c.l.b16 %v579
      %v1080 = vunpack.c.l.b16 %v580
      %v1081 = vpack.c.b16 %v1080, %v1079
      %v1083 = vsel %vm1029, %v1021, 0
      %v1086 = vsel %vm1029, %v1081, 0
      %1088 = vmatprep.subr.bf16.mxu0 0
      %1089 = vmatpush1.bf16.xpose.msra.mxu0 0
      %1090 = vmatprep.subr.bf16.mxu0 0
      %1091 = vmatpush1.bf16.xpose.msra.mxu0 0
      %1092 = vmatprep.subr.bf16.mxu0 0
      %1093 = vmatpush1.bf16.xpose.msra.mxu0 0
      %1094 = vmatprep.subr.bf16.mxu0 0
      %1095 = vmatpush1.bf16.xpose.msra.mxu0 0
      %1096 = vmatprep.subr.bf16.mxu0 0
      %1097 = vmatpush1.bf16.xpose.msra.mxu0 0
      %1098 = vmatprep.subr.bf16.mxu0 0
      %1099 = vmatpush1.bf16.xpose.msra.mxu0 0
      %1100 = vmatprep.subr.bf16.mxu0 0
      %1101 = vmatpush1.bf16.xpose.msra.mxu0 0
      %1102 = vmatprep.subr.bf16.mxu0 0
      %1103 = vmatpush1.bf16.xpose.msra.mxu0 %v1086
      %1104 = vmatprep.subr.bf16.mxu0 0
      %1105 = vmatpush2.bf16.xpose.msra.mxu0 0
      %1106 = vmatprep.subr.bf16.mxu0 0
      %1107 = vmatpush2.bf16.xpose.msra.mxu0 0
      %1108 = vmatprep.subr.bf16.mxu0 0
      %1109 = vmatpush2.bf16.xpose.msra.mxu0 0
      %1110 = vmatprep.subr.bf16.mxu0 0
      %1111 = vmatpush2.bf16.xpose.msra.mxu0 0
      %1112 = vmatprep.subr.bf16.mxu0 0
      %1113 = vmatpush2.bf16.xpose.msra.mxu0 0
      %1114 = vmatprep.subr.bf16.mxu0 0
      %1115 = vmatpush2.bf16.xpose.msra.mxu0 0
      %1116 = vmatprep.subr.bf16.mxu0 0
      %1117 = vmatpush2.bf16.xpose.msra.mxu0 0
      %1118 = vmatprep.subr.bf16.mxu0 0
      %1119 = vmatpush2.bf16.xpose.msra.mxu0 0
      %1120 = vmatprep.mubr.bf16.mxu0 0
      %1121 = vmatmul.mubr.bf16.gmra.mxu0 %v1083
      %v1122 = vpop.f32.mrf.mxu0
      %v1123 = vadd.f32 0.0, %v1122
      %v1124 = vpop.f32.mrf.mxu0
      %v1125 = vpop.f32.mrf.mxu0
      %v1126 = vadd.f32 0.0, %v1125
      %v1127 = vpop.f32.mrf.mxu0
      %1128 = vdwg.mxu0
      %v1131 = vunpack.c.l.b16 %v581
      %v1132 = vunpack.c.l.b16 %v582
      %v1133 = vpack.c.b16 %v1132, %v1131
      %v1135 = vsel %vm1029, %v1022, 0
      %v1138 = vsel %vm1029, %v1133, 0
      %1140 = vmatprep.subr.bf16.mxu0 0
      %1141 = vmatpush1.bf16.xpose.msra.mxu0 0
      %1142 = vmatprep.subr.bf16.mxu0 0
      %1143 = vmatpush1.bf16.xpose.msra.mxu0 0
      %1144 = vmatprep.subr.bf16.mxu0 0
      %1145 = vmatpush1.bf16.xpose.msra.mxu0 0
      %1146 = vmatprep.subr.bf16.mxu0 0
      %1147 = vmatpush1.bf16.xpose.msra.mxu0 0
      %1148 = vmatprep.subr.bf16.mxu0 0
      %1149 = vmatpush1.bf16.xpose.msra.mxu0 0
      %1150 = vmatprep.subr.bf16.mxu0 0
      %1151 = vmatpush1.bf16.xpose.msra.mxu0 0
      %1152 = vmatprep.subr.bf16.mxu0 0
      %1153 = vmatpush1.bf16.xpose.msra.mxu0 0
      %1154 = vmatprep.subr.bf16.mxu0 0
      %1155 = vmatpush1.bf16.xpose.msra.mxu0 %v1138
      %1156 = vmatprep.subr.bf16.mxu0 0
      %1157 = vmatpush2.bf16.xpose.msra.mxu0 0
      %1158 = vmatprep.subr.bf16.mxu0 0
      %1159 = vmatpush2.bf16.xpose.msra.mxu0 0
      %1160 = vmatprep.subr.bf16.mxu0 0
      %1161 = vmatpush2.bf16.xpose.msra.mxu0 0
      %1162 = vmatprep.subr.bf16.mxu0 0
      %1163 = vmatpush2.bf16.xpose.msra.mxu0 0
      %1164 = vmatprep.subr.bf16.mxu0 0
      %1165 = vmatpush2.bf16.xpose.msra.mxu0 0
      %1166 = vmatprep.subr.bf16.mxu0 0
      %1167 = vmatpush2.bf16.xpose.msra.mxu0 0
      %1168 = vmatprep.subr.bf16.mxu0 0
      %1169 = vmatpush2.bf16.xpose.msra.mxu0 0
      %1170 = vmatprep.subr.bf16.mxu0 0
      %1171 = vmatpush2.bf16.xpose.msra.mxu0 0
      %1172 = vmatprep.mubr.bf16.mxu0 0
      %1173 = vmatmul.mubr.bf16.gmra.mxu0 %v1135
      %v1174 = vpop.f32.mrf.mxu0
      %v1175 = vadd.f32 0.0, %v1174
      %v1176 = vpop.f32.mrf.mxu0
      %v1177 = vpop.f32.mrf.mxu0
      %v1178 = vadd.f32 0.0, %v1177
      %v1179 = vpop.f32.mrf.mxu0
      %1180 = vdwg.mxu0
      %v1183 = vunpack.c.l.b16 %v583
      %v1184 = vunpack.c.l.b16 %v584
      %v1185 = vpack.c.b16 %v1184, %v1183
      %v1187 = vsel %vm1029, %v1023, 0
      %v1190 = vsel %vm1029, %v1185, 0
      %1192 = vmatprep.subr.bf16.mxu0 0
      %1193 = vmatpush1.bf16.xpose.msra.mxu0 0
      %1194 = vmatprep.subr.bf16.mxu0 0
      %1195 = vmatpush1.bf16.xpose.msra.mxu0 0
      %1196 = vmatprep.subr.bf16.mxu0 0
      %1197 = vmatpush1.bf16.xpose.msra.mxu0 0
      %1198 = vmatprep.subr.bf16.mxu0 0
      %1199 = vmatpush1.bf16.xpose.msra.mxu0 0
      %1200 = vmatprep.subr.bf16.mxu0 0
      %1201 = vmatpush1.bf16.xpose.msra.mxu0 0
      %1202 = vmatprep.subr.bf16.mxu0 0
      %1203 = vmatpush1.bf16.xpose.msra.mxu0 0
      %1204 = vmatprep.subr.bf16.mxu0 0
      %1205 = vmatpush1.bf16.xpose.msra.mxu0 0
      %1206 = vmatprep.subr.bf16.mxu0 0
      %1207 = vmatpush1.bf16.xpose.msra.mxu0 %v1190
      %1208 = vmatprep.subr.bf16.mxu0 0
      %1209 = vmatpush2.bf16.xpose.msra.mxu0 0
      %1210 = vmatprep.subr.bf16.mxu0 0
      %1211 = vmatpush2.bf16.xpose.msra.mxu0 0
      %1212 = vmatprep.subr.bf16.mxu0 0
      %1213 = vmatpush2.bf16.xpose.msra.mxu0 0
      %1214 = vmatprep.subr.bf16.mxu0 0
      %1215 = vmatpush2.bf16.xpose.msra.mxu0 0
      %1216 = vmatprep.subr.bf16.mxu0 0
      %1217 = vmatpush2.bf16.xpose.msra.mxu0 0
      %1218 = vmatprep.subr.bf16.mxu0 0
      %1219 = vmatpush2.bf16.xpose.msra.mxu0 0
      %1220 = vmatprep.subr.bf16.mxu0 0
      %1221 = vmatpush2.bf16.xpose.msra.mxu0 0
      %1222 = vmatprep.subr.bf16.mxu0 0
      %1223 = vmatpush2.bf16.xpose.msra.mxu0 0
      %1224 = vmatprep.mubr.bf16.mxu0 0
      %1225 = vmatmul.mubr.bf16.gmra.mxu0 %v1187
      %v1226 = vpop.f32.mrf.mxu0
      %v1227 = vadd.f32 0.0, %v1226
      %v1228 = vpop.f32.mrf.mxu0
      %v1229 = vpop.f32.mrf.mxu0
      %v1230 = vadd.f32 0.0, %v1229
      %v1231 = vpop.f32.mrf.mxu0
      %1232 = vdwg.mxu0
      %vm1233 = vcmask 130048
      %v1234 = vsel %vm1233, %v1071, -inf
      %1235 = vmax.xlane.f32.xlu0 %v1234
      %v1236 = vpop.xlane.xlu0 %1235
      %v1237 = vsel %vm1233, %v1074, -inf
      %1238 = vmax.xlane.f32.xlu0 %v1237
      %v1239 = vpop.xlane.xlu0 %1238
      %v1240 = vsel %vm1233, %v1123, -inf
      %1241 = vmax.xlane.f32.xlu0 %v1240
      %v1242 = vpop.xlane.xlu0 %1241
      %v1243 = vsel %vm1233, %v1126, -inf
      %1244 = vmax.xlane.f32.xlu0 %v1243
      %v1245 = vpop.xlane.xlu0 %1244
      %v1246 = vsel %vm1233, %v1175, -inf
      %1247 = vmax.xlane.f32.xlu0 %v1246
      %v1248 = vpop.xlane.xlu0 %1247
      %v1249 = vsel %vm1233, %v1178, -inf
      %1250 = vmax.xlane.f32.xlu0 %v1249
      %v1251 = vpop.xlane.xlu0 %1250
      %v1252 = vsel %vm1233, %v1227, -inf
      %1253 = vmax.xlane.f32.xlu0 %v1252
      %v1254 = vpop.xlane.xlu0 %1253
      %v1255 = vsel %vm1233, %v1230, -inf
      %1256 = vmax.xlane.f32.xlu0 %v1255
      %v1257 = vpop.xlane.xlu0 %1256
      %v1258 = vsub.f32 %v1071, %v1236
      %v1259 = vsub.f32 %v1074, %v1239
      %v1260 = vsub.f32 %v1123, %v1242
      %v1261 = vsub.f32 %v1126, %v1245
      %v1262 = vsub.f32 %v1175, %v1248
      %v1263 = vsub.f32 %v1178, %v1251
      %v1264 = vsub.f32 %v1227, %v1254
      %v1265 = vsub.f32 %v1230, %v1257
      %v1266 = vmul.f32 %v1258, 1.442695
      %v1267 = vpow.pop %v1266
      %v1268 = vmul.f32 %v1259, 1.442695
      %v1269 = vpow.pop %v1268
      %v1270 = vmul.f32 %v1260, 1.442695
      %v1271 = vpow.pop %v1270
      %v1272 = vmul.f32 %v1261, 1.442695
      %v1273 = vpow.pop %v1272
      %v1274 = vmul.f32 %v1262, 1.442695
      %v1275 = vpow.pop %v1274
      %v1276 = vmul.f32 %v1263, 1.442695
      %v1277 = vpow.pop %v1276
      %v1278 = vmul.f32 %v1264, 1.442695
      %v1279 = vpow.pop %v1278
      %v1280 = vmul.f32 %v1265, 1.442695
      %v1281 = vpow.pop %v1280
      %v1282 = vsel %vm1233, %v1267, 0.0
      %1283 = vadd.xlane.f32.xlu0 %v1282
      %v1284 = vpop.xlane.xlu0 %1283
      %v1285 = vsel %vm1233, %v1269, 0.0
      %1286 = vadd.xlane.f32.xlu0 %v1285
      %v1287 = vpop.xlane.xlu0 %1286
      %v1288 = vsel %vm1233, %v1271, 0.0
      %1289 = vadd.xlane.f32.xlu0 %v1288
      %v1290 = vpop.xlane.xlu0 %1289
      %v1291 = vsel %vm1233, %v1273, 0.0
      %1292 = vadd.xlane.f32.xlu0 %v1291
      %v1293 = vpop.xlane.xlu0 %1292
      %v1294 = vsel %vm1233, %v1275, 0.0
      %1295 = vadd.xlane.f32.xlu0 %v1294
      %v1296 = vpop.xlane.xlu0 %1295
      %v1297 = vsel %vm1233, %v1277, 0.0
      %1298 = vadd.xlane.f32.xlu0 %v1297
      %v1299 = vpop.xlane.xlu0 %1298
      %v1300 = vsel %vm1233, %v1279, 0.0
      %1301 = vadd.xlane.f32.xlu0 %v1300
      %v1302 = vpop.xlane.xlu0 %1301
      %v1303 = vsel %vm1233, %v1281, 0.0
      %1304 = vadd.xlane.f32.xlu0 %v1303
      %v1305 = vpop.xlane.xlu0 %1304
      %v1306 = vpack.c.bf16 %v1269, %v1267
      %v1307 = vpack.c.bf16 %v1273, %v1271
      %v1308 = vpack.c.bf16 %v1277, %v1275
      %v1309 = vpack.c.bf16 %v1281, %v1279
      %v1312 = vunpack.c.l.b16 %v585
      %v1313 = vunpack.c.l.b16 %v586
      %v1314 = vpack.c.b16 %v1313, %v1312
      %v1317 = vsel %vm1233, %v1306, 0
      %1319 = vmatprep.subr.bf16.mxu0 0
      %1320 = vmatpush1.bf16.msra.mxu0 0
      %1321 = vmatprep.subr.bf16.mxu0 0
      %1322 = vmatpush1.bf16.msra.mxu0 0
      %1323 = vmatprep.subr.bf16.mxu0 0
      %1324 = vmatpush1.bf16.msra.mxu0 0
      %1325 = vmatprep.subr.bf16.mxu0 0
      %1326 = vmatpush1.bf16.msra.mxu0 0
      %1327 = vmatprep.subr.bf16.mxu0 0
      %1328 = vmatpush1.bf16.msra.mxu0 0
      %1329 = vmatprep.subr.bf16.mxu0 0
      %1330 = vmatpush1.bf16.msra.mxu0 0
      %1331 = vmatprep.subr.bf16.mxu0 0
      %1332 = vmatpush1.bf16.msra.mxu0 0
      %1333 = vmatprep.subr.bf16.mxu0 0
      %1334 = vmatpush1.bf16.msra.mxu0 %v1314
      %1335 = vmatprep.subr.bf16.mxu0 0
      %1336 = vmatpush2.bf16.msra.mxu0 0
      %1337 = vmatprep.subr.bf16.mxu0 0
      %1338 = vmatpush2.bf16.msra.mxu0 0
      %1339 = vmatprep.subr.bf16.mxu0 0
      %1340 = vmatpush2.bf16.msra.mxu0 0
      %1341 = vmatprep.subr.bf16.mxu0 0
      %1342 = vmatpush2.bf16.msra.mxu0 0
      %1343 = vmatprep.subr.bf16.mxu0 0
      %1344 = vmatpush2.bf16.msra.mxu0 0
      %1345 = vmatprep.subr.bf16.mxu0 0
      %1346 = vmatpush2.bf16.msra.mxu0 0
      %1347 = vmatprep.subr.bf16.mxu0 0
      %1348 = vmatpush2.bf16.msra.mxu0 0
      %1349 = vmatprep.subr.bf16.mxu0 0
      %1350 = vmatpush2.bf16.msra.mxu0 0
      %1351 = vmatprep.mubr.bf16.mxu0 0
      %1352 = vmatmul.mubr.bf16.gmra.mxu0 %v1317
      %v1353 = vpop.f32.mrf.mxu0
      %v1354 = vadd.f32 0.0, %v1353
      %v1355 = vpop.f32.mrf.mxu0
      %v1356 = vpop.f32.mrf.mxu0
      %v1357 = vadd.f32 0.0, %v1356
      %v1358 = vpop.f32.mrf.mxu0
      %1359 = vdwg.mxu0
      %v1362 = vunpack.c.l.b16 %v587
      %v1363 = vunpack.c.l.b16 %v588
      %v1364 = vpack.c.b16 %v1363, %v1362
      %v1367 = vsel %vm1233, %v1307, 0
      %1369 = vmatprep.subr.bf16.mxu0 0
      %1370 = vmatpush1.bf16.msra.mxu0 0
      %1371 = vmatprep.subr.bf16.mxu0 0
      %1372 = vmatpush1.bf16.msra.mxu0 0
      %1373 = vmatprep.subr.bf16.mxu0 0
      %1374 = vmatpush1.bf16.msra.mxu0 0
      %1375 = vmatprep.subr.bf16.mxu0 0
      %1376 = vmatpush1.bf16.msra.mxu0 0
      %1377 = vmatprep.subr.bf16.mxu0 0
      %1378 = vmatpush1.bf16.msra.mxu0 0
      %1379 = vmatprep.subr.bf16.mxu0 0
      %1380 = vmatpush1.bf16.msra.mxu0 0
      %1381 = vmatprep.subr.bf16.mxu0 0
      %1382 = vmatpush1.bf16.msra.mxu0 0
      %1383 = vmatprep.subr.bf16.mxu0 0
      %1384 = vmatpush1.bf16.msra.mxu0 %v1364
      %1385 = vmatprep.subr.bf16.mxu0 0
      %1386 = vmatpush2.bf16.msra.mxu0 0
      %1387 = vmatprep.subr.bf16.mxu0 0
      %1388 = vmatpush2.bf16.msra.mxu0 0
      %1389 = vmatprep.subr.bf16.mxu0 0
      %1390 = vmatpush2.bf16.msra.mxu0 0
      %1391 = vmatprep.subr.bf16.mxu0 0
      %1392 = vmatpush2.bf16.msra.mxu0 0
      %1393 = vmatprep.subr.bf16.mxu0 0
      %1394 = vmatpush2.bf16.msra.mxu0 0
      %1395 = vmatprep.subr.bf16.mxu0 0
      %1396 = vmatpush2.bf16.msra.mxu0 0
      %1397 = vmatprep.subr.bf16.mxu0 0
      %1398 = vmatpush2.bf16.msra.mxu0 0
      %1399 = vmatprep.subr.bf16.mxu0 0
      %1400 = vmatpush2.bf16.msra.mxu0 0
      %1401 = vmatprep.mubr.bf16.mxu0 0
      %1402 = vmatmul.mubr.bf16.gmra.mxu0 %v1367
      %v1403 = vpop.f32.mrf.mxu0
      %v1404 = vadd.f32 0.0, %v1403
      %v1405 = vpop.f32.mrf.mxu0
      %v1406 = vpop.f32.mrf.mxu0
      %v1407 = vadd.f32 0.0, %v1406
      %v1408 = vpop.f32.mrf.mxu0
      %1409 = vdwg.mxu0
      %v1412 = vunpack.c.l.b16 %v589
      %v1413 = vunpack.c.l.b16 %v590
      %v1414 = vpack.c.b16 %v1413, %v1412
      %v1417 = vsel %vm1233, %v1308, 0
      %1419 = vmatprep.subr.bf16.mxu0 0
      %1420 = vmatpush1.bf16.msra.mxu0 0
      %1421 = vmatprep.subr.bf16.mxu0 0
      %1422 = vmatpush1.bf16.msra.mxu0 0
      %1423 = vmatprep.subr.bf16.mxu0 0
      %1424 = vmatpush1.bf16.msra.mxu0 0
      %1425 = vmatprep.subr.bf16.mxu0 0
      %1426 = vmatpush1.bf16.msra.mxu0 0
      %1427 = vmatprep.subr.bf16.mxu0 0
      %1428 = vmatpush1.bf16.msra.mxu0 0
      %1429 = vmatprep.subr.bf16.mxu0 0
      %1430 = vmatpush1.bf16.msra.mxu0 0
      %1431 = vmatprep.subr.bf16.mxu0 0
      %1432 = vmatpush1.bf16.msra.mxu0 0
      %1433 = vmatprep.subr.bf16.mxu0 0
      %1434 = vmatpush1.bf16.msra.mxu0 %v1414
      %1435 = vmatprep.subr.bf16.mxu0 0
      %1436 = vmatpush2.bf16.msra.mxu0 0
      %1437 = vmatprep.subr.bf16.mxu0 0
      %1438 = vmatpush2.bf16.msra.mxu0 0
      %1439 = vmatprep.subr.bf16.mxu0 0
      %1440 = vmatpush2.bf16.msra.mxu0 0
      %1441 = vmatprep.subr.bf16.mxu0 0
      %1442 = vmatpush2.bf16.msra.mxu0 0
      %1443 = vmatprep.subr.bf16.mxu0 0
      %1444 = vmatpush2.bf16.msra.mxu0 0
      %1445 = vmatprep.subr.bf16.mxu0 0
      %1446 = vmatpush2.bf16.msra.mxu0 0
      %1447 = vmatprep.subr.bf16.mxu0 0
      %1448 = vmatpush2.bf16.msra.mxu0 0
      %1449 = vmatprep.subr.bf16.mxu0 0
      %1450 = vmatpush2.bf16.msra.mxu0 0
      %1451 = vmatprep.mubr.bf16.mxu0 0
      %1452 = vmatmul.mubr.bf16.gmra.mxu0 %v1417
      %v1453 = vpop.f32.mrf.mxu0
      %v1454 = vadd.f32 0.0, %v1453
      %v1455 = vpop.f32.mrf.mxu0
      %v1456 = vpop.f32.mrf.mxu0
      %v1457 = vadd.f32 0.0, %v1456
      %v1458 = vpop.f32.mrf.mxu0
      %1459 = vdwg.mxu0
      %v1462 = vunpack.c.l.b16 %v591
      %v1463 = vunpack.c.l.b16 %v592
      %v1464 = vpack.c.b16 %v1463, %v1462
      %v1467 = vsel %vm1233, %v1309, 0
      %1469 = vmatprep.subr.bf16.mxu0 0
      %1470 = vmatpush1.bf16.msra.mxu0 0
      %1471 = vmatprep.subr.bf16.mxu0 0
      %1472 = vmatpush1.bf16.msra.mxu0 0
      %1473 = vmatprep.subr.bf16.mxu0 0
      %1474 = vmatpush1.bf16.msra.mxu0 0
      %1475 = vmatprep.subr.bf16.mxu0 0
      %1476 = vmatpush1.bf16.msra.mxu0 0
      %1477 = vmatprep.subr.bf16.mxu0 0
      %1478 = vmatpush1.bf16.msra.mxu0 0
      %1479 = vmatprep.subr.bf16.mxu0 0
      %1480 = vmatpush1.bf16.msra.mxu0 0
      %1481 = vmatprep.subr.bf16.mxu0 0
      %1482 = vmatpush1.bf16.msra.mxu0 0
      %1483 = vmatprep.subr.bf16.mxu0 0
      %1484 = vmatpush1.bf16.msra.mxu0 %v1464
      %1485 = vmatprep.subr.bf16.mxu0 0
      %1486 = vmatpush2.bf16.msra.mxu0 0
      %1487 = vmatprep.subr.bf16.mxu0 0
      %1488 = vmatpush2.bf16.msra.mxu0 0
      %1489 = vmatprep.subr.bf16.mxu0 0
      %1490 = vmatpush2.bf16.msra.mxu0 0
      %1491 = vmatprep.subr.bf16.mxu0 0
      %1492 = vmatpush2.bf16.msra.mxu0 0
      %1493 = vmatprep.subr.bf16.mxu0 0
      %1494 = vmatpush2.bf16.msra.mxu0 0
      %1495 = vmatprep.subr.bf16.mxu0 0
      %1496 = vmatpush2.bf16.msra.mxu0 0
      %1497 = vmatprep.subr.bf16.mxu0 0
      %1498 = vmatpush2.bf16.msra.mxu0 0
      %1499 = vmatprep.subr.bf16.mxu0 0
      %1500 = vmatpush2.bf16.msra.mxu0 0
      %1501 = vmatprep.mubr.bf16.mxu0 0
      %1502 = vmatmul.mubr.bf16.gmra.mxu0 %v1467
      %v1503 = vpop.f32.mrf.mxu0
      %v1504 = vadd.f32 0.0, %v1503
      %v1505 = vpop.f32.mrf.mxu0
      %v1506 = vpop.f32.mrf.mxu0
      %v1507 = vadd.f32 0.0, %v1506
      %v1508 = vpop.f32.mrf.mxu0
      %1509 = vdwg.mxu0
      %v1510 = vrcp.pop %v1284
      %v1511 = vrcp.pop %v1287
      %v1512 = vrcp.pop %v1290
      %v1513 = vrcp.pop %v1293
      %v1514 = vrcp.pop %v1296
      %v1515 = vrcp.pop %v1299
      %v1516 = vrcp.pop %v1302
      %v1517 = vrcp.pop %v1305
      %v1518 = vmul.f32 %v1354, %v1510
      %v1519 = vmul.f32 %v1357, %v1511
      %v1520 = vmul.f32 %v1404, %v1512
      %v1521 = vmul.f32 %v1407, %v1513
      %v1522 = vmul.f32 %v1454, %v1514
      %v1523 = vmul.f32 %v1457, %v1515
      %v1524 = vmul.f32 %v1504, %v1516
      %v1525 = vmul.f32 %v1507, %v1517
      %v1526 = vcombine.low %v1518, %v1522
      %v1527 = vcombine.high %v1518, %v1522
      %v1529 = vunpack.c.l.s4 1983009808
      %v1530 = vunpack.c.0.s8 %v1529
      %v1531 = vlaneseq
      %v1532 = vshrl.u32 %v1531, 7
      %v1533 = vsub.s32 %v1530, %v1532
      %v1534 = vrot.slane %v1526, %v1533
      %v1536 = vunpack.c.l.s4 1983009808
      %v1537 = vunpack.c.0.s8 %v1536
      %v1538 = vlaneseq
      %v1539 = vshrl.u32 %v1538, 7
      %v1540 = vsub.s32 %v1537, %v1539
      %v1541 = vrot.slane %v1527, %v1540
      %v1542 = vcombine.low %v1520, %v1524
      %v1543 = vcombine.high %v1520, %v1524
      %v1545 = vunpack.c.l.s4 1983009808
      %v1546 = vunpack.c.0.s8 %v1545
      %v1547 = vlaneseq
      %v1548 = vshrl.u32 %v1547, 7
      %v1549 = vsub.s32 %v1546, %v1548
      %v1550 = vrot.slane %v1542, %v1549
      %v1552 = vunpack.c.l.s4 1983009808
      %v1553 = vunpack.c.0.s8 %v1552
      %v1554 = vlaneseq
      %v1555 = vshrl.u32 %v1554, 7
      %v1556 = vsub.s32 %v1553, %v1555
      %v1557 = vrot.slane %v1543, %v1556
      %v1558 = vcombine.low %v1534, %v1550
      %v1559 = vcombine.high %v1534, %v1550
      %v1561 = vunpack.c.l.s4 1934713408
      %v1562 = vunpack.c.0.s8 %v1561
      %v1563 = vlaneseq
      %v1564 = vshrl.u32 %v1563, 7
      %v1565 = vsub.s32 %v1562, %v1564
      %v1566 = vrot.slane %v1558, %v1565
      %v1568 = vunpack.c.l.s4 1934713408
      %v1569 = vunpack.c.0.s8 %v1568
      %v1570 = vlaneseq
      %v1571 = vshrl.u32 %v1570, 7
      %v1572 = vsub.s32 %v1569, %v1571
      %v1573 = vrot.slane %v1559, %v1572
      %v1574 = vcombine.low %v1541, %v1557
      %v1575 = vcombine.high %v1541, %v1557
      %v1577 = vunpack.c.l.s4 1934713408
      %v1578 = vunpack.c.0.s8 %v1577
      %v1579 = vlaneseq
      %v1580 = vshrl.u32 %v1579, 7
      %v1581 = vsub.s32 %v1578, %v1580
      %v1582 = vrot.slane %v1574, %v1581
      %v1584 = vunpack.c.l.s4 1934713408
      %v1585 = vunpack.c.0.s8 %v1584
      %v1586 = vlaneseq
      %v1587 = vshrl.u32 %v1586, 7
      %v1588 = vsub.s32 %v1585, %v1587
      %v1589 = vrot.slane %v1575, %v1588
      %v1590 = vcombine.high %v1566, 0.0
      %v1591 = vcombine.high %v1573, 0.0
      %v1592 = vcombine.high %v1582, 0.0
      %v1593 = vcombine.high %v1589, 0.0
      %v1594 = vcombine.low %v1519, %v1523
      %v1595 = vcombine.high %v1519, %v1523
      %v1597 = vunpack.c.l.s4 1983009808
      %v1598 = vunpack.c.0.s8 %v1597
      %v1599 = vlaneseq
      %v1600 = vshrl.u32 %v1599, 7
      %v1601 = vsub.s32 %v1598, %v1600
      %v1602 = vrot.slane %v1594, %v1601
      %v1604 = vunpack.c.l.s4 1983009808
      %v1605 = vunpack.c.0.s8 %v1604
      %v1606 = vlaneseq
      %v1607 = vshrl.u32 %v1606, 7
      %v1608 = vsub.s32 %v1605, %v1607
      %v1609 = vrot.slane %v1595, %v1608
      %v1610 = vcombine.low %v1521, %v1525
      %v1611 = vcombine.high %v1521, %v1525
      %v1613 = vunpack.c.l.s4 1983009808
      %v1614 = vunpack.c.0.s8 %v1613
      %v1615 = vlaneseq
      %v1616 = vshrl.u32 %v1615, 7
      %v1617 = vsub.s32 %v1614, %v1616
      %v1618 = vrot.slane %v1610, %v1617
      %v1620 = vunpack.c.l.s4 1983009808
      %v1621 = vunpack.c.0.s8 %v1620
      %v1622 = vlaneseq
      %v1623 = vshrl.u32 %v1622, 7
      %v1624 = vsub.s32 %v1621, %v1623
      %v1625 = vrot.slane %v1611, %v1624
      %v1626 = vcombine.low %v1602, %v1618
      %v1627 = vcombine.high %v1602, %v1618
      %v1629 = vunpack.c.l.s4 1934713408
      %v1630 = vunpack.c.0.s8 %v1629
      %v1631 = vlaneseq
      %v1632 = vshrl.u32 %v1631, 7
      %v1633 = vsub.s32 %v1630, %v1632
      %v1634 = vrot.slane %v1626, %v1633
      %v1636 = vunpack.c.l.s4 1934713408
      %v1637 = vunpack.c.0.s8 %v1636
      %v1638 = vlaneseq
      %v1639 = vshrl.u32 %v1638, 7
      %v1640 = vsub.s32 %v1637, %v1639
      %v1641 = vrot.slane %v1627, %v1640
      %v1642 = vcombine.low %v1609, %v1625
      %v1643 = vcombine.high %v1609, %v1625
      %v1645 = vunpack.c.l.s4 1934713408
      %v1646 = vunpack.c.0.s8 %v1645
      %v1647 = vlaneseq
      %v1648 = vshrl.u32 %v1647, 7
      %v1649 = vsub.s32 %v1646, %v1648
      %v1650 = vrot.slane %v1642, %v1649
      %v1652 = vunpack.c.l.s4 1934713408
      %v1653 = vunpack.c.0.s8 %v1652
      %v1654 = vlaneseq
      %v1655 = vshrl.u32 %v1654, 7
      %v1656 = vsub.s32 %v1653, %v1655
      %v1657 = vrot.slane %v1643, %v1656
      %v1658 = vcombine.high %v1634, 0.0
      %v1659 = vcombine.high %v1641, 0.0
      %v1660 = vcombine.high %v1650, 0.0
      %v1661 = vcombine.high %v1657, 0.0
      %v1662 = vcombine.low %v1566, %v1573
      %v1664 = vunpack.c.l.s4 1983009808
      %v1665 = vunpack.c.0.s8 %v1664
      %v1666 = vlaneseq
      %v1667 = vshrl.u32 %v1666, 7
      %v1668 = vsub.s32 %v1665, %v1667
      %v1669 = vrot.slane %v1662, %v1668
      %v1670 = vcombine.low %v1590, %v1591
      %v1672 = vunpack.c.l.s4 1983009808
      %v1673 = vunpack.c.0.s8 %v1672
      %v1674 = vlaneseq
      %v1675 = vshrl.u32 %v1674, 7
      %v1676 = vsub.s32 %v1673, %v1675
      %v1677 = vrot.slane %v1670, %v1676
      %v1678 = vcombine.low %v1582, %v1589
      %v1680 = vunpack.c.l.s4 1983009808
      %v1681 = vunpack.c.0.s8 %v1680
      %v1682 = vlaneseq
      %v1683 = vshrl.u32 %v1682, 7
      %v1684 = vsub.s32 %v1681, %v1683
      %v1685 = vrot.slane %v1678, %v1684
      %v1686 = vcombine.low %v1592, %v1593
      %v1688 = vunpack.c.l.s4 1983009808
      %v1689 = vunpack.c.0.s8 %v1688
      %v1690 = vlaneseq
      %v1691 = vshrl.u32 %v1690, 7
      %v1692 = vsub.s32 %v1689, %v1691
      %v1693 = vrot.slane %v1686, %v1692
      %v1694 = vcombine.low %v1669, %v1677
      %v1695 = vcombine.high %v1669, %v1677
      %v1697 = vunpack.c.l.s4 1934713408
      %v1698 = vunpack.c.0.s8 %v1697
      %v1699 = vlaneseq
      %v1700 = vshrl.u32 %v1699, 7
      %v1701 = vsub.s32 %v1698, %v1700
      %v1702 = vrot.slane %v1694, %v1701
      %v1704 = vunpack.c.l.s4 1934713408
      %v1705 = vunpack.c.0.s8 %v1704
      %v1706 = vlaneseq
      %v1707 = vshrl.u32 %v1706, 7
      %v1708 = vsub.s32 %v1705, %v1707
      %v1709 = vrot.slane %v1695, %v1708
      %v1710 = vcombine.low %v1685, %v1693
      %v1711 = vcombine.high %v1685, %v1693
      %v1713 = vunpack.c.l.s4 1934713408
      %v1714 = vunpack.c.0.s8 %v1713
      %v1715 = vlaneseq
      %v1716 = vshrl.u32 %v1715, 7
      %v1717 = vsub.s32 %v1714, %v1716
      %v1718 = vrot.slane %v1710, %v1717
      %v1720 = vunpack.c.l.s4 1934713408
      %v1721 = vunpack.c.0.s8 %v1720
      %v1722 = vlaneseq
      %v1723 = vshrl.u32 %v1722, 7
      %v1724 = vsub.s32 %v1721, %v1723
      %v1725 = vrot.slane %v1711, %v1724
      %v1726 = vcombine.low %v1702, %v1718
      %v1727 = vcombine.high %v1702, %v1718
      %v1728 = vcombine.low %v1709, %v1725
      %v1729 = vcombine.high %v1709, %v1725
      %v1730 = vcombine.low %v1634, %v1641
      %v1732 = vunpack.c.l.s4 1983009808
      %v1733 = vunpack.c.0.s8 %v1732
      %v1734 = vlaneseq
      %v1735 = vshrl.u32 %v1734, 7
      %v1736 = vsub.s32 %v1733, %v1735
      %v1737 = vrot.slane %v1730, %v1736
      %v1738 = vcombine.low %v1658, %v1659
      %v1740 = vunpack.c.l.s4 1983009808
      %v1741 = vunpack.c.0.s8 %v1740
      %v1742 = vlaneseq
      %v1743 = vshrl.u32 %v1742, 7
      %v1744 = vsub.s32 %v1741, %v1743
      %v1745 = vrot.slane %v1738, %v1744
      %v1746 = vcombine.low %v1650, %v1657
      %v1748 = vunpack.c.l.s4 1983009808
      %v1749 = vunpack.c.0.s8 %v1748
      %v1750 = vlaneseq
      %v1751 = vshrl.u32 %v1750, 7
      %v1752 = vsub.s32 %v1749, %v1751
      %v1753 = vrot.slane %v1746, %v1752
      %v1754 = vcombine.low %v1660, %v1661
      %v1756 = vunpack.c.l.s4 1983009808
      %v1757 = vunpack.c.0.s8 %v1756
      %v1758 = vlaneseq
      %v1759 = vshrl.u32 %v1758, 7
      %v1760 = vsub.s32 %v1757, %v1759
      %v1761 = vrot.slane %v1754, %v1760
      %v1762 = vcombine.low %v1737, %v1745
      %v1763 = vcombine.high %v1737, %v1745
      %v1765 = vunpack.c.l.s4 1934713408
      %v1766 = vunpack.c.0.s8 %v1765
      %v1767 = vlaneseq
      %v1768 = vshrl.u32 %v1767, 7
      %v1769 = vsub.s32 %v1766, %v1768
      %v1770 = vrot.slane %v1762, %v1769
      %v1772 = vunpack.c.l.s4 1934713408
      %v1773 = vunpack.c.0.s8 %v1772
      %v1774 = vlaneseq
      %v1775 = vshrl.u32 %v1774, 7
      %v1776 = vsub.s32 %v1773, %v1775
      %v1777 = vrot.slane %v1763, %v1776
      %v1778 = vcombine.low %v1753, %v1761
      %v1779 = vcombine.high %v1753, %v1761
      %v1781 = vunpack.c.l.s4 1934713408
      %v1782 = vunpack.c.0.s8 %v1781
      %v1783 = vlaneseq
      %v1784 = vshrl.u32 %v1783, 7
      %v1785 = vsub.s32 %v1782, %v1784
      %v1786 = vrot.slane %v1778, %v1785
      %v1788 = vunpack.c.l.s4 1934713408
      %v1789 = vunpack.c.0.s8 %v1788
      %v1790 = vlaneseq
      %v1791 = vshrl.u32 %v1790, 7
      %v1792 = vsub.s32 %v1789, %v1791
      %v1793 = vrot.slane %v1779, %v1792
      %v1794 = vcombine.low %v1770, %v1786
      %v1795 = vcombine.high %v1770, %v1786
      %v1796 = vcombine.low %v1777, %v1793
      %v1797 = vcombine.high %v1777, %v1793
      %1800 = vrot.lane.b32.xlu0 %v1727, 32
      %v1801 = vpop.permute.xlu0 %1800
      %1802 = vrot.lane.b32.xlu0 %v1795, 32
      %v1803 = vpop.permute.xlu0 %1802
      %1808 = vrot.lane.b32.xlu0 %v1728, 64
      %v1809 = vpop.permute.xlu0 %1808
      %1810 = vrot.lane.b32.xlu0 %v1796, 64
      %v1811 = vpop.permute.xlu0 %1810
      %1816 = vrot.lane.b32.xlu0 %v1729, 96
      %v1817 = vpop.permute.xlu0 %1816
      %1818 = vrot.lane.b32.xlu0 %v1797, 96
      %v1819 = vpop.permute.xlu0 %1818
      %v1822 = vsel %vm1029, %v1726, %v1801
      %v1823 = vsel %vm1029, %v1794, %v1803
      %vm1824 = vcmask 523264
      %v1825 = vsel %vm1824, %v1822, %v1809
      %v1826 = vsel %vm1824, %v1823, %v1811
      %vm1827 = vcmask 785408
      %v1828 = vsel %vm1827, %v1825, %v1817
      %v1829 = vsel %vm1827, %v1826, %v1819
      %v1830 = vpack.c.bf16 %v1829, %v1828
      %v1832 = vlaneseq
      %v1833 = vshrl.u32 %v1832, 7
      %v1834 = vsub.s32 0, %v1833
      %v1835 = vrot.slane %v626, %v1834
      %v1853 = vunpack.c.l.b16 %v610
      %v1854 = vunpack.c.l.b16 %v611
      %v1855 = vunpack.c.l.b16 %v612
      %v1856 = vunpack.c.l.b16 %v613
      %v1857 = vunpack.c.l.b16 %v614
      %v1858 = vunpack.c.l.b16 %v615
      %v1859 = vunpack.c.l.b16 %v616
      %v1860 = vunpack.c.l.b16 %v617
      %v1861 = vunpack.c.l.b16 %v618
      %v1862 = vunpack.c.l.b16 %v619
      %v1863 = vunpack.c.l.b16 %v620
      %v1864 = vunpack.c.l.b16 %v621
      %v1865 = vunpack.c.l.b16 %v622
      %v1866 = vunpack.c.l.b16 %v623
      %v1867 = vunpack.c.l.b16 %v624
      %v1868 = vunpack.c.l.b16 %v625
      %v1869 = vpack.c.b16 %v1854, %v1853
      %v1870 = vpack.c.b16 %v1856, %v1855
      %v1871 = vpack.c.b16 %v1858, %v1857
      %v1872 = vpack.c.b16 %v1860, %v1859
      %v1873 = vpack.c.b16 %v1862, %v1861
      %v1874 = vpack.c.b16 %v1864, %v1863
      %v1875 = vpack.c.b16 %v1866, %v1865
      %v1876 = vpack.c.b16 %v1868, %v1867
      %1885 = vmatprep.subr.bf16.mxu0 0
      %1886 = vmatpush1.bf16.msra.mxu0 %v1876
      %1887 = vmatprep.subr.bf16.mxu0 0
      %1888 = vmatpush1.bf16.msra.mxu0 %v1875
      %1889 = vmatprep.subr.bf16.mxu0 0
      %1890 = vmatpush1.bf16.msra.mxu0 %v1874
      %1891 = vmatprep.subr.bf16.mxu0 0
      %1892 = vmatpush1.bf16.msra.mxu0 %v1873
      %1893 = vmatprep.subr.bf16.mxu0 0
      %1894 = vmatpush1.bf16.msra.mxu0 %v1872
      %1895 = vmatprep.subr.bf16.mxu0 0
      %1896 = vmatpush1.bf16.msra.mxu0 %v1871
      %1897 = vmatprep.subr.bf16.mxu0 0
      %1898 = vmatpush1.bf16.msra.mxu0 %v1870
      %1899 = vmatprep.subr.bf16.mxu0 0
      %1900 = vmatpush1.bf16.msra.mxu0 %v1869
      %1901 = vmatprep.subr.bf16.mxu0 0
      %1902 = vmatpush2.bf16.msra.mxu0 0
      %1903 = vmatprep.subr.bf16.mxu0 0
      %1904 = vmatpush2.bf16.msra.mxu0 0
      %1905 = vmatprep.subr.bf16.mxu0 0
      %1906 = vmatpush2.bf16.msra.mxu0 0
      %1907 = vmatprep.subr.bf16.mxu0 0
      %1908 = vmatpush2.bf16.msra.mxu0 0
      %1909 = vmatprep.subr.bf16.mxu0 0
      %1910 = vmatpush2.bf16.msra.mxu0 0
      %1911 = vmatprep.subr.bf16.mxu0 0
      %1912 = vmatpush2.bf16.msra.mxu0 0
      %1913 = vmatprep.subr.bf16.mxu0 0
      %1914 = vmatpush2.bf16.msra.mxu0 0
      %1915 = vmatprep.subr.bf16.mxu0 0
      %1916 = vmatpush2.bf16.msra.mxu0 0
      %1917 = vmatprep.mubr.bf16.mxu0 0
      %1918 = vmatmul.mubr.bf16.gmra.mxu0 %v1830
      %v1919 = vpop.f32.mrf.mxu0
      %v1920 = vadd.f32 %v1835, %v1919
      %v1921 = vpop.f32.mrf.mxu0
      %v1922 = vpop.f32.mrf.mxu0
      %v1923 = vadd.f32 %v1835, %v1922
      %v1924 = vpop.f32.mrf.mxu0
      %1925 = vdwg.mxu0
      %v1926 = vunpack.c.l.bf16 %v575
      %v1927 = vunpack.c.l.bf16 %v576
      %v1928 = vadd.f32 %v1926, %v1920
      %v1929 = vadd.f32 %v1927, %v1923
      %v1930 = vld [vmem:[%s11] sm:$0x1]
      %v1931 = vld [vmem:[%s12] sm:$0x1]
      %1932 = vadd.xlane.f32.xlu0 %v1928
      %v1933 = vpop.xlane.xlu0 %1932
      %1934 = vadd.xlane.f32.xlu0 %v1929
      %v1935 = vpop.xlane.xlu0 %1934
      %v1936 = vrcp.pop 128.0
      %v1937 = vmul.f32 %v1933, %v1936
      %v1938 = vmul.f32 %v1935, %v1936
      %v1939 = vsub.f32 %v1928, %v1937
      %v1940 = vsub.f32 %v1929, %v1938
      %v1941 = vmul.f32 %v1939, %v1939
      %v1942 = vmul.f32 %v1940, %v1940
      %1943 = vadd.xlane.f32.xlu0 %v1941
      %v1944 = vpop.xlane.xlu0 %1943
      %1945 = vadd.xlane.f32.xlu0 %v1942
      %v1946 = vpop.xlane.xlu0 %1945
      %v1947 = vmul.f32 %v1944, %v1936
      %v1948 = vmul.f32 %v1946, %v1936
      %v1949 = vadd.f32 %v1947, 1e-05
      %v1950 = vadd.f32 %v1948, 1e-05
      %v1951 = vrsqrt.pop %v1949
      %v1952 = vrsqrt.pop %v1950
      %v1953 = vmul.f32 %v1939, %v1951
      %v1954 = vmul.f32 %v1940, %v1952
      %v1956 = vlaneseq
      %v1957 = vshrl.u32 %v1956, 7
      %v1958 = vsub.s32 0, %v1957
      %v1959 = vrot.slane %v1930, %v1958
      %v1961 = vmul.f32 %v1953, %v1959
      %v1962 = vmul.f32 %v1954, %v1959
      %v1964 = vlaneseq
      %v1965 = vshrl.u32 %v1964, 7
      %v1966 = vsub.s32 0, %v1965
      %v1967 = vrot.slane %v1931, %v1966
      %v1969 = vadd.f32 %v1961, %v1967
      %v1970 = vadd.f32 %v1962, %v1967
      %v1971 = vld [vmem:[%s7] sm:$0xff]
      %v1972 = vld [vmem:[%s7 + $0x8] sm:$0xff]
      %v1973 = vld [vmem:[%s7 + $0x10] sm:$0xff]
      %v1974 = vld [vmem:[%s7 + $0x18] sm:$0xff]
      %v1975 = vld [vmem:[%s7 + $0x20] sm:$0xff]
      %v1976 = vld [vmem:[%s7 + $0x28] sm:$0xff]
      %v1977 = vld [vmem:[%s7 + $0x30] sm:$0xff]
      %v1978 = vld [vmem:[%s7 + $0x38] sm:$0xff]
      %v1979 = vld [vmem:[%s7 + $0x40] sm:$0xff]
      %v1980 = vld [vmem:[%s7 + $0x48] sm:$0xff]
      %v1981 = vld [vmem:[%s7 + $0x50] sm:$0xff]
      %v1982 = vld [vmem:[%s7 + $0x58] sm:$0xff]
      %v1983 = vld [vmem:[%s7 + $0x60] sm:$0xff]
      %v1984 = vld [vmem:[%s7 + $0x68] sm:$0xff]
      %v1985 = vld [vmem:[%s7 + $0x70] sm:$0xff]
      %v1986 = vld [vmem:[%s7 + $0x78] sm:$0xff]
      %v1987 = vld [vmem:[%s8] sm:$0x3]
      %v1988 = vld [vmem:[%s9] sm:$0xf]
      %v1989 = vld [vmem:[%s9 + $0x4] sm:$0xf]
      %v1990 = vld [vmem:[%s9 + $0x8] sm:$0xf]
      %v1991 = vld [vmem:[%s9 + $0xc] sm:$0xf]
      %v1992 = vld [vmem:[%s9 + $0x10] sm:$0xf]
      %v1993 = vld [vmem:[%s9 + $0x14] sm:$0xf]
      %v1994 = vld [vmem:[%s9 + $0x18] sm:$0xf]
      %v1995 = vld [vmem:[%s9 + $0x1c] sm:$0xf]
      %v1996 = vld [vmem:[%s9 + $0x20] sm:$0xf]
      %v1997 = vld [vmem:[%s9 + $0x24] sm:$0xf]
      %v1998 = vld [vmem:[%s9 + $0x28] sm:$0xf]
      %v1999 = vld [vmem:[%s9 + $0x2c] sm:$0xf]
      %v2000 = vld [vmem:[%s9 + $0x30] sm:$0xf]
      %v2001 = vld [vmem:[%s9 + $0x34] sm:$0xf]
      %v2002 = vld [vmem:[%s9 + $0x38] sm:$0xf]
      %v2003 = vld [vmem:[%s9 + $0x3c] sm:$0xf]
      %v2004 = vld [vmem:[%s9 + $0x40] sm:$0xf]
      %v2005 = vld [vmem:[%s9 + $0x44] sm:$0xf]
      %v2006 = vld [vmem:[%s9 + $0x48] sm:$0xf]
      %v2007 = vld [vmem:[%s9 + $0x4c] sm:$0xf]
      %v2008 = vld [vmem:[%s9 + $0x50] sm:$0xf]
      %v2009 = vld [vmem:[%s9 + $0x54] sm:$0xf]
      %v2010 = vld [vmem:[%s9 + $0x58] sm:$0xf]
      %v2011 = vld [vmem:[%s9 + $0x5c] sm:$0xf]
      %v2012 = vld [vmem:[%s9 + $0x60] sm:$0xf]
      %v2013 = vld [vmem:[%s9 + $0x64] sm:$0xf]
      %v2014 = vld [vmem:[%s9 + $0x68] sm:$0xf]
      %v2015 = vld [vmem:[%s9 + $0x6c] sm:$0xf]
      %v2016 = vld [vmem:[%s9 + $0x70] sm:$0xf]
      %v2017 = vld [vmem:[%s9 + $0x74] sm:$0xf]
      %v2018 = vld [vmem:[%s9 + $0x78] sm:$0xf]
      %v2019 = vld [vmem:[%s9 + $0x7c] sm:$0xf]
      %v2020 = vld [vmem:[%s10] sm:$0x1]
      %v2021 = vpack.c.bf16 %v1970, %v1969
      %v2023 = vlaneseq
      %v2024 = vshrl.u32 %v2023, 7
      %v2025 = vsub.s32 0, %v2024
      %v2026 = vrot.slane %v1987, %v2025
      %v2027 = vlaneseq
      %v2028 = vshrl.u32 %v2027, 7
      %v2029 = vsub.s32 1, %v2028
      %v2030 = vrot.slane %v1987, %v2029
      %v2049 = vunpack.c.l.b16 %v1971
      %v2050 = vunpack.c.h.b16 %v1971
      %v2051 = vunpack.c.l.b16 %v1972
      %v2052 = vunpack.c.h.b16 %v1972
      %v2053 = vunpack.c.l.b16 %v1973
      %v2054 = vunpack.c.h.b16 %v1973
      %v2055 = vunpack.c.l.b16 %v1974
      %v2056 = vunpack.c.h.b16 %v1974
      %v2057 = vunpack.c.l.b16 %v1975
      %v2058 = vunpack.c.h.b16 %v1975
      %v2059 = vunpack.c.l.b16 %v1976
      %v2060 = vunpack.c.h.b16 %v1976
      %v2061 = vunpack.c.l.b16 %v1977
      %v2062 = vunpack.c.h.b16 %v1977
      %v2063 = vunpack.c.l.b16 %v1978
      %v2064 = vunpack.c.h.b16 %v1978
      %v2065 = vunpack.c.l.b16 %v1979
      %v2066 = vunpack.c.h.b16 %v1979
      %v2067 = vunpack.c.l.b16 %v1980
      %v2068 = vunpack.c.h.b16 %v1980
      %v2069 = vunpack.c.l.b16 %v1981
      %v2070 = vunpack.c.h.b16 %v1981
      %v2071 = vunpack.c.l.b16 %v1982
      %v2072 = vunpack.c.h.b16 %v1982
      %v2073 = vunpack.c.l.b16 %v1983
      %v2074 = vunpack.c.h.b16 %v1983
      %v2075 = vunpack.c.l.b16 %v1984
      %v2076 = vunpack.c.h.b16 %v1984
      %v2077 = vunpack.c.l.b16 %v1985
      %v2078 = vunpack.c.h.b16 %v1985
      %v2079 = vunpack.c.l.b16 %v1986
      %v2080 = vunpack.c.h.b16 %v1986
      %v2081 = vpack.c.b16 %v2051, %v2049
      %v2082 = vpack.c.b16 %v2052, %v2050
      %v2083 = vpack.c.b16 %v2055, %v2053
      %v2084 = vpack.c.b16 %v2056, %v2054
      %v2085 = vpack.c.b16 %v2059, %v2057
      %v2086 = vpack.c.b16 %v2060, %v2058
      %v2087 = vpack.c.b16 %v2063, %v2061
      %v2088 = vpack.c.b16 %v2064, %v2062
      %v2089 = vpack.c.b16 %v2067, %v2065
      %v2090 = vpack.c.b16 %v2068, %v2066
      %v2091 = vpack.c.b16 %v2071, %v2069
      %v2092 = vpack.c.b16 %v2072, %v2070
      %v2093 = vpack.c.b16 %v2075, %v2073
      %v2094 = vpack.c.b16 %v2076, %v2074
      %v2095 = vpack.c.b16 %v2079, %v2077
      %v2096 = vpack.c.b16 %v2080, %v2078
      %2113 = vmatprep.subr.bf16.mxu0 %v2096
      %2114 = vmatpush1.bf16.msra.mxu0 %v2095
      %2115 = vmatprep.subr.bf16.mxu0 %v2094
      %2116 = vmatpush1.bf16.msra.mxu0 %v2093
      %2117 = vmatprep.subr.bf16.mxu0 %v2092
      %2118 = vmatpush1.bf16.msra.mxu0 %v2091
      %2119 = vmatprep.subr.bf16.mxu0 %v2090
      %2120 = vmatpush1.bf16.msra.mxu0 %v2089
      %2121 = vmatprep.subr.bf16.mxu0 %v2088
      %2122 = vmatpush1.bf16.msra.mxu0 %v2087
      %2123 = vmatprep.subr.bf16.mxu0 %v2086
      %2124 = vmatpush1.bf16.msra.mxu0 %v2085
      %2125 = vmatprep.subr.bf16.mxu0 %v2084
      %2126 = vmatpush1.bf16.msra.mxu0 %v2083
      %2127 = vmatprep.subr.bf16.mxu0 %v2082
      %2128 = vmatpush1.bf16.msra.mxu0 %v2081
      %2129 = vmatprep.subr.bf16.mxu0 0
      %2130 = vmatpush2.bf16.msra.mxu0 0
      %2131 = vmatprep.subr.bf16.mxu0 0
      %2132 = vmatpush2.bf16.msra.mxu0 0
      %2133 = vmatprep.subr.bf16.mxu0 0
      %2134 = vmatpush2.bf16.msra.mxu0 0
      %2135 = vmatprep.subr.bf16.mxu0 0
      %2136 = vmatpush2.bf16.msra.mxu0 0
      %2137 = vmatprep.subr.bf16.mxu0 0
      %2138 = vmatpush2.bf16.msra.mxu0 0
      %2139 = vmatprep.subr.bf16.mxu0 0
      %2140 = vmatpush2.bf16.msra.mxu0 0
      %2141 = vmatprep.subr.bf16.mxu0 0
      %2142 = vmatpush2.bf16.msra.mxu0 0
      %2143 = vmatprep.subr.bf16.mxu0 0
      %2144 = vmatpush2.bf16.msra.mxu0 0
      %2145 = vmatprep.mubr.bf16.mxu0 0
      %2146 = vmatmul.mubr.bf16.gmra.mxu0 %v2021
      %v2147 = vpop.f32.mrf.mxu0
      %v2148 = vadd.f32 %v2026, %v2147
      %v2149 = vpop.f32.mrf.mxu0
      %v2150 = vadd.f32 %v2030, %v2149
      %v2151 = vpop.f32.mrf.mxu0
      %v2152 = vadd.f32 %v2026, %v2151
      %v2153 = vpop.f32.mrf.mxu0
      %v2154 = vadd.f32 %v2030, %v2153
      %2155 = vdwg.mxu0
      %v2156 = vmax.f32 %v2148, 0.0
      %v2157 = vmax.f32 %v2150, 0.0
      %v2158 = vmax.f32 %v2152, 0.0
      %v2159 = vmax.f32 %v2154, 0.0
      %v2160 = vpack.c.bf16 %v2158, %v2156
      %v2161 = vpack.c.bf16 %v2159, %v2157
      %v2163 = vlaneseq
      %v2164 = vshrl.u32 %v2163, 7
      %v2165 = vsub.s32 0, %v2164
      %v2166 = vrot.slane %v2020, %v2165
      %v2200 = vunpack.c.l.b16 %v1988
      %v2201 = vunpack.c.l.b16 %v1989
      %v2202 = vunpack.c.l.b16 %v1990
      %v2203 = vunpack.c.l.b16 %v1991
      %v2204 = vunpack.c.l.b16 %v1992
      %v2205 = vunpack.c.l.b16 %v1993
      %v2206 = vunpack.c.l.b16 %v1994
      %v2207 = vunpack.c.l.b16 %v1995
      %v2208 = vunpack.c.l.b16 %v1996
      %v2209 = vunpack.c.l.b16 %v1997
      %v2210 = vunpack.c.l.b16 %v1998
      %v2211 = vunpack.c.l.b16 %v1999
      %v2212 = vunpack.c.l.b16 %v2000
      %v2213 = vunpack.c.l.b16 %v2001
      %v2214 = vunpack.c.l.b16 %v2002
      %v2215 = vunpack.c.l.b16 %v2003
      %v2216 = vunpack.c.l.b16 %v2004
      %v2217 = vunpack.c.l.b16 %v2005
      %v2218 = vunpack.c.l.b16 %v2006
      %v2219 = vunpack.c.l.b16 %v2007
      %v2220 = vunpack.c.l.b16 %v2008
      %v2221 = vunpack.c.l.b16 %v2009
      %v2222 = vunpack.c.l.b16 %v2010
      %v2223 = vunpack.c.l.b16 %v2011
      %v2224 = vunpack.c.l.b16 %v2012
      %v2225 = vunpack.c.l.b16 %v2013
      %v2226 = vunpack.c.l.b16 %v2014
      %v2227 = vunpack.c.l.b16 %v2015
      %v2228 = vunpack.c.l.b16 %v2016
      %v2229 = vunpack.c.l.b16 %v2017
      %v2230 = vunpack.c.l.b16 %v2018
      %v2231 = vunpack.c.l.b16 %v2019
      %v2232 = vpack.c.b16 %v2201, %v2200
      %v2233 = vpack.c.b16 %v2203, %v2202
      %v2234 = vpack.c.b16 %v2205, %v2204
      %v2235 = vpack.c.b16 %v2207, %v2206
      %v2236 = vpack.c.b16 %v2209, %v2208
      %v2237 = vpack.c.b16 %v2211, %v2210
      %v2238 = vpack.c.b16 %v2213, %v2212
      %v2239 = vpack.c.b16 %v2215, %v2214
      %v2240 = vpack.c.b16 %v2217, %v2216
      %v2241 = vpack.c.b16 %v2219, %v2218
      %v2242 = vpack.c.b16 %v2221, %v2220
      %v2243 = vpack.c.b16 %v2223, %v2222
      %v2244 = vpack.c.b16 %v2225, %v2224
      %v2245 = vpack.c.b16 %v2227, %v2226
      %v2246 = vpack.c.b16 %v2229, %v2228
      %v2247 = vpack.c.b16 %v2231, %v2230
      %2264 = vmatprep.subr.bf16.mxu0 0
      %2265 = vmatpush1.bf16.msra.mxu0 %v2239
      %2266 = vmatprep.subr.bf16.mxu0 0
      %2267 = vmatpush1.bf16.msra.mxu0 %v2238
      %2268 = vmatprep.subr.bf16.mxu0 0
      %2269 = vmatpush1.bf16.msra.mxu0 %v2237
      %2270 = vmatprep.subr.bf16.mxu0 0
      %2271 = vmatpush1.bf16.msra.mxu0 %v2236
      %2272 = vmatprep.subr.bf16.mxu0 0
      %2273 = vmatpush1.bf16.msra.mxu0 %v2235
      %2274 = vmatprep.subr.bf16.mxu0 0
      %2275 = vmatpush1.bf16.msra.mxu0 %v2234
      %2276 = vmatprep.subr.bf16.mxu0 0
      %2277 = vmatpush1.bf16.msra.mxu0 %v2233
      %2278 = vmatprep.subr.bf16.mxu0 0
      %2279 = vmatpush1.bf16.msra.mxu0 %v2232
      %2280 = vmatprep.subr.bf16.mxu0 0
      %2281 = vmatpush2.bf16.msra.mxu0 %v2247
      %2282 = vmatprep.subr.bf16.mxu0 0
      %2283 = vmatpush2.bf16.msra.mxu0 %v2246
      %2284 = vmatprep.subr.bf16.mxu0 0
      %2285 = vmatpush2.bf16.msra.mxu0 %v2245
      %2286 = vmatprep.subr.bf16.mxu0 0
      %2287 = vmatpush2.bf16.msra.mxu0 %v2244
      %2288 = vmatprep.subr.bf16.mxu0 0
      %2289 = vmatpush2.bf16.msra.mxu0 %v2243
      %2290 = vmatprep.subr.bf16.mxu0 0
      %2291 = vmatpush2.bf16.msra.mxu0 %v2242
      %2292 = vmatprep.subr.bf16.mxu0 0
      %2293 = vmatpush2.bf16.msra.mxu0 %v2241
      %2294 = vmatprep.subr.bf16.mxu0 0
      %2295 = vmatpush2.bf16.msra.mxu0 %v2240
      %2296 = vmatprep.mubr.bf16.mxu0 %v2161
      %2297 = vmatmul.mubr.bf16.gmra.mxu0 %v2160
      %v2298 = vpop.f32.mrf.mxu0
      %v2299 = vadd.f32 %v2166, %v2298
      %v2300 = vpop.f32.mrf.mxu0
      %v2301 = vpop.f32.mrf.mxu0
      %v2302 = vadd.f32 %v2166, %v2301
      %v2303 = vpop.f32.mrf.mxu0
      %2304 = vdwg.mxu0
      %v2305 = vadd.f32 %v1969, %v2299
      %v2306 = vadd.f32 %v1970, %v2302
      %v2307 = vld [vmem:[%s13] sm:$0x1]
      %v2308 = vld [vmem:[%s14] sm:$0x1]
      %2309 = vadd.xlane.f32.xlu0 %v2305
      %v2310 = vpop.xlane.xlu0 %2309
      %2311 = vadd.xlane.f32.xlu0 %v2306
      %v2312 = vpop.xlane.xlu0 %2311
      %v2313 = vmul.f32 %v2310, %v1936
      %v2314 = vmul.f32 %v2312, %v1936
      %v2315 = vsub.f32 %v2305, %v2313
      %v2316 = vsub.f32 %v2306, %v2314
      %v2317 = vmul.f32 %v2315, %v2315
      %v2318 = vmul.f32 %v2316, %v2316
      %2319 = vadd.xlane.f32.xlu0 %v2317
      %v2320 = vpop.xlane.xlu0 %2319
      %2321 = vadd.xlane.f32.xlu0 %v2318
      %v2322 = vpop.xlane.xlu0 %2321
      %v2323 = vmul.f32 %v2320, %v1936
      %v2324 = vmul.f32 %v2322, %v1936
      %v2325 = vadd.f32 %v2323, 1e-05
      %v2326 = vadd.f32 %v2324, 1e-05
      %v2327 = vrsqrt.pop %v2325
      %v2328 = vrsqrt.pop %v2326
      %v2329 = vmul.f32 %v2315, %v2327
      %v2330 = vmul.f32 %v2316, %v2328
      %v2332 = vlaneseq
      %v2333 = vshrl.u32 %v2332, 7
      %v2334 = vsub.s32 0, %v2333
      %v2335 = vrot.slane %v2307, %v2334
      %v2337 = vmul.f32 %v2329, %v2335
      %v2338 = vmul.f32 %v2330, %v2335
      %v2340 = vlaneseq
      %v2341 = vshrl.u32 %v2340, 7
      %v2342 = vsub.s32 0, %v2341
      %v2343 = vrot.slane %v2308, %v2342
      %v2345 = vadd.f32 %v2337, %v2343
      %v2346 = vadd.f32 %v2338, %v2343
      %v2347 = vpack.c.bf16 %v2346, %v2345
      %v2349 = vunpack.c.l.b16 %v2347
      %v2350 = vunpack.c.h.b16 %v2347
      %v2351 = vpack.c.b16 %v2349, %v2349
      %v2352 = vpack.c.b16 %v2350, %v2350
      %2355 = vst [vmem:[%s572] sm:$0xf] %v2351
      %2356 = vst [vmem:[%s572 + $0x4] sm:$0xf] %v2352
      %s2357 = smul.u32 2, %s31
      %p2358 = scmp.lt.s32.totalorder %s30, 1
      %s2359 = scalar_select %p2358, %s30, 1
      %p2360 = scmp.lt.s32.totalorder %s2357, 1
      %s2361 = scalar_select %p2360, %s2357, 1
      %s2362 = smul.addr %s2359, 2
      %s2363 = sadd.s32 %s2361, %s2362
      %s2364 = smul.addr %s2363, 4
      %s2365 = scalar_lea.vmem %s15, %s2364
      // Predicated region
      $region81: #{transformer_forward.12} parent=79 // pred_check
        %p2366 = pneg %p390
      $region82: #{transformer_forward.12} parent=79 // pred_check_branch
        %2368 = sbr.rel (%p2366) target = $region84
      $region83: #{transformer_forward.12} parent=79 // pred_region
        %s2369 = smul.u32 2, %s31
      $region84: #{transformer_forward.12} parent=79 // pred_fallthru
        _
    $region80: #{transformer_forward.12} parent=5 // pred_fallthru
      _
    %p2370 = scmp.le.s32.totalorder 2, %s21
    // Predicated region
    $region85: #{transformer_forward.12} parent=5 // pred_check
      %p2371 = pneg %p2370
    $region86: #{transformer_forward.12} parent=5 // pred_check_branch
      %2373 = sbr.rel (%p2371) target = $region88
    $region87: #{transformer_forward.12} parent=5 // pred_region
      %s2374 = ssub.s32 %s21, 2
      // Predicated region
      $region89: #{transformer_forward.12} parent=87 // pred_check
        %p2375 = pneg %p396
      $region90: #{transformer_forward.12} parent=87 // pred_check_branch
        %2377 = sbr.rel (%p2375) target = $region92
      $region91: #{transformer_forward.12} parent=87 // pred_region
        %s2378 = smul.u32 2, %s33
        %p2379 = scmp.lt.s32.totalorder %s32, 1
        %s2380 = scalar_select %p2379, %s32, 1
        %p2381 = scmp.lt.s32.totalorder %s2378, 1
        %s2382 = scalar_select %p2381, %s2378, 1
        %s2383 = smul.addr %s2380, 2
        %s2384 = sadd.s32 %s2382, %s2383
        %s2385 = smul.addr %s2384, 4
        %s2386 = scalar_lea.vmem %s15, %s2385
      $region92: #{transformer_forward.12} parent=87 // pred_fallthru
        _
    $region88: #{transformer_forward.12} parent=5 // pred_fallthru
      _
  $region6: #{transformer_forward.12} parent=0 // loop_footer
    %s25 = sadd.s32 1, %s21
  $region7: #{transformer_forward.12} parent=0 // loop_footer_branch
    %20 = sbr.rel target = $region3
  $region8: #{transformer_forward.12} parent=0 // loop_exit
    _

// kernel: transformer_forward.21
$region0: #{transformer_forward.21}
  #allocation0 [shape = 'u32[]', space=smem, size = 0x4, offset = 0x4, fixed_abs, tag = 'smem constant byte address 0x4 - core index']
  #allocation1 [shape = 'u32[144,128]{1,0:T(1,128)}', space=vmem, size = 0x12000, scoped, tag = 'internal scratch']
  %s0 = inlined_call_operand.vmem [shape: bf16[2,8,128], index: 0, kind: input, shape index: {}]
  %s1 = inlined_call_operand.vmem [shape: bf16[128,128], index: 1, kind: input, shape index: {}]
  %s2 = inlined_call_operand.vmem [shape: f32[1,128], index: 2, kind: input, shape index: {}]
  %s3 = inlined_call_operand.hbm [shape: f32[2,8,128], index: 3, kind: output, shape index: {}]
  %s4 = sld [smem:[#allocation0]]
  $region45: #{transformer_forward.21} parent=0
    _
  %s6 = ssub.s32 1, %s4
  %s7 = scalar_select 0, %s6, %s4
  $region1: #{transformer_forward.21} parent=0
    #allocation2 [shape = 'u8[8192]{0}', space=vmem, size = 0x2000, scoped, tag = 'output window, operand 0']
    #allocation3 [shape = 's32[2]{0}', space=sflag, size = 0x8, scoped, tag = 'scoped memory for transformer_forward.21']
    %8 = vsyncpa [#allocation3], 0
    %s9 = scalar_lea.sflag [#allocation3], 1
    %10 = vsyncpa %s9, 0
    loop: start=0, step=1, limit=4
    $region2: #{transformer_forward.21} parent=1 // loop_pre_header
      _
    $region3: #{transformer_forward.21} parent=1 // loop_header
      %s12 = sphi 0, %s16
      %p13 = scmp.ge.s32.totalorder %s12, 4
      %s19 = sphi 0, %s31
      %s20 = sphi 0, %s27
      %s21 = sphi 0, %s19
      %s22 = sphi 0, %s20
      %s23 = sphi 0, %s21
      %s24 = sphi 0, %s22
      %s34 = sphi 0, %s36
      %s37 = sphi 0, %s34
      %s38 = sphi 0, %s37
      %s54 = sphi 0, %s38
      %s60 = sphi 0, %s62
      %s63 = sphi 0, %s60
      %s64 = sphi 0, %s63
      %s80 = sphi 0, %s64
      %s86 = sphi 0, %s88
      %s89 = sphi 0, %s86
      %s90 = sphi 0, %s89
      %s106 = sphi 0, %s90
      %s114 = sphi 0, %s116
      %s117 = sphi 0, %s114
      %s118 = sphi 0, %s117
      %s134 = sphi 0, %s118
    $region4: #{transformer_forward.21} parent=1 // loop_header_branch
      %15 = sbr.rel (%p13) target = $region8
    $region5: #{transformer_forward.21} parent=1 // loop_body
      %s17 = ssub.s32 %s12, 1
      %s18 = ssub.s32 %s12, 2
      %s25 = sadd.s32 1, %s20
      %p26 = scmp.ge.s32.totalorder %s25, 1
      %s27 = scalar_select %p26, 0, %s25
      %s28 = sadd.s32 1, %s19
      %s29 = scalar_select %p26, %s28, %s19
      %p30 = scmp.ge.s32.totalorder %s29, 2
      %s31 = scalar_select %p30, 0, %s29
      %s32 = ssub.s32 %s19, %s31
      %p33 = scmp.eq.s32.totalorder %s32, 0
      %s35 = sadd.s32 %s34, 1
      %s36 = scalar_select %p33, %s34, %s35
      %p39 = pneg %p33
      %p40 = scmp.eq.s32.totalorder %s12, 1
      %p41 = por %p39, %p40
      %p42 = scmp.ne.s32.totalorder %s34, %s37
      %p43 = scmp.eq.s32.totalorder %s12, 0
      %p44 = por %p42, %p43
      %p45 = scmp.ne.s32.totalorder %s34, %s37
      %p46 = scmp.eq.s32.totalorder %s17, 1
      %p47 = por %p45, %p46
      %p48 = scmp.ne.s32.totalorder %s37, %s38
      %p49 = scmp.eq.s32.totalorder %s17, 0
      %p50 = por %p48, %p49
      %p51 = scmp.ne.s32.totalorder %s37, %s38
      %p52 = scmp.eq.s32.totalorder %s18, 1
      %p53 = por %p51, %p52
      %p55 = scmp.ne.s32.totalorder %s38, %s54
      %p56 = scmp.eq.s32.totalorder %s18, 0
      %p57 = por %p55, %p56
      %s58 = ssub.s32 %s20, %s27
      %p59 = scmp.eq.s32.totalorder %s58, 0
      %s61 = sadd.s32 %s60, 1
      %s62 = scalar_select %p59, %s60, %s61
      %p65 = pneg %p59
      %p66 = scmp.eq.s32.totalorder %s12, 1
      %p67 = por %p65, %p66
      %p68 = scmp.ne.s32.totalorder %s60, %s63
      %p69 = scmp.eq.s32.totalorder %s12, 0
      %p70 = por %p68, %p69
      %p71 = scmp.ne.s32.totalorder %s60, %s63
      %p72 = scmp.eq.s32.totalorder %s17, 1
      %p73 = por %p71, %p72
      %p74 = scmp.ne.s32.totalorder %s63, %s64
      %p75 = scmp.eq.s32.totalorder %s17, 0
      %p76 = por %p74, %p75
      %p77 = scmp.ne.s32.totalorder %s63, %s64
      %p78 = scmp.eq.s32.totalorder %s18, 1
      %p79 = por %p77, %p78
      %p81 = scmp.ne.s32.totalorder %s64, %s80
      %p82 = scmp.eq.s32.totalorder %s18, 0
      %p83 = por %p81, %p82
      %s84 = ssub.s32 %s20, %s27
      %p85 = scmp.eq.s32.totalorder %s84, 0
      %s87 = sadd.s32 %s86, 1
      %s88 = scalar_select %p85, %s86, %s87
      %p91 = pneg %p85
      %p92 = scmp.eq.s32.totalorder %s12, 1
      %p93 = por %p91, %p92
      %p94 = scmp.ne.s32.totalorder %s86, %s89
      %p95 = scmp.eq.s32.totalorder %s12, 0
      %p96 = por %p94, %p95
      %p97 = scmp.ne.s32.totalorder %s86, %s89
      %p98 = scmp.eq.s32.totalorder %s17, 1
      %p99 = por %p97, %p98
      %p100 = scmp.ne.s32.totalorder %s89, %s90
      %p101 = scmp.eq.s32.totalorder %s17, 0
      %p102 = por %p100, %p101
      %p103 = scmp.ne.s32.totalorder %s89, %s90
      %p104 = scmp.eq.s32.totalorder %s18, 1
      %p105 = por %p103, %p104
      %p107 = scmp.ne.s32.totalorder %s90, %s106
      %p108 = scmp.eq.s32.totalorder %s18, 0
      %p109 = por %p107, %p108
      %s110 = ssub.s32 %s19, %s31
      %s111 = ssub.s32 %s20, %s27
      %s112 = sor.u32 %s110, %s111
      %p113 = scmp.eq.s32.totalorder %s112, 0
      %s115 = sadd.s32 %s114, 1
      %s116 = scalar_select %p113, %s114, %s115
      %p119 = pneg %p113
      %p120 = scmp.eq.s32.totalorder %s12, 1
      %p121 = por %p119, %p120
      %p122 = scmp.ne.s32.totalorder %s114, %s117
      %p123 = scmp.eq.s32.totalorder %s12, 0
      %p124 = por %p122, %p123
      %p125 = scmp.ne.s32.totalorder %s114, %s117
      %p126 = scmp.eq.s32.totalorder %s17, 1
      %p127 = por %p125, %p126
      %p128 = scmp.ne.s32.totalorder %s117, %s118
      %p129 = scmp.eq.s32.totalorder %s17, 0
      %p130 = por %p128, %p129
      %p131 = scmp.ne.s32.totalorder %s117, %s118
      %p132 = scmp.eq.s32.totalorder %s18, 1
      %p133 = por %p131, %p132
      %p135 = scmp.ne.s32.totalorder %s118, %s134
      %p136 = scmp.eq.s32.totalorder %s18, 0
      %p137 = por %p135, %p136
      %p138 = scmp.le.s32.totalorder 1, %s12
      %p139 = scmp.lt.s32.totalorder %s12, 3
      %p140 = pnand %p138, %p139
      %p141 = pneg %p140
      // Predicated region
      $region9: #{transformer_forward.21} parent=5 // pred_check
        _
      $region10: #{transformer_forward.21} parent=5 // pred_check_branch
        %143 = sbr.rel (%p140) target = $region12
      $region11: #{transformer_forward.21} parent=5 // pred_region
        %s144 = ssub.s32 %s12, 1
        // Predicated region
        $region13: #{transformer_forward.21} parent=11 // pred_check
          %p145 = pneg %p76
        $region14: #{transformer_forward.21} parent=11 // pred_check_branch
          %147 = sbr.rel (%p145) target = $region16
        $region15: #{transformer_forward.21} parent=11 // pred_region
          %p148 = scmp.lt.s32.totalorder %s22, 0
          %s149 = scalar_select %p148, %s22, 0
          %s150 = smul.addr %s149, 4
          %s151 = scalar_lea.vmem %s1, %s150
        $region16: #{transformer_forward.21} parent=11 // pred_fallthru
          _
        // Predicated region
        $region17: #{transformer_forward.21} parent=11 // pred_check
          %p152 = pneg %p102
        $region18: #{transformer_forward.21} parent=11 // pred_check_branch
          %154 = sbr.rel (%p152) target = $region20
        $region19: #{transformer_forward.21} parent=11 // pred_region
          %p155 = scmp.lt.s32.totalorder %s22, 0
          %s156 = scalar_select %p155, %s22, 0
          %s157 = scalar_lea.vmem %s2, %s156
        $region20: #{transformer_forward.21} parent=11 // pred_fallthru
          _
      $region12: #{transformer_forward.21} parent=5 // pred_fallthru
        _
      %p158 = scmp.lt.s32.totalorder %s12, 2
      // Predicated region
      $region21: #{transformer_forward.21} parent=5 // pred_check
        %p159 = pneg %p158
      $region22: #{transformer_forward.21} parent=5 // pred_check_branch
        %161 = sbr.rel (%p159) target = $region24
      $region23: #{transformer_forward.21} parent=5 // pred_region
        // Predicated region
        $region25: #{transformer_forward.21} parent=23 // pred_check
          %p162 = pneg %p44
        $region26: #{transformer_forward.21} parent=23 // pred_check_branch
          %164 = sbr.rel (%p162) target = $region28
        $region27: #{transformer_forward.21} parent=23 // pred_region
          %p165 = scmp.lt.s32.totalorder %s19, 1
          %s166 = scalar_select %p165, %s19, 1
          %s167 = smul.addr %s166, 4
          %s168 = scalar_lea.vmem %s0, %s167
        $region28: #{transformer_forward.21} parent=23 // pred_fallthru
          _
      $region24: #{transformer_forward.21} parent=5 // pred_fallthru
        _
      %p169 = scmp.le.s32.totalorder 1, %s12
      %p170 = scmp.lt.s32.totalorder %s12, 3
      %p171 = pnand %p169, %p170
      %p172 = pneg %p171
      // Predicated region
      $region29: #{transformer_forward.21} parent=5 // pred_check
        _
      $region30: #{transformer_forward.21} parent=5 // pred_check_branch
        %174 = sbr.rel (%p171) target = $region32
      $region31: #{transformer_forward.21} parent=5 // pred_region
        %s175 = ssub.s32 %s12, 1
        %p176 = scmp.lt.s32.totalorder %s21, 1
        %s177 = scalar_select %p176, %s21, 1
        %s178 = smul.addr %s177, 4
        %s179 = scalar_lea.vmem %s0, %s178
        %p180 = pneg %p50
        %p181 = pneg %p47
        %p182 = scmp.lt.s32.totalorder %s22, 0
        %s183 = scalar_select %p182, %s22, 0
        %s184 = smul.addr %s183, 4
        %s185 = scalar_lea.vmem %s1, %s184
        %p186 = pneg %p76
        %p187 = pneg %p73
        %p188 = scmp.lt.s32.totalorder %s22, 0
        %s189 = scalar_select %p188, %s22, 0
        %s190 = scalar_lea.vmem %s2, %s189
        %p191 = pneg %p102
        %p192 = pneg %p99
        %p193 = pneg %p130
        %p194 = pneg %p127
        %s195 = sand.u32 %s117, 1
        %s196 = scalar_lea.sflag [#allocation3], %s195
        %s197 = sand.u32 %s117, 1
        %s198 = smul.addr %s197, 8
        %s199 = scalar_lea.vmem [#allocation2], %s198
        %p200 = scmp.lt.s32.totalorder %s21, 1
        %s201 = scalar_select %p200, %s21, 1
        %s202 = smul.addr %s201, 4
        %s203 = scalar_lea.vmem %s0, %s202
        %p204 = scmp.lt.s32.totalorder %s22, 0
        %s205 = scalar_select %p204, %s22, 0
        %s206 = smul.addr %s205, 4
        %s207 = scalar_lea.vmem %s1, %s206
        %p208 = scmp.lt.s32.totalorder %s22, 0
        %s209 = scalar_select %p208, %s22, 0
        %s210 = scalar_lea.vmem %s2, %s209
        %v212 = vld [vmem:[%s203] sm:$0xf]
        %v213 = vld [vmem:[%s207] sm:$0xf]
        %v214 = vld [vmem:[%s207 + $0x4] sm:$0xf]
        %v215 = vld [vmem:[%s207 + $0x8] sm:$0xf]
        %v216 = vld [vmem:[%s207 + $0xc] sm:$0xf]
        %v217 = vld [vmem:[%s207 + $0x10] sm:$0xf]
        %v218 = vld [vmem:[%s207 + $0x14] sm:$0xf]
        %v219 = vld [vmem:[%s207 + $0x18] sm:$0xf]
        %v220 = vld [vmem:[%s207 + $0x1c] sm:$0xf]
        %v221 = vld [vmem:[%s207 + $0x20] sm:$0xf]
        %v222 = vld [vmem:[%s207 + $0x24] sm:$0xf]
        %v223 = vld [vmem:[%s207 + $0x28] sm:$0xf]
        %v224 = vld [vmem:[%s207 + $0x2c] sm:$0xf]
        %v225 = vld [vmem:[%s207 + $0x30] sm:$0xf]
        %v226 = vld [vmem:[%s207 + $0x34] sm:$0xf]
        %v227 = vld [vmem:[%s207 + $0x38] sm:$0xf]
        %v228 = vld [vmem:[%s207 + $0x3c] sm:$0xf]
        %v229 = vld [vmem:[%s210] sm:$0x1]
        %v231 = vlaneseq
        %v232 = vshrl.u32 %v231, 7
        %v233 = vsub.s32 0, %v232
        %v234 = vrot.slane %v229, %v233
        %v252 = vunpack.c.l.b16 %v213
        %v253 = vunpack.c.l.b16 %v214
        %v254 = vunpack.c.l.b16 %v215
        %v255 = vunpack.c.l.b16 %v216
        %v256 = vunpack.c.l.b16 %v217
        %v257 = vunpack.c.l.b16 %v218
        %v258 = vunpack.c.l.b16 %v219
        %v259 = vunpack.c.l.b16 %v220
        %v260 = vunpack.c.l.b16 %v221
        %v261 = vunpack.c.l.b16 %v222
        %v262 = vunpack.c.l.b16 %v223
        %v263 = vunpack.c.l.b16 %v224
        %v264 = vunpack.c.l.b16 %v225
        %v265 = vunpack.c.l.b16 %v226
        %v266 = vunpack.c.l.b16 %v227
        %v267 = vunpack.c.l.b16 %v228
        %v268 = vpack.c.b16 %v253, %v252
        %v269 = vpack.c.b16 %v255, %v254
        %v270 = vpack.c.b16 %v257, %v256
        %v271 = vpack.c.b16 %v259, %v258
        %v272 = vpack.c.b16 %v261, %v260
        %v273 = vpack.c.b16 %v263, %v262
        %v274 = vpack.c.b16 %v265, %v264
        %v275 = vpack.c.b16 %v267, %v266
        %284 = vmatprep.subr.bf16.mxu0 0
        %285 = vmatpush1.bf16.msra.mxu0 %v275
        %286 = vmatprep.subr.bf16.mxu0 0
        %287 = vmatpush1.bf16.msra.mxu0 %v274
        %288 = vmatprep.subr.bf16.mxu0 0
        %289 = vmatpush1.bf16.msra.mxu0 %v273
        %290 = vmatprep.subr.bf16.mxu0 0
        %291 = vmatpush1.bf16.msra.mxu0 %v272
        %292 = vmatprep.subr.bf16.mxu0 0
        %293 = vmatpush1.bf16.msra.mxu0 %v271
        %294 = vmatprep.subr.bf16.mxu0 0
        %295 = vmatpush1.bf16.msra.mxu0 %v270
        %296 = vmatprep.subr.bf16.mxu0 0
        %297 = vmatpush1.bf16.msra.mxu0 %v269
        %298 = vmatprep.subr.bf16.mxu0 0
        %299 = vmatpush1.bf16.msra.mxu0 %v268
        %300 = vmatprep.subr.bf16.mxu0 0
        %301 = vmatpush2.bf16.msra.mxu0 0
        %302 = vmatprep.subr.bf16.mxu0 0
        %303 = vmatpush2.bf16.msra.mxu0 0
        %304 = vmatprep.subr.bf16.mxu0 0
        %305 = vmatpush2.bf16.msra.mxu0 0
        %306 = vmatprep.subr.bf16.mxu0 0
        %307 = vmatpush2.bf16.msra.mxu0 0
        %308 = vmatprep.subr.bf16.mxu0 0
        %309 = vmatpush2.bf16.msra.mxu0 0
        %310 = vmatprep.subr.bf16.mxu0 0
        %311 = vmatpush2.bf16.msra.mxu0 0
        %312 = vmatprep.subr.bf16.mxu0 0
        %313 = vmatpush2.bf16.msra.mxu0 0
        %314 = vmatprep.subr.bf16.mxu0 0
        %315 = vmatpush2.bf16.msra.mxu0 0
        %316 = vmatprep.mubr.bf16.mxu0 0
        %317 = vmatmul.mubr.bf16.gmra.mxu0 %v212
        %v318 = vpop.f32.mrf.mxu0
        %v319 = vadd.f32 %v234, %v318
        %v320 = vpop.f32.mrf.mxu0
        %v321 = vpop.f32.mrf.mxu0
        %v322 = vpop.f32.mrf.mxu0
        %323 = vdwg.mxu0
        %324 = vst [vmem:[%s199] sm:$0xff] %v319
        %s325 = sand.u32 %s117, 1
        %s326 = scalar_lea.sflag [#allocation3], %s325
        %s327 = sand.u32 %s117, 1
        %s328 = smul.addr %s327, 8
        %s329 = scalar_lea.vmem [#allocation2], %s328
        // Predicated region
        $region33: #{transformer_forward.21} parent=31 // pred_check
          %p330 = pneg %p127
        $region34: #{transformer_forward.21} parent=31 // pred_check_branch
          %332 = sbr.rel (%p330) target = $region36
        $region35: #{transformer_forward.21} parent=31 // pred_region
          %s334 = ssub.s32 128, 128
          %335 = vsyncadd %s326, %s334
          %s336 = sadd.s32 %s22, %s21
          %s337 = smul.addr %s336, 128
          %s338 = scalar_lea.hbm %s3, %s337
          %s340 = sshll.u32 %s329, 4
          %s341 = int_to_ptr.vmem [resolvable:$true] %s340
          %343 = dma.vmem_to_hbm [thread:$0]  %s341, 128, %s338, %s326
        $region36: #{transformer_forward.21} parent=31 // pred_fallthru
          _
      $region32: #{transformer_forward.21} parent=5 // pred_fallthru
        _
      %p344 = scmp.le.s32.totalorder 2, %s12
      // Predicated region
      $region37: #{transformer_forward.21} parent=5 // pred_check
        %p345 = pneg %p344
      $region38: #{transformer_forward.21} parent=5 // pred_check_branch
        %347 = sbr.rel (%p345) target = $region40
      $region39: #{transformer_forward.21} parent=5 // pred_region
        %s348 = ssub.s32 %s12, 2
        // Predicated region
        $region41: #{transformer_forward.21} parent=39 // pred_check
          %p349 = pneg %p133
        $region42: #{transformer_forward.21} parent=39 // pred_check_branch
          %351 = sbr.rel (%p349) target = $region44
        $region43: #{transformer_forward.21} parent=39 // pred_region
          %s352 = sand.u32 %s118, 1
          %s353 = scalar_lea.sflag [#allocation3], %s352
          %s354 = sand.u32 %s118, 1
          %s355 = smul.addr %s354, 8
          %s356 = scalar_lea.vmem [#allocation2], %s355
          %357 = dma.done %s353, 128
        $region44: #{transformer_forward.21} parent=39 // pred_fallthru
          _
      $region40: #{transformer_forward.21} parent=5 // pred_fallthru
        _
    $region6: #{transformer_forward.21} parent=1 // loop_footer
      %s16 = sadd.s32 1, %s12
    $region7: #{transformer_forward.21} parent=1 // loop_footer_branch
      %11 = sbr.rel target = $region3
    $region8: #{transformer_forward.21} parent=1 // loop_exit
      _
    %358 = vsyncpa [#allocation3], 1
    %s359 = scalar_lea.sflag [#allocation3], 1
    %360 = vsyncpa %s359, 1

// kernel: transformer_forward.17
$region0: #{transformer_forward.17}
  #allocation0 [shape = 'u32[]', space=smem, size = 0x4, offset = 0x4, fixed_abs, tag = 'smem constant byte address 0x4 - core index']
  #allocation1 [shape = 'u32[144,128]{1,0:T(1,128)}', space=vmem, size = 0x12000, scoped, tag = 'internal scratch']
  %s0 = inlined_call_operand.vmem [shape: bf16[2,8,128], index: 0, kind: input, shape index: {}]
  %s1 = inlined_call_operand.vmem [shape: bf16[2,4,8,32], index: 1, kind: input, shape index: {}]
  %s2 = inlined_call_operand.vmem [shape: bf16[2,4,8,32], index: 2, kind: input, shape index: {}]
  %s3 = inlined_call_operand.vmem [shape: bf16[2,4,16,32], index: 3, kind: input, shape index: {}]
  %s4 = inlined_call_operand.vmem [shape: bf16[2,4,16,32], index: 4, kind: input, shape index: {}]
  %s5 = inlined_call_operand.vmem [shape: bf16[128,128], index: 5, kind: input, shape index: {}]
  %s6 = inlined_call_operand.vmem [shape: f32[1,128], index: 6, kind: input, shape index: {}]
  %s7 = inlined_call_operand.vmem [shape: bf16[128,128], index: 7, kind: input, shape index: {}]
  %s8 = inlined_call_operand.vmem [shape: f32[1,128], index: 8, kind: input, shape index: {}]
  %s9 = inlined_call_operand.vmem [shape: bf16[128,128], index: 9, kind: input, shape index: {}]
  %s10 = inlined_call_operand.vmem [shape: f32[1,128], index: 10, kind: input, shape index: {}]
  %s11 = inlined_call_operand.vmem [shape: bf16[128,128], index: 11, kind: input, shape index: {}]
  %s12 = inlined_call_operand.vmem [shape: f32[1,128], index: 12, kind: input, shape index: {}]
  %s13 = inlined_call_operand.vmem [shape: bf16[128,256], index: 13, kind: input, shape index: {}]
  %s14 = inlined_call_operand.vmem [shape: f32[1,256], index: 14, kind: input, shape index: {}]
  %s15 = inlined_call_operand.vmem [shape: bf16[256,128], index: 15, kind: input, shape index: {}]
  %s16 = inlined_call_operand.vmem [shape: f32[1,128], index: 16, kind: input, shape index: {}]
  %s17 = inlined_call_operand.vmem [shape: f32[1,128], index: 17, kind: input, shape index: {}]
  %s18 = inlined_call_operand.vmem [shape: f32[1,128], index: 18, kind: input, shape index: {}]
  %s19 = inlined_call_operand.vmem [shape: f32[1,128], index: 19, kind: input, shape index: {}]
  %s20 = inlined_call_operand.vmem [shape: f32[1,128], index: 20, kind: input, shape index: {}]
  %s21 = inlined_call_operand.vmem [shape: f32[1,128], index: 21, kind: input, shape index: {}]
  %s22 = inlined_call_operand.vmem [shape: f32[1,128], index: 22, kind: input, shape index: {}]
  %s23 = inlined_call_operand.vmem [shape: bf16[2,8,128], index: 23, kind: output, shape index: {}]
  %s24 = sld [smem:[#allocation0]]
  $region125: #{transformer_forward.17} parent=0
    _
  %s26 = ssub.s32 1, %s24
  %s27 = scalar_select 0, %s26, %s24
  loop: start=0, step=1, limit=4
  $region2: #{transformer_forward.17} parent=0 // loop_pre_header
    _
  $region3: #{transformer_forward.17} parent=0 // loop_header
    %s29 = sphi 0, %s33
    %p30 = scmp.ge.s32.totalorder %s29, 4
    %s36 = sphi 0, %s48
    %s37 = sphi 0, %s44
    %s38 = sphi 0, %s36
    %s39 = sphi 0, %s37
    %s40 = sphi 0, %s38
    %s41 = sphi 0, %s39
    %s53 = sphi 0, %s55
    %s56 = sphi 0, %s53
    %s57 = sphi 0, %s56
    %s73 = sphi 0, %s57
    %s79 = sphi 0, %s81
    %s82 = sphi 0, %s79
    %s83 = sphi 0, %s82
    %s99 = sphi 0, %s83
    %s105 = sphi 0, %s107
    %s108 = sphi 0, %s105
    %s109 = sphi 0, %s108
    %s125 = sphi 0, %s109
    %s131 = sphi 0, %s133
    %s134 = sphi 0, %s131
    %s135 = sphi 0, %s134
    %s151 = sphi 0, %s135
    %s157 = sphi 0, %s159
    %s160 = sphi 0, %s157
    %s161 = sphi 0, %s160
    %s177 = sphi 0, %s161
    %s181 = sphi 0, %s181
    %s183 = sphi 0, %s181
    %s184 = sphi 0, %s183
    %s198 = sphi 0, %s184
    %s202 = sphi 0, %s202
    %s204 = sphi 0, %s202
    %s205 = sphi 0, %s204
    %s219 = sphi 0, %s205
    %s223 = sphi 0, %s223
    %s225 = sphi 0, %s223
    %s226 = sphi 0, %s225
    %s240 = sphi 0, %s226
    %s244 = sphi 0, %s244
    %s246 = sphi 0, %s244
    %s247 = sphi 0, %s246
    %s261 = sphi 0, %s247
    %s265 = sphi 0, %s265
    %s267 = sphi 0, %s265
    %s268 = sphi 0, %s267
    %s282 = sphi 0, %s268
    %s286 = sphi 0, %s286
    %s288 = sphi 0, %s286
    %s289 = sphi 0, %s288
    %s303 = sphi 0, %s289
    %s307 = sphi 0, %s307
    %s309 = sphi 0, %s307
    %s310 = sphi 0, %s309
    %s324 = sphi 0, %s310
    %s328 = sphi 0, %s328
    %s330 = sphi 0, %s328
    %s331 = sphi 0, %s330
    %s345 = sphi 0, %s331
    %s349 = sphi 0, %s349
    %s351 = sphi 0, %s349
    %s352 = sphi 0, %s351
    %s366 = sphi 0, %s352
    %s370 = sphi 0, %s370
    %s372 = sphi 0, %s370
    %s373 = sphi 0, %s372
    %s387 = sphi 0, %s373
    %s391 = sphi 0, %s391
    %s393 = sphi 0, %s391
    %s394 = sphi 0, %s393
    %s408 = sphi 0, %s394
    %s412 = sphi 0, %s412
    %s414 = sphi 0, %s412
    %s415 = sphi 0, %s414
    %s429 = sphi 0, %s415
    %s433 = sphi 0, %s433
    %s435 = sphi 0, %s433
    %s436 = sphi 0, %s435
    %s450 = sphi 0, %s436
    %s454 = sphi 0, %s454
    %s456 = sphi 0, %s454
    %s457 = sphi 0, %s456
    %s471 = sphi 0, %s457
    %s475 = sphi 0, %s475
    %s477 = sphi 0, %s475
    %s478 = sphi 0, %s477
    %s492 = sphi 0, %s478
    %s496 = sphi 0, %s496
    %s498 = sphi 0, %s496
    %s499 = sphi 0, %s498
    %s513 = sphi 0, %s499
    %s517 = sphi 0, %s517
    %s519 = sphi 0, %s517
    %s520 = sphi 0, %s519
    %s534 = sphi 0, %s520
    %s538 = sphi 0, %s538
    %s540 = sphi 0, %s538
    %s541 = sphi 0, %s540
    %s555 = sphi 0, %s541
    %s563 = sphi 0, %s565
    %s566 = sphi 0, %s563
    %s567 = sphi 0, %s566
    %s583 = sphi 0, %s567
  $region4: #{transformer_forward.17} parent=0 // loop_header_branch
    %32 = sbr.rel (%p30) target = $region8
  $region5: #{transformer_forward.17} parent=0 // loop_body
    %s34 = ssub.s32 %s29, 1
    %s35 = ssub.s32 %s29, 2
    %s42 = sadd.s32 1, %s37
    %p43 = scmp.ge.s32.totalorder %s42, 1
    %s44 = scalar_select %p43, 0, %s42
    %s45 = sadd.s32 1, %s36
    %s46 = scalar_select %p43, %s45, %s36
    %p47 = scmp.ge.s32.totalorder %s46, 2
    %s48 = scalar_select %p47, 0, %s46
    %s49 = ssub.s32 %s36, %s48
    %s50 = ssub.s32 %s37, %s44
    %s51 = sor.u32 %s49, %s50
    %p52 = scmp.eq.s32.totalorder %s51, 0
    %s54 = sadd.s32 %s53, 1
    %s55 = scalar_select %p52, %s53, %s54
    %p58 = pneg %p52
    %p59 = scmp.eq.s32.totalorder %s29, 1
    %p60 = por %p58, %p59
    %p61 = scmp.ne.s32.totalorder %s53, %s56
    %p62 = scmp.eq.s32.totalorder %s29, 0
    %p63 = por %p61, %p62
    %p64 = scmp.ne.s32.totalorder %s53, %s56
    %p65 = scmp.eq.s32.totalorder %s34, 1
    %p66 = por %p64, %p65
    %p67 = scmp.ne.s32.totalorder %s56, %s57
    %p68 = scmp.eq.s32.totalorder %s34, 0
    %p69 = por %p67, %p68
    %p70 = scmp.ne.s32.totalorder %s56, %s57
    %p71 = scmp.eq.s32.totalorder %s35, 1
    %p72 = por %p70, %p71
    %p74 = scmp.ne.s32.totalorder %s57, %s73
    %p75 = scmp.eq.s32.totalorder %s35, 0
    %p76 = por %p74, %p75
    %s77 = ssub.s32 %s36, %s48
    %p78 = scmp.eq.s32.totalorder %s77, 0
    %s80 = sadd.s32 %s79, 1
    %s81 = scalar_select %p78, %s79, %s80
    %p84 = pneg %p78
    %p85 = scmp.eq.s32.totalorder %s29, 1
    %p86 = por %p84, %p85
    %p87 = scmp.ne.s32.totalorder %s79, %s82
    %p88 = scmp.eq.s32.totalorder %s29, 0
    %p89 = por %p87, %p88
    %p90 = scmp.ne.s32.totalorder %s79, %s82
    %p91 = scmp.eq.s32.totalorder %s34, 1
    %p92 = por %p90, %p91
    %p93 = scmp.ne.s32.totalorder %s82, %s83
    %p94 = scmp.eq.s32.totalorder %s34, 0
    %p95 = por %p93, %p94
    %p96 = scmp.ne.s32.totalorder %s82, %s83
    %p97 = scmp.eq.s32.totalorder %s35, 1
    %p98 = por %p96, %p97
    %p100 = scmp.ne.s32.totalorder %s83, %s99
    %p101 = scmp.eq.s32.totalorder %s35, 0
    %p102 = por %p100, %p101
    %s103 = ssub.s32 %s36, %s48
    %p104 = scmp.eq.s32.totalorder %s103, 0
    %s106 = sadd.s32 %s105, 1
    %s107 = scalar_select %p104, %s105, %s106
    %p110 = pneg %p104
    %p111 = scmp.eq.s32.totalorder %s29, 1
    %p112 = por %p110, %p111
    %p113 = scmp.ne.s32.totalorder %s105, %s108
    %p114 = scmp.eq.s32.totalorder %s29, 0
    %p115 = por %p113, %p114
    %p116 = scmp.ne.s32.totalorder %s105, %s108
    %p117 = scmp.eq.s32.totalorder %s34, 1
    %p118 = por %p116, %p117
    %p119 = scmp.ne.s32.totalorder %s108, %s109
    %p120 = scmp.eq.s32.totalorder %s34, 0
    %p121 = por %p119, %p120
    %p122 = scmp.ne.s32.totalorder %s108, %s109
    %p123 = scmp.eq.s32.totalorder %s35, 1
    %p124 = por %p122, %p123
    %p126 = scmp.ne.s32.totalorder %s109, %s125
    %p127 = scmp.eq.s32.totalorder %s35, 0
    %p128 = por %p126, %p127
    %s129 = ssub.s32 %s36, %s48
    %p130 = scmp.eq.s32.totalorder %s129, 0
    %s132 = sadd.s32 %s131, 1
    %s133 = scalar_select %p130, %s131, %s132
    %p136 = pneg %p130
    %p137 = scmp.eq.s32.totalorder %s29, 1
    %p138 = por %p136, %p137
    %p139 = scmp.ne.s32.totalorder %s131, %s134
    %p140 = scmp.eq.s32.totalorder %s29, 0
    %p141 = por %p139, %p140
    %p142 = scmp.ne.s32.totalorder %s131, %s134
    %p143 = scmp.eq.s32.totalorder %s34, 1
    %p144 = por %p142, %p143
    %p145 = scmp.ne.s32.totalorder %s134, %s135
    %p146 = scmp.eq.s32.totalorder %s34, 0
    %p147 = por %p145, %p146
    %p148 = scmp.ne.s32.totalorder %s134, %s135
    %p149 = scmp.eq.s32.totalorder %s35, 1
    %p150 = por %p148, %p149
    %p152 = scmp.ne.s32.totalorder %s135, %s151
    %p153 = scmp.eq.s32.totalorder %s35, 0
    %p154 = por %p152, %p153
    %s155 = ssub.s32 %s36, %s48
    %p156 = scmp.eq.s32.totalorder %s155, 0
    %s158 = sadd.s32 %s157, 1
    %s159 = scalar_select %p156, %s157, %s158
    %p162 = pneg %p156
    %p163 = scmp.eq.s32.totalorder %s29, 1
    %p164 = por %p162, %p163
    %p165 = scmp.ne.s32.totalorder %s157, %s160
    %p166 = scmp.eq.s32.totalorder %s29, 0
    %p167 = por %p165, %p166
    %p168 = scmp.ne.s32.totalorder %s157, %s160
    %p169 = scmp.eq.s32.totalorder %s34, 1
    %p170 = por %p168, %p169
    %p171 = scmp.ne.s32.totalorder %s160, %s161
    %p172 = scmp.eq.s32.totalorder %s34, 0
    %p173 = por %p171, %p172
    %p174 = scmp.ne.s32.totalorder %s160, %s161
    %p175 = scmp.eq.s32.totalorder %s35, 1
    %p176 = por %p174, %p175
    %p178 = scmp.ne.s32.totalorder %s161, %s177
    %p179 = scmp.eq.s32.totalorder %s35, 0
    %p180 = por %p178, %p179
    %s182 = sadd.s32 %s181, 1
    %p185 = scmp.eq.s32.totalorder %s29, 1
    %p186 = scmp.ne.s32.totalorder %s181, %s183
    %p187 = scmp.eq.s32.totalorder %s29, 0
    %p188 = por %p186, %p187
    %p189 = scmp.ne.s32.totalorder %s181, %s183
    %p190 = scmp.eq.s32.totalorder %s34, 1
    %p191 = por %p189, %p190
    %p192 = scmp.ne.s32.totalorder %s183, %s184
    %p193 = scmp.eq.s32.totalorder %s34, 0
    %p194 = por %p192, %p193
    %p195 = scmp.ne.s32.totalorder %s183, %s184
    %p196 = scmp.eq.s32.totalorder %s35, 1
    %p197 = por %p195, %p196
    %p199 = scmp.ne.s32.totalorder %s184, %s198
    %p200 = scmp.eq.s32.totalorder %s35, 0
    %p201 = por %p199, %p200
    %s203 = sadd.s32 %s202, 1
    %p206 = scmp.eq.s32.totalorder %s29, 1
    %p207 = scmp.ne.s32.totalorder %s202, %s204
    %p208 = scmp.eq.s32.totalorder %s29, 0
    %p209 = por %p207, %p208
    %p210 = scmp.ne.s32.totalorder %s202, %s204
    %p211 = scmp.eq.s32.totalorder %s34, 1
    %p212 = por %p210, %p211
    %p213 = scmp.ne.s32.totalorder %s204, %s205
    %p214 = scmp.eq.s32.totalorder %s34, 0
    %p215 = por %p213, %p214
    %p216 = scmp.ne.s32.totalorder %s204, %s205
    %p217 = scmp.eq.s32.totalorder %s35, 1
    %p218 = por %p216, %p217
    %p220 = scmp.ne.s32.totalorder %s205, %s219
    %p221 = scmp.eq.s32.totalorder %s35, 0
    %p222 = por %p220, %p221
    %s224 = sadd.s32 %s223, 1
    %p227 = scmp.eq.s32.totalorder %s29, 1
    %p228 = scmp.ne.s32.totalorder %s223, %s225
    %p229 = scmp.eq.s32.totalorder %s29, 0
    %p230 = por %p228, %p229
    %p231 = scmp.ne.s32.totalorder %s223, %s225
    %p232 = scmp.eq.s32.totalorder %s34, 1
    %p233 = por %p231, %p232
    %p234 = scmp.ne.s32.totalorder %s225, %s226
    %p235 = scmp.eq.s32.totalorder %s34, 0
    %p236 = por %p234, %p235
    %p237 = scmp.ne.s32.totalorder %s225, %s226
    %p238 = scmp.eq.s32.totalorder %s35, 1
    %p239 = por %p237, %p238
    %p241 = scmp.ne.s32.totalorder %s226, %s240
    %p242 = scmp.eq.s32.totalorder %s35, 0
    %p243 = por %p241, %p242
    %s245 = sadd.s32 %s244, 1
    %p248 = scmp.eq.s32.totalorder %s29, 1
    %p249 = scmp.ne.s32.totalorder %s244, %s246
    %p250 = scmp.eq.s32.totalorder %s29, 0
    %p251 = por %p249, %p250
    %p252 = scmp.ne.s32.totalorder %s244, %s246
    %p253 = scmp.eq.s32.totalorder %s34, 1
    %p254 = por %p252, %p253
    %p255 = scmp.ne.s32.totalorder %s246, %s247
    %p256 = scmp.eq.s32.totalorder %s34, 0
    %p257 = por %p255, %p256
    %p258 = scmp.ne.s32.totalorder %s246, %s247
    %p259 = scmp.eq.s32.totalorder %s35, 1
    %p260 = por %p258, %p259
    %p262 = scmp.ne.s32.totalorder %s247, %s261
    %p263 = scmp.eq.s32.totalorder %s35, 0
    %p264 = por %p262, %p263
    %s266 = sadd.s32 %s265, 1
    %p269 = scmp.eq.s32.totalorder %s29, 1
    %p270 = scmp.ne.s32.totalorder %s265, %s267
    %p271 = scmp.eq.s32.totalorder %s29, 0
    %p272 = por %p270, %p271
    %p273 = scmp.ne.s32.totalorder %s265, %s267
    %p274 = scmp.eq.s32.totalorder %s34, 1
    %p275 = por %p273, %p274
    %p276 = scmp.ne.s32.totalorder %s267, %s268
    %p277 = scmp.eq.s32.totalorder %s34, 0
    %p278 = por %p276, %p277
    %p279 = scmp.ne.s32.totalorder %s267, %s268
    %p280 = scmp.eq.s32.totalorder %s35, 1
    %p281 = por %p279, %p280
    %p283 = scmp.ne.s32.totalorder %s268, %s282
    %p284 = scmp.eq.s32.totalorder %s35, 0
    %p285 = por %p283, %p284
    %s287 = sadd.s32 %s286, 1
    %p290 = scmp.eq.s32.totalorder %s29, 1
    %p291 = scmp.ne.s32.totalorder %s286, %s288
    %p292 = scmp.eq.s32.totalorder %s29, 0
    %p293 = por %p291, %p292
    %p294 = scmp.ne.s32.totalorder %s286, %s288
    %p295 = scmp.eq.s32.totalorder %s34, 1
    %p296 = por %p294, %p295
    %p297 = scmp.ne.s32.totalorder %s288, %s289
    %p298 = scmp.eq.s32.totalorder %s34, 0
    %p299 = por %p297, %p298
    %p300 = scmp.ne.s32.totalorder %s288, %s289
    %p301 = scmp.eq.s32.totalorder %s35, 1
    %p302 = por %p300, %p301
    %p304 = scmp.ne.s32.totalorder %s289, %s303
    %p305 = scmp.eq.s32.totalorder %s35, 0
    %p306 = por %p304, %p305
    %s308 = sadd.s32 %s307, 1
    %p311 = scmp.eq.s32.totalorder %s29, 1
    %p312 = scmp.ne.s32.totalorder %s307, %s309
    %p313 = scmp.eq.s32.totalorder %s29, 0
    %p314 = por %p312, %p313
    %p315 = scmp.ne.s32.totalorder %s307, %s309
    %p316 = scmp.eq.s32.totalorder %s34, 1
    %p317 = por %p315, %p316
    %p318 = scmp.ne.s32.totalorder %s309, %s310
    %p319 = scmp.eq.s32.totalorder %s34, 0
    %p320 = por %p318, %p319
    %p321 = scmp.ne.s32.totalorder %s309, %s310
    %p322 = scmp.eq.s32.totalorder %s35, 1
    %p323 = por %p321, %p322
    %p325 = scmp.ne.s32.totalorder %s310, %s324
    %p326 = scmp.eq.s32.totalorder %s35, 0
    %p327 = por %p325, %p326
    %s329 = sadd.s32 %s328, 1
    %p332 = scmp.eq.s32.totalorder %s29, 1
    %p333 = scmp.ne.s32.totalorder %s328, %s330
    %p334 = scmp.eq.s32.totalorder %s29, 0
    %p335 = por %p333, %p334
    %p336 = scmp.ne.s32.totalorder %s328, %s330
    %p337 = scmp.eq.s32.totalorder %s34, 1
    %p338 = por %p336, %p337
    %p339 = scmp.ne.s32.totalorder %s330, %s331
    %p340 = scmp.eq.s32.totalorder %s34, 0
    %p341 = por %p339, %p340
    %p342 = scmp.ne.s32.totalorder %s330, %s331
    %p343 = scmp.eq.s32.totalorder %s35, 1
    %p344 = por %p342, %p343
    %p346 = scmp.ne.s32.totalorder %s331, %s345
    %p347 = scmp.eq.s32.totalorder %s35, 0
    %p348 = por %p346, %p347
    %s350 = sadd.s32 %s349, 1
    %p353 = scmp.eq.s32.totalorder %s29, 1
    %p354 = scmp.ne.s32.totalorder %s349, %s351
    %p355 = scmp.eq.s32.totalorder %s29, 0
    %p356 = por %p354, %p355
    %p357 = scmp.ne.s32.totalorder %s349, %s351
    %p358 = scmp.eq.s32.totalorder %s34, 1
    %p359 = por %p357, %p358
    %p360 = scmp.ne.s32.totalorder %s351, %s352
    %p361 = scmp.eq.s32.totalorder %s34, 0
    %p362 = por %p360, %p361
    %p363 = scmp.ne.s32.totalorder %s351, %s352
    %p364 = scmp.eq.s32.totalorder %s35, 1
    %p365 = por %p363, %p364
    %p367 = scmp.ne.s32.totalorder %s352, %s366
    %p368 = scmp.eq.s32.totalorder %s35, 0
    %p369 = por %p367, %p368
    %s371 = sadd.s32 %s370, 1
    %p374 = scmp.eq.s32.totalorder %s29, 1
    %p375 = scmp.ne.s32.totalorder %s370, %s372
    %p376 = scmp.eq.s32.totalorder %s29, 0
    %p377 = por %p375, %p376
    %p378 = scmp.ne.s32.totalorder %s370, %s372
    %p379 = scmp.eq.s32.totalorder %s34, 1
    %p380 = por %p378, %p379
    %p381 = scmp.ne.s32.totalorder %s372, %s373
    %p382 = scmp.eq.s32.totalorder %s34, 0
    %p383 = por %p381, %p382
    %p384 = scmp.ne.s32.totalorder %s372, %s373
    %p385 = scmp.eq.s32.totalorder %s35, 1
    %p386 = por %p384, %p385
    %p388 = scmp.ne.s32.totalorder %s373, %s387
    %p389 = scmp.eq.s32.totalorder %s35, 0
    %p390 = por %p388, %p389
    %s392 = sadd.s32 %s391, 1
    %p395 = scmp.eq.s32.totalorder %s29, 1
    %p396 = scmp.ne.s32.totalorder %s391, %s393
    %p397 = scmp.eq.s32.totalorder %s29, 0
    %p398 = por %p396, %p397
    %p399 = scmp.ne.s32.totalorder %s391, %s393
    %p400 = scmp.eq.s32.totalorder %s34, 1
    %p401 = por %p399, %p400
    %p402 = scmp.ne.s32.totalorder %s393, %s394
    %p403 = scmp.eq.s32.totalorder %s34, 0
    %p404 = por %p402, %p403
    %p405 = scmp.ne.s32.totalorder %s393, %s394
    %p406 = scmp.eq.s32.totalorder %s35, 1
    %p407 = por %p405, %p406
    %p409 = scmp.ne.s32.totalorder %s394, %s408
    %p410 = scmp.eq.s32.totalorder %s35, 0
    %p411 = por %p409, %p410
    %s413 = sadd.s32 %s412, 1
    %p416 = scmp.eq.s32.totalorder %s29, 1
    %p417 = scmp.ne.s32.totalorder %s412, %s414
    %p418 = scmp.eq.s32.totalorder %s29, 0
    %p419 = por %p417, %p418
    %p420 = scmp.ne.s32.totalorder %s412, %s414
    %p421 = scmp.eq.s32.totalorder %s34, 1
    %p422 = por %p420, %p421
    %p423 = scmp.ne.s32.totalorder %s414, %s415
    %p424 = scmp.eq.s32.totalorder %s34, 0
    %p425 = por %p423, %p424
    %p426 = scmp.ne.s32.totalorder %s414, %s415
    %p427 = scmp.eq.s32.totalorder %s35, 1
    %p428 = por %p426, %p427
    %p430 = scmp.ne.s32.totalorder %s415, %s429
    %p431 = scmp.eq.s32.totalorder %s35, 0
    %p432 = por %p430, %p431
    %s434 = sadd.s32 %s433, 1
    %p437 = scmp.eq.s32.totalorder %s29, 1
    %p438 = scmp.ne.s32.totalorder %s433, %s435
    %p439 = scmp.eq.s32.totalorder %s29, 0
    %p440 = por %p438, %p439
    %p441 = scmp.ne.s32.totalorder %s433, %s435
    %p442 = scmp.eq.s32.totalorder %s34, 1
    %p443 = por %p441, %p442
    %p444 = scmp.ne.s32.totalorder %s435, %s436
    %p445 = scmp.eq.s32.totalorder %s34, 0
    %p446 = por %p444, %p445
    %p447 = scmp.ne.s32.totalorder %s435, %s436
    %p448 = scmp.eq.s32.totalorder %s35, 1
    %p449 = por %p447, %p448
    %p451 = scmp.ne.s32.totalorder %s436, %s450
    %p452 = scmp.eq.s32.totalorder %s35, 0
    %p453 = por %p451, %p452
    %s455 = sadd.s32 %s454, 1
    %p458 = scmp.eq.s32.totalorder %s29, 1
    %p459 = scmp.ne.s32.totalorder %s454, %s456
    %p460 = scmp.eq.s32.totalorder %s29, 0
    %p461 = por %p459, %p460
    %p462 = scmp.ne.s32.totalorder %s454, %s456
    %p463 = scmp.eq.s32.totalorder %s34, 1
    %p464 = por %p462, %p463
    %p465 = scmp.ne.s32.totalorder %s456, %s457
    %p466 = scmp.eq.s32.totalorder %s34, 0
    %p467 = por %p465, %p466
    %p468 = scmp.ne.s32.totalorder %s456, %s457
    %p469 = scmp.eq.s32.totalorder %s35, 1
    %p470 = por %p468, %p469
    %p472 = scmp.ne.s32.totalorder %s457, %s471
    %p473 = scmp.eq.s32.totalorder %s35, 0
    %p474 = por %p472, %p473
    %s476 = sadd.s32 %s475, 1
    %p479 = scmp.eq.s32.totalorder %s29, 1
    %p480 = scmp.ne.s32.totalorder %s475, %s477
    %p481 = scmp.eq.s32.totalorder %s29, 0
    %p482 = por %p480, %p481
    %p483 = scmp.ne.s32.totalorder %s475, %s477
    %p484 = scmp.eq.s32.totalorder %s34, 1
    %p485 = por %p483, %p484
    %p486 = scmp.ne.s32.totalorder %s477, %s478
    %p487 = scmp.eq.s32.totalorder %s34, 0
    %p488 = por %p486, %p487
    %p489 = scmp.ne.s32.totalorder %s477, %s478
    %p490 = scmp.eq.s32.totalorder %s35, 1
    %p491 = por %p489, %p490
    %p493 = scmp.ne.s32.totalorder %s478, %s492
    %p494 = scmp.eq.s32.totalorder %s35, 0
    %p495 = por %p493, %p494
    %s497 = sadd.s32 %s496, 1
    %p500 = scmp.eq.s32.totalorder %s29, 1
    %p501 = scmp.ne.s32.totalorder %s496, %s498
    %p502 = scmp.eq.s32.totalorder %s29, 0
    %p503 = por %p501, %p502
    %p504 = scmp.ne.s32.totalorder %s496, %s498
    %p505 = scmp.eq.s32.totalorder %s34, 1
    %p506 = por %p504, %p505
    %p507 = scmp.ne.s32.totalorder %s498, %s499
    %p508 = scmp.eq.s32.totalorder %s34, 0
    %p509 = por %p507, %p508
    %p510 = scmp.ne.s32.totalorder %s498, %s499
    %p511 = scmp.eq.s32.totalorder %s35, 1
    %p512 = por %p510, %p511
    %p514 = scmp.ne.s32.totalorder %s499, %s513
    %p515 = scmp.eq.s32.totalorder %s35, 0
    %p516 = por %p514, %p515
    %s518 = sadd.s32 %s517, 1
    %p521 = scmp.eq.s32.totalorder %s29, 1
    %p522 = scmp.ne.s32.totalorder %s517, %s519
    %p523 = scmp.eq.s32.totalorder %s29, 0
    %p524 = por %p522, %p523
    %p525 = scmp.ne.s32.totalorder %s517, %s519
    %p526 = scmp.eq.s32.totalorder %s34, 1
    %p527 = por %p525, %p526
    %p528 = scmp.ne.s32.totalorder %s519, %s520
    %p529 = scmp.eq.s32.totalorder %s34, 0
    %p530 = por %p528, %p529
    %p531 = scmp.ne.s32.totalorder %s519, %s520
    %p532 = scmp.eq.s32.totalorder %s35, 1
    %p533 = por %p531, %p532
    %p535 = scmp.ne.s32.totalorder %s520, %s534
    %p536 = scmp.eq.s32.totalorder %s35, 0
    %p537 = por %p535, %p536
    %s539 = sadd.s32 %s538, 1
    %p542 = scmp.eq.s32.totalorder %s29, 1
    %p543 = scmp.ne.s32.totalorder %s538, %s540
    %p544 = scmp.eq.s32.totalorder %s29, 0
    %p545 = por %p543, %p544
    %p546 = scmp.ne.s32.totalorder %s538, %s540
    %p547 = scmp.eq.s32.totalorder %s34, 1
    %p548 = por %p546, %p547
    %p549 = scmp.ne.s32.totalorder %s540, %s541
    %p550 = scmp.eq.s32.totalorder %s34, 0
    %p551 = por %p549, %p550
    %p552 = scmp.ne.s32.totalorder %s540, %s541
    %p553 = scmp.eq.s32.totalorder %s35, 1
    %p554 = por %p552, %p553
    %p556 = scmp.ne.s32.totalorder %s541, %s555
    %p557 = scmp.eq.s32.totalorder %s35, 0
    %p558 = por %p556, %p557
    %s559 = ssub.s32 %s36, %s48
    %s560 = ssub.s32 %s37, %s44
    %s561 = sor.u32 %s559, %s560
    %p562 = scmp.eq.s32.totalorder %s561, 0
    %s564 = sadd.s32 %s563, 1
    %s565 = scalar_select %p562, %s563, %s564
    %p568 = pneg %p562
    %p569 = scmp.eq.s32.totalorder %s29, 1
    %p570 = por %p568, %p569
    %p571 = scmp.ne.s32.totalorder %s563, %s566
    %p572 = scmp.eq.s32.totalorder %s29, 0
    %p573 = por %p571, %p572
    %p574 = scmp.ne.s32.totalorder %s563, %s566
    %p575 = scmp.eq.s32.totalorder %s34, 1
    %p576 = por %p574, %p575
    %p577 = scmp.ne.s32.totalorder %s566, %s567
    %p578 = scmp.eq.s32.totalorder %s34, 0
    %p579 = por %p577, %p578
    %p580 = scmp.ne.s32.totalorder %s566, %s567
    %p581 = scmp.eq.s32.totalorder %s35, 1
    %p582 = por %p580, %p581
    %p584 = scmp.ne.s32.totalorder %s567, %s583
    %p585 = scmp.eq.s32.totalorder %s35, 0
    %p586 = por %p584, %p585
    %p587 = scmp.le.s32.totalorder 1, %s29
    %p588 = scmp.lt.s32.totalorder %s29, 3
    %p589 = pnand %p587, %p588
    %p590 = pneg %p589
    // Predicated region
    $region9: #{transformer_forward.17} parent=5 // pred_check
      _
    $region10: #{transformer_forward.17} parent=5 // pred_check_branch
      %592 = sbr.rel (%p589) target = $region12
    $region11: #{transformer_forward.17} parent=5 // pred_region
      %s593 = ssub.s32 %s29, 1
      // Predicated region
      $region13: #{transformer_forward.17} parent=11 // pred_check
        %p594 = pneg %p194
      $region14: #{transformer_forward.17} parent=11 // pred_check_branch
        %596 = sbr.rel (%p594) target = $region16
      $region15: #{transformer_forward.17} parent=11 // pred_region
        _
      $region16: #{transformer_forward.17} parent=11 // pred_fallthru
        _
      // Predicated region
      $region17: #{transformer_forward.17} parent=11 // pred_check
        %p597 = pneg %p215
      $region18: #{transformer_forward.17} parent=11 // pred_check_branch
        %599 = sbr.rel (%p597) target = $region20
      $region19: #{transformer_forward.17} parent=11 // pred_region
        _
      $region20: #{transformer_forward.17} parent=11 // pred_fallthru
        _
      // Predicated region
      $region21: #{transformer_forward.17} parent=11 // pred_check
        %p600 = pneg %p236
      $region22: #{transformer_forward.17} parent=11 // pred_check_branch
        %602 = sbr.rel (%p600) target = $region24
      $region23: #{transformer_forward.17} parent=11 // pred_region
        _
      $region24: #{transformer_forward.17} parent=11 // pred_fallthru
        _
      // Predicated region
      $region25: #{transformer_forward.17} parent=11 // pred_check
        %p603 = pneg %p257
      $region26: #{transformer_forward.17} parent=11 // pred_check_branch
        %605 = sbr.rel (%p603) target = $region28
      $region27: #{transformer_forward.17} parent=11 // pred_region
        _
      $region28: #{transformer_forward.17} parent=11 // pred_fallthru
        _
      // Predicated region
      $region29: #{transformer_forward.17} parent=11 // pred_check
        %p606 = pneg %p278
      $region30: #{transformer_forward.17} parent=11 // pred_check_branch
        %608 = sbr.rel (%p606) target = $region32
      $region31: #{transformer_forward.17} parent=11 // pred_region
        _
      $region32: #{transformer_forward.17} parent=11 // pred_fallthru
        _
      // Predicated region
      $region33: #{transformer_forward.17} parent=11 // pred_check
        %p609 = pneg %p299
      $region34: #{transformer_forward.17} parent=11 // pred_check_branch
        %611 = sbr.rel (%p609) target = $region36
      $region35: #{transformer_forward.17} parent=11 // pred_region
        _
      $region36: #{transformer_forward.17} parent=11 // pred_fallthru
        _
      // Predicated region
      $region37: #{transformer_forward.17} parent=11 // pred_check
        %p612 = pneg %p320
      $region38: #{transformer_forward.17} parent=11 // pred_check_branch
        %614 = sbr.rel (%p612) target = $region40
      $region39: #{transformer_forward.17} parent=11 // pred_region
        _
      $region40: #{transformer_forward.17} parent=11 // pred_fallthru
        _
      // Predicated region
      $region41: #{transformer_forward.17} parent=11 // pred_check
        %p615 = pneg %p341
      $region42: #{transformer_forward.17} parent=11 // pred_check_branch
        %617 = sbr.rel (%p615) target = $region44
      $region43: #{transformer_forward.17} parent=11 // pred_region
        _
      $region44: #{transformer_forward.17} parent=11 // pred_fallthru
        _
      // Predicated region
      $region45: #{transformer_forward.17} parent=11 // pred_check
        %p618 = pneg %p362
      $region46: #{transformer_forward.17} parent=11 // pred_check_branch
        %620 = sbr.rel (%p618) target = $region48
      $region47: #{transformer_forward.17} parent=11 // pred_region
        _
      $region48: #{transformer_forward.17} parent=11 // pred_fallthru
        _
      // Predicated region
      $region49: #{transformer_forward.17} parent=11 // pred_check
        %p621 = pneg %p383
      $region50: #{transformer_forward.17} parent=11 // pred_check_branch
        %623 = sbr.rel (%p621) target = $region52
      $region51: #{transformer_forward.17} parent=11 // pred_region
        _
      $region52: #{transformer_forward.17} parent=11 // pred_fallthru
        _
      // Predicated region
      $region53: #{transformer_forward.17} parent=11 // pred_check
        %p624 = pneg %p404
      $region54: #{transformer_forward.17} parent=11 // pred_check_branch
        %626 = sbr.rel (%p624) target = $region56
      $region55: #{transformer_forward.17} parent=11 // pred_region
        _
      $region56: #{transformer_forward.17} parent=11 // pred_fallthru
        _
      // Predicated region
      $region57: #{transformer_forward.17} parent=11 // pred_check
        %p627 = pneg %p425
      $region58: #{transformer_forward.17} parent=11 // pred_check_branch
        %629 = sbr.rel (%p627) target = $region60
      $region59: #{transformer_forward.17} parent=11 // pred_region
        _
      $region60: #{transformer_forward.17} parent=11 // pred_fallthru
        _
      // Predicated region
      $region61: #{transformer_forward.17} parent=11 // pred_check
        %p630 = pneg %p446
      $region62: #{transformer_forward.17} parent=11 // pred_check_branch
        %632 = sbr.rel (%p630) target = $region64
      $region63: #{transformer_forward.17} parent=11 // pred_region
        _
      $region64: #{transformer_forward.17} parent=11 // pred_fallthru
        _
      // Predicated region
      $region65: #{transformer_forward.17} parent=11 // pred_check
        %p633 = pneg %p467
      $region66: #{transformer_forward.17} parent=11 // pred_check_branch
        %635 = sbr.rel (%p633) target = $region68
      $region67: #{transformer_forward.17} parent=11 // pred_region
        _
      $region68: #{transformer_forward.17} parent=11 // pred_fallthru
        _
      // Predicated region
      $region69: #{transformer_forward.17} parent=11 // pred_check
        %p636 = pneg %p488
      $region70: #{transformer_forward.17} parent=11 // pred_check_branch
        %638 = sbr.rel (%p636) target = $region72
      $region71: #{transformer_forward.17} parent=11 // pred_region
        _
      $region72: #{transformer_forward.17} parent=11 // pred_fallthru
        _
      // Predicated region
      $region73: #{transformer_forward.17} parent=11 // pred_check
        %p639 = pneg %p509
      $region74: #{transformer_forward.17} parent=11 // pred_check_branch
        %641 = sbr.rel (%p639) target = $region76
      $region75: #{transformer_forward.17} parent=11 // pred_region
        _
      $region76: #{transformer_forward.17} parent=11 // pred_fallthru
        _
      // Predicated region
      $region77: #{transformer_forward.17} parent=11 // pred_check
        %p642 = pneg %p530
      $region78: #{transformer_forward.17} parent=11 // pred_check_branch
        %644 = sbr.rel (%p642) target = $region80
      $region79: #{transformer_forward.17} parent=11 // pred_region
        _
      $region80: #{transformer_forward.17} parent=11 // pred_fallthru
        _
      // Predicated region
      $region81: #{transformer_forward.17} parent=11 // pred_check
        %p645 = pneg %p551
      $region82: #{transformer_forward.17} parent=11 // pred_check_branch
        %647 = sbr.rel (%p645) target = $region84
      $region83: #{transformer_forward.17} parent=11 // pred_region
        _
      $region84: #{transformer_forward.17} parent=11 // pred_fallthru
        _
    $region12: #{transformer_forward.17} parent=5 // pred_fallthru
      _
    %p648 = scmp.lt.s32.totalorder %s29, 2
    // Predicated region
    $region85: #{transformer_forward.17} parent=5 // pred_check
      %p649 = pneg %p648
    $region86: #{transformer_forward.17} parent=5 // pred_check_branch
      %651 = sbr.rel (%p649) target = $region88
    $region87: #{transformer_forward.17} parent=5 // pred_region
      // Predicated region
      $region89: #{transformer_forward.17} parent=87 // pred_check
        %p652 = pneg %p63
      $region90: #{transformer_forward.17} parent=87 // pred_check_branch
        %654 = sbr.rel (%p652) target = $region92
      $region91: #{transformer_forward.17} parent=87 // pred_region
        %p655 = scmp.lt.s32.totalorder %s36, 1
        %s656 = scalar_select %p655, %s36, 1
        %p657 = scmp.lt.s32.totalorder %s37, 0
        %s658 = scalar_select %p657, %s37, 0
        %s659 = sadd.s32 %s658, %s656
        %s660 = smul.addr %s659, 4
        %s661 = scalar_lea.vmem %s0, %s660
      $region92: #{transformer_forward.17} parent=87 // pred_fallthru
        _
      // Predicated region
      $region93: #{transformer_forward.17} parent=87 // pred_check
        %p662 = pneg %p89
      $region94: #{transformer_forward.17} parent=87 // pred_check_branch
        %664 = sbr.rel (%p662) target = $region96
      $region95: #{transformer_forward.17} parent=87 // pred_region
        %p665 = scmp.lt.s32.totalorder %s36, 1
        %s666 = scalar_select %p665, %s36, 1
        %s667 = smul.addr %s666, 4
        %s668 = smul.addr %s667, 4
        %s669 = scalar_lea.vmem %s1, %s668
      $region96: #{transformer_forward.17} parent=87 // pred_fallthru
        _
      // Predicated region
      $region97: #{transformer_forward.17} parent=87 // pred_check
        %p670 = pneg %p115
      $region98: #{transformer_forward.17} parent=87 // pred_check_branch
        %672 = sbr.rel (%p670) target = $region100
      $region99: #{transformer_forward.17} parent=87 // pred_region
        %p673 = scmp.lt.s32.totalorder %s36, 1
        %s674 = scalar_select %p673, %s36, 1
        %s675 = smul.addr %s674, 4
        %s676 = smul.addr %s675, 4
        %s677 = scalar_lea.vmem %s2, %s676
      $region100: #{transformer_forward.17} parent=87 // pred_fallthru
        _
      // Predicated region
      $region101: #{transformer_forward.17} parent=87 // pred_check
        %p678 = pneg %p141
      $region102: #{transformer_forward.17} parent=87 // pred_check_branch
        %680 = sbr.rel (%p678) target = $region104
      $region103: #{transformer_forward.17} parent=87 // pred_region
        %p681 = scmp.lt.s32.totalorder %s36, 1
        %s682 = scalar_select %p681, %s36, 1
        %s683 = smul.addr %s682, 8
        %s684 = smul.addr %s683, 4
        %s685 = scalar_lea.vmem %s3, %s684
      $region104: #{transformer_forward.17} parent=87 // pred_fallthru
        _
      // Predicated region
      $region105: #{transformer_forward.17} parent=87 // pred_check
        %p686 = pneg %p167
      $region106: #{transformer_forward.17} parent=87 // pred_check_branch
        %688 = sbr.rel (%p686) target = $region108
      $region107: #{transformer_forward.17} parent=87 // pred_region
        %p689 = scmp.lt.s32.totalorder %s36, 1
        %s690 = scalar_select %p689, %s36, 1
        %s691 = smul.addr %s690, 8
        %s692 = smul.addr %s691, 4
        %s693 = scalar_lea.vmem %s4, %s692
      $region108: #{transformer_forward.17} parent=87 // pred_fallthru
        _
    $region88: #{transformer_forward.17} parent=5 // pred_fallthru
      _
    %p694 = scmp.le.s32.totalorder 1, %s29
    %p695 = scmp.lt.s32.totalorder %s29, 3
    %p696 = pnand %p694, %p695
    %p697 = pneg %p696
    // Predicated region
    $region109: #{transformer_forward.17} parent=5 // pred_check
      _
    $region110: #{transformer_forward.17} parent=5 // pred_check_branch
      %699 = sbr.rel (%p696) target = $region112
    $region111: #{transformer_forward.17} parent=5 // pred_region
      %s700 = ssub.s32 %s29, 1
      %p701 = scmp.lt.s32.totalorder %s38, 1
      %s702 = scalar_select %p701, %s38, 1
      %p703 = scmp.lt.s32.totalorder %s39, 0
      %s704 = scalar_select %p703, %s39, 0
      %s705 = sadd.s32 %s704, %s702
      %s706 = smul.addr %s705, 4
      %s707 = scalar_lea.vmem %s0, %s706
      %p708 = pneg %p69
      %p709 = pneg %p66
      %p710 = scmp.lt.s32.totalorder %s38, 1
      %s711 = scalar_select %p710, %s38, 1
      %s712 = smul.addr %s711, 4
      %s713 = smul.addr %s712, 4
      %s714 = scalar_lea.vmem %s1, %s713
      %p715 = pneg %p95
      %p716 = pneg %p92
      %p717 = scmp.lt.s32.totalorder %s38, 1
      %s718 = scalar_select %p717, %s38, 1
      %s719 = smul.addr %s718, 4
      %s720 = smul.addr %s719, 4
      %s721 = scalar_lea.vmem %s2, %s720
      %p722 = pneg %p121
      %p723 = pneg %p118
      %p724 = scmp.lt.s32.totalorder %s38, 1
      %s725 = scalar_select %p724, %s38, 1
      %s726 = smul.addr %s725, 8
      %s727 = smul.addr %s726, 4
      %s728 = scalar_lea.vmem %s3, %s727
      %p729 = pneg %p147
      %p730 = pneg %p144
      %p731 = scmp.lt.s32.totalorder %s38, 1
      %s732 = scalar_select %p731, %s38, 1
      %s733 = smul.addr %s732, 8
      %s734 = smul.addr %s733, 4
      %s735 = scalar_lea.vmem %s4, %s734
      %p736 = pneg %p173
      %p737 = pneg %p170
      %p738 = pneg %p194
      %p739 = pneg %p191
      %p740 = pneg %p215
      %p741 = pneg %p212
      %p742 = pneg %p236
      %p743 = pneg %p233
      %p744 = pneg %p257
      %p745 = pneg %p254
      %p746 = pneg %p278
      %p747 = pneg %p275
      %p748 = pneg %p299
      %p749 = pneg %p296
      %p750 = pneg %p320
      %p751 = pneg %p317
      %p752 = pneg %p341
      %p753 = pneg %p338
      %p754 = pneg %p362
      %p755 = pneg %p359
      %p756 = pneg %p383
      %p757 = pneg %p380
      %p758 = pneg %p404
      %p759 = pneg %p401
      %p760 = pneg %p425
      %p761 = pneg %p422
      %p762 = pneg %p446
      %p763 = pneg %p443
      %p764 = pneg %p467
      %p765 = pneg %p464
      %p766 = pneg %p488
      %p767 = pneg %p485
      %p768 = pneg %p509
      %p769 = pneg %p506
      %p770 = pneg %p530
      %p771 = pneg %p527
      %p772 = pneg %p551
      %p773 = pneg %p548
      %p774 = pneg %p579
      %p775 = pneg %p576
      %p776 = scmp.lt.s32.totalorder %s38, 1
      %s777 = scalar_select %p776, %s38, 1
      %p778 = scmp.lt.s32.totalorder %s39, 0
      %s779 = scalar_select %p778, %s39, 0
      %s780 = sadd.s32 %s779, %s777
      %s781 = smul.addr %s780, 4
      %s782 = scalar_lea.vmem %s23, %s781
      %p783 = scmp.lt.s32.totalorder %s38, 1
      %s784 = scalar_select %p783, %s38, 1
      %p785 = scmp.lt.s32.totalorder %s39, 0
      %s786 = scalar_select %p785, %s39, 0
      %s787 = sadd.s32 %s786, %s784
      %s788 = smul.addr %s787, 4
      %s789 = scalar_lea.vmem %s0, %s788
      %p790 = scmp.lt.s32.totalorder %s38, 1
      %s791 = scalar_select %p790, %s38, 1
      %s792 = smul.addr %s791, 4
      %s793 = smul.addr %s792, 4
      %s794 = scalar_lea.vmem %s1, %s793
      %p795 = scmp.lt.s32.totalorder %s38, 1
      %s796 = scalar_select %p795, %s38, 1
      %s797 = smul.addr %s796, 4
      %s798 = smul.addr %s797, 4
      %s799 = scalar_lea.vmem %s2, %s798
      %p800 = scmp.lt.s32.totalorder %s38, 1
      %s801 = scalar_select %p800, %s38, 1
      %s802 = smul.addr %s801, 8
      %s803 = smul.addr %s802, 4
      %s804 = scalar_lea.vmem %s3, %s803
      %p805 = scmp.lt.s32.totalorder %s38, 1
      %s806 = scalar_select %p805, %s38, 1
      %s807 = smul.addr %s806, 8
      %s808 = smul.addr %s807, 4
      %s809 = scalar_lea.vmem %s4, %s808
      %p810 = scmp.lt.s32.totalorder %s38, 1
      %s811 = scalar_select %p810, %s38, 1
      %p812 = scmp.lt.s32.totalorder %s39, 0
      %s813 = scalar_select %p812, %s39, 0
      %s814 = sadd.s32 %s813, %s811
      %s815 = smul.addr %s814, 4
      %s816 = scalar_lea.vmem %s23, %s815
      %v818 = vld [vmem:[%s789] sm:$0xf]
      %v819 = vld [vmem:[%s794] sm:$0xf]
      %v820 = vld [vmem:[%s794 + $0x4] sm:$0xf]
      %v821 = vld [vmem:[%s794 + $0x8] sm:$0xf]
      %v822 = vld [vmem:[%s794 + $0xc] sm:$0xf]
      %v823 = vld [vmem:[%s799] sm:$0xf]
      %v824 = vld [vmem:[%s799 + $0x4] sm:$0xf]
      %v825 = vld [vmem:[%s799 + $0x8] sm:$0xf]
      %v826 = vld [vmem:[%s799 + $0xc] sm:$0xf]
      %v827 = vld [vmem:[%s5] sm:$0xf]
      %v828 = vld [vmem:[%s5 + $0x4] sm:$0xf]
      %v829 = vld [vmem:[%s5 + $0x8] sm:$0xf]
      %v830 = vld [vmem:[%s5 + $0xc] sm:$0xf]
      %v831 = vld [vmem:[%s5 + $0x10] sm:$0xf]
      %v832 = vld [vmem:[%s5 + $0x14] sm:$0xf]
      %v833 = vld [vmem:[%s5 + $0x18] sm:$0xf]
      %v834 = vld [vmem:[%s5 + $0x1c] sm:$0xf]
      %v835 = vld [vmem:[%s5 + $0x20] sm:$0xf]
      %v836 = vld [vmem:[%s5 + $0x24] sm:$0xf]
      %v837 = vld [vmem:[%s5 + $0x28] sm:$0xf]
      %v838 = vld [vmem:[%s5 + $0x2c] sm:$0xf]
      %v839 = vld [vmem:[%s5 + $0x30] sm:$0xf]
      %v840 = vld [vmem:[%s5 + $0x34] sm:$0xf]
      %v841 = vld [vmem:[%s5 + $0x38] sm:$0xf]
      %v842 = vld [vmem:[%s5 + $0x3c] sm:$0xf]
      %v843 = vld [vmem:[%s6] sm:$0x1]
      %v844 = vld [vmem:[%s7] sm:$0xf]
      %v845 = vld [vmem:[%s7 + $0x4] sm:$0xf]
      %v846 = vld [vmem:[%s7 + $0x8] sm:$0xf]
      %v847 = vld [vmem:[%s7 + $0xc] sm:$0xf]
      %v848 = vld [vmem:[%s7 + $0x10] sm:$0xf]
      %v849 = vld [vmem:[%s7 + $0x14] sm:$0xf]
      %v850 = vld [vmem:[%s7 + $0x18] sm:$0xf]
      %v851 = vld [vmem:[%s7 + $0x1c] sm:$0xf]
      %v852 = vld [vmem:[%s7 + $0x20] sm:$0xf]
      %v853 = vld [vmem:[%s7 + $0x24] sm:$0xf]
      %v854 = vld [vmem:[%s7 + $0x28] sm:$0xf]
      %v855 = vld [vmem:[%s7 + $0x2c] sm:$0xf]
      %v856 = vld [vmem:[%s7 + $0x30] sm:$0xf]
      %v857 = vld [vmem:[%s7 + $0x34] sm:$0xf]
      %v858 = vld [vmem:[%s7 + $0x38] sm:$0xf]
      %v859 = vld [vmem:[%s7 + $0x3c] sm:$0xf]
      %v860 = vld [vmem:[%s8] sm:$0x1]
      %v862 = vlaneseq
      %v863 = vshrl.u32 %v862, 7
      %v864 = vsub.s32 0, %v863
      %v865 = vrot.slane %v843, %v864
      %v883 = vunpack.c.l.b16 %v827
      %v884 = vunpack.c.l.b16 %v828
      %v885 = vunpack.c.l.b16 %v829
      %v886 = vunpack.c.l.b16 %v830
      %v887 = vunpack.c.l.b16 %v831
      %v888 = vunpack.c.l.b16 %v832
      %v889 = vunpack.c.l.b16 %v833
      %v890 = vunpack.c.l.b16 %v834
      %v891 = vunpack.c.l.b16 %v835
      %v892 = vunpack.c.l.b16 %v836
      %v893 = vunpack.c.l.b16 %v837
      %v894 = vunpack.c.l.b16 %v838
      %v895 = vunpack.c.l.b16 %v839
      %v896 = vunpack.c.l.b16 %v840
      %v897 = vunpack.c.l.b16 %v841
      %v898 = vunpack.c.l.b16 %v842
      %v899 = vpack.c.b16 %v884, %v883
      %v900 = vpack.c.b16 %v886, %v885
      %v901 = vpack.c.b16 %v888, %v887
      %v902 = vpack.c.b16 %v890, %v889
      %v903 = vpack.c.b16 %v892, %v891
      %v904 = vpack.c.b16 %v894, %v893
      %v905 = vpack.c.b16 %v896, %v895
      %v906 = vpack.c.b16 %v898, %v897
      %915 = vmatprep.subr.bf16.mxu0 0
      %916 = vmatpush1.bf16.msra.mxu0 %v906
      %917 = vmatprep.subr.bf16.mxu0 0
      %918 = vmatpush1.bf16.msra.mxu0 %v905
      %919 = vmatprep.subr.bf16.mxu0 0
      %920 = vmatpush1.bf16.msra.mxu0 %v904
      %921 = vmatprep.subr.bf16.mxu0 0
      %922 = vmatpush1.bf16.msra.mxu0 %v903
      %923 = vmatprep.subr.bf16.mxu0 0
      %924 = vmatpush1.bf16.msra.mxu0 %v902
      %925 = vmatprep.subr.bf16.mxu0 0
      %926 = vmatpush1.bf16.msra.mxu0 %v901
      %927 = vmatprep.subr.bf16.mxu0 0
      %928 = vmatpush1.bf16.msra.mxu0 %v900
      %929 = vmatprep.subr.bf16.mxu0 0
      %930 = vmatpush1.bf16.msra.mxu0 %v899
      %931 = vmatprep.subr.bf16.mxu0 0
      %932 = vmatpush2.bf16.msra.mxu0 0
      %933 = vmatprep.subr.bf16.mxu0 0
      %934 = vmatpush2.bf16.msra.mxu0 0
      %935 = vmatprep.subr.bf16.mxu0 0
      %936 = vmatpush2.bf16.msra.mxu0 0
      %937 = vmatprep.subr.bf16.mxu0 0
      %938 = vmatpush2.bf16.msra.mxu0 0
      %939 = vmatprep.subr.bf16.mxu0 0
      %940 = vmatpush2.bf16.msra.mxu0 0
      %941 = vmatprep.subr.bf16.mxu0 0
      %942 = vmatpush2.bf16.msra.mxu0 0
      %943 = vmatprep.subr.bf16.mxu0 0
      %944 = vmatpush2.bf16.msra.mxu0 0
      %945 = vmatprep.subr.bf16.mxu0 0
      %946 = vmatpush2.bf16.msra.mxu0 0
      %947 = vmatprep.mubr.bf16.mxu0 0
      %948 = vmatmul.mubr.bf16.gmra.mxu0 %v818
      %v949 = vpop.f32.mrf.mxu0
      %v950 = vadd.f32 %v865, %v949
      %v951 = vpop.f32.mrf.mxu0
      %v952 = vpop.f32.mrf.mxu0
      %v953 = vpop.f32.mrf.mxu0
      %954 = vdwg.mxu0
      %956 = vrot.lane.b32.xlu0 %v950, 96
      %v957 = vpop.permute.xlu0 %956
      %959 = vrot.lane.b32.xlu0 %v950, 64
      %v960 = vpop.permute.xlu0 %959
      %962 = vrot.lane.b32.xlu0 %v950, 32
      %v963 = vpop.permute.xlu0 %962
      %v965 = vcombine.low %v950, %v960
      %v966 = vcombine.high %v950, %v960
      %v968 = vunpack.c.l.s4 1983009808
      %v969 = vunpack.c.0.s8 %v968
      %v970 = vlaneseq
      %v971 = vshrl.u32 %v970, 7
      %v972 = vsub.s32 %v969, %v971
      %v973 = vrot.slane %v965, %v972
      %v975 = vunpack.c.l.s4 1983009808
      %v976 = vunpack.c.0.s8 %v975
      %v977 = vlaneseq
      %v978 = vshrl.u32 %v977, 7
      %v979 = vsub.s32 %v976, %v978
      %v980 = vrot.slane %v966, %v979
      %v981 = vcombine.low %v957, %v963
      %v982 = vcombine.high %v957, %v963
      %v984 = vunpack.c.l.s4 1983009808
      %v985 = vunpack.c.0.s8 %v984
      %v986 = vlaneseq
      %v987 = vshrl.u32 %v986, 7
      %v988 = vsub.s32 %v985, %v987
      %v989 = vrot.slane %v981, %v988
      %v991 = vunpack.c.l.s4 1983009808
      %v992 = vunpack.c.0.s8 %v991
      %v993 = vlaneseq
      %v994 = vshrl.u32 %v993, 7
      %v995 = vsub.s32 %v992, %v994
      %v996 = vrot.slane %v982, %v995
      %v997 = vcombine.low %v973, %v989
      %v998 = vcombine.high %v973, %v989
      %v1000 = vunpack.c.l.s4 1934713408
      %v1001 = vunpack.c.0.s8 %v1000
      %v1002 = vlaneseq
      %v1003 = vshrl.u32 %v1002, 7
      %v1004 = vsub.s32 %v1001, %v1003
      %v1005 = vrot.slane %v997, %v1004
      %v1007 = vunpack.c.l.s4 1934713408
      %v1008 = vunpack.c.0.s8 %v1007
      %v1009 = vlaneseq
      %v1010 = vshrl.u32 %v1009, 7
      %v1011 = vsub.s32 %v1008, %v1010
      %v1012 = vrot.slane %v998, %v1011
      %v1013 = vcombine.low %v980, %v996
      %v1014 = vcombine.high %v980, %v996
      %v1016 = vunpack.c.l.s4 1934713408
      %v1017 = vunpack.c.0.s8 %v1016
      %v1018 = vlaneseq
      %v1019 = vshrl.u32 %v1018, 7
      %v1020 = vsub.s32 %v1017, %v1019
      %v1021 = vrot.slane %v1013, %v1020
      %v1023 = vunpack.c.l.s4 1934713408
      %v1024 = vunpack.c.0.s8 %v1023
      %v1025 = vlaneseq
      %v1026 = vshrl.u32 %v1025, 7
      %v1027 = vsub.s32 %v1024, %v1026
      %v1028 = vrot.slane %v1014, %v1027
      %v1029 = vcombine.high %v1005, 0.0
      %v1030 = vcombine.high %v1012, 0.0
      %v1031 = vcombine.high %v1021, 0.0
      %v1032 = vcombine.high %v1028, 0.0
      %v1033 = vcombine.low %v1005, %v1012
      %v1035 = vunpack.c.l.s4 1983009808
      %v1036 = vunpack.c.0.s8 %v1035
      %v1037 = vlaneseq
      %v1038 = vshrl.u32 %v1037, 7
      %v1039 = vsub.s32 %v1036, %v1038
      %v1040 = vrot.slane %v1033, %v1039
      %v1041 = vcombine.low %v1029, %v1030
      %v1043 = vunpack.c.l.s4 1983009808
      %v1044 = vunpack.c.0.s8 %v1043
      %v1045 = vlaneseq
      %v1046 = vshrl.u32 %v1045, 7
      %v1047 = vsub.s32 %v1044, %v1046
      %v1048 = vrot.slane %v1041, %v1047
      %v1049 = vcombine.low %v1021, %v1028
      %v1051 = vunpack.c.l.s4 1983009808
      %v1052 = vunpack.c.0.s8 %v1051
      %v1053 = vlaneseq
      %v1054 = vshrl.u32 %v1053, 7
      %v1055 = vsub.s32 %v1052, %v1054
      %v1056 = vrot.slane %v1049, %v1055
      %v1057 = vcombine.low %v1031, %v1032
      %v1059 = vunpack.c.l.s4 1983009808
      %v1060 = vunpack.c.0.s8 %v1059
      %v1061 = vlaneseq
      %v1062 = vshrl.u32 %v1061, 7
      %v1063 = vsub.s32 %v1060, %v1062
      %v1064 = vrot.slane %v1057, %v1063
      %v1065 = vcombine.low %v1040, %v1048
      %v1066 = vcombine.high %v1040, %v1048
      %v1068 = vunpack.c.l.s4 1934713408
      %v1069 = vunpack.c.0.s8 %v1068
      %v1070 = vlaneseq
      %v1071 = vshrl.u32 %v1070, 7
      %v1072 = vsub.s32 %v1069, %v1071
      %v1073 = vrot.slane %v1065, %v1072
      %v1075 = vunpack.c.l.s4 1934713408
      %v1076 = vunpack.c.0.s8 %v1075
      %v1077 = vlaneseq
      %v1078 = vshrl.u32 %v1077, 7
      %v1079 = vsub.s32 %v1076, %v1078
      %v1080 = vrot.slane %v1066, %v1079
      %v1081 = vcombine.low %v1056, %v1064
      %v1082 = vcombine.high %v1056, %v1064
      %v1084 = vunpack.c.l.s4 1934713408
      %v1085 = vunpack.c.0.s8 %v1084
      %v1086 = vlaneseq
      %v1087 = vshrl.u32 %v1086, 7
      %v1088 = vsub.s32 %v1085, %v1087
      %v1089 = vrot.slane %v1081, %v1088
      %v1091 = vunpack.c.l.s4 1934713408
      %v1092 = vunpack.c.0.s8 %v1091
      %v1093 = vlaneseq
      %v1094 = vshrl.u32 %v1093, 7
      %v1095 = vsub.s32 %v1092, %v1094
      %v1096 = vrot.slane %v1082, %v1095
      %v1097 = vcombine.low %v1073, %v1089
      %v1098 = vcombine.high %v1073, %v1089
      %v1099 = vcombine.low %v1080, %v1096
      %v1100 = vcombine.high %v1080, %v1096
      %v1101 = vpack.c.bf16 %v1097, %v1097
      %v1102 = vpack.c.bf16 %v1098, %v1098
      %v1103 = vpack.c.bf16 %v1099, %v1099
      %v1104 = vpack.c.bf16 %v1100, %v1100
      %vm1105 = vcmask 261120
      %v1107 = vsel %vm1105, %v1101, 0
      %v1110 = vsel %vm1105, %v819, 0
      %1112 = vmatprep.subr.bf16.mxu0 0
      %1113 = vmatpush1.bf16.xpose.msra.mxu0 0
      %1114 = vmatprep.subr.bf16.mxu0 0
      %1115 = vmatpush1.bf16.xpose.msra.mxu0 0
      %1116 = vmatprep.subr.bf16.mxu0 0
      %1117 = vmatpush1.bf16.xpose.msra.mxu0 0
      %1118 = vmatprep.subr.bf16.mxu0 0
      %1119 = vmatpush1.bf16.xpose.msra.mxu0 0
      %1120 = vmatprep.subr.bf16.mxu0 0
      %1121 = vmatpush1.bf16.xpose.msra.mxu0 0
      %1122 = vmatprep.subr.bf16.mxu0 0
      %1123 = vmatpush1.bf16.xpose.msra.mxu0 0
      %1124 = vmatprep.subr.bf16.mxu0 0
      %1125 = vmatpush1.bf16.xpose.msra.mxu0 0
      %1126 = vmatprep.subr.bf16.mxu0 0
      %1127 = vmatpush1.bf16.xpose.msra.mxu0 %v1110
      %1128 = vmatprep.subr.bf16.mxu0 0
      %1129 = vmatpush2.bf16.xpose.msra.mxu0 0
      %1130 = vmatprep.subr.bf16.mxu0 0
      %1131 = vmatpush2.bf16.xpose.msra.mxu0 0
      %1132 = vmatprep.subr.bf16.mxu0 0
      %1133 = vmatpush2.bf16.xpose.msra.mxu0 0
      %1134 = vmatprep.subr.bf16.mxu0 0
      %1135 = vmatpush2.bf16.xpose.msra.mxu0 0
      %1136 = vmatprep.subr.bf16.mxu0 0
      %1137 = vmatpush2.bf16.xpose.msra.mxu0 0
      %1138 = vmatprep.subr.bf16.mxu0 0
      %1139 = vmatpush2.bf16.xpose.msra.mxu0 0
      %1140 = vmatprep.subr.bf16.mxu0 0
      %1141 = vmatpush2.bf16.xpose.msra.mxu0 0
      %1142 = vmatprep.subr.bf16.mxu0 0
      %1143 = vmatpush2.bf16.xpose.msra.mxu0 0
      %1144 = vmatprep.mubr.bf16.mxu0 0
      %1145 = vmatmul.mubr.bf16.gmra.mxu0 %v1107
      %v1146 = vpop.f32.mrf.mxu0
      %v1147 = vadd.f32 0.0, %v1146
      %v1148 = vpop.f32.mrf.mxu0
      %v1149 = vpop.f32.mrf.mxu0
      %v1150 = vpop.f32.mrf.mxu0
      %1151 = vdwg.mxu0
      %v1153 = vsel %vm1105, %v1102, 0
      %v1156 = vsel %vm1105, %v820, 0
      %1158 = vmatprep.subr.bf16.mxu0 0
      %1159 = vmatpush1.bf16.xpose.msra.mxu0 0
      %1160 = vmatprep.subr.bf16.mxu0 0
      %1161 = vmatpush1.bf16.xpose.msra.mxu0 0
      %1162 = vmatprep.subr.bf16.mxu0 0
      %1163 = vmatpush1.bf16.xpose.msra.mxu0 0
      %1164 = vmatprep.subr.bf16.mxu0 0
      %1165 = vmatpush1.bf16.xpose.msra.mxu0 0
      %1166 = vmatprep.subr.bf16.mxu0 0
      %1167 = vmatpush1.bf16.xpose.msra.mxu0 0
      %1168 = vmatprep.subr.bf16.mxu0 0
      %1169 = vmatpush1.bf16.xpose.msra.mxu0 0
      %1170 = vmatprep.subr.bf16.mxu0 0
      %1171 = vmatpush1.bf16.xpose.msra.mxu0 0
      %1172 = vmatprep.subr.bf16.mxu0 0
      %1173 = vmatpush1.bf16.xpose.msra.mxu0 %v1156
      %1174 = vmatprep.subr.bf16.mxu0 0
      %1175 = vmatpush2.bf16.xpose.msra.mxu0 0
      %1176 = vmatprep.subr.bf16.mxu0 0
      %1177 = vmatpush2.bf16.xpose.msra.mxu0 0
      %1178 = vmatprep.subr.bf16.mxu0 0
      %1179 = vmatpush2.bf16.xpose.msra.mxu0 0
      %1180 = vmatprep.subr.bf16.mxu0 0
      %1181 = vmatpush2.bf16.xpose.msra.mxu0 0
      %1182 = vmatprep.subr.bf16.mxu0 0
      %1183 = vmatpush2.bf16.xpose.msra.mxu0 0
      %1184 = vmatprep.subr.bf16.mxu0 0
      %1185 = vmatpush2.bf16.xpose.msra.mxu0 0
      %1186 = vmatprep.subr.bf16.mxu0 0
      %1187 = vmatpush2.bf16.xpose.msra.mxu0 0
      %1188 = vmatprep.subr.bf16.mxu0 0
      %1189 = vmatpush2.bf16.xpose.msra.mxu0 0
      %1190 = vmatprep.mubr.bf16.mxu0 0
      %1191 = vmatmul.mubr.bf16.gmra.mxu0 %v1153
      %v1192 = vpop.f32.mrf.mxu0
      %v1193 = vadd.f32 0.0, %v1192
      %v1194 = vpop.f32.mrf.mxu0
      %v1195 = vpop.f32.mrf.mxu0
      %v1196 = vpop.f32.mrf.mxu0
      %1197 = vdwg.mxu0
      %v1199 = vsel %vm1105, %v1103, 0
      %v1202 = vsel %vm1105, %v821, 0
      %1204 = vmatprep.subr.bf16.mxu0 0
      %1205 = vmatpush1.bf16.xpose.msra.mxu0 0
      %1206 = vmatprep.subr.bf16.mxu0 0
      %1207 = vmatpush1.bf16.xpose.msra.mxu0 0
      %1208 = vmatprep.subr.bf16.mxu0 0
      %1209 = vmatpush1.bf16.xpose.msra.mxu0 0
      %1210 = vmatprep.subr.bf16.mxu0 0
      %1211 = vmatpush1.bf16.xpose.msra.mxu0 0
      %1212 = vmatprep.subr.bf16.mxu0 0
      %1213 = vmatpush1.bf16.xpose.msra.mxu0 0
      %1214 = vmatprep.subr.bf16.mxu0 0
      %1215 = vmatpush1.bf16.xpose.msra.mxu0 0
      %1216 = vmatprep.subr.bf16.mxu0 0
      %1217 = vmatpush1.bf16.xpose.msra.mxu0 0
      %1218 = vmatprep.subr.bf16.mxu0 0
      %1219 = vmatpush1.bf16.xpose.msra.mxu0 %v1202
      %1220 = vmatprep.subr.bf16.mxu0 0
      %1221 = vmatpush2.bf16.xpose.msra.mxu0 0
      %1222 = vmatprep.subr.bf16.mxu0 0
      %1223 = vmatpush2.bf16.xpose.msra.mxu0 0
      %1224 = vmatprep.subr.bf16.mxu0 0
      %1225 = vmatpush2.bf16.xpose.msra.mxu0 0
      %1226 = vmatprep.subr.bf16.mxu0 0
      %1227 = vmatpush2.bf16.xpose.msra.mxu0 0
      %1228 = vmatprep.subr.bf16.mxu0 0
      %1229 = vmatpush2.bf16.xpose.msra.mxu0 0
      %1230 = vmatprep.subr.bf16.mxu0 0
      %1231 = vmatpush2.bf16.xpose.msra.mxu0 0
      %1232 = vmatprep.subr.bf16.mxu0 0
      %1233 = vmatpush2.bf16.xpose.msra.mxu0 0
      %1234 = vmatprep.subr.bf16.mxu0 0
      %1235 = vmatpush2.bf16.xpose.msra.mxu0 0
      %1236 = vmatprep.mubr.bf16.mxu0 0
      %1237 = vmatmul.mubr.bf16.gmra.mxu0 %v1199
      %v1238 = vpop.f32.mrf.mxu0
      %v1239 = vadd.f32 0.0, %v1238
      %v1240 = vpop.f32.mrf.mxu0
      %v1241 = vpop.f32.mrf.mxu0
      %v1242 = vpop.f32.mrf.mxu0
      %1243 = vdwg.mxu0
      %v1245 = vsel %vm1105, %v1104, 0
      %v1248 = vsel %vm1105, %v822, 0
      %1250 = vmatprep.subr.bf16.mxu0 0
      %1251 = vmatpush1.bf16.xpose.msra.mxu0 0
      %1252 = vmatprep.subr.bf16.mxu0 0
      %1253 = vmatpush1.bf16.xpose.msra.mxu0 0
      %1254 = vmatprep.subr.bf16.mxu0 0
      %1255 = vmatpush1.bf16.xpose.msra.mxu0 0
      %1256 = vmatprep.subr.bf16.mxu0 0
      %1257 = vmatpush1.bf16.xpose.msra.mxu0 0
      %1258 = vmatprep.subr.bf16.mxu0 0
      %1259 = vmatpush1.bf16.xpose.msra.mxu0 0
      %1260 = vmatprep.subr.bf16.mxu0 0
      %1261 = vmatpush1.bf16.xpose.msra.mxu0 0
      %1262 = vmatprep.subr.bf16.mxu0 0
      %1263 = vmatpush1.bf16.xpose.msra.mxu0 0
      %1264 = vmatprep.subr.bf16.mxu0 0
      %1265 = vmatpush1.bf16.xpose.msra.mxu0 %v1248
      %1266 = vmatprep.subr.bf16.mxu0 0
      %1267 = vmatpush2.bf16.xpose.msra.mxu0 0
      %1268 = vmatprep.subr.bf16.mxu0 0
      %1269 = vmatpush2.bf16.xpose.msra.mxu0 0
      %1270 = vmatprep.subr.bf16.mxu0 0
      %1271 = vmatpush2.bf16.xpose.msra.mxu0 0
      %1272 = vmatprep.subr.bf16.mxu0 0
      %1273 = vmatpush2.bf16.xpose.msra.mxu0 0
      %1274 = vmatprep.subr.bf16.mxu0 0
      %1275 = vmatpush2.bf16.xpose.msra.mxu0 0
      %1276 = vmatprep.subr.bf16.mxu0 0
      %1277 = vmatpush2.bf16.xpose.msra.mxu0 0
      %1278 = vmatprep.subr.bf16.mxu0 0
      %1279 = vmatpush2.bf16.xpose.msra.mxu0 0
      %1280 = vmatprep.subr.bf16.mxu0 0
      %1281 = vmatpush2.bf16.xpose.msra.mxu0 0
      %1282 = vmatprep.mubr.bf16.mxu0 0
      %1283 = vmatmul.mubr.bf16.gmra.mxu0 %v1245
      %v1284 = vpop.f32.mrf.mxu0
      %v1285 = vadd.f32 0.0, %v1284
      %v1286 = vpop.f32.mrf.mxu0
      %v1287 = vpop.f32.mrf.mxu0
      %v1288 = vpop.f32.mrf.mxu0
      %1289 = vdwg.mxu0
      %vm1290 = vcmask 64512
      %v1291 = vsel %vm1290, %v1147, -inf
      %1292 = vmax.xlane.f32.xlu0 %v1291
      %v1293 = vpop.xlane.xlu0 %1292
      %v1294 = vsel %vm1290, %v1193, -inf
      %1295 = vmax.xlane.f32.xlu0 %v1294
      %v1296 = vpop.xlane.xlu0 %1295
      %v1297 = vsel %vm1290, %v1239, -inf
      %1298 = vmax.xlane.f32.xlu0 %v1297
      %v1299 = vpop.xlane.xlu0 %1298
      %v1300 = vsel %vm1290, %v1285, -inf
      %1301 = vmax.xlane.f32.xlu0 %v1300
      %v1302 = vpop.xlane.xlu0 %1301
      %v1303 = vsub.f32 %v1147, %v1293
      %v1304 = vsub.f32 %v1193, %v1296
      %v1305 = vsub.f32 %v1239, %v1299
      %v1306 = vsub.f32 %v1285, %v1302
      %v1307 = vmul.f32 %v1303, 1.442695
      %v1308 = vpow.pop %v1307
      %v1309 = vmul.f32 %v1304, 1.442695
      %v1310 = vpow.pop %v1309
      %v1311 = vmul.f32 %v1305, 1.442695
      %v1312 = vpow.pop %v1311
      %v1313 = vmul.f32 %v1306, 1.442695
      %v1314 = vpow.pop %v1313
      %v1315 = vsel %vm1290, %v1308, 0.0
      %1316 = vadd.xlane.f32.xlu0 %v1315
      %v1317 = vpop.xlane.xlu0 %1316
      %v1318 = vsel %vm1290, %v1310, 0.0
      %1319 = vadd.xlane.f32.xlu0 %v1318
      %v1320 = vpop.xlane.xlu0 %1319
      %v1321 = vsel %vm1290, %v1312, 0.0
      %1322 = vadd.xlane.f32.xlu0 %v1321
      %v1323 = vpop.xlane.xlu0 %1322
      %v1324 = vsel %vm1290, %v1314, 0.0
      %1325 = vadd.xlane.f32.xlu0 %v1324
      %v1326 = vpop.xlane.xlu0 %1325
      %v1327 = vpack.c.bf16 %v1308, %v1308
      %v1328 = vpack.c.bf16 %v1310, %v1310
      %v1329 = vpack.c.bf16 %v1312, %v1312
      %v1330 = vpack.c.bf16 %v1314, %v1314
      %v1332 = vsel %vm1290, %v1327, 0
      %vm1334 = vcmask 1043456
      %v1336 = vsel %vm1334, %v823, 0
      %1338 = vmatprep.subr.bf16.mxu0 0
      %1339 = vmatpush1.bf16.msra.mxu0 0
      %1340 = vmatprep.subr.bf16.mxu0 0
      %1341 = vmatpush1.bf16.msra.mxu0 0
      %1342 = vmatprep.subr.bf16.mxu0 0
      %1343 = vmatpush1.bf16.msra.mxu0 0
      %1344 = vmatprep.subr.bf16.mxu0 0
      %1345 = vmatpush1.bf16.msra.mxu0 0
      %1346 = vmatprep.subr.bf16.mxu0 0
      %1347 = vmatpush1.bf16.msra.mxu0 0
      %1348 = vmatprep.subr.bf16.mxu0 0
      %1349 = vmatpush1.bf16.msra.mxu0 0
      %1350 = vmatprep.subr.bf16.mxu0 0
      %1351 = vmatpush1.bf16.msra.mxu0 0
      %1352 = vmatprep.subr.bf16.mxu0 0
      %1353 = vmatpush1.bf16.msra.mxu0 %v1336
      %1354 = vmatprep.subr.bf16.mxu0 0
      %1355 = vmatpush2.bf16.msra.mxu0 0
      %1356 = vmatprep.subr.bf16.mxu0 0
      %1357 = vmatpush2.bf16.msra.mxu0 0
      %1358 = vmatprep.subr.bf16.mxu0 0
      %1359 = vmatpush2.bf16.msra.mxu0 0
      %1360 = vmatprep.subr.bf16.mxu0 0
      %1361 = vmatpush2.bf16.msra.mxu0 0
      %1362 = vmatprep.subr.bf16.mxu0 0
      %1363 = vmatpush2.bf16.msra.mxu0 0
      %1364 = vmatprep.subr.bf16.mxu0 0
      %1365 = vmatpush2.bf16.msra.mxu0 0
      %1366 = vmatprep.subr.bf16.mxu0 0
      %1367 = vmatpush2.bf16.msra.mxu0 0
      %1368 = vmatprep.subr.bf16.mxu0 0
      %1369 = vmatpush2.bf16.msra.mxu0 0
      %1370 = vmatprep.mubr.bf16.mxu0 0
      %1371 = vmatmul.mubr.bf16.gmra.mxu0 %v1332
      %v1372 = vpop.f32.mrf.mxu0
      %v1373 = vadd.f32 0.0, %v1372
      %v1374 = vpop.f32.mrf.mxu0
      %v1375 = vpop.f32.mrf.mxu0
      %v1376 = vpop.f32.mrf.mxu0
      %1377 = vdwg.mxu0
      %v1379 = vsel %vm1290, %v1328, 0
      %v1382 = vsel %vm1334, %v824, 0
      %1384 = vmatprep.subr.bf16.mxu0 0
      %1385 = vmatpush1.bf16.msra.mxu0 0
      %1386 = vmatprep.subr.bf16.mxu0 0
      %1387 = vmatpush1.bf16.msra.mxu0 0
      %1388 = vmatprep.subr.bf16.mxu0 0
      %1389 = vmatpush1.bf16.msra.mxu0 0
      %1390 = vmatprep.subr.bf16.mxu0 0
      %1391 = vmatpush1.bf16.msra.mxu0 0
      %1392 = vmatprep.subr.bf16.mxu0 0
      %1393 = vmatpush1.bf16.msra.mxu0 0
      %1394 = vmatprep.subr.bf16.mxu0 0
      %1395 = vmatpush1.bf16.msra.mxu0 0
      %1396 = vmatprep.subr.bf16.mxu0 0
      %1397 = vmatpush1.bf16.msra.mxu0 0
      %1398 = vmatprep.subr.bf16.mxu0 0
      %1399 = vmatpush1.bf16.msra.mxu0 %v1382
      %1400 = vmatprep.subr.bf16.mxu0 0
      %1401 = vmatpush2.bf16.msra.mxu0 0
      %1402 = vmatprep.subr.bf16.mxu0 0
      %1403 = vmatpush2.bf16.msra.mxu0 0
      %1404 = vmatprep.subr.bf16.mxu0 0
      %1405 = vmatpush2.bf16.msra.mxu0 0
      %1406 = vmatprep.subr.bf16.mxu0 0
      %1407 = vmatpush2.bf16.msra.mxu0 0
      %1408 = vmatprep.subr.bf16.mxu0 0
      %1409 = vmatpush2.bf16.msra.mxu0 0
      %1410 = vmatprep.subr.bf16.mxu0 0
      %1411 = vmatpush2.bf16.msra.mxu0 0
      %1412 = vmatprep.subr.bf16.mxu0 0
      %1413 = vmatpush2.bf16.msra.mxu0 0
      %1414 = vmatprep.subr.bf16.mxu0 0
      %1415 = vmatpush2.bf16.msra.mxu0 0
      %1416 = vmatprep.mubr.bf16.mxu0 0
      %1417 = vmatmul.mubr.bf16.gmra.mxu0 %v1379
      %v1418 = vpop.f32.mrf.mxu0
      %v1419 = vadd.f32 0.0, %v1418
      %v1420 = vpop.f32.mrf.mxu0
      %v1421 = vpop.f32.mrf.mxu0
      %v1422 = vpop.f32.mrf.mxu0
      %1423 = vdwg.mxu0
      %v1425 = vsel %vm1290, %v1329, 0
      %v1428 = vsel %vm1334, %v825, 0
      %1430 = vmatprep.subr.bf16.mxu0 0
      %1431 = vmatpush1.bf16.msra.mxu0 0
      %1432 = vmatprep.subr.bf16.mxu0 0
      %1433 = vmatpush1.bf16.msra.mxu0 0
      %1434 = vmatprep.subr.bf16.mxu0 0
      %1435 = vmatpush1.bf16.msra.mxu0 0
      %1436 = vmatprep.subr.bf16.mxu0 0
      %1437 = vmatpush1.bf16.msra.mxu0 0
      %1438 = vmatprep.subr.bf16.mxu0 0
      %1439 = vmatpush1.bf16.msra.mxu0 0
      %1440 = vmatprep.subr.bf16.mxu0 0
      %1441 = vmatpush1.bf16.msra.mxu0 0
      %1442 = vmatprep.subr.bf16.mxu0 0
      %1443 = vmatpush1.bf16.msra.mxu0 0
      %1444 = vmatprep.subr.bf16.mxu0 0
      %1445 = vmatpush1.bf16.msra.mxu0 %v1428
      %1446 = vmatprep.subr.bf16.mxu0 0
      %1447 = vmatpush2.bf16.msra.mxu0 0
      %1448 = vmatprep.subr.bf16.mxu0 0
      %1449 = vmatpush2.bf16.msra.mxu0 0
      %1450 = vmatprep.subr.bf16.mxu0 0
      %1451 = vmatpush2.bf16.msra.mxu0 0
      %1452 = vmatprep.subr.bf16.mxu0 0
      %1453 = vmatpush2.bf16.msra.mxu0 0
      %1454 = vmatprep.subr.bf16.mxu0 0
      %1455 = vmatpush2.bf16.msra.mxu0 0
      %1456 = vmatprep.subr.bf16.mxu0 0
      %1457 = vmatpush2.bf16.msra.mxu0 0
      %1458 = vmatprep.subr.bf16.mxu0 0
      %1459 = vmatpush2.bf16.msra.mxu0 0
      %1460 = vmatprep.subr.bf16.mxu0 0
      %1461 = vmatpush2.bf16.msra.mxu0 0
      %1462 = vmatprep.mubr.bf16.mxu0 0
      %1463 = vmatmul.mubr.bf16.gmra.mxu0 %v1425
      %v1464 = vpop.f32.mrf.mxu0
      %v1465 = vadd.f32 0.0, %v1464
      %v1466 = vpop.f32.mrf.mxu0
      %v1467 = vpop.f32.mrf.mxu0
      %v1468 = vpop.f32.mrf.mxu0
      %1469 = vdwg.mxu0
      %v1471 = vsel %vm1290, %v1330, 0
      %v1474 = vsel %vm1334, %v826, 0
      %1476 = vmatprep.subr.bf16.mxu0 0
      %1477 = vmatpush1.bf16.msra.mxu0 0
      %1478 = vmatprep.subr.bf16.mxu0 0
      %1479 = vmatpush1.bf16.msra.mxu0 0
      %1480 = vmatprep.subr.bf16.mxu0 0
      %1481 = vmatpush1.bf16.msra.mxu0 0
      %1482 = vmatprep.subr.bf16.mxu0 0
      %1483 = vmatpush1.bf16.msra.mxu0 0
      %1484 = vmatprep.subr.bf16.mxu0 0
      %1485 = vmatpush1.bf16.msra.mxu0 0
      %1486 = vmatprep.subr.bf16.mxu0 0
      %1487 = vmatpush1.bf16.msra.mxu0 0
      %1488 = vmatprep.subr.bf16.mxu0 0
      %1489 = vmatpush1.bf16.msra.mxu0 0
      %1490 = vmatprep.subr.bf16.mxu0 0
      %1491 = vmatpush1.bf16.msra.mxu0 %v1474
      %1492 = vmatprep.subr.bf16.mxu0 0
      %1493 = vmatpush2.bf16.msra.mxu0 0
      %1494 = vmatprep.subr.bf16.mxu0 0
      %1495 = vmatpush2.bf16.msra.mxu0 0
      %1496 = vmatprep.subr.bf16.mxu0 0
      %1497 = vmatpush2.bf16.msra.mxu0 0
      %1498 = vmatprep.subr.bf16.mxu0 0
      %1499 = vmatpush2.bf16.msra.mxu0 0
      %1500 = vmatprep.subr.bf16.mxu0 0
      %1501 = vmatpush2.bf16.msra.mxu0 0
      %1502 = vmatprep.subr.bf16.mxu0 0
      %1503 = vmatpush2.bf16.msra.mxu0 0
      %1504 = vmatprep.subr.bf16.mxu0 0
      %1505 = vmatpush2.bf16.msra.mxu0 0
      %1506 = vmatprep.subr.bf16.mxu0 0
      %1507 = vmatpush2.bf16.msra.mxu0 0
      %1508 = vmatprep.mubr.bf16.mxu0 0
      %1509 = vmatmul.mubr.bf16.gmra.mxu0 %v1471
      %v1510 = vpop.f32.mrf.mxu0
      %v1511 = vadd.f32 0.0, %v1510
      %v1512 = vpop.f32.mrf.mxu0
      %v1513 = vpop.f32.mrf.mxu0
      %v1514 = vpop.f32.mrf.mxu0
      %1515 = vdwg.mxu0
      %v1516 = vrcp.pop %v1317
      %v1517 = vrcp.pop %v1320
      %v1518 = vrcp.pop %v1323
      %v1519 = vrcp.pop %v1326
      %v1520 = vmul.f32 %v1373, %v1516
      %v1521 = vmul.f32 %v1419, %v1517
      %v1522 = vmul.f32 %v1465, %v1518
      %v1523 = vmul.f32 %v1511, %v1519
      %v1524 = vcombine.low %v1520, %v1522
      %v1525 = vcombine.high %v1520, %v1522
      %v1527 = vunpack.c.l.s4 1983009808
      %v1528 = vunpack.c.0.s8 %v1527
      %v1529 = vlaneseq
      %v1530 = vshrl.u32 %v1529, 7
      %v1531 = vsub.s32 %v1528, %v1530
      %v1532 = vrot.slane %v1524, %v1531
      %v1534 = vunpack.c.l.s4 1983009808
      %v1535 = vunpack.c.0.s8 %v1534
      %v1536 = vlaneseq
      %v1537 = vshrl.u32 %v1536, 7
      %v1538 = vsub.s32 %v1535, %v1537
      %v1539 = vrot.slane %v1525, %v1538
      %v1540 = vcombine.low %v1521, %v1523
      %v1541 = vcombine.high %v1521, %v1523
      %v1543 = vunpack.c.l.s4 1983009808
      %v1544 = vunpack.c.0.s8 %v1543
      %v1545 = vlaneseq
      %v1546 = vshrl.u32 %v1545, 7
      %v1547 = vsub.s32 %v1544, %v1546
      %v1548 = vrot.slane %v1540, %v1547
      %v1550 = vunpack.c.l.s4 1983009808
      %v1551 = vunpack.c.0.s8 %v1550
      %v1552 = vlaneseq
      %v1553 = vshrl.u32 %v1552, 7
      %v1554 = vsub.s32 %v1551, %v1553
      %v1555 = vrot.slane %v1541, %v1554
      %v1556 = vcombine.low %v1532, %v1548
      %v1557 = vcombine.high %v1532, %v1548
      %v1559 = vunpack.c.l.s4 1934713408
      %v1560 = vunpack.c.0.s8 %v1559
      %v1561 = vlaneseq
      %v1562 = vshrl.u32 %v1561, 7
      %v1563 = vsub.s32 %v1560, %v1562
      %v1564 = vrot.slane %v1556, %v1563
      %v1566 = vunpack.c.l.s4 1934713408
      %v1567 = vunpack.c.0.s8 %v1566
      %v1568 = vlaneseq
      %v1569 = vshrl.u32 %v1568, 7
      %v1570 = vsub.s32 %v1567, %v1569
      %v1571 = vrot.slane %v1557, %v1570
      %v1572 = vcombine.low %v1539, %v1555
      %v1573 = vcombine.high %v1539, %v1555
      %v1575 = vunpack.c.l.s4 1934713408
      %v1576 = vunpack.c.0.s8 %v1575
      %v1577 = vlaneseq
      %v1578 = vshrl.u32 %v1577, 7
      %v1579 = vsub.s32 %v1576, %v1578
      %v1580 = vrot.slane %v1572, %v1579
      %v1582 = vunpack.c.l.s4 1934713408
      %v1583 = vunpack.c.0.s8 %v1582
      %v1584 = vlaneseq
      %v1585 = vshrl.u32 %v1584, 7
      %v1586 = vsub.s32 %v1583, %v1585
      %v1587 = vrot.slane %v1573, %v1586
      %v1588 = vcombine.high %v1564, 0.0
      %v1589 = vcombine.high %v1571, 0.0
      %v1590 = vcombine.high %v1580, 0.0
      %v1591 = vcombine.high %v1587, 0.0
      %v1592 = vcombine.low %v1564, %v1571
      %v1594 = vunpack.c.l.s4 1983009808
      %v1595 = vunpack.c.0.s8 %v1594
      %v1596 = vlaneseq
      %v1597 = vshrl.u32 %v1596, 7
      %v1598 = vsub.s32 %v1595, %v1597
      %v1599 = vrot.slane %v1592, %v1598
      %v1600 = vcombine.low %v1588, %v1589
      %v1602 = vunpack.c.l.s4 1983009808
      %v1603 = vunpack.c.0.s8 %v1602
      %v1604 = vlaneseq
      %v1605 = vshrl.u32 %v1604, 7
      %v1606 = vsub.s32 %v1603, %v1605
      %v1607 = vrot.slane %v1600, %v1606
      %v1608 = vcombine.low %v1580, %v1587
      %v1610 = vunpack.c.l.s4 1983009808
      %v1611 = vunpack.c.0.s8 %v1610
      %v1612 = vlaneseq
      %v1613 = vshrl.u32 %v1612, 7
      %v1614 = vsub.s32 %v1611, %v1613
      %v1615 = vrot.slane %v1608, %v1614
      %v1616 = vcombine.low %v1590, %v1591
      %v1618 = vunpack.c.l.s4 1983009808
      %v1619 = vunpack.c.0.s8 %v1618
      %v1620 = vlaneseq
      %v1621 = vshrl.u32 %v1620, 7
      %v1622 = vsub.s32 %v1619, %v1621
      %v1623 = vrot.slane %v1616, %v1622
      %v1624 = vcombine.low %v1599, %v1607
      %v1625 = vcombine.high %v1599, %v1607
      %v1627 = vunpack.c.l.s4 1934713408
      %v1628 = vunpack.c.0.s8 %v1627
      %v1629 = vlaneseq
      %v1630 = vshrl.u32 %v1629, 7
      %v1631 = vsub.s32 %v1628, %v1630
      %v1632 = vrot.slane %v1624, %v1631
      %v1634 = vunpack.c.l.s4 1934713408
      %v1635 = vunpack.c.0.s8 %v1634
      %v1636 = vlaneseq
      %v1637 = vshrl.u32 %v1636, 7
      %v1638 = vsub.s32 %v1635, %v1637
      %v1639 = vrot.slane %v1625, %v1638
      %v1640 = vcombine.low %v1615, %v1623
      %v1641 = vcombine.high %v1615, %v1623
      %v1643 = vunpack.c.l.s4 1934713408
      %v1644 = vunpack.c.0.s8 %v1643
      %v1645 = vlaneseq
      %v1646 = vshrl.u32 %v1645, 7
      %v1647 = vsub.s32 %v1644, %v1646
      %v1648 = vrot.slane %v1640, %v1647
      %v1650 = vunpack.c.l.s4 1934713408
      %v1651 = vunpack.c.0.s8 %v1650
      %v1652 = vlaneseq
      %v1653 = vshrl.u32 %v1652, 7
      %v1654 = vsub.s32 %v1651, %v1653
      %v1655 = vrot.slane %v1641, %v1654
      %v1656 = vcombine.low %v1632, %v1648
      %v1657 = vcombine.high %v1632, %v1648
      %v1658 = vcombine.low %v1639, %v1655
      %v1659 = vcombine.high %v1639, %v1655
      %1661 = vrot.lane.b32.xlu0 %v1657, 32
      %v1662 = vpop.permute.xlu0 %1661
      %1665 = vrot.lane.b32.xlu0 %v1658, 64
      %v1666 = vpop.permute.xlu0 %1665
      %1669 = vrot.lane.b32.xlu0 %v1659, 96
      %v1670 = vpop.permute.xlu0 %1669
      %v1672 = vsel %vm1105, %v1656, %v1662
      %vm1673 = vcmask 523264
      %v1674 = vsel %vm1673, %v1672, %v1666
      %vm1675 = vcmask 785408
      %v1676 = vsel %vm1675, %v1674, %v1670
      %v1677 = vpack.c.bf16 %v1676, %v1676
      %v1679 = vlaneseq
      %v1680 = vshrl.u32 %v1679, 7
      %v1681 = vsub.s32 0, %v1680
      %v1682 = vrot.slane %v860, %v1681
      %v1700 = vunpack.c.l.b16 %v844
      %v1701 = vunpack.c.l.b16 %v845
      %v1702 = vunpack.c.l.b16 %v846
      %v1703 = vunpack.c.l.b16 %v847
      %v1704 = vunpack.c.l.b16 %v848
      %v1705 = vunpack.c.l.b16 %v849
      %v1706 = vunpack.c.l.b16 %v850
      %v1707 = vunpack.c.l.b16 %v851
      %v1708 = vunpack.c.l.b16 %v852
      %v1709 = vunpack.c.l.b16 %v853
      %v1710 = vunpack.c.l.b16 %v854
      %v1711 = vunpack.c.l.b16 %v855
      %v1712 = vunpack.c.l.b16 %v856
      %v1713 = vunpack.c.l.b16 %v857
      %v1714 = vunpack.c.l.b16 %v858
      %v1715 = vunpack.c.l.b16 %v859
      %v1716 = vpack.c.b16 %v1701, %v1700
      %v1717 = vpack.c.b16 %v1703, %v1702
      %v1718 = vpack.c.b16 %v1705, %v1704
      %v1719 = vpack.c.b16 %v1707, %v1706
      %v1720 = vpack.c.b16 %v1709, %v1708
      %v1721 = vpack.c.b16 %v1711, %v1710
      %v1722 = vpack.c.b16 %v1713, %v1712
      %v1723 = vpack.c.b16 %v1715, %v1714
      %1732 = vmatprep.subr.bf16.mxu0 0
      %1733 = vmatpush1.bf16.msra.mxu0 %v1723
      %1734 = vmatprep.subr.bf16.mxu0 0
      %1735 = vmatpush1.bf16.msra.mxu0 %v1722
      %1736 = vmatprep.subr.bf16.mxu0 0
      %1737 = vmatpush1.bf16.msra.mxu0 %v1721
      %1738 = vmatprep.subr.bf16.mxu0 0
      %1739 = vmatpush1.bf16.msra.mxu0 %v1720
      %1740 = vmatprep.subr.bf16.mxu0 0
      %1741 = vmatpush1.bf16.msra.mxu0 %v1719
      %1742 = vmatprep.subr.bf16.mxu0 0
      %1743 = vmatpush1.bf16.msra.mxu0 %v1718
      %1744 = vmatprep.subr.bf16.mxu0 0
      %1745 = vmatpush1.bf16.msra.mxu0 %v1717
      %1746 = vmatprep.subr.bf16.mxu0 0
      %1747 = vmatpush1.bf16.msra.mxu0 %v1716
      %1748 = vmatprep.subr.bf16.mxu0 0
      %1749 = vmatpush2.bf16.msra.mxu0 0
      %1750 = vmatprep.subr.bf16.mxu0 0
      %1751 = vmatpush2.bf16.msra.mxu0 0
      %1752 = vmatprep.subr.bf16.mxu0 0
      %1753 = vmatpush2.bf16.msra.mxu0 0
      %1754 = vmatprep.subr.bf16.mxu0 0
      %1755 = vmatpush2.bf16.msra.mxu0 0
      %1756 = vmatprep.subr.bf16.mxu0 0
      %1757 = vmatpush2.bf16.msra.mxu0 0
      %1758 = vmatprep.subr.bf16.mxu0 0
      %1759 = vmatpush2.bf16.msra.mxu0 0
      %1760 = vmatprep.subr.bf16.mxu0 0
      %1761 = vmatpush2.bf16.msra.mxu0 0
      %1762 = vmatprep.subr.bf16.mxu0 0
      %1763 = vmatpush2.bf16.msra.mxu0 0
      %1764 = vmatprep.mubr.bf16.mxu0 0
      %1765 = vmatmul.mubr.bf16.gmra.mxu0 %v1677
      %v1766 = vpop.f32.mrf.mxu0
      %v1767 = vadd.f32 %v1682, %v1766
      %v1768 = vpop.f32.mrf.mxu0
      %v1769 = vpop.f32.mrf.mxu0
      %v1770 = vpop.f32.mrf.mxu0
      %1771 = vdwg.mxu0
      %v1772 = vunpack.c.l.bf16 %v818
      %v1773 = vadd.f32 %v1772, %v1767
      %v1774 = vld [vmem:[%s17] sm:$0x1]
      %v1775 = vld [vmem:[%s18] sm:$0x1]
      %1776 = vadd.xlane.f32.xlu0 %v1773
      %v1777 = vpop.xlane.xlu0 %1776
      %v1778 = vrcp.pop 128.0
      %v1779 = vmul.f32 %v1777, %v1778
      %v1780 = vsub.f32 %v1773, %v1779
      %v1781 = vmul.f32 %v1780, %v1780
      %1782 = vadd.xlane.f32.xlu0 %v1781
      %v1783 = vpop.xlane.xlu0 %1782
      %v1784 = vmul.f32 %v1783, %v1778
      %v1785 = vadd.f32 %v1784, 1e-05
      %v1786 = vrsqrt.pop %v1785
      %v1787 = vmul.f32 %v1780, %v1786
      %v1789 = vlaneseq
      %v1790 = vshrl.u32 %v1789, 7
      %v1791 = vsub.s32 0, %v1790
      %v1792 = vrot.slane %v1774, %v1791
      %v1794 = vmul.f32 %v1787, %v1792
      %v1796 = vlaneseq
      %v1797 = vshrl.u32 %v1796, 7
      %v1798 = vsub.s32 0, %v1797
      %v1799 = vrot.slane %v1775, %v1798
      %v1801 = vadd.f32 %v1794, %v1799
      %v1802 = vpack.c.bf16 %v1801, %v1801
      %v1803 = vld [vmem:[%s804] sm:$0xf]
      %v1804 = vld [vmem:[%s804 + $0x4] sm:$0xf]
      %v1805 = vld [vmem:[%s804 + $0x8] sm:$0xf]
      %v1806 = vld [vmem:[%s804 + $0xc] sm:$0xf]
      %v1807 = vld [vmem:[%s804 + $0x10] sm:$0xf]
      %v1808 = vld [vmem:[%s804 + $0x14] sm:$0xf]
      %v1809 = vld [vmem:[%s804 + $0x18] sm:$0xf]
      %v1810 = vld [vmem:[%s804 + $0x1c] sm:$0xf]
      %v1811 = vld [vmem:[%s809] sm:$0xf]
      %v1812 = vld [vmem:[%s809 + $0x4] sm:$0xf]
      %v1813 = vld [vmem:[%s809 + $0x8] sm:$0xf]
      %v1814 = vld [vmem:[%s809 + $0xc] sm:$0xf]
      %v1815 = vld [vmem:[%s809 + $0x10] sm:$0xf]
      %v1816 = vld [vmem:[%s809 + $0x14] sm:$0xf]
      %v1817 = vld [vmem:[%s809 + $0x18] sm:$0xf]
      %v1818 = vld [vmem:[%s809 + $0x1c] sm:$0xf]
      %v1819 = vld [vmem:[%s9] sm:$0xf]
      %v1820 = vld [vmem:[%s9 + $0x4] sm:$0xf]
      %v1821 = vld [vmem:[%s9 + $0x8] sm:$0xf]
      %v1822 = vld [vmem:[%s9 + $0xc] sm:$0xf]
      %v1823 = vld [vmem:[%s9 + $0x10] sm:$0xf]
      %v1824 = vld [vmem:[%s9 + $0x14] sm:$0xf]
      %v1825 = vld [vmem:[%s9 + $0x18] sm:$0xf]
      %v1826 = vld [vmem:[%s9 + $0x1c] sm:$0xf]
      %v1827 = vld [vmem:[%s9 + $0x20] sm:$0xf]
      %v1828 = vld [vmem:[%s9 + $0x24] sm:$0xf]
      %v1829 = vld [vmem:[%s9 + $0x28] sm:$0xf]
      %v1830 = vld [vmem:[%s9 + $0x2c] sm:$0xf]
      %v1831 = vld [vmem:[%s9 + $0x30] sm:$0xf]
      %v1832 = vld [vmem:[%s9 + $0x34] sm:$0xf]
      %v1833 = vld [vmem:[%s9 + $0x38] sm:$0xf]
      %v1834 = vld [vmem:[%s9 + $0x3c] sm:$0xf]
      %v1835 = vld [vmem:[%s10] sm:$0x1]
      %v1836 = vld [vmem:[%s11] sm:$0xf]
      %v1837 = vld [vmem:[%s11 + $0x4] sm:$0xf]
      %v1838 = vld [vmem:[%s11 + $0x8] sm:$0xf]
      %v1839 = vld [vmem:[%s11 + $0xc] sm:$0xf]
      %v1840 = vld [vmem:[%s11 + $0x10] sm:$0xf]
      %v1841 = vld [vmem:[%s11 + $0x14] sm:$0xf]
      %v1842 = vld [vmem:[%s11 + $0x18] sm:$0xf]
      %v1843 = vld [vmem:[%s11 + $0x1c] sm:$0xf]
      %v1844 = vld [vmem:[%s11 + $0x20] sm:$0xf]
      %v1845 = vld [vmem:[%s11 + $0x24] sm:$0xf]
      %v1846 = vld [vmem:[%s11 + $0x28] sm:$0xf]
      %v1847 = vld [vmem:[%s11 + $0x2c] sm:$0xf]
      %v1848 = vld [vmem:[%s11 + $0x30] sm:$0xf]
      %v1849 = vld [vmem:[%s11 + $0x34] sm:$0xf]
      %v1850 = vld [vmem:[%s11 + $0x38] sm:$0xf]
      %v1851 = vld [vmem:[%s11 + $0x3c] sm:$0xf]
      %v1852 = vld [vmem:[%s12] sm:$0x1]
      %v1854 = vlaneseq
      %v1855 = vshrl.u32 %v1854, 7
      %v1856 = vsub.s32 0, %v1855
      %v1857 = vrot.slane %v1835, %v1856
      %v1875 = vunpack.c.l.b16 %v1819
      %v1876 = vunpack.c.l.b16 %v1820
      %v1877 = vunpack.c.l.b16 %v1821
      %v1878 = vunpack.c.l.b16 %v1822
      %v1879 = vunpack.c.l.b16 %v1823
      %v1880 = vunpack.c.l.b16 %v1824
      %v1881 = vunpack.c.l.b16 %v1825
      %v1882 = vunpack.c.l.b16 %v1826
      %v1883 = vunpack.c.l.b16 %v1827
      %v1884 = vunpack.c.l.b16 %v1828
      %v1885 = vunpack.c.l.b16 %v1829
      %v1886 = vunpack.c.l.b16 %v1830
      %v1887 = vunpack.c.l.b16 %v1831
      %v1888 = vunpack.c.l.b16 %v1832
      %v1889 = vunpack.c.l.b16 %v1833
      %v1890 = vunpack.c.l.b16 %v1834
      %v1891 = vpack.c.b16 %v1876, %v1875
      %v1892 = vpack.c.b16 %v1878, %v1877
      %v1893 = vpack.c.b16 %v1880, %v1879
      %v1894 = vpack.c.b16 %v1882, %v1881
      %v1895 = vpack.c.b16 %v1884, %v1883
      %v1896 = vpack.c.b16 %v1886, %v1885
      %v1897 = vpack.c.b16 %v1888, %v1887
      %v1898 = vpack.c.b16 %v1890, %v1889
      %1907 = vmatprep.subr.bf16.mxu0 0
      %1908 = vmatpush1.bf16.msra.mxu0 %v1898
      %1909 = vmatprep.subr.bf16.mxu0 0
      %1910 = vmatpush1.bf16.msra.mxu0 %v1897
      %1911 = vmatprep.subr.bf16.mxu0 0
      %1912 = vmatpush1.bf16.msra.mxu0 %v1896
      %1913 = vmatprep.subr.bf16.mxu0 0
      %1914 = vmatpush1.bf16.msra.mxu0 %v1895
      %1915 = vmatprep.subr.bf16.mxu0 0
      %1916 = vmatpush1.bf16.msra.mxu0 %v1894
      %1917 = vmatprep.subr.bf16.mxu0 0
      %1918 = vmatpush1.bf16.msra.mxu0 %v1893
      %1919 = vmatprep.subr.bf16.mxu0 0
      %1920 = vmatpush1.bf16.msra.mxu0 %v1892
      %1921 = vmatprep.subr.bf16.mxu0 0
      %1922 = vmatpush1.bf16.msra.mxu0 %v1891
      %1923 = vmatprep.subr.bf16.mxu0 0
      %1924 = vmatpush2.bf16.msra.mxu0 0
      %1925 = vmatprep.subr.bf16.mxu0 0
      %1926 = vmatpush2.bf16.msra.mxu0 0
      %1927 = vmatprep.subr.bf16.mxu0 0
      %1928 = vmatpush2.bf16.msra.mxu0 0
      %1929 = vmatprep.subr.bf16.mxu0 0
      %1930 = vmatpush2.bf16.msra.mxu0 0
      %1931 = vmatprep.subr.bf16.mxu0 0
      %1932 = vmatpush2.bf16.msra.mxu0 0
      %1933 = vmatprep.subr.bf16.mxu0 0
      %1934 = vmatpush2.bf16.msra.mxu0 0
      %1935 = vmatprep.subr.bf16.mxu0 0
      %1936 = vmatpush2.bf16.msra.mxu0 0
      %1937 = vmatprep.subr.bf16.mxu0 0
      %1938 = vmatpush2.bf16.msra.mxu0 0
      %1939 = vmatprep.mubr.bf16.mxu0 0
      %1940 = vmatmul.mubr.bf16.gmra.mxu0 %v1802
      %v1941 = vpop.f32.mrf.mxu0
      %v1942 = vadd.f32 %v1857, %v1941
      %v1943 = vpop.f32.mrf.mxu0
      %v1944 = vpop.f32.mrf.mxu0
      %v1945 = vpop.f32.mrf.mxu0
      %1946 = vdwg.mxu0
      %1948 = vrot.lane.b32.xlu0 %v1942, 96
      %v1949 = vpop.permute.xlu0 %1948
      %1951 = vrot.lane.b32.xlu0 %v1942, 64
      %v1952 = vpop.permute.xlu0 %1951
      %1954 = vrot.lane.b32.xlu0 %v1942, 32
      %v1955 = vpop.permute.xlu0 %1954
      %v1957 = vcombine.low %v1942, %v1952
      %v1958 = vcombine.high %v1942, %v1952
      %v1960 = vunpack.c.l.s4 1983009808
      %v1961 = vunpack.c.0.s8 %v1960
      %v1962 = vlaneseq
      %v1963 = vshrl.u32 %v1962, 7
      %v1964 = vsub.s32 %v1961, %v1963
      %v1965 = vrot.slane %v1957, %v1964
      %v1967 = vunpack.c.l.s4 1983009808
      %v1968 = vunpack.c.0.s8 %v1967
      %v1969 = vlaneseq
      %v1970 = vshrl.u32 %v1969, 7
      %v1971 = vsub.s32 %v1968, %v1970
      %v1972 = vrot.slane %v1958, %v1971
      %v1973 = vcombine.low %v1949, %v1955
      %v1974 = vcombine.high %v1949, %v1955
      %v1976 = vunpack.c.l.s4 1983009808
      %v1977 = vunpack.c.0.s8 %v1976
      %v1978 = vlaneseq
      %v1979 = vshrl.u32 %v1978, 7
      %v1980 = vsub.s32 %v1977, %v1979
      %v1981 = vrot.slane %v1973, %v1980
      %v1983 = vunpack.c.l.s4 1983009808
      %v1984 = vunpack.c.0.s8 %v1983
      %v1985 = vlaneseq
      %v1986 = vshrl.u32 %v1985, 7
      %v1987 = vsub.s32 %v1984, %v1986
      %v1988 = vrot.slane %v1974, %v1987
      %v1989 = vcombine.low %v1965, %v1981
      %v1990 = vcombine.high %v1965, %v1981
      %v1992 = vunpack.c.l.s4 1934713408
      %v1993 = vunpack.c.0.s8 %v1992
      %v1994 = vlaneseq
      %v1995 = vshrl.u32 %v1994, 7
      %v1996 = vsub.s32 %v1993, %v1995
      %v1997 = vrot.slane %v1989, %v1996
      %v1999 = vunpack.c.l.s4 1934713408
      %v2000 = vunpack.c.0.s8 %v1999
      %v2001 = vlaneseq
      %v2002 = vshrl.u32 %v2001, 7
      %v2003 = vsub.s32 %v2000, %v2002
      %v2004 = vrot.slane %v1990, %v2003
      %v2005 = vcombine.low %v1972, %v1988
      %v2006 = vcombine.high %v1972, %v1988
      %v2008 = vunpack.c.l.s4 1934713408
      %v2009 = vunpack.c.0.s8 %v2008
      %v2010 = vlaneseq
      %v2011 = vshrl.u32 %v2010, 7
      %v2012 = vsub.s32 %v2009, %v2011
      %v2013 = vrot.slane %v2005, %v2012
      %v2015 = vunpack.c.l.s4 1934713408
      %v2016 = vunpack.c.0.s8 %v2015
      %v2017 = vlaneseq
      %v2018 = vshrl.u32 %v2017, 7
      %v2019 = vsub.s32 %v2016, %v2018
      %v2020 = vrot.slane %v2006, %v2019
      %v2021 = vcombine.high %v1997, 0.0
      %v2022 = vcombine.high %v2004, 0.0
      %v2023 = vcombine.high %v2013, 0.0
      %v2024 = vcombine.high %v2020, 0.0
      %v2025 = vcombine.low %v1997, %v2004
      %v2027 = vunpack.c.l.s4 1983009808
      %v2028 = vunpack.c.0.s8 %v2027
      %v2029 = vlaneseq
      %v2030 = vshrl.u32 %v2029, 7
      %v2031 = vsub.s32 %v2028, %v2030
      %v2032 = vrot.slane %v2025, %v2031
      %v2033 = vcombine.low %v2021, %v2022
      %v2035 = vunpack.c.l.s4 1983009808
      %v2036 = vunpack.c.0.s8 %v2035
      %v2037 = vlaneseq
      %v2038 = vshrl.u32 %v2037, 7
      %v2039 = vsub.s32 %v2036, %v2038
      %v2040 = vrot.slane %v2033, %v2039
      %v2041 = vcombine.low %v2013, %v2020
      %v2043 = vunpack.c.l.s4 1983009808
      %v2044 = vunpack.c.0.s8 %v2043
      %v2045 = vlaneseq
      %v2046 = vshrl.u32 %v2045, 7
      %v2047 = vsub.s32 %v2044, %v2046
      %v2048 = vrot.slane %v2041, %v2047
      %v2049 = vcombine.low %v2023, %v2024
      %v2051 = vunpack.c.l.s4 1983009808
      %v2052 = vunpack.c.0.s8 %v2051
      %v2053 = vlaneseq
      %v2054 = vshrl.u32 %v2053, 7
      %v2055 = vsub.s32 %v2052, %v2054
      %v2056 = vrot.slane %v2049, %v2055
      %v2057 = vcombine.low %v2032, %v2040
      %v2058 = vcombine.high %v2032, %v2040
      %v2060 = vunpack.c.l.s4 1934713408
      %v2061 = vunpack.c.0.s8 %v2060
      %v2062 = vlaneseq
      %v2063 = vshrl.u32 %v2062, 7
      %v2064 = vsub.s32 %v2061, %v2063
      %v2065 = vrot.slane %v2057, %v2064
      %v2067 = vunpack.c.l.s4 1934713408
      %v2068 = vunpack.c.0.s8 %v2067
      %v2069 = vlaneseq
      %v2070 = vshrl.u32 %v2069, 7
      %v2071 = vsub.s32 %v2068, %v2070
      %v2072 = vrot.slane %v2058, %v2071
      %v2073 = vcombine.low %v2048, %v2056
      %v2074 = vcombine.high %v2048, %v2056
      %v2076 = vunpack.c.l.s4 1934713408
      %v2077 = vunpack.c.0.s8 %v2076
      %v2078 = vlaneseq
      %v2079 = vshrl.u32 %v2078, 7
      %v2080 = vsub.s32 %v2077, %v2079
      %v2081 = vrot.slane %v2073, %v2080
      %v2083 = vunpack.c.l.s4 1934713408
      %v2084 = vunpack.c.0.s8 %v2083
      %v2085 = vlaneseq
      %v2086 = vshrl.u32 %v2085, 7
      %v2087 = vsub.s32 %v2084, %v2086
      %v2088 = vrot.slane %v2074, %v2087
      %v2089 = vcombine.low %v2065, %v2081
      %v2090 = vcombine.high %v2065, %v2081
      %v2091 = vcombine.low %v2072, %v2088
      %v2092 = vcombine.high %v2072, %v2088
      %v2093 = vpack.c.bf16 %v2089, %v2089
      %v2094 = vpack.c.bf16 %v2090, %v2090
      %v2095 = vpack.c.bf16 %v2091, %v2091
      %v2096 = vpack.c.bf16 %v2092, %v2092
      %v2099 = vunpack.c.l.b16 %v1803
      %v2100 = vunpack.c.l.b16 %v1804
      %v2101 = vpack.c.b16 %v2100, %v2099
      %v2103 = vsel %vm1105, %v2093, 0
      %v2106 = vsel %vm1105, %v2101, 0
      %2108 = vmatprep.subr.bf16.mxu0 0
      %2109 = vmatpush1.bf16.xpose.msra.mxu0 0
      %2110 = vmatprep.subr.bf16.mxu0 0
      %2111 = vmatpush1.bf16.xpose.msra.mxu0 0
      %2112 = vmatprep.subr.bf16.mxu0 0
      %2113 = vmatpush1.bf16.xpose.msra.mxu0 0
      %2114 = vmatprep.subr.bf16.mxu0 0
      %2115 = vmatpush1.bf16.xpose.msra.mxu0 0
      %2116 = vmatprep.subr.bf16.mxu0 0
      %2117 = vmatpush1.bf16.xpose.msra.mxu0 0
      %2118 = vmatprep.subr.bf16.mxu0 0
      %2119 = vmatpush1.bf16.xpose.msra.mxu0 0
      %2120 = vmatprep.subr.bf16.mxu0 0
      %2121 = vmatpush1.bf16.xpose.msra.mxu0 0
      %2122 = vmatprep.subr.bf16.mxu0 0
      %2123 = vmatpush1.bf16.xpose.msra.mxu0 %v2106
      %2124 = vmatprep.subr.bf16.mxu0 0
      %2125 = vmatpush2.bf16.xpose.msra.mxu0 0
      %2126 = vmatprep.subr.bf16.mxu0 0
      %2127 = vmatpush2.bf16.xpose.msra.mxu0 0
      %2128 = vmatprep.subr.bf16.mxu0 0
      %2129 = vmatpush2.bf16.xpose.msra.mxu0 0
      %2130 = vmatprep.subr.bf16.mxu0 0
      %2131 = vmatpush2.bf16.xpose.msra.mxu0 0
      %2132 = vmatprep.subr.bf16.mxu0 0
      %2133 = vmatpush2.bf16.xpose.msra.mxu0 0
      %2134 = vmatprep.subr.bf16.mxu0 0
      %2135 = vmatpush2.bf16.xpose.msra.mxu0 0
      %2136 = vmatprep.subr.bf16.mxu0 0
      %2137 = vmatpush2.bf16.xpose.msra.mxu0 0
      %2138 = vmatprep.subr.bf16.mxu0 0
      %2139 = vmatpush2.bf16.xpose.msra.mxu0 0
      %2140 = vmatprep.mubr.bf16.mxu0 0
      %2141 = vmatmul.mubr.bf16.gmra.mxu0 %v2103
      %v2142 = vpop.f32.mrf.mxu0
      %v2143 = vadd.f32 0.0, %v2142
      %v2144 = vpop.f32.mrf.mxu0
      %v2145 = vpop.f32.mrf.mxu0
      %v2146 = vpop.f32.mrf.mxu0
      %2147 = vdwg.mxu0
      %v2150 = vunpack.c.l.b16 %v1805
      %v2151 = vunpack.c.l.b16 %v1806
      %v2152 = vpack.c.b16 %v2151, %v2150
      %v2154 = vsel %vm1105, %v2094, 0
      %v2157 = vsel %vm1105, %v2152, 0
      %2159 = vmatprep.subr.bf16.mxu0 0
      %2160 = vmatpush1.bf16.xpose.msra.mxu0 0
      %2161 = vmatprep.subr.bf16.mxu0 0
      %2162 = vmatpush1.bf16.xpose.msra.mxu0 0
      %2163 = vmatprep.subr.bf16.mxu0 0
      %2164 = vmatpush1.bf16.xpose.msra.mxu0 0
      %2165 = vmatprep.subr.bf16.mxu0 0
      %2166 = vmatpush1.bf16.xpose.msra.mxu0 0
      %2167 = vmatprep.subr.bf16.mxu0 0
      %2168 = vmatpush1.bf16.xpose.msra.mxu0 0
      %2169 = vmatprep.subr.bf16.mxu0 0
      %2170 = vmatpush1.bf16.xpose.msra.mxu0 0
      %2171 = vmatprep.subr.bf16.mxu0 0
      %2172 = vmatpush1.bf16.xpose.msra.mxu0 0
      %2173 = vmatprep.subr.bf16.mxu0 0
      %2174 = vmatpush1.bf16.xpose.msra.mxu0 %v2157
      %2175 = vmatprep.subr.bf16.mxu0 0
      %2176 = vmatpush2.bf16.xpose.msra.mxu0 0
      %2177 = vmatprep.subr.bf16.mxu0 0
      %2178 = vmatpush2.bf16.xpose.msra.mxu0 0
      %2179 = vmatprep.subr.bf16.mxu0 0
      %2180 = vmatpush2.bf16.xpose.msra.mxu0 0
      %2181 = vmatprep.subr.bf16.mxu0 0
      %2182 = vmatpush2.bf16.xpose.msra.mxu0 0
      %2183 = vmatprep.subr.bf16.mxu0 0
      %2184 = vmatpush2.bf16.xpose.msra.mxu0 0
      %2185 = vmatprep.subr.bf16.mxu0 0
      %2186 = vmatpush2.bf16.xpose.msra.mxu0 0
      %2187 = vmatprep.subr.bf16.mxu0 0
      %2188 = vmatpush2.bf16.xpose.msra.mxu0 0
      %2189 = vmatprep.subr.bf16.mxu0 0
      %2190 = vmatpush2.bf16.xpose.msra.mxu0 0
      %2191 = vmatprep.mubr.bf16.mxu0 0
      %2192 = vmatmul.mubr.bf16.gmra.mxu0 %v2154
      %v2193 = vpop.f32.mrf.mxu0
      %v2194 = vadd.f32 0.0, %v2193
      %v2195 = vpop.f32.mrf.mxu0
      %v2196 = vpop.f32.mrf.mxu0
      %v2197 = vpop.f32.mrf.mxu0
      %2198 = vdwg.mxu0
      %v2201 = vunpack.c.l.b16 %v1807
      %v2202 = vunpack.c.l.b16 %v1808
      %v2203 = vpack.c.b16 %v2202, %v2201
      %v2205 = vsel %vm1105, %v2095, 0
      %v2208 = vsel %vm1105, %v2203, 0
      %2210 = vmatprep.subr.bf16.mxu0 0
      %2211 = vmatpush1.bf16.xpose.msra.mxu0 0
      %2212 = vmatprep.subr.bf16.mxu0 0
      %2213 = vmatpush1.bf16.xpose.msra.mxu0 0
      %2214 = vmatprep.subr.bf16.mxu0 0
      %2215 = vmatpush1.bf16.xpose.msra.mxu0 0
      %2216 = vmatprep.subr.bf16.mxu0 0
      %2217 = vmatpush1.bf16.xpose.msra.mxu0 0
      %2218 = vmatprep.subr.bf16.mxu0 0
      %2219 = vmatpush1.bf16.xpose.msra.mxu0 0
      %2220 = vmatprep.subr.bf16.mxu0 0
      %2221 = vmatpush1.bf16.xpose.msra.mxu0 0
      %2222 = vmatprep.subr.bf16.mxu0 0
      %2223 = vmatpush1.bf16.xpose.msra.mxu0 0
      %2224 = vmatprep.subr.bf16.mxu0 0
      %2225 = vmatpush1.bf16.xpose.msra.mxu0 %v2208
      %2226 = vmatprep.subr.bf16.mxu0 0
      %2227 = vmatpush2.bf16.xpose.msra.mxu0 0
      %2228 = vmatprep.subr.bf16.mxu0 0
      %2229 = vmatpush2.bf16.xpose.msra.mxu0 0
      %2230 = vmatprep.subr.bf16.mxu0 0
      %2231 = vmatpush2.bf16.xpose.msra.mxu0 0
      %2232 = vmatprep.subr.bf16.mxu0 0
      %2233 = vmatpush2.bf16.xpose.msra.mxu0 0
      %2234 = vmatprep.subr.bf16.mxu0 0
      %2235 = vmatpush2.bf16.xpose.msra.mxu0 0
      %2236 = vmatprep.subr.bf16.mxu0 0
      %2237 = vmatpush2.bf16.xpose.msra.mxu0 0
      %2238 = vmatprep.subr.bf16.mxu0 0
      %2239 = vmatpush2.bf16.xpose.msra.mxu0 0
      %2240 = vmatprep.subr.bf16.mxu0 0
      %2241 = vmatpush2.bf16.xpose.msra.mxu0 0
      %2242 = vmatprep.mubr.bf16.mxu0 0
      %2243 = vmatmul.mubr.bf16.gmra.mxu0 %v2205
      %v2244 = vpop.f32.mrf.mxu0
      %v2245 = vadd.f32 0.0, %v2244
      %v2246 = vpop.f32.mrf.mxu0
      %v2247 = vpop.f32.mrf.mxu0
      %v2248 = vpop.f32.mrf.mxu0
      %2249 = vdwg.mxu0
      %v2252 = vunpack.c.l.b16 %v1809
      %v2253 = vunpack.c.l.b16 %v1810
      %v2254 = vpack.c.b16 %v2253, %v2252
      %v2256 = vsel %vm1105, %v2096, 0
      %v2259 = vsel %vm1105, %v2254, 0
      %2261 = vmatprep.subr.bf16.mxu0 0
      %2262 = vmatpush1.bf16.xpose.msra.mxu0 0
      %2263 = vmatprep.subr.bf16.mxu0 0
      %2264 = vmatpush1.bf16.xpose.msra.mxu0 0
      %2265 = vmatprep.subr.bf16.mxu0 0
      %2266 = vmatpush1.bf16.xpose.msra.mxu0 0
      %2267 = vmatprep.subr.bf16.mxu0 0
      %2268 = vmatpush1.bf16.xpose.msra.mxu0 0
      %2269 = vmatprep.subr.bf16.mxu0 0
      %2270 = vmatpush1.bf16.xpose.msra.mxu0 0
      %2271 = vmatprep.subr.bf16.mxu0 0
      %2272 = vmatpush1.bf16.xpose.msra.mxu0 0
      %2273 = vmatprep.subr.bf16.mxu0 0
      %2274 = vmatpush1.bf16.xpose.msra.mxu0 0
      %2275 = vmatprep.subr.bf16.mxu0 0
      %2276 = vmatpush1.bf16.xpose.msra.mxu0 %v2259
      %2277 = vmatprep.subr.bf16.mxu0 0
      %2278 = vmatpush2.bf16.xpose.msra.mxu0 0
      %2279 = vmatprep.subr.bf16.mxu0 0
      %2280 = vmatpush2.bf16.xpose.msra.mxu0 0
      %2281 = vmatprep.subr.bf16.mxu0 0
      %2282 = vmatpush2.bf16.xpose.msra.mxu0 0
      %2283 = vmatprep.subr.bf16.mxu0 0
      %2284 = vmatpush2.bf16.xpose.msra.mxu0 0
      %2285 = vmatprep.subr.bf16.mxu0 0
      %2286 = vmatpush2.bf16.xpose.msra.mxu0 0
      %2287 = vmatprep.subr.bf16.mxu0 0
      %2288 = vmatpush2.bf16.xpose.msra.mxu0 0
      %2289 = vmatprep.subr.bf16.mxu0 0
      %2290 = vmatpush2.bf16.xpose.msra.mxu0 0
      %2291 = vmatprep.subr.bf16.mxu0 0
      %2292 = vmatpush2.bf16.xpose.msra.mxu0 0
      %2293 = vmatprep.mubr.bf16.mxu0 0
      %2294 = vmatmul.mubr.bf16.gmra.mxu0 %v2256
      %v2295 = vpop.f32.mrf.mxu0
      %v2296 = vadd.f32 0.0, %v2295
      %v2297 = vpop.f32.mrf.mxu0
      %v2298 = vpop.f32.mrf.mxu0
      %v2299 = vpop.f32.mrf.mxu0
      %2300 = vdwg.mxu0
      %vm2301 = vcmask 130048
      %v2302 = vsel %vm2301, %v2143, -inf
      %2303 = vmax.xlane.f32.xlu0 %v2302
      %v2304 = vpop.xlane.xlu0 %2303
      %v2305 = vsel %vm2301, %v2194, -inf
      %2306 = vmax.xlane.f32.xlu0 %v2305
      %v2307 = vpop.xlane.xlu0 %2306
      %v2308 = vsel %vm2301, %v2245, -inf
      %2309 = vmax.xlane.f32.xlu0 %v2308
      %v2310 = vpop.xlane.xlu0 %2309
      %v2311 = vsel %vm2301, %v2296, -inf
      %2312 = vmax.xlane.f32.xlu0 %v2311
      %v2313 = vpop.xlane.xlu0 %2312
      %v2314 = vsub.f32 %v2143, %v2304
      %v2315 = vsub.f32 %v2194, %v2307
      %v2316 = vsub.f32 %v2245, %v2310
      %v2317 = vsub.f32 %v2296, %v2313
      %v2318 = vmul.f32 %v2314, 1.442695
      %v2319 = vpow.pop %v2318
      %v2320 = vmul.f32 %v2315, 1.442695
      %v2321 = vpow.pop %v2320
      %v2322 = vmul.f32 %v2316, 1.442695
      %v2323 = vpow.pop %v2322
      %v2324 = vmul.f32 %v2317, 1.442695
      %v2325 = vpow.pop %v2324
      %v2326 = vsel %vm2301, %v2319, 0.0
      %2327 = vadd.xlane.f32.xlu0 %v2326
      %v2328 = vpop.xlane.xlu0 %2327
      %v2329 = vsel %vm2301, %v2321, 0.0
      %2330 = vadd.xlane.f32.xlu0 %v2329
      %v2331 = vpop.xlane.xlu0 %2330
      %v2332 = vsel %vm2301, %v2323, 0.0
      %2333 = vadd.xlane.f32.xlu0 %v2332
      %v2334 = vpop.xlane.xlu0 %2333
      %v2335 = vsel %vm2301, %v2325, 0.0
      %2336 = vadd.xlane.f32.xlu0 %v2335
      %v2337 = vpop.xlane.xlu0 %2336
      %v2338 = vpack.c.bf16 %v2319, %v2319
      %v2339 = vpack.c.bf16 %v2321, %v2321
      %v2340 = vpack.c.bf16 %v2323, %v2323
      %v2341 = vpack.c.bf16 %v2325, %v2325
      %v2344 = vunpack.c.l.b16 %v1811
      %v2345 = vunpack.c.l.b16 %v1812
      %v2346 = vpack.c.b16 %v2345, %v2344
      %v2349 = vsel %vm2301, %v2338, 0
      %2351 = vmatprep.subr.bf16.mxu0 0
      %2352 = vmatpush1.bf16.msra.mxu0 0
      %2353 = vmatprep.subr.bf16.mxu0 0
      %2354 = vmatpush1.bf16.msra.mxu0 0
      %2355 = vmatprep.subr.bf16.mxu0 0
      %2356 = vmatpush1.bf16.msra.mxu0 0
      %2357 = vmatprep.subr.bf16.mxu0 0
      %2358 = vmatpush1.bf16.msra.mxu0 0
      %2359 = vmatprep.subr.bf16.mxu0 0
      %2360 = vmatpush1.bf16.msra.mxu0 0
      %2361 = vmatprep.subr.bf16.mxu0 0
      %2362 = vmatpush1.bf16.msra.mxu0 0
      %2363 = vmatprep.subr.bf16.mxu0 0
      %2364 = vmatpush1.bf16.msra.mxu0 0
      %2365 = vmatprep.subr.bf16.mxu0 0
      %2366 = vmatpush1.bf16.msra.mxu0 %v2346
      %2367 = vmatprep.subr.bf16.mxu0 0
      %2368 = vmatpush2.bf16.msra.mxu0 0
      %2369 = vmatprep.subr.bf16.mxu0 0
      %2370 = vmatpush2.bf16.msra.mxu0 0
      %2371 = vmatprep.subr.bf16.mxu0 0
      %2372 = vmatpush2.bf16.msra.mxu0 0
      %2373 = vmatprep.subr.bf16.mxu0 0
      %2374 = vmatpush2.bf16.msra.mxu0 0
      %2375 = vmatprep.subr.bf16.mxu0 0
      %2376 = vmatpush2.bf16.msra.mxu0 0
      %2377 = vmatprep.subr.bf16.mxu0 0
      %2378 = vmatpush2.bf16.msra.mxu0 0
      %2379 = vmatprep.subr.bf16.mxu0 0
      %2380 = vmatpush2.bf16.msra.mxu0 0
      %2381 = vmatprep.subr.bf16.mxu0 0
      %2382 = vmatpush2.bf16.msra.mxu0 0
      %2383 = vmatprep.mubr.bf16.mxu0 0
      %2384 = vmatmul.mubr.bf16.gmra.mxu0 %v2349
      %v2385 = vpop.f32.mrf.mxu0
      %v2386 = vadd.f32 0.0, %v2385
      %v2387 = vpop.f32.mrf.mxu0
      %v2388 = vpop.f32.mrf.mxu0
      %v2389 = vpop.f32.mrf.mxu0
      %2390 = vdwg.mxu0
      %v2393 = vunpack.c.l.b16 %v1813
      %v2394 = vunpack.c.l.b16 %v1814
      %v2395 = vpack.c.b16 %v2394, %v2393
      %v2398 = vsel %vm2301, %v2339, 0
      %2400 = vmatprep.subr.bf16.mxu0 0
      %2401 = vmatpush1.bf16.msra.mxu0 0
      %2402 = vmatprep.subr.bf16.mxu0 0
      %2403 = vmatpush1.bf16.msra.mxu0 0
      %2404 = vmatprep.subr.bf16.mxu0 0
      %2405 = vmatpush1.bf16.msra.mxu0 0
      %2406 = vmatprep.subr.bf16.mxu0 0
      %2407 = vmatpush1.bf16.msra.mxu0 0
      %2408 = vmatprep.subr.bf16.mxu0 0
      %2409 = vmatpush1.bf16.msra.mxu0 0
      %2410 = vmatprep.subr.bf16.mxu0 0
      %2411 = vmatpush1.bf16.msra.mxu0 0
      %2412 = vmatprep.subr.bf16.mxu0 0
      %2413 = vmatpush1.bf16.msra.mxu0 0
      %2414 = vmatprep.subr.bf16.mxu0 0
      %2415 = vmatpush1.bf16.msra.mxu0 %v2395
      %2416 = vmatprep.subr.bf16.mxu0 0
      %2417 = vmatpush2.bf16.msra.mxu0 0
      %2418 = vmatprep.subr.bf16.mxu0 0
      %2419 = vmatpush2.bf16.msra.mxu0 0
      %2420 = vmatprep.subr.bf16.mxu0 0
      %2421 = vmatpush2.bf16.msra.mxu0 0
      %2422 = vmatprep.subr.bf16.mxu0 0
      %2423 = vmatpush2.bf16.msra.mxu0 0
      %2424 = vmatprep.subr.bf16.mxu0 0
      %2425 = vmatpush2.bf16.msra.mxu0 0
      %2426 = vmatprep.subr.bf16.mxu0 0
      %2427 = vmatpush2.bf16.msra.mxu0 0
      %2428 = vmatprep.subr.bf16.mxu0 0
      %2429 = vmatpush2.bf16.msra.mxu0 0
      %2430 = vmatprep.subr.bf16.mxu0 0
      %2431 = vmatpush2.bf16.msra.mxu0 0
      %2432 = vmatprep.mubr.bf16.mxu0 0
      %2433 = vmatmul.mubr.bf16.gmra.mxu0 %v2398
      %v2434 = vpop.f32.mrf.mxu0
      %v2435 = vadd.f32 0.0, %v2434
      %v2436 = vpop.f32.mrf.mxu0
      %v2437 = vpop.f32.mrf.mxu0
      %v2438 = vpop.f32.mrf.mxu0
      %2439 = vdwg.mxu0
      %v2442 = vunpack.c.l.b16 %v1815
      %v2443 = vunpack.c.l.b16 %v1816
      %v2444 = vpack.c.b16 %v2443, %v2442
      %v2447 = vsel %vm2301, %v2340, 0
      %2449 = vmatprep.subr.bf16.mxu0 0
      %2450 = vmatpush1.bf16.msra.mxu0 0
      %2451 = vmatprep.subr.bf16.mxu0 0
      %2452 = vmatpush1.bf16.msra.mxu0 0
      %2453 = vmatprep.subr.bf16.mxu0 0
      %2454 = vmatpush1.bf16.msra.mxu0 0
      %2455 = vmatprep.subr.bf16.mxu0 0
      %2456 = vmatpush1.bf16.msra.mxu0 0
      %2457 = vmatprep.subr.bf16.mxu0 0
      %2458 = vmatpush1.bf16.msra.mxu0 0
      %2459 = vmatprep.subr.bf16.mxu0 0
      %2460 = vmatpush1.bf16.msra.mxu0 0
      %2461 = vmatprep.subr.bf16.mxu0 0
      %2462 = vmatpush1.bf16.msra.mxu0 0
      %2463 = vmatprep.subr.bf16.mxu0 0
      %2464 = vmatpush1.bf16.msra.mxu0 %v2444
      %2465 = vmatprep.subr.bf16.mxu0 0
      %2466 = vmatpush2.bf16.msra.mxu0 0
      %2467 = vmatprep.subr.bf16.mxu0 0
      %2468 = vmatpush2.bf16.msra.mxu0 0
      %2469 = vmatprep.subr.bf16.mxu0 0
      %2470 = vmatpush2.bf16.msra.mxu0 0
      %2471 = vmatprep.subr.bf16.mxu0 0
      %2472 = vmatpush2.bf16.msra.mxu0 0
      %2473 = vmatprep.subr.bf16.mxu0 0
      %2474 = vmatpush2.bf16.msra.mxu0 0
      %2475 = vmatprep.subr.bf16.mxu0 0
      %2476 = vmatpush2.bf16.msra.mxu0 0
      %2477 = vmatprep.subr.bf16.mxu0 0
      %2478 = vmatpush2.bf16.msra.mxu0 0
      %2479 = vmatprep.subr.bf16.mxu0 0
      %2480 = vmatpush2.bf16.msra.mxu0 0
      %2481 = vmatprep.mubr.bf16.mxu0 0
      %2482 = vmatmul.mubr.bf16.gmra.mxu0 %v2447
      %v2483 = vpop.f32.mrf.mxu0
      %v2484 = vadd.f32 0.0, %v2483
      %v2485 = vpop.f32.mrf.mxu0
      %v2486 = vpop.f32.mrf.mxu0
      %v2487 = vpop.f32.mrf.mxu0
      %2488 = vdwg.mxu0
      %v2491 = vunpack.c.l.b16 %v1817
      %v2492 = vunpack.c.l.b16 %v1818
      %v2493 = vpack.c.b16 %v2492, %v2491
      %v2496 = vsel %vm2301, %v2341, 0
      %2498 = vmatprep.subr.bf16.mxu0 0
      %2499 = vmatpush1.bf16.msra.mxu0 0
      %2500 = vmatprep.subr.bf16.mxu0 0
      %2501 = vmatpush1.bf16.msra.mxu0 0
      %2502 = vmatprep.subr.bf16.mxu0 0
      %2503 = vmatpush1.bf16.msra.mxu0 0
      %2504 = vmatprep.subr.bf16.mxu0 0
      %2505 = vmatpush1.bf16.msra.mxu0 0
      %2506 = vmatprep.subr.bf16.mxu0 0
      %2507 = vmatpush1.bf16.msra.mxu0 0
      %2508 = vmatprep.subr.bf16.mxu0 0
      %2509 = vmatpush1.bf16.msra.mxu0 0
      %2510 = vmatprep.subr.bf16.mxu0 0
      %2511 = vmatpush1.bf16.msra.mxu0 0
      %2512 = vmatprep.subr.bf16.mxu0 0
      %2513 = vmatpush1.bf16.msra.mxu0 %v2493
      %2514 = vmatprep.subr.bf16.mxu0 0
      %2515 = vmatpush2.bf16.msra.mxu0 0
      %2516 = vmatprep.subr.bf16.mxu0 0
      %2517 = vmatpush2.bf16.msra.mxu0 0
      %2518 = vmatprep.subr.bf16.mxu0 0
      %2519 = vmatpush2.bf16.msra.mxu0 0
      %2520 = vmatprep.subr.bf16.mxu0 0
      %2521 = vmatpush2.bf16.msra.mxu0 0
      %2522 = vmatprep.subr.bf16.mxu0 0
      %2523 = vmatpush2.bf16.msra.mxu0 0
      %2524 = vmatprep.subr.bf16.mxu0 0
      %2525 = vmatpush2.bf16.msra.mxu0 0
      %2526 = vmatprep.subr.bf16.mxu0 0
      %2527 = vmatpush2.bf16.msra.mxu0 0
      %2528 = vmatprep.subr.bf16.mxu0 0
      %2529 = vmatpush2.bf16.msra.mxu0 0
      %2530 = vmatprep.mubr.bf16.mxu0 0
      %2531 = vmatmul.mubr.bf16.gmra.mxu0 %v2496
      %v2532 = vpop.f32.mrf.mxu0
      %v2533 = vadd.f32 0.0, %v2532
      %v2534 = vpop.f32.mrf.mxu0
      %v2535 = vpop.f32.mrf.mxu0
      %v2536 = vpop.f32.mrf.mxu0
      %2537 = vdwg.mxu0
      %v2538 = vrcp.pop %v2328
      %v2539 = vrcp.pop %v2331
      %v2540 = vrcp.pop %v2334
      %v2541 = vrcp.pop %v2337
      %v2542 = vmul.f32 %v2386, %v2538
      %v2543 = vmul.f32 %v2435, %v2539
      %v2544 = vmul.f32 %v2484, %v2540
      %v2545 = vmul.f32 %v2533, %v2541
      %v2546 = vcombine.low %v2542, %v2544
      %v2547 = vcombine.high %v2542, %v2544
      %v2549 = vunpack.c.l.s4 1983009808
      %v2550 = vunpack.c.0.s8 %v2549
      %v2551 = vlaneseq
      %v2552 = vshrl.u32 %v2551, 7
      %v2553 = vsub.s32 %v2550, %v2552
      %v2554 = vrot.slane %v2546, %v2553
      %v2556 = vunpack.c.l.s4 1983009808
      %v2557 = vunpack.c.0.s8 %v2556
      %v2558 = vlaneseq
      %v2559 = vshrl.u32 %v2558, 7
      %v2560 = vsub.s32 %v2557, %v2559
      %v2561 = vrot.slane %v2547, %v2560
      %v2562 = vcombine.low %v2543, %v2545
      %v2563 = vcombine.high %v2543, %v2545
      %v2565 = vunpack.c.l.s4 1983009808
      %v2566 = vunpack.c.0.s8 %v2565
      %v2567 = vlaneseq
      %v2568 = vshrl.u32 %v2567, 7
      %v2569 = vsub.s32 %v2566, %v2568
      %v2570 = vrot.slane %v2562, %v2569
      %v2572 = vunpack.c.l.s4 1983009808
      %v2573 = vunpack.c.0.s8 %v2572
      %v2574 = vlaneseq
      %v2575 = vshrl.u32 %v2574, 7
      %v2576 = vsub.s32 %v2573, %v2575
      %v2577 = vrot.slane %v2563, %v2576
      %v2578 = vcombine.low %v2554, %v2570
      %v2579 = vcombine.high %v2554, %v2570
      %v2581 = vunpack.c.l.s4 1934713408
      %v2582 = vunpack.c.0.s8 %v2581
      %v2583 = vlaneseq
      %v2584 = vshrl.u32 %v2583, 7
      %v2585 = vsub.s32 %v2582, %v2584
      %v2586 = vrot.slane %v2578, %v2585
      %v2588 = vunpack.c.l.s4 1934713408
      %v2589 = vunpack.c.0.s8 %v2588
      %v2590 = vlaneseq
      %v2591 = vshrl.u32 %v2590, 7
      %v2592 = vsub.s32 %v2589, %v2591
      %v2593 = vrot.slane %v2579, %v2592
      %v2594 = vcombine.low %v2561, %v2577
      %v2595 = vcombine.high %v2561, %v2577
      %v2597 = vunpack.c.l.s4 1934713408
      %v2598 = vunpack.c.0.s8 %v2597
      %v2599 = vlaneseq
      %v2600 = vshrl.u32 %v2599, 7
      %v2601 = vsub.s32 %v2598, %v2600
      %v2602 = vrot.slane %v2594, %v2601
      %v2604 = vunpack.c.l.s4 1934713408
      %v2605 = vunpack.c.0.s8 %v2604
      %v2606 = vlaneseq
      %v2607 = vshrl.u32 %v2606, 7
      %v2608 = vsub.s32 %v2605, %v2607
      %v2609 = vrot.slane %v2595, %v2608
      %v2610 = vcombine.high %v2586, 0.0
      %v2611 = vcombine.high %v2593, 0.0
      %v2612 = vcombine.high %v2602, 0.0
      %v2613 = vcombine.high %v2609, 0.0
      %v2614 = vcombine.low %v2586, %v2593
      %v2616 = vunpack.c.l.s4 1983009808
      %v2617 = vunpack.c.0.s8 %v2616
      %v2618 = vlaneseq
      %v2619 = vshrl.u32 %v2618, 7
      %v2620 = vsub.s32 %v2617, %v2619
      %v2621 = vrot.slane %v2614, %v2620
      %v2622 = vcombine.low %v2610, %v2611
      %v2624 = vunpack.c.l.s4 1983009808
      %v2625 = vunpack.c.0.s8 %v2624
      %v2626 = vlaneseq
      %v2627 = vshrl.u32 %v2626, 7
      %v2628 = vsub.s32 %v2625, %v2627
      %v2629 = vrot.slane %v2622, %v2628
      %v2630 = vcombine.low %v2602, %v2609
      %v2632 = vunpack.c.l.s4 1983009808
      %v2633 = vunpack.c.0.s8 %v2632
      %v2634 = vlaneseq
      %v2635 = vshrl.u32 %v2634, 7
      %v2636 = vsub.s32 %v2633, %v2635
      %v2637 = vrot.slane %v2630, %v2636
      %v2638 = vcombine.low %v2612, %v2613
      %v2640 = vunpack.c.l.s4 1983009808
      %v2641 = vunpack.c.0.s8 %v2640
      %v2642 = vlaneseq
      %v2643 = vshrl.u32 %v2642, 7
      %v2644 = vsub.s32 %v2641, %v2643
      %v2645 = vrot.slane %v2638, %v2644
      %v2646 = vcombine.low %v2621, %v2629
      %v2647 = vcombine.high %v2621, %v2629
      %v2649 = vunpack.c.l.s4 1934713408
      %v2650 = vunpack.c.0.s8 %v2649
      %v2651 = vlaneseq
      %v2652 = vshrl.u32 %v2651, 7
      %v2653 = vsub.s32 %v2650, %v2652
      %v2654 = vrot.slane %v2646, %v2653
      %v2656 = vunpack.c.l.s4 1934713408
      %v2657 = vunpack.c.0.s8 %v2656
      %v2658 = vlaneseq
      %v2659 = vshrl.u32 %v2658, 7
      %v2660 = vsub.s32 %v2657, %v2659
      %v2661 = vrot.slane %v2647, %v2660
      %v2662 = vcombine.low %v2637, %v2645
      %v2663 = vcombine.high %v2637, %v2645
      %v2665 = vunpack.c.l.s4 1934713408
      %v2666 = vunpack.c.0.s8 %v2665
      %v2667 = vlaneseq
      %v2668 = vshrl.u32 %v2667, 7
      %v2669 = vsub.s32 %v2666, %v2668
      %v2670 = vrot.slane %v2662, %v2669
      %v2672 = vunpack.c.l.s4 1934713408
      %v2673 = vunpack.c.0.s8 %v2672
      %v2674 = vlaneseq
      %v2675 = vshrl.u32 %v2674, 7
      %v2676 = vsub.s32 %v2673, %v2675
      %v2677 = vrot.slane %v2663, %v2676
      %v2678 = vcombine.low %v2654, %v2670
      %v2679 = vcombine.high %v2654, %v2670
      %v2680 = vcombine.low %v2661, %v2677
      %v2681 = vcombine.high %v2661, %v2677
      %2683 = vrot.lane.b32.xlu0 %v2679, 32
      %v2684 = vpop.permute.xlu0 %2683
      %2687 = vrot.lane.b32.xlu0 %v2680, 64
      %v2688 = vpop.permute.xlu0 %2687
      %2691 = vrot.lane.b32.xlu0 %v2681, 96
      %v2692 = vpop.permute.xlu0 %2691
      %v2694 = vsel %vm1105, %v2678, %v2684
      %v2695 = vsel %vm1673, %v2694, %v2688
      %v2696 = vsel %vm1675, %v2695, %v2692
      %v2697 = vpack.c.bf16 %v2696, %v2696
      %v2699 = vlaneseq
      %v2700 = vshrl.u32 %v2699, 7
      %v2701 = vsub.s32 0, %v2700
      %v2702 = vrot.slane %v1852, %v2701
      %v2720 = vunpack.c.l.b16 %v1836
      %v2721 = vunpack.c.l.b16 %v1837
      %v2722 = vunpack.c.l.b16 %v1838
      %v2723 = vunpack.c.l.b16 %v1839
      %v2724 = vunpack.c.l.b16 %v1840
      %v2725 = vunpack.c.l.b16 %v1841
      %v2726 = vunpack.c.l.b16 %v1842
      %v2727 = vunpack.c.l.b16 %v1843
      %v2728 = vunpack.c.l.b16 %v1844
      %v2729 = vunpack.c.l.b16 %v1845
      %v2730 = vunpack.c.l.b16 %v1846
      %v2731 = vunpack.c.l.b16 %v1847
      %v2732 = vunpack.c.l.b16 %v1848
      %v2733 = vunpack.c.l.b16 %v1849
      %v2734 = vunpack.c.l.b16 %v1850
      %v2735 = vunpack.c.l.b16 %v1851
      %v2736 = vpack.c.b16 %v2721, %v2720
      %v2737 = vpack.c.b16 %v2723, %v2722
      %v2738 = vpack.c.b16 %v2725, %v2724
      %v2739 = vpack.c.b16 %v2727, %v2726
      %v2740 = vpack.c.b16 %v2729, %v2728
      %v2741 = vpack.c.b16 %v2731, %v2730
      %v2742 = vpack.c.b16 %v2733, %v2732
      %v2743 = vpack.c.b16 %v2735, %v2734
      %2752 = vmatprep.subr.bf16.mxu0 0
      %2753 = vmatpush1.bf16.msra.mxu0 %v2743
      %2754 = vmatprep.subr.bf16.mxu0 0
      %2755 = vmatpush1.bf16.msra.mxu0 %v2742
      %2756 = vmatprep.subr.bf16.mxu0 0
      %2757 = vmatpush1.bf16.msra.mxu0 %v2741
      %2758 = vmatprep.subr.bf16.mxu0 0
      %2759 = vmatpush1.bf16.msra.mxu0 %v2740
      %2760 = vmatprep.subr.bf16.mxu0 0
      %2761 = vmatpush1.bf16.msra.mxu0 %v2739
      %2762 = vmatprep.subr.bf16.mxu0 0
      %2763 = vmatpush1.bf16.msra.mxu0 %v2738
      %2764 = vmatprep.subr.bf16.mxu0 0
      %2765 = vmatpush1.bf16.msra.mxu0 %v2737
      %2766 = vmatprep.subr.bf16.mxu0 0
      %2767 = vmatpush1.bf16.msra.mxu0 %v2736
      %2768 = vmatprep.subr.bf16.mxu0 0
      %2769 = vmatpush2.bf16.msra.mxu0 0
      %2770 = vmatprep.subr.bf16.mxu0 0
      %2771 = vmatpush2.bf16.msra.mxu0 0
      %2772 = vmatprep.subr.bf16.mxu0 0
      %2773 = vmatpush2.bf16.msra.mxu0 0
      %2774 = vmatprep.subr.bf16.mxu0 0
      %2775 = vmatpush2.bf16.msra.mxu0 0
      %2776 = vmatprep.subr.bf16.mxu0 0
      %2777 = vmatpush2.bf16.msra.mxu0 0
      %2778 = vmatprep.subr.bf16.mxu0 0
      %2779 = vmatpush2.bf16.msra.mxu0 0
      %2780 = vmatprep.subr.bf16.mxu0 0
      %2781 = vmatpush2.bf16.msra.mxu0 0
      %2782 = vmatprep.subr.bf16.mxu0 0
      %2783 = vmatpush2.bf16.msra.mxu0 0
      %2784 = vmatprep.mubr.bf16.mxu0 0
      %2785 = vmatmul.mubr.bf16.gmra.mxu0 %v2697
      %v2786 = vpop.f32.mrf.mxu0
      %v2787 = vadd.f32 %v2702, %v2786
      %v2788 = vpop.f32.mrf.mxu0
      %v2789 = vpop.f32.mrf.mxu0
      %v2790 = vpop.f32.mrf.mxu0
      %2791 = vdwg.mxu0
      %v2792 = vadd.f32 %v1801, %v2787
      %v2793 = vld [vmem:[%s19] sm:$0x1]
      %v2794 = vld [vmem:[%s20] sm:$0x1]
      %2795 = vadd.xlane.f32.xlu0 %v2792
      %v2796 = vpop.xlane.xlu0 %2795
      %v2797 = vmul.f32 %v2796, %v1778
      %v2798 = vsub.f32 %v2792, %v2797
      %v2799 = vmul.f32 %v2798, %v2798
      %2800 = vadd.xlane.f32.xlu0 %v2799
      %v2801 = vpop.xlane.xlu0 %2800
      %v2802 = vmul.f32 %v2801, %v1778
      %v2803 = vadd.f32 %v2802, 1e-05
      %v2804 = vrsqrt.pop %v2803
      %v2805 = vmul.f32 %v2798, %v2804
      %v2807 = vlaneseq
      %v2808 = vshrl.u32 %v2807, 7
      %v2809 = vsub.s32 0, %v2808
      %v2810 = vrot.slane %v2793, %v2809
      %v2812 = vmul.f32 %v2805, %v2810
      %v2814 = vlaneseq
      %v2815 = vshrl.u32 %v2814, 7
      %v2816 = vsub.s32 0, %v2815
      %v2817 = vrot.slane %v2794, %v2816
      %v2819 = vadd.f32 %v2812, %v2817
      %v2820 = vld [vmem:[%s13] sm:$0xff]
      %v2821 = vld [vmem:[%s13 + $0x8] sm:$0xff]
      %v2822 = vld [vmem:[%s13 + $0x10] sm:$0xff]
      %v2823 = vld [vmem:[%s13 + $0x18] sm:$0xff]
      %v2824 = vld [vmem:[%s13 + $0x20] sm:$0xff]
      %v2825 = vld [vmem:[%s13 + $0x28] sm:$0xff]
      %v2826 = vld [vmem:[%s13 + $0x30] sm:$0xff]
      %v2827 = vld [vmem:[%s13 + $0x38] sm:$0xff]
      %v2828 = vld [vmem:[%s13 + $0x40] sm:$0xff]
      %v2829 = vld [vmem:[%s13 + $0x48] sm:$0xff]
      %v2830 = vld [vmem:[%s13 + $0x50] sm:$0xff]
      %v2831 = vld [vmem:[%s13 + $0x58] sm:$0xff]
      %v2832 = vld [vmem:[%s13 + $0x60] sm:$0xff]
      %v2833 = vld [vmem:[%s13 + $0x68] sm:$0xff]
      %v2834 = vld [vmem:[%s13 + $0x70] sm:$0xff]
      %v2835 = vld [vmem:[%s13 + $0x78] sm:$0xff]
      %v2836 = vld [vmem:[%s14] sm:$0x3]
      %v2837 = vld [vmem:[%s15] sm:$0xf]
      %v2838 = vld [vmem:[%s15 + $0x4] sm:$0xf]
      %v2839 = vld [vmem:[%s15 + $0x8] sm:$0xf]
      %v2840 = vld [vmem:[%s15 + $0xc] sm:$0xf]
      %v2841 = vld [vmem:[%s15 + $0x10] sm:$0xf]
      %v2842 = vld [vmem:[%s15 + $0x14] sm:$0xf]
      %v2843 = vld [vmem:[%s15 + $0x18] sm:$0xf]
      %v2844 = vld [vmem:[%s15 + $0x1c] sm:$0xf]
      %v2845 = vld [vmem:[%s15 + $0x20] sm:$0xf]
      %v2846 = vld [vmem:[%s15 + $0x24] sm:$0xf]
      %v2847 = vld [vmem:[%s15 + $0x28] sm:$0xf]
      %v2848 = vld [vmem:[%s15 + $0x2c] sm:$0xf]
      %v2849 = vld [vmem:[%s15 + $0x30] sm:$0xf]
      %v2850 = vld [vmem:[%s15 + $0x34] sm:$0xf]
      %v2851 = vld [vmem:[%s15 + $0x38] sm:$0xf]
      %v2852 = vld [vmem:[%s15 + $0x3c] sm:$0xf]
      %v2853 = vld [vmem:[%s15 + $0x40] sm:$0xf]
      %v2854 = vld [vmem:[%s15 + $0x44] sm:$0xf]
      %v2855 = vld [vmem:[%s15 + $0x48] sm:$0xf]
      %v2856 = vld [vmem:[%s15 + $0x4c] sm:$0xf]
      %v2857 = vld [vmem:[%s15 + $0x50] sm:$0xf]
      %v2858 = vld [vmem:[%s15 + $0x54] sm:$0xf]
      %v2859 = vld [vmem:[%s15 + $0x58] sm:$0xf]
      %v2860 = vld [vmem:[%s15 + $0x5c] sm:$0xf]
      %v2861 = vld [vmem:[%s15 + $0x60] sm:$0xf]
      %v2862 = vld [vmem:[%s15 + $0x64] sm:$0xf]
      %v2863 = vld [vmem:[%s15 + $0x68] sm:$0xf]
      %v2864 = vld [vmem:[%s15 + $0x6c] sm:$0xf]
      %v2865 = vld [vmem:[%s15 + $0x70] sm:$0xf]
      %v2866 = vld [vmem:[%s15 + $0x74] sm:$0xf]
      %v2867 = vld [vmem:[%s15 + $0x78] sm:$0xf]
      %v2868 = vld [vmem:[%s15 + $0x7c] sm:$0xf]
      %v2869 = vld [vmem:[%s16] sm:$0x1]
      %v2870 = vpack.c.bf16 %v2819, %v2819
      %v2872 = vlaneseq
      %v2873 = vshrl.u32 %v2872, 7
      %v2874 = vsub.s32 0, %v2873
      %v2875 = vrot.slane %v2836, %v2874
      %v2876 = vlaneseq
      %v2877 = vshrl.u32 %v2876, 7
      %v2878 = vsub.s32 1, %v2877
      %v2879 = vrot.slane %v2836, %v2878
      %v2898 = vunpack.c.l.b16 %v2820
      %v2899 = vunpack.c.h.b16 %v2820
      %v2900 = vunpack.c.l.b16 %v2821
      %v2901 = vunpack.c.h.b16 %v2821
      %v2902 = vunpack.c.l.b16 %v2822
      %v2903 = vunpack.c.h.b16 %v2822
      %v2904 = vunpack.c.l.b16 %v2823
      %v2905 = vunpack.c.h.b16 %v2823
      %v2906 = vunpack.c.l.b16 %v2824
      %v2907 = vunpack.c.h.b16 %v2824
      %v2908 = vunpack.c.l.b16 %v2825
      %v2909 = vunpack.c.h.b16 %v2825
      %v2910 = vunpack.c.l.b16 %v2826
      %v2911 = vunpack.c.h.b16 %v2826
      %v2912 = vunpack.c.l.b16 %v2827
      %v2913 = vunpack.c.h.b16 %v2827
      %v2914 = vunpack.c.l.b16 %v2828
      %v2915 = vunpack.c.h.b16 %v2828
      %v2916 = vunpack.c.l.b16 %v2829
      %v2917 = vunpack.c.h.b16 %v2829
      %v2918 = vunpack.c.l.b16 %v2830
      %v2919 = vunpack.c.h.b16 %v2830
      %v2920 = vunpack.c.l.b16 %v2831
      %v2921 = vunpack.c.h.b16 %v2831
      %v2922 = vunpack.c.l.b16 %v2832
      %v2923 = vunpack.c.h.b16 %v2832
      %v2924 = vunpack.c.l.b16 %v2833
      %v2925 = vunpack.c.h.b16 %v2833
      %v2926 = vunpack.c.l.b16 %v2834
      %v2927 = vunpack.c.h.b16 %v2834
      %v2928 = vunpack.c.l.b16 %v2835
      %v2929 = vunpack.c.h.b16 %v2835
      %v2930 = vpack.c.b16 %v2900, %v2898
      %v2931 = vpack.c.b16 %v2901, %v2899
      %v2932 = vpack.c.b16 %v2904, %v2902
      %v2933 = vpack.c.b16 %v2905, %v2903
      %v2934 = vpack.c.b16 %v2908, %v2906
      %v2935 = vpack.c.b16 %v2909, %v2907
      %v2936 = vpack.c.b16 %v2912, %v2910
      %v2937 = vpack.c.b16 %v2913, %v2911
      %v2938 = vpack.c.b16 %v2916, %v2914
      %v2939 = vpack.c.b16 %v2917, %v2915
      %v2940 = vpack.c.b16 %v2920, %v2918
      %v2941 = vpack.c.b16 %v2921, %v2919
      %v2942 = vpack.c.b16 %v2924, %v2922
      %v2943 = vpack.c.b16 %v2925, %v2923
      %v2944 = vpack.c.b16 %v2928, %v2926
      %v2945 = vpack.c.b16 %v2929, %v2927
      %2962 = vmatprep.subr.bf16.mxu0 %v2945
      %2963 = vmatpush1.bf16.msra.mxu0 %v2944
      %2964 = vmatprep.subr.bf16.mxu0 %v2943
      %2965 = vmatpush1.bf16.msra.mxu0 %v2942
      %2966 = vmatprep.subr.bf16.mxu0 %v2941
      %2967 = vmatpush1.bf16.msra.mxu0 %v2940
      %2968 = vmatprep.subr.bf16.mxu0 %v2939
      %2969 = vmatpush1.bf16.msra.mxu0 %v2938
      %2970 = vmatprep.subr.bf16.mxu0 %v2937
      %2971 = vmatpush1.bf16.msra.mxu0 %v2936
      %2972 = vmatprep.subr.bf16.mxu0 %v2935
      %2973 = vmatpush1.bf16.msra.mxu0 %v2934
      %2974 = vmatprep.subr.bf16.mxu0 %v2933
      %2975 = vmatpush1.bf16.msra.mxu0 %v2932
      %2976 = vmatprep.subr.bf16.mxu0 %v2931
      %2977 = vmatpush1.bf16.msra.mxu0 %v2930
      %2978 = vmatprep.subr.bf16.mxu0 0
      %2979 = vmatpush2.bf16.msra.mxu0 0
      %2980 = vmatprep.subr.bf16.mxu0 0
      %2981 = vmatpush2.bf16.msra.mxu0 0
      %2982 = vmatprep.subr.bf16.mxu0 0
      %2983 = vmatpush2.bf16.msra.mxu0 0
      %2984 = vmatprep.subr.bf16.mxu0 0
      %2985 = vmatpush2.bf16.msra.mxu0 0
      %2986 = vmatprep.subr.bf16.mxu0 0
      %2987 = vmatpush2.bf16.msra.mxu0 0
      %2988 = vmatprep.subr.bf16.mxu0 0
      %2989 = vmatpush2.bf16.msra.mxu0 0
      %2990 = vmatprep.subr.bf16.mxu0 0
      %2991 = vmatpush2.bf16.msra.mxu0 0
      %2992 = vmatprep.subr.bf16.mxu0 0
      %2993 = vmatpush2.bf16.msra.mxu0 0
      %2994 = vmatprep.mubr.bf16.mxu0 0
      %2995 = vmatmul.mubr.bf16.gmra.mxu0 %v2870
      %v2996 = vpop.f32.mrf.mxu0
      %v2997 = vadd.f32 %v2875, %v2996
      %v2998 = vpop.f32.mrf.mxu0
      %v2999 = vadd.f32 %v2879, %v2998
      %v3000 = vpop.f32.mrf.mxu0
      %v3001 = vpop.f32.mrf.mxu0
      %3002 = vdwg.mxu0
      %v3003 = vmax.f32 %v2997, 0.0
      %v3004 = vmax.f32 %v2999, 0.0
      %v3005 = vpack.c.bf16 %v3003, %v3003
      %v3006 = vpack.c.bf16 %v3004, %v3004
      %v3008 = vlaneseq
      %v3009 = vshrl.u32 %v3008, 7
      %v3010 = vsub.s32 0, %v3009
      %v3011 = vrot.slane %v2869, %v3010
      %v3045 = vunpack.c.l.b16 %v2837
      %v3046 = vunpack.c.l.b16 %v2838
      %v3047 = vunpack.c.l.b16 %v2839
      %v3048 = vunpack.c.l.b16 %v2840
      %v3049 = vunpack.c.l.b16 %v2841
      %v3050 = vunpack.c.l.b16 %v2842
      %v3051 = vunpack.c.l.b16 %v2843
      %v3052 = vunpack.c.l.b16 %v2844
      %v3053 = vunpack.c.l.b16 %v2845
      %v3054 = vunpack.c.l.b16 %v2846
      %v3055 = vunpack.c.l.b16 %v2847
      %v3056 = vunpack.c.l.b16 %v2848
      %v3057 = vunpack.c.l.b16 %v2849
      %v3058 = vunpack.c.l.b16 %v2850
      %v3059 = vunpack.c.l.b16 %v2851
      %v3060 = vunpack.c.l.b16 %v2852
      %v3061 = vunpack.c.l.b16 %v2853
      %v3062 = vunpack.c.l.b16 %v2854
      %v3063 = vunpack.c.l.b16 %v2855
      %v3064 = vunpack.c.l.b16 %v2856
      %v3065 = vunpack.c.l.b16 %v2857
      %v3066 = vunpack.c.l.b16 %v2858
      %v3067 = vunpack.c.l.b16 %v2859
      %v3068 = vunpack.c.l.b16 %v2860
      %v3069 = vunpack.c.l.b16 %v2861
      %v3070 = vunpack.c.l.b16 %v2862
      %v3071 = vunpack.c.l.b16 %v2863
      %v3072 = vunpack.c.l.b16 %v2864
      %v3073 = vunpack.c.l.b16 %v2865
      %v3074 = vunpack.c.l.b16 %v2866
      %v3075 = vunpack.c.l.b16 %v2867
      %v3076 = vunpack.c.l.b16 %v2868
      %v3077 = vpack.c.b16 %v3046, %v3045
      %v3078 = vpack.c.b16 %v3048, %v3047
      %v3079 = vpack.c.b16 %v3050, %v3049
      %v3080 = vpack.c.b16 %v3052, %v3051
      %v3081 = vpack.c.b16 %v3054, %v3053
      %v3082 = vpack.c.b16 %v3056, %v3055
      %v3083 = vpack.c.b16 %v3058, %v3057
      %v3084 = vpack.c.b16 %v3060, %v3059
      %v3085 = vpack.c.b16 %v3062, %v3061
      %v3086 = vpack.c.b16 %v3064, %v3063
      %v3087 = vpack.c.b16 %v3066, %v3065
      %v3088 = vpack.c.b16 %v3068, %v3067
      %v3089 = vpack.c.b16 %v3070, %v3069
      %v3090 = vpack.c.b16 %v3072, %v3071
      %v3091 = vpack.c.b16 %v3074, %v3073
      %v3092 = vpack.c.b16 %v3076, %v3075
      %3109 = vmatprep.subr.bf16.mxu0 0
      %3110 = vmatpush1.bf16.msra.mxu0 %v3084
      %3111 = vmatprep.subr.bf16.mxu0 0
      %3112 = vmatpush1.bf16.msra.mxu0 %v3083
      %3113 = vmatprep.subr.bf16.mxu0 0
      %3114 = vmatpush1.bf16.msra.mxu0 %v3082
      %3115 = vmatprep.subr.bf16.mxu0 0
      %3116 = vmatpush1.bf16.msra.mxu0 %v3081
      %3117 = vmatprep.subr.bf16.mxu0 0
      %3118 = vmatpush1.bf16.msra.mxu0 %v3080
      %3119 = vmatprep.subr.bf16.mxu0 0
      %3120 = vmatpush1.bf16.msra.mxu0 %v3079
      %3121 = vmatprep.subr.bf16.mxu0 0
      %3122 = vmatpush1.bf16.msra.mxu0 %v3078
      %3123 = vmatprep.subr.bf16.mxu0 0
      %3124 = vmatpush1.bf16.msra.mxu0 %v3077
      %3125 = vmatprep.subr.bf16.mxu0 0
      %3126 = vmatpush2.bf16.msra.mxu0 %v3092
      %3127 = vmatprep.subr.bf16.mxu0 0
      %3128 = vmatpush2.bf16.msra.mxu0 %v3091
      %3129 = vmatprep.subr.bf16.mxu0 0
      %3130 = vmatpush2.bf16.msra.mxu0 %v3090
      %3131 = vmatprep.subr.bf16.mxu0 0
      %3132 = vmatpush2.bf16.msra.mxu0 %v3089
      %3133 = vmatprep.subr.bf16.mxu0 0
      %3134 = vmatpush2.bf16.msra.mxu0 %v3088
      %3135 = vmatprep.subr.bf16.mxu0 0
      %3136 = vmatpush2.bf16.msra.mxu0 %v3087
      %3137 = vmatprep.subr.bf16.mxu0 0
      %3138 = vmatpush2.bf16.msra.mxu0 %v3086
      %3139 = vmatprep.subr.bf16.mxu0 0
      %3140 = vmatpush2.bf16.msra.mxu0 %v3085
      %3141 = vmatprep.mubr.bf16.mxu0 %v3006
      %3142 = vmatmul.mubr.bf16.gmra.mxu0 %v3005
      %v3143 = vpop.f32.mrf.mxu0
      %v3144 = vadd.f32 %v3011, %v3143
      %v3145 = vpop.f32.mrf.mxu0
      %v3146 = vpop.f32.mrf.mxu0
      %v3147 = vpop.f32.mrf.mxu0
      %3148 = vdwg.mxu0
      %v3149 = vadd.f32 %v2819, %v3144
      %v3150 = vld [vmem:[%s21] sm:$0x1]
      %v3151 = vld [vmem:[%s22] sm:$0x1]
      %3152 = vadd.xlane.f32.xlu0 %v3149
      %v3153 = vpop.xlane.xlu0 %3152
      %v3154 = vmul.f32 %v3153, %v1778
      %v3155 = vsub.f32 %v3149, %v3154
      %v3156 = vmul.f32 %v3155, %v3155
      %3157 = vadd.xlane.f32.xlu0 %v3156
      %v3158 = vpop.xlane.xlu0 %3157
      %v3159 = vmul.f32 %v3158, %v1778
      %v3160 = vadd.f32 %v3159, 1e-05
      %v3161 = vrsqrt.pop %v3160
      %v3162 = vmul.f32 %v3155, %v3161
      %v3164 = vlaneseq
      %v3165 = vshrl.u32 %v3164, 7
      %v3166 = vsub.s32 0, %v3165
      %v3167 = vrot.slane %v3150, %v3166
      %v3169 = vmul.f32 %v3162, %v3167
      %v3171 = vlaneseq
      %v3172 = vshrl.u32 %v3171, 7
      %v3173 = vsub.s32 0, %v3172
      %v3174 = vrot.slane %v3151, %v3173
      %v3176 = vadd.f32 %v3169, %v3174
      %v3177 = vpack.c.bf16 %v3176, %v3176
      %3178 = vst [vmem:[%s816] sm:$0xf] %v3177
      %p3179 = scmp.lt.s32.totalorder %s38, 1
      %s3180 = scalar_select %p3179, %s38, 1
      %p3181 = scmp.lt.s32.totalorder %s39, 0
      %s3182 = scalar_select %p3181, %s39, 0
      %s3183 = sadd.s32 %s3182, %s3180
      %s3184 = smul.addr %s3183, 4
      %s3185 = scalar_lea.vmem %s23, %s3184
      // Predicated region
      $region113: #{transformer_forward.17} parent=111 // pred_check
        %p3186 = pneg %p576
      $region114: #{transformer_forward.17} parent=111 // pred_check_branch
        %3188 = sbr.rel (%p3186) target = $region116
      $region115: #{transformer_forward.17} parent=111 // pred_region
        _
      $region116: #{transformer_forward.17} parent=111 // pred_fallthru
        _
    $region112: #{transformer_forward.17} parent=5 // pred_fallthru
      _
    %p3189 = scmp.le.s32.totalorder 2, %s29
    // Predicated region
    $region117: #{transformer_forward.17} parent=5 // pred_check
      %p3190 = pneg %p3189
    $region118: #{transformer_forward.17} parent=5 // pred_check_branch
      %3192 = sbr.rel (%p3190) target = $region120
    $region119: #{transformer_forward.17} parent=5 // pred_region
      %s3193 = ssub.s32 %s29, 2
      // Predicated region
      $region121: #{transformer_forward.17} parent=119 // pred_check
        %p3194 = pneg %p582
      $region122: #{transformer_forward.17} parent=119 // pred_check_branch
        %3196 = sbr.rel (%p3194) target = $region124
      $region123: #{transformer_forward.17} parent=119 // pred_region
        %p3197 = scmp.lt.s32.totalorder %s40, 1
        %s3198 = scalar_select %p3197, %s40, 1
        %p3199 = scmp.lt.s32.totalorder %s41, 0
        %s3200 = scalar_select %p3199, %s41, 0
        %s3201 = sadd.s32 %s3200, %s3198
        %s3202 = smul.addr %s3201, 4
        %s3203 = scalar_lea.vmem %s23, %s3202
      $region124: #{transformer_forward.17} parent=119 // pred_fallthru
        _
    $region120: #{transformer_forward.17} parent=5 // pred_fallthru
      _
  $region6: #{transformer_forward.17} parent=0 // loop_footer
    %s33 = sadd.s32 1, %s29
  $region7: #{transformer_forward.17} parent=0 // loop_footer_branch
    %28 = sbr.rel target = $region3
  $region8: #{transformer_forward.17} parent=0 // loop_exit
    _

</llo_original>
